<compile_context>
chip_gen: v7x
topology: tpu7x:2x2x1
jax: 0.10.0
libtpu: 0.0.40
codegen_flags: <defaults>
</compile_context>

<pallas_src>
import functools

import jax
import jax.numpy as jnp
from jax.experimental import pallas as pl
from jax.experimental.pallas import tpu as pltpu

# ---------------- config (small, self-consistent, lane-friendly) ----------------
IMG_SIZE = 32
PATCH = 8
IN_CHANS = 3
EMBED_DIM = 256                         # lane-dense (2 x 128-lane tiles)
NUM_HEADS = 2
HEAD_DIM = EMBED_DIM // NUM_HEADS       # 128  -> head slices are lane-tile aligned
MLP_HIDDEN = 4 * EMBED_DIM              # 1024
DEPTH = 2
HEAD_MLP_HIDDEN = 256                   # optional `mlp` head (Linear-ReLU-Linear)
NUM_TOKENS = (IMG_SIZE // PATCH) ** 2   # 16 tokens per image
EPS = 1e-6

# 1 => fold the whole batch into one grid step (best for single-TC v5e/v6e).
# On v7x with larger batches, set to 2 so each TensorCore gets B/2 images
# flattened into one (B/2 * T, D) activation slab.
NUM_BATCH_CHUNKS = 1


# ---------------- single fused kernel ----------------
def _fused_vit_kernel(patches_ref, pw_ref, pb_ref, pos_ref,
                      ln1w_ref, ln1b_ref, wqkv_ref, bqkv_ref,
                      wproj_ref, bproj_ref, ln2w_ref, ln2b_ref,
                      wfc1_ref, bfc1_ref, wfc2_ref, bfc2_ref,
                      flnw_ref, flnb_ref, *rest, bs, use_mlp):
    """Whole ViT forward for `bs` images (tokens flattened to bs*T rows)."""
    if use_mlp:
        mw1_ref, mb1_ref, mw2_ref, mb2_ref, o_ref = rest
    else:
        (o_ref,) = rest

    D = EMBED_DIM
    T = NUM_TOKENS
    scale = 1.0 / (HEAD_DIM ** 0.5)

    def layernorm(v, w, b):
        mu = jnp.mean(v, axis=-1, keepdims=True)
        var = jnp.mean((v - mu) ** 2, axis=-1, keepdims=True)
        return (v - mu) * jax.lax.rsqrt(var + EPS) * w + b

    def mm(a, w_bf16, bias_f32):
        # bf16 MXU inputs, f32 accumulation; elementwise math stays f32.
        return jnp.dot(a.astype(jnp.bfloat16), w_bf16,
                       preferred_element_type=jnp.float32) + bias_f32

    # ---- patch embedding + positional embedding ----
    x = mm(patches_ref[...], pw_ref[...], pb_ref[...]) + pos_ref[...]   # (bs*T, D) f32

    for d in range(DEPTH):                      # static unroll (toy depth)
        # ---- attention: ONE fused lane-dense QKV matmul ----
        h = layernorm(x, ln1w_ref[d], ln1b_ref[d]).astype(jnp.bfloat16)
        qkv = (jnp.dot(h, wqkv_ref[d], preferred_element_type=jnp.float32)
               + bqkv_ref[d]).astype(jnp.bfloat16)                      # (bs*T, 3D), bf16 once
        q = qkv[:, 0:D]
        k = qkv[:, D:2 * D]
        v = qkv[:, 2 * D:3 * D]

        # Per-image, per-head attention with 128-aligned slices.  Scores are
        # tiny (T x T) at this size; TODO(synk): flash-style K-tiling needed
        # for real RADIO token counts.
        o_rows = []
        for b in range(bs):
            r = slice(b * T, (b + 1) * T)
            head_outs = []
            for hd in range(NUM_HEADS):
                c = slice(hd * HEAD_DIM, (hd + 1) * HEAD_DIM)
                qh, kh, vh = q[r, c], k[r, c], v[r, c]
                s = jnp.einsum('qd,kd->qk', qh, kh,
                               preferred_element_type=jnp.float32) * scale
                s = s - jnp.max(s, axis=-1, keepdims=True)
                p = jnp.exp(s)
                p = p * pl.reciprocal(jnp.sum(p, axis=-1, keepdims=True),
                                      approx=True)
                head_outs.append(
                    jnp.dot(p.astype(jnp.bfloat16), vh,
                            preferred_element_type=jnp.float32
                            ).astype(jnp.bfloat16))                      # (T, Dh)
            o_rows.append(jnp.concatenate(head_outs, axis=-1))           # (T, D)
        o = jnp.concatenate(o_rows, axis=0)                              # (bs*T, D) bf16

        # single lane-dense (bs*T, D) @ (D, D) output projection
        x = x + jnp.dot(o, wproj_ref[d],
                        preferred_element_type=jnp.float32) + bproj_ref[d]

        # ---- MLP ----
        h2 = mm(layernorm(x, ln2w_ref[d], ln2b_ref[d]), wfc1_ref[d], bfc1_ref[d])
        # TODO(synk): PyTorch nn.GELU default is exact erf; tanh approximation used here.
        h2 = jax.nn.gelu(h2, approximate=True)
        x = x + mm(h2, wfc2_ref[d], bfc2_ref[d])

    # ---- final LayerNorm (fused, no HBM round trip) ----
    x = layernorm(x, flnw_ref[...], flnb_ref[...])

    # ---- optional per-token MLP head (Linear-ReLU-Linear), fused ----
    if use_mlp:
        h3 = mm(x, mw1_ref[...], mb1_ref[...])
        h3 = jnp.maximum(h3, 0.0)
        x = mm(h3, mw2_ref[...], mb2_ref[...])

    o_ref[...] = x


# ---------------- Pallas wrapper ----------------
def fused_vit_pallas(patches_flat, pos_tiled, kp, use_mlp=True,
                     num_chunks=NUM_BATCH_CHUNKS):
    TT_total, PC = patches_flat.shape
    assert TT_total % (num_chunks * NUM_TOKENS) == 0
    tt = TT_total // num_chunks                 # tokens per grid step
    bs = tt // NUM_TOKENS                       # images per grid step

    args = [patches_flat, kp['patch_w'], kp['patch_b'], pos_tiled,
            kp['ln1_w'], kp['ln1_b'], kp['w_qkv'], kp['b_qkv'],
            kp['w_proj'], kp['b_proj'], kp['ln2_w'], kp['ln2_b'],
            kp['w_fc1'], kp['b_fc1'], kp['w_fc2'], kp['b_fc2'],
            kp['final_ln_w'], kp['final_ln_b']]
    if use_mlp:
        # only DMA the head-MLP weights when they are actually used
        args += [kp['mlp_w1'], kp['mlp_b1'], kp['mlp_w2'], kp['mlp_b2']]

    def full_spec(a):
        nd = a.ndim
        return pl.BlockSpec(a.shape, lambda c, _nd=nd: (0,) * _nd)

    in_specs = []
    for i, a in enumerate(args):
        if i == 0:      # patches: chunked over the flattened token axis
            in_specs.append(pl.BlockSpec((tt, PC), lambda c: (c, 0)))
        elif i == 3:    # tiled positional embedding: chunked the same way
            in_specs.append(pl.BlockSpec((tt, EMBED_DIM), lambda c: (c, 0)))
        else:           # weights: fully VMEM-resident
            in_specs.append(full_spec(a))

    return pl.pallas_call(
        functools.partial(_fused_vit_kernel, bs=bs, use_mlp=use_mlp),
        grid=(num_chunks,),
        in_specs=in_specs,
        # lane-dense (tt, D) output; NCHW transpose stays outside the kernel
        out_specs=pl.BlockSpec((tt, EMBED_DIM), lambda c: (c, 0)),
        out_shape=jax.ShapeDtypeStruct((TT_total, EMBED_DIM), jnp.float32),
        compiler_params=pltpu.CompilerParams(
            dimension_semantics=("parallel",),
            vmem_limit_bytes=32 * 1024 * 1024),
    )(*args)


# ---------------- parameter init + host-side kernel-layout prep ----------------
def init_params(key):
    keys = iter(jax.random.split(key, 32))

    def rand(shape, scale=0.02):
        return (scale * jax.random.normal(next(keys), shape)).astype(jnp.float32)

    P = PATCH * PATCH * IN_CHANS
    params = {
        'patch_w': rand((P, EMBED_DIM)),
        'patch_b': jnp.zeros((EMBED_DIM,), jnp.float32),
        'pos_embed': rand((NUM_TOKENS, EMBED_DIM)),
        'final_ln_w': jnp.ones((EMBED_DIM,), jnp.float32),
        'final_ln_b': jnp.zeros((EMBED_DIM,), jnp.float32),
        'blocks': [],
        'mlp_w1': rand((EMBED_DIM, HEAD_MLP_HIDDEN)),
        'mlp_b1': jnp.zeros((HEAD_MLP_HIDDEN,), jnp.float32),
        'mlp_w2': rand((HEAD_MLP_HIDDEN, EMBED_DIM)),
        'mlp_b2': jnp.zeros((EMBED_DIM,), jnp.float32),
    }
    for _ in range(DEPTH):
        params['blocks'].append({
            'ln1_w': jnp.ones((1, EMBED_DIM), jnp.float32),
            'ln1_b': jnp.zeros((1, EMBED_DIM), jnp.float32),
            # original (D, 3D) layout; columns ordered [q | k | v], heads
            # contiguous 128-wide slices inside each part
            'w_qkv': rand((EMBED_DIM, 3 * EMBED_DIM)),
            'b_qkv': jnp.zeros((1, 3 * EMBED_DIM), jnp.float32),
            'w_proj': rand((EMBED_DIM, EMBED_DIM)),
            'b_proj': jnp.zeros((1, EMBED_DIM), jnp.float32),
            'ln2_w': jnp.ones((1, EMBED_DIM), jnp.float32),
            'ln2_b': jnp.zeros((1, EMBED_DIM), jnp.float32),
            'w_fc1': rand((EMBED_DIM, MLP_HIDDEN)),
            'b_fc1': jnp.zeros((1, MLP_HIDDEN), jnp.float32),
            'w_fc2': rand((MLP_HIDDEN, EMBED_DIM)),
            'b_fc2': jnp.zeros((1, EMBED_DIM), jnp.float32),
        })
    return params


def prepare_kernel_params(params):
    """Stack per-block params over depth and cast matmul weights to bf16
    (MXU-native).  Weight layouts stay in their natural (D, 3D)/(D, D) form;
    biases / LN / pos stay f32 and lane-dense."""
    blocks = params['blocks']

    def stack(name):
        return jnp.stack([b[name] for b in blocks], axis=0)

    bf16 = lambda a: a.astype(jnp.bfloat16)

    # TODO(synk): loading a real RADIO checkpoint requires permuting the Conv2d
    # patch-embed weight from (C, P, P) flattening to this (P, P, C) flattening.
    return dict(
        patch_w=bf16(params['patch_w']),
        patch_b=params['patch_b'][None, :],
        pos_embed=params['pos_embed'],
        ln1_w=stack('ln1_w'), ln1_b=stack('ln1_b'),
        w_qkv=bf16(stack('w_qkv')), b_qkv=stack('b_qkv'),        # (DEPTH,1,3D) lane-dense
        w_proj=bf16(stack('w_proj')), b_proj=stack('b_proj'),
        ln2_w=stack('ln2_w'), ln2_b=stack('ln2_b'),
        w_fc1=bf16(stack('w_fc1')), b_fc1=stack('b_fc1'),
        w_fc2=bf16(stack('w_fc2')), b_fc2=stack('b_fc2'),
        final_ln_w=params['final_ln_w'][None, :],
        final_ln_b=params['final_ln_b'][None, :],
        mlp_w1=bf16(params['mlp_w1']), mlp_b1=params['mlp_b1'][None, :],
        mlp_w2=bf16(params['mlp_w2']), mlp_b2=params['mlp_b2'][None, :],
    )


# ---------------- forward (mirrors RadioBackbone.forward) ----------------
def radio_backbone_forward(x, kparams, use_mlp=True):
    B, Cin, H, W = x.shape
    Hp, Wp = H // PATCH, W // PATCH
    T = Hp * Wp

    # patchify (cheap glue reshapes) and flatten batch into the token axis;
    # cast to bf16 for the MXU patch-embed matmul
    patches = x.reshape(B, Cin, Hp, PATCH, Wp, PATCH)
    patches = patches.transpose(0, 2, 4, 3, 5, 1).reshape(B * T, PATCH * PATCH * Cin)
    patches = patches.astype(jnp.bfloat16)

    # positional embedding replicated per image so the kernel works on the
    # flattened (B*T, D) token slab directly
    pos_tiled = jnp.tile(kparams['pos_embed'], (B, 1))

    # ONE fused kernel: patch-embed -> DEPTH blocks -> final LN -> head MLP
    tokens = fused_vit_pallas(patches, pos_tiled, kparams, use_mlp=use_mlp)  # (B*T, D)

    # positional features NCHW — single transpose at the very end (the PyTorch
    # NCHW -> tokens -> NCHW permute pair around the head MLP cancels exactly).
    tokens = tokens.reshape(B, T, EMBED_DIM)
    pos_feats = tokens.transpose(0, 2, 1).reshape(B, EMBED_DIM, Hp, Wp)
    return pos_feats


if __name__ == "__main__":
    key = jax.random.PRNGKey(0)
    pkey, xkey = jax.random.split(key)
    params = init_params(pkey)
    kparams = prepare_kernel_params(params)

    x = jax.random.normal(xkey, (2, IN_CHANS, IMG_SIZE, IMG_SIZE), dtype=jnp.float32)

    fwd = jax.jit(functools.partial(radio_backbone_forward,
                                    kparams=kparams, use_mlp=True))
    out = jax.block_until_ready(fwd(x))

    expected = (2, EMBED_DIM, IMG_SIZE // PATCH, IMG_SIZE // PATCH)
    assert out.shape == expected, (out.shape, expected)
    assert out.dtype == jnp.float32
    assert bool(jnp.all(jnp.isfinite(out)))
    print("KERNEL_OK")
</pallas_src>

<mosaic_0001>
module attributes {stable_mosaic.version = 11 : i64} {
  func.func @_fused_vit_kernel(%arg0: i32, %arg1: memref<32x192xbf16, #tpu.memory_space<vmem>>, %arg2: memref<192x256xbf16, #tpu.memory_space<vmem>>, %arg3: memref<1x256xf32, #tpu.memory_space<vmem>>, %arg4: memref<32x256xf32, #tpu.memory_space<vmem>>, %arg5: memref<2x1x256xf32, #tpu.memory_space<vmem>>, %arg6: memref<2x1x256xf32, #tpu.memory_space<vmem>>, %arg7: memref<2x256x768xbf16, #tpu.memory_space<vmem>>, %arg8: memref<2x1x768xf32, #tpu.memory_space<vmem>>, %arg9: memref<2x256x256xbf16, #tpu.memory_space<vmem>>, %arg10: memref<2x1x256xf32, #tpu.memory_space<vmem>>, %arg11: memref<2x1x256xf32, #tpu.memory_space<vmem>>, %arg12: memref<2x1x256xf32, #tpu.memory_space<vmem>>, %arg13: memref<2x256x1024xbf16, #tpu.memory_space<vmem>>, %arg14: memref<2x1x1024xf32, #tpu.memory_space<vmem>>, %arg15: memref<2x1024x256xbf16, #tpu.memory_space<vmem>>, %arg16: memref<2x1x256xf32, #tpu.memory_space<vmem>>, %arg17: memref<1x256xf32, #tpu.memory_space<vmem>>, %arg18: memref<1x256xf32, #tpu.memory_space<vmem>>, %arg19: memref<256x256xbf16, #tpu.memory_space<vmem>>, %arg20: memref<1x256xf32, #tpu.memory_space<vmem>>, %arg21: memref<256x256xbf16, #tpu.memory_space<vmem>>, %arg22: memref<1x256xf32, #tpu.memory_space<vmem>>, %arg23: memref<32x256xf32, #tpu.memory_space<vmem>>) attributes {dimension_semantics = [#tpu.dimension_semantics<parallel>], iteration_bounds = array<i64: 1>, scalar_prefetch = 0 : i64, scratch_operands = 0 : i64, tpu.core_type = #tpu.core_type<tc>, window_params = [{transform_indices = @transform_0, window_bounds = array<i64: 32, 192>}, {pipeline_mode = #tpu.pipeline_mode<synchronous>, transform_indices = @transform_1, window_bounds = array<i64: 192, 256>}, {pipeline_mode = #tpu.pipeline_mode<synchronous>, transform_indices = @transform_2, window_bounds = array<i64: 1, 256>}, {transform_indices = @transform_3, window_bounds = array<i64: 32, 256>}, {pipeline_mode = #tpu.pipeline_mode<synchronous>, transform_indices = @transform_4, window_bounds = array<i64: 2, 1, 256>}, {pipeline_mode = #tpu.pipeline_mode<synchronous>, transform_indices = @transform_5, window_bounds = array<i64: 2, 1, 256>}, {pipeline_mode = #tpu.pipeline_mode<synchronous>, transform_indices = @transform_6, window_bounds = array<i64: 2, 256, 768>}, {pipeline_mode = #tpu.pipeline_mode<synchronous>, transform_indices = @transform_7, window_bounds = array<i64: 2, 1, 768>}, {pipeline_mode = #tpu.pipeline_mode<synchronous>, transform_indices = @transform_8, window_bounds = array<i64: 2, 256, 256>}, {pipeline_mode = #tpu.pipeline_mode<synchronous>, transform_indices = @transform_9, window_bounds = array<i64: 2, 1, 256>}, {pipeline_mode = #tpu.pipeline_mode<synchronous>, transform_indices = @transform_10, window_bounds = array<i64: 2, 1, 256>}, {pipeline_mode = #tpu.pipeline_mode<synchronous>, transform_indices = @transform_11, window_bounds = array<i64: 2, 1, 256>}, {pipeline_mode = #tpu.pipeline_mode<synchronous>, transform_indices = @transform_12, window_bounds = array<i64: 2, 256, 1024>}, {pipeline_mode = #tpu.pipeline_mode<synchronous>, transform_indices = @transform_13, window_bounds = array<i64: 2, 1, 1024>}, {pipeline_mode = #tpu.pipeline_mode<synchronous>, transform_indices = @transform_14, window_bounds = array<i64: 2, 1024, 256>}, {pipeline_mode = #tpu.pipeline_mode<synchronous>, transform_indices = @transform_15, window_bounds = array<i64: 2, 1, 256>}, {pipeline_mode = #tpu.pipeline_mode<synchronous>, transform_indices = @transform_16, window_bounds = array<i64: 1, 256>}, {pipeline_mode = #tpu.pipeline_mode<synchronous>, transform_indices = @transform_17, window_bounds = array<i64: 1, 256>}, {pipeline_mode = #tpu.pipeline_mode<synchronous>, transform_indices = @transform_18, window_bounds = array<i64: 256, 256>}, {pipeline_mode = #tpu.pipeline_mode<synchronous>, transform_indices = @transform_19, window_bounds = array<i64: 1, 256>}, {pipeline_mode = #tpu.pipeline_mode<synchronous>, transform_indices = @transform_20, window_bounds = array<i64: 256, 256>}, {pipeline_mode = #tpu.pipeline_mode<synchronous>, transform_indices = @transform_21, window_bounds = array<i64: 1, 256>}, {transform_indices = @transform_22, window_bounds = array<i64: 32, 256>}]} {
    %c0 = arith.constant 0 : index
    %c0_0 = arith.constant 0 : index
    %0 = vector.load %arg1[%c0, %c0_0] : memref<32x192xbf16, #tpu.memory_space<vmem>>, vector<32x192xbf16>
    %c0_1 = arith.constant 0 : index
    %c0_2 = arith.constant 0 : index
    %1 = vector.load %arg2[%c0_1, %c0_2] : memref<192x256xbf16, #tpu.memory_space<vmem>>, vector<192x256xbf16>
    %c0_3 = arith.constant 0 : index
    %c0_4 = arith.constant 0 : index
    %2 = vector.load %arg3[%c0_3, %c0_4] : memref<1x256xf32, #tpu.memory_space<vmem>>, vector<1x256xf32>
    %cst = arith.constant dense<0.000000e+00> : vector<32x256xf32>
    %3 = tpu.matmul %0, %1, %cst {dimension_numbers = #tpu.dot_dimension_numbers<[1], [0], [0], [1], [0, 0, 1, 1], [], []>} : vector<32x192xbf16>, vector<192x256xbf16>, vector<32x256xf32> -> vector<32x256xf32>
    %4 = vector.broadcast %2 : vector<1x256xf32> to vector<32x256xf32>
    %5 = arith.addf %3, %4 : vector<32x256xf32>
    %c0_5 = arith.constant 0 : index
    %c0_6 = arith.constant 0 : index
    %6 = vector.load %arg4[%c0_5, %c0_6] : memref<32x256xf32, #tpu.memory_space<vmem>>, vector<32x256xf32>
    %7 = arith.addf %5, %6 : vector<32x256xf32>
    %c0_7 = arith.constant 0 : index
    %c0_8 = arith.constant 0 : index
    %c0_9 = arith.constant 0 : index
    %8 = vector.load %arg5[%c0_7, %c0_8, %c0_9] : memref<2x1x256xf32, #tpu.memory_space<vmem>>, vector<1x1x256xf32>
    %9 = vector.shape_cast %8 : vector<1x1x256xf32> to vector<1x256xf32>
    %c0_10 = arith.constant 0 : index
    %c0_11 = arith.constant 0 : index
    %c0_12 = arith.constant 0 : index
    %10 = vector.load %arg6[%c0_10, %c0_11, %c0_12] : memref<2x1x256xf32, #tpu.memory_space<vmem>>, vector<1x1x256xf32>
    %11 = vector.shape_cast %10 : vector<1x1x256xf32> to vector<1x256xf32>
    %cst_13 = arith.constant dense<0.000000e+00> : vector<32xf32>
    %12 = vector.multi_reduction <add>, %7, %cst_13 [1] : vector<32x256xf32> to vector<32xf32>
    %13 = vector.shape_cast %12 : vector<32xf32> to vector<32x1xf32>
    %cst_14 = arith.constant 2.560000e+02 : f32
    %14 = vector.broadcast %cst_14 : f32 to vector<32x1xf32>
    %15 = arith.divf %13, %14 : vector<32x1xf32>
    %16 = vector.broadcast %15 : vector<32x1xf32> to vector<32x256xf32>
    %17 = arith.subf %7, %16 : vector<32x256xf32>
    %18 = arith.mulf %17, %17 : vector<32x256xf32>
    %cst_15 = arith.constant dense<0.000000e+00> : vector<32xf32>
    %19 = vector.multi_reduction <add>, %18, %cst_15 [1] : vector<32x256xf32> to vector<32xf32>
    %20 = vector.shape_cast %19 : vector<32xf32> to vector<32x1xf32>
    %cst_16 = arith.constant 2.560000e+02 : f32
    %21 = vector.broadcast %cst_16 : f32 to vector<32x1xf32>
    %22 = arith.divf %20, %21 : vector<32x1xf32>
    %23 = vector.broadcast %15 : vector<32x1xf32> to vector<32x256xf32>
    %24 = arith.subf %7, %23 : vector<32x256xf32>
    %cst_17 = arith.constant 9.99999997E-7 : f32
    %25 = vector.broadcast %cst_17 : f32 to vector<32x1xf32>
    %26 = arith.addf %22, %25 : vector<32x1xf32>
    %27 = math.rsqrt %26 : vector<32x1xf32>
    %28 = vector.broadcast %27 : vector<32x1xf32> to vector<32x256xf32>
    %29 = arith.mulf %24, %28 : vector<32x256xf32>
    %30 = vector.broadcast %9 : vector<1x256xf32> to vector<32x256xf32>
    %31 = arith.mulf %29, %30 : vector<32x256xf32>
    %32 = vector.broadcast %11 : vector<1x256xf32> to vector<32x256xf32>
    %33 = arith.addf %31, %32 : vector<32x256xf32>
    %34 = arith.truncf %33 : vector<32x256xf32> to vector<32x256xbf16>
    %c0_18 = arith.constant 0 : index
    %c0_19 = arith.constant 0 : index
    %c0_20 = arith.constant 0 : index
    %35 = vector.load %arg7[%c0_18, %c0_19, %c0_20] : memref<2x256x768xbf16, #tpu.memory_space<vmem>>, vector<1x256x768xbf16>
    %36 = vector.shape_cast %35 : vector<1x256x768xbf16> to vector<256x768xbf16>
    %cst_21 = arith.constant dense<0.000000e+00> : vector<32x768xf32>
    %37 = tpu.matmul %34, %36, %cst_21 {dimension_numbers = #tpu.dot_dimension_numbers<[1], [0], [0], [1], [0, 0, 1, 1], [], []>} : vector<32x256xbf16>, vector<256x768xbf16>, vector<32x768xf32> -> vector<32x768xf32>
    %c0_22 = arith.constant 0 : index
    %c0_23 = arith.constant 0 : index
    %c0_24 = arith.constant 0 : index
    %38 = vector.load %arg8[%c0_22, %c0_23, %c0_24] : memref<2x1x768xf32, #tpu.memory_space<vmem>>, vector<1x1x768xf32>
    %39 = vector.shape_cast %38 : vector<1x1x768xf32> to vector<1x768xf32>
    %40 = vector.broadcast %39 : vector<1x768xf32> to vector<32x768xf32>
    %41 = arith.addf %37, %40 : vector<32x768xf32>
    %42 = arith.truncf %41 : vector<32x768xf32> to vector<32x768xbf16>
    %43 = vector.extract_strided_slice %42 {offsets = [0, 0], sizes = [32, 256], strides = [1, 1]} : vector<32x768xbf16> to vector<32x256xbf16>
    %44 = vector.extract_strided_slice %42 {offsets = [0, 256], sizes = [32, 256], strides = [1, 1]} : vector<32x768xbf16> to vector<32x256xbf16>
    %45 = vector.extract_strided_slice %42 {offsets = [0, 512], sizes = [32, 256], strides = [1, 1]} : vector<32x768xbf16> to vector<32x256xbf16>
    %46 = vector.extract_strided_slice %43 {offsets = [0, 0], sizes = [16, 128], strides = [1, 1]} : vector<32x256xbf16> to vector<16x128xbf16>
    %47 = vector.extract_strided_slice %44 {offsets = [0, 0], sizes = [16, 128], strides = [1, 1]} : vector<32x256xbf16> to vector<16x128xbf16>
    %48 = vector.extract_strided_slice %45 {offsets = [0, 0], sizes = [16, 128], strides = [1, 1]} : vector<32x256xbf16> to vector<16x128xbf16>
    "tpu.trace_start"() <{level = 10 : i32, message = "qd,kd->qk"}> : () -> ()
    %cst_25 = arith.constant dense<0.000000e+00> : vector<16x16xf32>
    %49 = tpu.matmul %46, %47, %cst_25 {dimension_numbers = #tpu.dot_dimension_numbers<[1], [1], [0], [0], [0, 0, 1, 0], [], []>} : vector<16x128xbf16>, vector<16x128xbf16>, vector<16x16xf32> -> vector<16x16xf32>
    "tpu.trace_stop"() : () -> ()
    %cst_26 = arith.constant 0.0883883461 : f32
    %50 = vector.broadcast %cst_26 : f32 to vector<16x16xf32>
    %51 = arith.mulf %49, %50 : vector<16x16xf32>
    %cst_27 = arith.constant dense<0xFF800000> : vector<16xf32>
    %52 = vector.multi_reduction <maximumf>, %51, %cst_27 [1] : vector<16x16xf32> to vector<16xf32>
    %53 = vector.shape_cast %52 : vector<16xf32> to vector<16x1xf32>
    %54 = vector.broadcast %53 : vector<16x1xf32> to vector<16x16xf32>
    %55 = arith.subf %51, %54 : vector<16x16xf32>
    %56 = math.exp %55 : vector<16x16xf32>
    %cst_28 = arith.constant dense<0.000000e+00> : vector<16xf32>
    %57 = vector.multi_reduction <add>, %56, %cst_28 [1] : vector<16x16xf32> to vector<16xf32>
    %58 = vector.shape_cast %57 : vector<16xf32> to vector<16x1xf32>
    %59 = tpu.reciprocal %58 {approx = true} : vector<16x1xf32> -> vector<16x1xf32>
    %60 = vector.broadcast %59 : vector<16x1xf32> to vector<16x16xf32>
    %61 = arith.mulf %56, %60 : vector<16x16xf32>
    %62 = arith.truncf %61 : vector<16x16xf32> to vector<16x16xbf16>
    %cst_29 = arith.constant dense<0.000000e+00> : vector<16x128xf32>
    %63 = tpu.matmul %62, %48, %cst_29 {dimension_numbers = #tpu.dot_dimension_numbers<[1], [0], [0], [1], [0, 0, 1, 1], [], []>} : vector<16x16xbf16>, vector<16x128xbf16>, vector<16x128xf32> -> vector<16x128xf32>
    %64 = arith.truncf %63 : vector<16x128xf32> to vector<16x128xbf16>
    %65 = vector.extract_strided_slice %43 {offsets = [0, 128], sizes = [16, 128], strides = [1, 1]} : vector<32x256xbf16> to vector<16x128xbf16>
    %66 = vector.extract_strided_slice %44 {offsets = [0, 128], sizes = [16, 128], strides = [1, 1]} : vector<32x256xbf16> to vector<16x128xbf16>
    %67 = vector.extract_strided_slice %45 {offsets = [0, 128], sizes = [16, 128], strides = [1, 1]} : vector<32x256xbf16> to vector<16x128xbf16>
    "tpu.trace_start"() <{level = 10 : i32, message = "qd,kd->qk"}> : () -> ()
    %cst_30 = arith.constant dense<0.000000e+00> : vector<16x16xf32>
    %68 = tpu.matmul %65, %66, %cst_30 {dimension_numbers = #tpu.dot_dimension_numbers<[1], [1], [0], [0], [0, 0, 1, 0], [], []>} : vector<16x128xbf16>, vector<16x128xbf16>, vector<16x16xf32> -> vector<16x16xf32>
    "tpu.trace_stop"() : () -> ()
    %cst_31 = arith.constant 0.0883883461 : f32
    %69 = vector.broadcast %cst_31 : f32 to vector<16x16xf32>
    %70 = arith.mulf %68, %69 : vector<16x16xf32>
    %cst_32 = arith.constant dense<0xFF800000> : vector<16xf32>
    %71 = vector.multi_reduction <maximumf>, %70, %cst_32 [1] : vector<16x16xf32> to vector<16xf32>
    %72 = vector.shape_cast %71 : vector<16xf32> to vector<16x1xf32>
    %73 = vector.broadcast %72 : vector<16x1xf32> to vector<16x16xf32>
    %74 = arith.subf %70, %73 : vector<16x16xf32>
    %75 = math.exp %74 : vector<16x16xf32>
    %cst_33 = arith.constant dense<0.000000e+00> : vector<16xf32>
    %76 = vector.multi_reduction <add>, %75, %cst_33 [1] : vector<16x16xf32> to vector<16xf32>
    %77 = vector.shape_cast %76 : vector<16xf32> to vector<16x1xf32>
    %78 = tpu.reciprocal %77 {approx = true} : vector<16x1xf32> -> vector<16x1xf32>
    %79 = vector.broadcast %78 : vector<16x1xf32> to vector<16x16xf32>
    %80 = arith.mulf %75, %79 : vector<16x16xf32>
    %81 = arith.truncf %80 : vector<16x16xf32> to vector<16x16xbf16>
    %cst_34 = arith.constant dense<0.000000e+00> : vector<16x128xf32>
    %82 = tpu.matmul %81, %67, %cst_34 {dimension_numbers = #tpu.dot_dimension_numbers<[1], [0], [0], [1], [0, 0, 1, 1], [], []>} : vector<16x16xbf16>, vector<16x128xbf16>, vector<16x128xf32> -> vector<16x128xf32>
    %83 = arith.truncf %82 : vector<16x128xf32> to vector<16x128xbf16>
    %84 = tpu.concatenate %64, %83 in 1 : vector<16x128xbf16>, vector<16x128xbf16> -> vector<16x256xbf16>
    %85 = vector.extract_strided_slice %43 {offsets = [16, 0], sizes = [16, 128], strides = [1, 1]} : vector<32x256xbf16> to vector<16x128xbf16>
    %86 = vector.extract_strided_slice %44 {offsets = [16, 0], sizes = [16, 128], strides = [1, 1]} : vector<32x256xbf16> to vector<16x128xbf16>
    %87 = vector.extract_strided_slice %45 {offsets = [16, 0], sizes = [16, 128], strides = [1, 1]} : vector<32x256xbf16> to vector<16x128xbf16>
    "tpu.trace_start"() <{level = 10 : i32, message = "qd,kd->qk"}> : () -> ()
    %cst_35 = arith.constant dense<0.000000e+00> : vector<16x16xf32>
    %88 = tpu.matmul %85, %86, %cst_35 {dimension_numbers = #tpu.dot_dimension_numbers<[1], [1], [0], [0], [0, 0, 1, 0], [], []>} : vector<16x128xbf16>, vector<16x128xbf16>, vector<16x16xf32> -> vector<16x16xf32>
    "tpu.trace_stop"() : () -> ()
    %cst_36 = arith.constant 0.0883883461 : f32
    %89 = vector.broadcast %cst_36 : f32 to vector<16x16xf32>
    %90 = arith.mulf %88, %89 : vector<16x16xf32>
    %cst_37 = arith.constant dense<0xFF800000> : vector<16xf32>
    %91 = vector.multi_reduction <maximumf>, %90, %cst_37 [1] : vector<16x16xf32> to vector<16xf32>
    %92 = vector.shape_cast %91 : vector<16xf32> to vector<16x1xf32>
    %93 = vector.broadcast %92 : vector<16x1xf32> to vector<16x16xf32>
    %94 = arith.subf %90, %93 : vector<16x16xf32>
    %95 = math.exp %94 : vector<16x16xf32>
    %cst_38 = arith.constant dense<0.000000e+00> : vector<16xf32>
    %96 = vector.multi_reduction <add>, %95, %cst_38 [1] : vector<16x16xf32> to vector<16xf32>
    %97 = vector.shape_cast %96 : vector<16xf32> to vector<16x1xf32>
    %98 = tpu.reciprocal %97 {approx = true} : vector<16x1xf32> -> vector<16x1xf32>
    %99 = vector.broadcast %98 : vector<16x1xf32> to vector<16x16xf32>
    %100 = arith.mulf %95, %99 : vector<16x16xf32>
    %101 = arith.truncf %100 : vector<16x16xf32> to vector<16x16xbf16>
    %cst_39 = arith.constant dense<0.000000e+00> : vector<16x128xf32>
    %102 = tpu.matmul %101, %87, %cst_39 {dimension_numbers = #tpu.dot_dimension_numbers<[1], [0], [0], [1], [0, 0, 1, 1], [], []>} : vector<16x16xbf16>, vector<16x128xbf16>, vector<16x128xf32> -> vector<16x128xf32>
    %103 = arith.truncf %102 : vector<16x128xf32> to vector<16x128xbf16>
    %104 = vector.extract_strided_slice %43 {offsets = [16, 128], sizes = [16, 128], strides = [1, 1]} : vector<32x256xbf16> to vector<16x128xbf16>
    %105 = vector.extract_strided_slice %44 {offsets = [16, 128], sizes = [16, 128], strides = [1, 1]} : vector<32x256xbf16> to vector<16x128xbf16>
    %106 = vector.extract_strided_slice %45 {offsets = [16, 128], sizes = [16, 128], strides = [1, 1]} : vector<32x256xbf16> to vector<16x128xbf16>
    "tpu.trace_start"() <{level = 10 : i32, message = "qd,kd->qk"}> : () -> ()
    %cst_40 = arith.constant dense<0.000000e+00> : vector<16x16xf32>
    %107 = tpu.matmul %104, %105, %cst_40 {dimension_numbers = #tpu.dot_dimension_numbers<[1], [1], [0], [0], [0, 0, 1, 0], [], []>} : vector<16x128xbf16>, vector<16x128xbf16>, vector<16x16xf32> -> vector<16x16xf32>
    "tpu.trace_stop"() : () -> ()
    %cst_41 = arith.constant 0.0883883461 : f32
    %108 = vector.broadcast %cst_41 : f32 to vector<16x16xf32>
    %109 = arith.mulf %107, %108 : vector<16x16xf32>
    %cst_42 = arith.constant dense<0xFF800000> : vector<16xf32>
    %110 = vector.multi_reduction <maximumf>, %109, %cst_42 [1] : vector<16x16xf32> to vector<16xf32>
    %111 = vector.shape_cast %110 : vector<16xf32> to vector<16x1xf32>
    %112 = vector.broadcast %111 : vector<16x1xf32> to vector<16x16xf32>
    %113 = arith.subf %109, %112 : vector<16x16xf32>
    %114 = math.exp %113 : vector<16x16xf32>
    %cst_43 = arith.constant dense<0.000000e+00> : vector<16xf32>
    %115 = vector.multi_reduction <add>, %114, %cst_43 [1] : vector<16x16xf32> to vector<16xf32>
    %116 = vector.shape_cast %115 : vector<16xf32> to vector<16x1xf32>
    %117 = tpu.reciprocal %116 {approx = true} : vector<16x1xf32> -> vector<16x1xf32>
    %118 = vector.broadcast %117 : vector<16x1xf32> to vector<16x16xf32>
    %119 = arith.mulf %114, %118 : vector<16x16xf32>
    %120 = arith.truncf %119 : vector<16x16xf32> to vector<16x16xbf16>
    %cst_44 = arith.constant dense<0.000000e+00> : vector<16x128xf32>
    %121 = tpu.matmul %120, %106, %cst_44 {dimension_numbers = #tpu.dot_dimension_numbers<[1], [0], [0], [1], [0, 0, 1, 1], [], []>} : vector<16x16xbf16>, vector<16x128xbf16>, vector<16x128xf32> -> vector<16x128xf32>
    %122 = arith.truncf %121 : vector<16x128xf32> to vector<16x128xbf16>
    %123 = tpu.concatenate %103, %122 in 1 : vector<16x128xbf16>, vector<16x128xbf16> -> vector<16x256xbf16>
    %124 = tpu.concatenate %84, %123 in 0 : vector<16x256xbf16>, vector<16x256xbf16> -> vector<32x256xbf16>
    %c0_45 = arith.constant 0 : index
    %c0_46 = arith.constant 0 : index
    %c0_47 = arith.constant 0 : index
    %125 = vector.load %arg9[%c0_45, %c0_46, %c0_47] : memref<2x256x256xbf16, #tpu.memory_space<vmem>>, vector<1x256x256xbf16>
    %126 = vector.shape_cast %125 : vector<1x256x256xbf16> to vector<256x256xbf16>
    %cst_48 = arith.constant dense<0.000000e+00> : vector<32x256xf32>
    %127 = tpu.matmul %124, %126, %cst_48 {dimension_numbers = #tpu.dot_dimension_numbers<[1], [0], [0], [1], [0, 0, 1, 1], [], []>} : vector<32x256xbf16>, vector<256x256xbf16>, vector<32x256xf32> -> vector<32x256xf32>
    %128 = arith.addf %7, %127 : vector<32x256xf32>
    %c0_49 = arith.constant 0 : index
    %c0_50 = arith.constant 0 : index
    %c0_51 = arith.constant 0 : index
    %129 = vector.load %arg10[%c0_49, %c0_50, %c0_51] : memref<2x1x256xf32, #tpu.memory_space<vmem>>, vector<1x1x256xf32>
    %130 = vector.shape_cast %129 : vector<1x1x256xf32> to vector<1x256xf32>
    %131 = vector.broadcast %130 : vector<1x256xf32> to vector<32x256xf32>
    %132 = arith.addf %128, %131 : vector<32x256xf32>
    %c0_52 = arith.constant 0 : index
    %c0_53 = arith.constant 0 : index
    %c0_54 = arith.constant 0 : index
    %133 = vector.load %arg11[%c0_52, %c0_53, %c0_54] : memref<2x1x256xf32, #tpu.memory_space<vmem>>, vector<1x1x256xf32>
    %134 = vector.shape_cast %133 : vector<1x1x256xf32> to vector<1x256xf32>
    %c0_55 = arith.constant 0 : index
    %c0_56 = arith.constant 0 : index
    %c0_57 = arith.constant 0 : index
    %135 = vector.load %arg12[%c0_55, %c0_56, %c0_57] : memref<2x1x256xf32, #tpu.memory_space<vmem>>, vector<1x1x256xf32>
    %136 = vector.shape_cast %135 : vector<1x1x256xf32> to vector<1x256xf32>
    %cst_58 = arith.constant dense<0.000000e+00> : vector<32xf32>
    %137 = vector.multi_reduction <add>, %132, %cst_58 [1] : vector<32x256xf32> to vector<32xf32>
    %138 = vector.shape_cast %137 : vector<32xf32> to vector<32x1xf32>
    %cst_59 = arith.constant 2.560000e+02 : f32
    %139 = vector.broadcast %cst_59 : f32 to vector<32x1xf32>
    %140 = arith.divf %138, %139 : vector<32x1xf32>
    %141 = vector.broadcast %140 : vector<32x1xf32> to vector<32x256xf32>
    %142 = arith.subf %132, %141 : vector<32x256xf32>
    %143 = arith.mulf %142, %142 : vector<32x256xf32>
    %cst_60 = arith.constant dense<0.000000e+00> : vector<32xf32>
    %144 = vector.multi_reduction <add>, %143, %cst_60 [1] : vector<32x256xf32> to vector<32xf32>
    %145 = vector.shape_cast %144 : vector<32xf32> to vector<32x1xf32>
    %cst_61 = arith.constant 2.560000e+02 : f32
    %146 = vector.broadcast %cst_61 : f32 to vector<32x1xf32>
    %147 = arith.divf %145, %146 : vector<32x1xf32>
    %148 = vector.broadcast %140 : vector<32x1xf32> to vector<32x256xf32>
    %149 = arith.subf %132, %148 : vector<32x256xf32>
    %cst_62 = arith.constant 9.99999997E-7 : f32
    %150 = vector.broadcast %cst_62 : f32 to vector<32x1xf32>
    %151 = arith.addf %147, %150 : vector<32x1xf32>
    %152 = math.rsqrt %151 : vector<32x1xf32>
    %153 = vector.broadcast %152 : vector<32x1xf32> to vector<32x256xf32>
    %154 = arith.mulf %149, %153 : vector<32x256xf32>
    %155 = vector.broadcast %134 : vector<1x256xf32> to vector<32x256xf32>
    %156 = arith.mulf %154, %155 : vector<32x256xf32>
    %157 = vector.broadcast %136 : vector<1x256xf32> to vector<32x256xf32>
    %158 = arith.addf %156, %157 : vector<32x256xf32>
    %c0_63 = arith.constant 0 : index
    %c0_64 = arith.constant 0 : index
    %c0_65 = arith.constant 0 : index
    %159 = vector.load %arg13[%c0_63, %c0_64, %c0_65] : memref<2x256x1024xbf16, #tpu.memory_space<vmem>>, vector<1x256x1024xbf16>
    %160 = vector.shape_cast %159 : vector<1x256x1024xbf16> to vector<256x1024xbf16>
    %c0_66 = arith.constant 0 : index
    %c0_67 = arith.constant 0 : index
    %c0_68 = arith.constant 0 : index
    %161 = vector.load %arg14[%c0_66, %c0_67, %c0_68] : memref<2x1x1024xf32, #tpu.memory_space<vmem>>, vector<1x1x1024xf32>
    %162 = vector.shape_cast %161 : vector<1x1x1024xf32> to vector<1x1024xf32>
    %163 = arith.truncf %158 : vector<32x256xf32> to vector<32x256xbf16>
    %cst_69 = arith.constant dense<0.000000e+00> : vector<32x1024xf32>
    %164 = tpu.matmul %163, %160, %cst_69 {dimension_numbers = #tpu.dot_dimension_numbers<[1], [0], [0], [1], [0, 0, 1, 1], [], []>} : vector<32x256xbf16>, vector<256x1024xbf16>, vector<32x1024xf32> -> vector<32x1024xf32>
    %165 = vector.broadcast %162 : vector<1x1024xf32> to vector<32x1024xf32>
    %166 = arith.addf %164, %165 : vector<32x1024xf32>
    %167 = arith.mulf %166, %166 : vector<32x1024xf32>
    %168 = arith.mulf %166, %167 : vector<32x1024xf32>
    %cst_70 = arith.constant 4.471500e-02 : f32
    %169 = vector.broadcast %cst_70 : f32 to vector<32x1024xf32>
    %170 = arith.mulf %169, %168 : vector<32x1024xf32>
    %171 = arith.addf %166, %170 : vector<32x1024xf32>
    %cst_71 = arith.constant 0.797884583 : f32
    %172 = vector.broadcast %cst_71 : f32 to vector<32x1024xf32>
    %173 = arith.mulf %172, %171 : vector<32x1024xf32>
    %174 = math.tanh %173 : vector<32x1024xf32>
    %cst_72 = arith.constant 1.000000e+00 : f32
    %175 = vector.broadcast %cst_72 : f32 to vector<32x1024xf32>
    %176 = arith.addf %175, %174 : vector<32x1024xf32>
    %cst_73 = arith.constant 5.000000e-01 : f32
    %177 = vector.broadcast %cst_73 : f32 to vector<32x1024xf32>
    %178 = arith.mulf %177, %176 : vector<32x1024xf32>
    %179 = arith.mulf %166, %178 : vector<32x1024xf32>
    %c0_74 = arith.constant 0 : index
    %c0_75 = arith.constant 0 : index
    %c0_76 = arith.constant 0 : index
    %180 = vector.load %arg15[%c0_74, %c0_75, %c0_76] : memref<2x1024x256xbf16, #tpu.memory_space<vmem>>, vector<1x1024x256xbf16>
    %181 = vector.shape_cast %180 : vector<1x1024x256xbf16> to vector<1024x256xbf16>
    %c0_77 = arith.constant 0 : index
    %c0_78 = arith.constant 0 : index
    %c0_79 = arith.constant 0 : index
    %182 = vector.load %arg16[%c0_77, %c0_78, %c0_79] : memref<2x1x256xf32, #tpu.memory_space<vmem>>, vector<1x1x256xf32>
    %183 = vector.shape_cast %182 : vector<1x1x256xf32> to vector<1x256xf32>
    %184 = arith.truncf %179 : vector<32x1024xf32> to vector<32x1024xbf16>
    %cst_80 = arith.constant dense<0.000000e+00> : vector<32x256xf32>
    %185 = tpu.matmul %184, %181, %cst_80 {dimension_numbers = #tpu.dot_dimension_numbers<[1], [0], [0], [1], [0, 0, 1, 1], [], []>} : vector<32x1024xbf16>, vector<1024x256xbf16>, vector<32x256xf32> -> vector<32x256xf32>
    %186 = vector.broadcast %183 : vector<1x256xf32> to vector<32x256xf32>
    %187 = arith.addf %185, %186 : vector<32x256xf32>
    %188 = arith.addf %132, %187 : vector<32x256xf32>
    %c1 = arith.constant 1 : index
    %c0_81 = arith.constant 0 : index
    %c0_82 = arith.constant 0 : index
    %189 = vector.load %arg5[%c1, %c0_81, %c0_82] : memref<2x1x256xf32, #tpu.memory_space<vmem>>, vector<1x1x256xf32>
    %190 = vector.shape_cast %189 : vector<1x1x256xf32> to vector<1x256xf32>
    %c1_83 = arith.constant 1 : index
    %c0_84 = arith.constant 0 : index
    %c0_85 = arith.constant 0 : index
    %191 = vector.load %arg6[%c1_83, %c0_84, %c0_85] : memref<2x1x256xf32, #tpu.memory_space<vmem>>, vector<1x1x256xf32>
    %192 = vector.shape_cast %191 : vector<1x1x256xf32> to vector<1x256xf32>
    %cst_86 = arith.constant dense<0.000000e+00> : vector<32xf32>
    %193 = vector.multi_reduction <add>, %188, %cst_86 [1] : vector<32x256xf32> to vector<32xf32>
    %194 = vector.shape_cast %193 : vector<32xf32> to vector<32x1xf32>
    %cst_87 = arith.constant 2.560000e+02 : f32
    %195 = vector.broadcast %cst_87 : f32 to vector<32x1xf32>
    %196 = arith.divf %194, %195 : vector<32x1xf32>
    %197 = vector.broadcast %196 : vector<32x1xf32> to vector<32x256xf32>
    %198 = arith.subf %188, %197 : vector<32x256xf32>
    %199 = arith.mulf %198, %198 : vector<32x256xf32>
    %cst_88 = arith.constant dense<0.000000e+00> : vector<32xf32>
    %200 = vector.multi_reduction <add>, %199, %cst_88 [1] : vector<32x256xf32> to vector<32xf32>
    %201 = vector.shape_cast %200 : vector<32xf32> to vector<32x1xf32>
    %cst_89 = arith.constant 2.560000e+02 : f32
    %202 = vector.broadcast %cst_89 : f32 to vector<32x1xf32>
    %203 = arith.divf %201, %202 : vector<32x1xf32>
    %204 = vector.broadcast %196 : vector<32x1xf32> to vector<32x256xf32>
    %205 = arith.subf %188, %204 : vector<32x256xf32>
    %cst_90 = arith.constant 9.99999997E-7 : f32
    %206 = vector.broadcast %cst_90 : f32 to vector<32x1xf32>
    %207 = arith.addf %203, %206 : vector<32x1xf32>
    %208 = math.rsqrt %207 : vector<32x1xf32>
    %209 = vector.broadcast %208 : vector<32x1xf32> to vector<32x256xf32>
    %210 = arith.mulf %205, %209 : vector<32x256xf32>
    %211 = vector.broadcast %190 : vector<1x256xf32> to vector<32x256xf32>
    %212 = arith.mulf %210, %211 : vector<32x256xf32>
    %213 = vector.broadcast %192 : vector<1x256xf32> to vector<32x256xf32>
    %214 = arith.addf %212, %213 : vector<32x256xf32>
    %215 = arith.truncf %214 : vector<32x256xf32> to vector<32x256xbf16>
    %c1_91 = arith.constant 1 : index
    %c0_92 = arith.constant 0 : index
    %c0_93 = arith.constant 0 : index
    %216 = vector.load %arg7[%c1_91, %c0_92, %c0_93] : memref<2x256x768xbf16, #tpu.memory_space<vmem>>, vector<1x256x768xbf16>
    %217 = vector.shape_cast %216 : vector<1x256x768xbf16> to vector<256x768xbf16>
    %cst_94 = arith.constant dense<0.000000e+00> : vector<32x768xf32>
    %218 = tpu.matmul %215, %217, %cst_94 {dimension_numbers = #tpu.dot_dimension_numbers<[1], [0], [0], [1], [0, 0, 1, 1], [], []>} : vector<32x256xbf16>, vector<256x768xbf16>, vector<32x768xf32> -> vector<32x768xf32>
    %c1_95 = arith.constant 1 : index
    %c0_96 = arith.constant 0 : index
    %c0_97 = arith.constant 0 : index
    %219 = vector.load %arg8[%c1_95, %c0_96, %c0_97] : memref<2x1x768xf32, #tpu.memory_space<vmem>>, vector<1x1x768xf32>
    %220 = vector.shape_cast %219 : vector<1x1x768xf32> to vector<1x768xf32>
    %221 = vector.broadcast %220 : vector<1x768xf32> to vector<32x768xf32>
    %222 = arith.addf %218, %221 : vector<32x768xf32>
    %223 = arith.truncf %222 : vector<32x768xf32> to vector<32x768xbf16>
    %224 = vector.extract_strided_slice %223 {offsets = [0, 0], sizes = [32, 256], strides = [1, 1]} : vector<32x768xbf16> to vector<32x256xbf16>
    %225 = vector.extract_strided_slice %223 {offsets = [0, 256], sizes = [32, 256], strides = [1, 1]} : vector<32x768xbf16> to vector<32x256xbf16>
    %226 = vector.extract_strided_slice %223 {offsets = [0, 512], sizes = [32, 256], strides = [1, 1]} : vector<32x768xbf16> to vector<32x256xbf16>
    %227 = vector.extract_strided_slice %224 {offsets = [0, 0], sizes = [16, 128], strides = [1, 1]} : vector<32x256xbf16> to vector<16x128xbf16>
    %228 = vector.extract_strided_slice %225 {offsets = [0, 0], sizes = [16, 128], strides = [1, 1]} : vector<32x256xbf16> to vector<16x128xbf16>
    %229 = vector.extract_strided_slice %226 {offsets = [0, 0], sizes = [16, 128], strides = [1, 1]} : vector<32x256xbf16> to vector<16x128xbf16>
    "tpu.trace_start"() <{level = 10 : i32, message = "qd,kd->qk"}> : () -> ()
    %cst_98 = arith.constant dense<0.000000e+00> : vector<16x16xf32>
    %230 = tpu.matmul %227, %228, %cst_98 {dimension_numbers = #tpu.dot_dimension_numbers<[1], [1], [0], [0], [0, 0, 1, 0], [], []>} : vector<16x128xbf16>, vector<16x128xbf16>, vector<16x16xf32> -> vector<16x16xf32>
    "tpu.trace_stop"() : () -> ()
    %cst_99 = arith.constant 0.0883883461 : f32
    %231 = vector.broadcast %cst_99 : f32 to vector<16x16xf32>
    %232 = arith.mulf %230, %231 : vector<16x16xf32>
    %cst_100 = arith.constant dense<0xFF800000> : vector<16xf32>
    %233 = vector.multi_reduction <maximumf>, %232, %cst_100 [1] : vector<16x16xf32> to vector<16xf32>
    %234 = vector.shape_cast %233 : vector<16xf32> to vector<16x1xf32>
    %235 = vector.broadcast %234 : vector<16x1xf32> to vector<16x16xf32>
    %236 = arith.subf %232, %235 : vector<16x16xf32>
    %237 = math.exp %236 : vector<16x16xf32>
    %cst_101 = arith.constant dense<0.000000e+00> : vector<16xf32>
    %238 = vector.multi_reduction <add>, %237, %cst_101 [1] : vector<16x16xf32> to vector<16xf32>
    %239 = vector.shape_cast %238 : vector<16xf32> to vector<16x1xf32>
    %240 = tpu.reciprocal %239 {approx = true} : vector<16x1xf32> -> vector<16x1xf32>
    %241 = vector.broadcast %240 : vector<16x1xf32> to vector<16x16xf32>
    %242 = arith.mulf %237, %241 : vector<16x16xf32>
    %243 = arith.truncf %242 : vector<16x16xf32> to vector<16x16xbf16>
    %cst_102 = arith.constant dense<0.000000e+00> : vector<16x128xf32>
    %244 = tpu.matmul %243, %229, %cst_102 {dimension_numbers = #tpu.dot_dimension_numbers<[1], [0], [0], [1], [0, 0, 1, 1], [], []>} : vector<16x16xbf16>, vector<16x128xbf16>, vector<16x128xf32> -> vector<16x128xf32>
    %245 = arith.truncf %244 : vector<16x128xf32> to vector<16x128xbf16>
    %246 = vector.extract_strided_slice %224 {offsets = [0, 128], sizes = [16, 128], strides = [1, 1]} : vector<32x256xbf16> to vector<16x128xbf16>
    %247 = vector.extract_strided_slice %225 {offsets = [0, 128], sizes = [16, 128], strides = [1, 1]} : vector<32x256xbf16> to vector<16x128xbf16>
    %248 = vector.extract_strided_slice %226 {offsets = [0, 128], sizes = [16, 128], strides = [1, 1]} : vector<32x256xbf16> to vector<16x128xbf16>
    "tpu.trace_start"() <{level = 10 : i32, message = "qd,kd->qk"}> : () -> ()
    %cst_103 = arith.constant dense<0.000000e+00> : vector<16x16xf32>
    %249 = tpu.matmul %246, %247, %cst_103 {dimension_numbers = #tpu.dot_dimension_numbers<[1], [1], [0], [0], [0, 0, 1, 0], [], []>} : vector<16x128xbf16>, vector<16x128xbf16>, vector<16x16xf32> -> vector<16x16xf32>
    "tpu.trace_stop"() : () -> ()
    %cst_104 = arith.constant 0.0883883461 : f32
    %250 = vector.broadcast %cst_104 : f32 to vector<16x16xf32>
    %251 = arith.mulf %249, %250 : vector<16x16xf32>
    %cst_105 = arith.constant dense<0xFF800000> : vector<16xf32>
    %252 = vector.multi_reduction <maximumf>, %251, %cst_105 [1] : vector<16x16xf32> to vector<16xf32>
    %253 = vector.shape_cast %252 : vector<16xf32> to vector<16x1xf32>
    %254 = vector.broadcast %253 : vector<16x1xf32> to vector<16x16xf32>
    %255 = arith.subf %251, %254 : vector<16x16xf32>
    %256 = math.exp %255 : vector<16x16xf32>
    %cst_106 = arith.constant dense<0.000000e+00> : vector<16xf32>
    %257 = vector.multi_reduction <add>, %256, %cst_106 [1] : vector<16x16xf32> to vector<16xf32>
    %258 = vector.shape_cast %257 : vector<16xf32> to vector<16x1xf32>
    %259 = tpu.reciprocal %258 {approx = true} : vector<16x1xf32> -> vector<16x1xf32>
    %260 = vector.broadcast %259 : vector<16x1xf32> to vector<16x16xf32>
    %261 = arith.mulf %256, %260 : vector<16x16xf32>
    %262 = arith.truncf %261 : vector<16x16xf32> to vector<16x16xbf16>
    %cst_107 = arith.constant dense<0.000000e+00> : vector<16x128xf32>
    %263 = tpu.matmul %262, %248, %cst_107 {dimension_numbers = #tpu.dot_dimension_numbers<[1], [0], [0], [1], [0, 0, 1, 1], [], []>} : vector<16x16xbf16>, vector<16x128xbf16>, vector<16x128xf32> -> vector<16x128xf32>
    %264 = arith.truncf %263 : vector<16x128xf32> to vector<16x128xbf16>
    %265 = tpu.concatenate %245, %264 in 1 : vector<16x128xbf16>, vector<16x128xbf16> -> vector<16x256xbf16>
    %266 = vector.extract_strided_slice %224 {offsets = [16, 0], sizes = [16, 128], strides = [1, 1]} : vector<32x256xbf16> to vector<16x128xbf16>
    %267 = vector.extract_strided_slice %225 {offsets = [16, 0], sizes = [16, 128], strides = [1, 1]} : vector<32x256xbf16> to vector<16x128xbf16>
    %268 = vector.extract_strided_slice %226 {offsets = [16, 0], sizes = [16, 128], strides = [1, 1]} : vector<32x256xbf16> to vector<16x128xbf16>
    "tpu.trace_start"() <{level = 10 : i32, message = "qd,kd->qk"}> : () -> ()
    %cst_108 = arith.constant dense<0.000000e+00> : vector<16x16xf32>
    %269 = tpu.matmul %266, %267, %cst_108 {dimension_numbers = #tpu.dot_dimension_numbers<[1], [1], [0], [0], [0, 0, 1, 0], [], []>} : vector<16x128xbf16>, vector<16x128xbf16>, vector<16x16xf32> -> vector<16x16xf32>
    "tpu.trace_stop"() : () -> ()
    %cst_109 = arith.constant 0.0883883461 : f32
    %270 = vector.broadcast %cst_109 : f32 to vector<16x16xf32>
    %271 = arith.mulf %269, %270 : vector<16x16xf32>
    %cst_110 = arith.constant dense<0xFF800000> : vector<16xf32>
    %272 = vector.multi_reduction <maximumf>, %271, %cst_110 [1] : vector<16x16xf32> to vector<16xf32>
    %273 = vector.shape_cast %272 : vector<16xf32> to vector<16x1xf32>
    %274 = vector.broadcast %273 : vector<16x1xf32> to vector<16x16xf32>
    %275 = arith.subf %271, %274 : vector<16x16xf32>
    %276 = math.exp %275 : vector<16x16xf32>
    %cst_111 = arith.constant dense<0.000000e+00> : vector<16xf32>
    %277 = vector.multi_reduction <add>, %276, %cst_111 [1] : vector<16x16xf32> to vector<16xf32>
    %278 = vector.shape_cast %277 : vector<16xf32> to vector<16x1xf32>
    %279 = tpu.reciprocal %278 {approx = true} : vector<16x1xf32> -> vector<16x1xf32>
    %280 = vector.broadcast %279 : vector<16x1xf32> to vector<16x16xf32>
    %281 = arith.mulf %276, %280 : vector<16x16xf32>
    %282 = arith.truncf %281 : vector<16x16xf32> to vector<16x16xbf16>
    %cst_112 = arith.constant dense<0.000000e+00> : vector<16x128xf32>
    %283 = tpu.matmul %282, %268, %cst_112 {dimension_numbers = #tpu.dot_dimension_numbers<[1], [0], [0], [1], [0, 0, 1, 1], [], []>} : vector<16x16xbf16>, vector<16x128xbf16>, vector<16x128xf32> -> vector<16x128xf32>
    %284 = arith.truncf %283 : vector<16x128xf32> to vector<16x128xbf16>
    %285 = vector.extract_strided_slice %224 {offsets = [16, 128], sizes = [16, 128], strides = [1, 1]} : vector<32x256xbf16> to vector<16x128xbf16>
    %286 = vector.extract_strided_slice %225 {offsets = [16, 128], sizes = [16, 128], strides = [1, 1]} : vector<32x256xbf16> to vector<16x128xbf16>
    %287 = vector.extract_strided_slice %226 {offsets = [16, 128], sizes = [16, 128], strides = [1, 1]} : vector<32x256xbf16> to vector<16x128xbf16>
    "tpu.trace_start"() <{level = 10 : i32, message = "qd,kd->qk"}> : () -> ()
    %cst_113 = arith.constant dense<0.000000e+00> : vector<16x16xf32>
    %288 = tpu.matmul %285, %286, %cst_113 {dimension_numbers = #tpu.dot_dimension_numbers<[1], [1], [0], [0], [0, 0, 1, 0], [], []>} : vector<16x128xbf16>, vector<16x128xbf16>, vector<16x16xf32> -> vector<16x16xf32>
    "tpu.trace_stop"() : () -> ()
    %cst_114 = arith.constant 0.0883883461 : f32
    %289 = vector.broadcast %cst_114 : f32 to vector<16x16xf32>
    %290 = arith.mulf %288, %289 : vector<16x16xf32>
    %cst_115 = arith.constant dense<0xFF800000> : vector<16xf32>
    %291 = vector.multi_reduction <maximumf>, %290, %cst_115 [1] : vector<16x16xf32> to vector<16xf32>
    %292 = vector.shape_cast %291 : vector<16xf32> to vector<16x1xf32>
    %293 = vector.broadcast %292 : vector<16x1xf32> to vector<16x16xf32>
    %294 = arith.subf %290, %293 : vector<16x16xf32>
    %295 = math.exp %294 : vector<16x16xf32>
    %cst_116 = arith.constant dense<0.000000e+00> : vector<16xf32>
    %296 = vector.multi_reduction <add>, %295, %cst_116 [1] : vector<16x16xf32> to vector<16xf32>
    %297 = vector.shape_cast %296 : vector<16xf32> to vector<16x1xf32>
    %298 = tpu.reciprocal %297 {approx = true} : vector<16x1xf32> -> vector<16x1xf32>
    %299 = vector.broadcast %298 : vector<16x1xf32> to vector<16x16xf32>
    %300 = arith.mulf %295, %299 : vector<16x16xf32>
    %301 = arith.truncf %300 : vector<16x16xf32> to vector<16x16xbf16>
    %cst_117 = arith.constant dense<0.000000e+00> : vector<16x128xf32>
    %302 = tpu.matmul %301, %287, %cst_117 {dimension_numbers = #tpu.dot_dimension_numbers<[1], [0], [0], [1], [0, 0, 1, 1], [], []>} : vector<16x16xbf16>, vector<16x128xbf16>, vector<16x128xf32> -> vector<16x128xf32>
    %303 = arith.truncf %302 : vector<16x128xf32> to vector<16x128xbf16>
    %304 = tpu.concatenate %284, %303 in 1 : vector<16x128xbf16>, vector<16x128xbf16> -> vector<16x256xbf16>
    %305 = tpu.concatenate %265, %304 in 0 : vector<16x256xbf16>, vector<16x256xbf16> -> vector<32x256xbf16>
    %c1_118 = arith.constant 1 : index
    %c0_119 = arith.constant 0 : index
    %c0_120 = arith.constant 0 : index
    %306 = vector.load %arg9[%c1_118, %c0_119, %c0_120] : memref<2x256x256xbf16, #tpu.memory_space<vmem>>, vector<1x256x256xbf16>
    %307 = vector.shape_cast %306 : vector<1x256x256xbf16> to vector<256x256xbf16>
    %cst_121 = arith.constant dense<0.000000e+00> : vector<32x256xf32>
    %308 = tpu.matmul %305, %307, %cst_121 {dimension_numbers = #tpu.dot_dimension_numbers<[1], [0], [0], [1], [0, 0, 1, 1], [], []>} : vector<32x256xbf16>, vector<256x256xbf16>, vector<32x256xf32> -> vector<32x256xf32>
    %309 = arith.addf %188, %308 : vector<32x256xf32>
    %c1_122 = arith.constant 1 : index
    %c0_123 = arith.constant 0 : index
    %c0_124 = arith.constant 0 : index
    %310 = vector.load %arg10[%c1_122, %c0_123, %c0_124] : memref<2x1x256xf32, #tpu.memory_space<vmem>>, vector<1x1x256xf32>
    %311 = vector.shape_cast %310 : vector<1x1x256xf32> to vector<1x256xf32>
    %312 = vector.broadcast %311 : vector<1x256xf32> to vector<32x256xf32>
    %313 = arith.addf %309, %312 : vector<32x256xf32>
    %c1_125 = arith.constant 1 : index
    %c0_126 = arith.constant 0 : index
    %c0_127 = arith.constant 0 : index
    %314 = vector.load %arg11[%c1_125, %c0_126, %c0_127] : memref<2x1x256xf32, #tpu.memory_space<vmem>>, vector<1x1x256xf32>
    %315 = vector.shape_cast %314 : vector<1x1x256xf32> to vector<1x256xf32>
    %c1_128 = arith.constant 1 : index
    %c0_129 = arith.constant 0 : index
    %c0_130 = arith.constant 0 : index
    %316 = vector.load %arg12[%c1_128, %c0_129, %c0_130] : memref<2x1x256xf32, #tpu.memory_space<vmem>>, vector<1x1x256xf32>
    %317 = vector.shape_cast %316 : vector<1x1x256xf32> to vector<1x256xf32>
    %cst_131 = arith.constant dense<0.000000e+00> : vector<32xf32>
    %318 = vector.multi_reduction <add>, %313, %cst_131 [1] : vector<32x256xf32> to vector<32xf32>
    %319 = vector.shape_cast %318 : vector<32xf32> to vector<32x1xf32>
    %cst_132 = arith.constant 2.560000e+02 : f32
    %320 = vector.broadcast %cst_132 : f32 to vector<32x1xf32>
    %321 = arith.divf %319, %320 : vector<32x1xf32>
    %322 = vector.broadcast %321 : vector<32x1xf32> to vector<32x256xf32>
    %323 = arith.subf %313, %322 : vector<32x256xf32>
    %324 = arith.mulf %323, %323 : vector<32x256xf32>
    %cst_133 = arith.constant dense<0.000000e+00> : vector<32xf32>
    %325 = vector.multi_reduction <add>, %324, %cst_133 [1] : vector<32x256xf32> to vector<32xf32>
    %326 = vector.shape_cast %325 : vector<32xf32> to vector<32x1xf32>
    %cst_134 = arith.constant 2.560000e+02 : f32
    %327 = vector.broadcast %cst_134 : f32 to vector<32x1xf32>
    %328 = arith.divf %326, %327 : vector<32x1xf32>
    %329 = vector.broadcast %321 : vector<32x1xf32> to vector<32x256xf32>
    %330 = arith.subf %313, %329 : vector<32x256xf32>
    %cst_135 = arith.constant 9.99999997E-7 : f32
    %331 = vector.broadcast %cst_135 : f32 to vector<32x1xf32>
    %332 = arith.addf %328, %331 : vector<32x1xf32>
    %333 = math.rsqrt %332 : vector<32x1xf32>
    %334 = vector.broadcast %333 : vector<32x1xf32> to vector<32x256xf32>
    %335 = arith.mulf %330, %334 : vector<32x256xf32>
    %336 = vector.broadcast %315 : vector<1x256xf32> to vector<32x256xf32>
    %337 = arith.mulf %335, %336 : vector<32x256xf32>
    %338 = vector.broadcast %317 : vector<1x256xf32> to vector<32x256xf32>
    %339 = arith.addf %337, %338 : vector<32x256xf32>
    %c1_136 = arith.constant 1 : index
    %c0_137 = arith.constant 0 : index
    %c0_138 = arith.constant 0 : index
    %340 = vector.load %arg13[%c1_136, %c0_137, %c0_138] : memref<2x256x1024xbf16, #tpu.memory_space<vmem>>, vector<1x256x1024xbf16>
    %341 = vector.shape_cast %340 : vector<1x256x1024xbf16> to vector<256x1024xbf16>
    %c1_139 = arith.constant 1 : index
    %c0_140 = arith.constant 0 : index
    %c0_141 = arith.constant 0 : index
    %342 = vector.load %arg14[%c1_139, %c0_140, %c0_141] : memref<2x1x1024xf32, #tpu.memory_space<vmem>>, vector<1x1x1024xf32>
    %343 = vector.shape_cast %342 : vector<1x1x1024xf32> to vector<1x1024xf32>
    %344 = arith.truncf %339 : vector<32x256xf32> to vector<32x256xbf16>
    %cst_142 = arith.constant dense<0.000000e+00> : vector<32x1024xf32>
    %345 = tpu.matmul %344, %341, %cst_142 {dimension_numbers = #tpu.dot_dimension_numbers<[1], [0], [0], [1], [0, 0, 1, 1], [], []>} : vector<32x256xbf16>, vector<256x1024xbf16>, vector<32x1024xf32> -> vector<32x1024xf32>
    %346 = vector.broadcast %343 : vector<1x1024xf32> to vector<32x1024xf32>
    %347 = arith.addf %345, %346 : vector<32x1024xf32>
    %348 = arith.mulf %347, %347 : vector<32x1024xf32>
    %349 = arith.mulf %347, %348 : vector<32x1024xf32>
    %cst_143 = arith.constant 4.471500e-02 : f32
    %350 = vector.broadcast %cst_143 : f32 to vector<32x1024xf32>
    %351 = arith.mulf %350, %349 : vector<32x1024xf32>
    %352 = arith.addf %347, %351 : vector<32x1024xf32>
    %cst_144 = arith.constant 0.797884583 : f32
    %353 = vector.broadcast %cst_144 : f32 to vector<32x1024xf32>
    %354 = arith.mulf %353, %352 : vector<32x1024xf32>
    %355 = math.tanh %354 : vector<32x1024xf32>
    %cst_145 = arith.constant 1.000000e+00 : f32
    %356 = vector.broadcast %cst_145 : f32 to vector<32x1024xf32>
    %357 = arith.addf %356, %355 : vector<32x1024xf32>
    %cst_146 = arith.constant 5.000000e-01 : f32
    %358 = vector.broadcast %cst_146 : f32 to vector<32x1024xf32>
    %359 = arith.mulf %358, %357 : vector<32x1024xf32>
    %360 = arith.mulf %347, %359 : vector<32x1024xf32>
    %c1_147 = arith.constant 1 : index
    %c0_148 = arith.constant 0 : index
    %c0_149 = arith.constant 0 : index
    %361 = vector.load %arg15[%c1_147, %c0_148, %c0_149] : memref<2x1024x256xbf16, #tpu.memory_space<vmem>>, vector<1x1024x256xbf16>
    %362 = vector.shape_cast %361 : vector<1x1024x256xbf16> to vector<1024x256xbf16>
    %c1_150 = arith.constant 1 : index
    %c0_151 = arith.constant 0 : index
    %c0_152 = arith.constant 0 : index
    %363 = vector.load %arg16[%c1_150, %c0_151, %c0_152] : memref<2x1x256xf32, #tpu.memory_space<vmem>>, vector<1x1x256xf32>
    %364 = vector.shape_cast %363 : vector<1x1x256xf32> to vector<1x256xf32>
    %365 = arith.truncf %360 : vector<32x1024xf32> to vector<32x1024xbf16>
    %cst_153 = arith.constant dense<0.000000e+00> : vector<32x256xf32>
    %366 = tpu.matmul %365, %362, %cst_153 {dimension_numbers = #tpu.dot_dimension_numbers<[1], [0], [0], [1], [0, 0, 1, 1], [], []>} : vector<32x1024xbf16>, vector<1024x256xbf16>, vector<32x256xf32> -> vector<32x256xf32>
    %367 = vector.broadcast %364 : vector<1x256xf32> to vector<32x256xf32>
    %368 = arith.addf %366, %367 : vector<32x256xf32>
    %369 = arith.addf %313, %368 : vector<32x256xf32>
    %c0_154 = arith.constant 0 : index
    %c0_155 = arith.constant 0 : index
    %370 = vector.load %arg17[%c0_154, %c0_155] : memref<1x256xf32, #tpu.memory_space<vmem>>, vector<1x256xf32>
    %c0_156 = arith.constant 0 : index
    %c0_157 = arith.constant 0 : index
    %371 = vector.load %arg18[%c0_156, %c0_157] : memref<1x256xf32, #tpu.memory_space<vmem>>, vector<1x256xf32>
    %cst_158 = arith.constant dense<0.000000e+00> : vector<32xf32>
    %372 = vector.multi_reduction <add>, %369, %cst_158 [1] : vector<32x256xf32> to vector<32xf32>
    %373 = vector.shape_cast %372 : vector<32xf32> to vector<32x1xf32>
    %cst_159 = arith.constant 2.560000e+02 : f32
    %374 = vector.broadcast %cst_159 : f32 to vector<32x1xf32>
    %375 = arith.divf %373, %374 : vector<32x1xf32>
    %376 = vector.broadcast %375 : vector<32x1xf32> to vector<32x256xf32>
    %377 = arith.subf %369, %376 : vector<32x256xf32>
    %378 = arith.mulf %377, %377 : vector<32x256xf32>
    %cst_160 = arith.constant dense<0.000000e+00> : vector<32xf32>
    %379 = vector.multi_reduction <add>, %378, %cst_160 [1] : vector<32x256xf32> to vector<32xf32>
    %380 = vector.shape_cast %379 : vector<32xf32> to vector<32x1xf32>
    %cst_161 = arith.constant 2.560000e+02 : f32
    %381 = vector.broadcast %cst_161 : f32 to vector<32x1xf32>
    %382 = arith.divf %380, %381 : vector<32x1xf32>
    %383 = vector.broadcast %375 : vector<32x1xf32> to vector<32x256xf32>
    %384 = arith.subf %369, %383 : vector<32x256xf32>
    %cst_162 = arith.constant 9.99999997E-7 : f32
    %385 = vector.broadcast %cst_162 : f32 to vector<32x1xf32>
    %386 = arith.addf %382, %385 : vector<32x1xf32>
    %387 = math.rsqrt %386 : vector<32x1xf32>
    %388 = vector.broadcast %387 : vector<32x1xf32> to vector<32x256xf32>
    %389 = arith.mulf %384, %388 : vector<32x256xf32>
    %390 = vector.broadcast %370 : vector<1x256xf32> to vector<32x256xf32>
    %391 = arith.mulf %389, %390 : vector<32x256xf32>
    %392 = vector.broadcast %371 : vector<1x256xf32> to vector<32x256xf32>
    %393 = arith.addf %391, %392 : vector<32x256xf32>
    %c0_163 = arith.constant 0 : index
    %c0_164 = arith.constant 0 : index
    %394 = vector.load %arg19[%c0_163, %c0_164] : memref<256x256xbf16, #tpu.memory_space<vmem>>, vector<256x256xbf16>
    %c0_165 = arith.constant 0 : index
    %c0_166 = arith.constant 0 : index
    %395 = vector.load %arg20[%c0_165, %c0_166] : memref<1x256xf32, #tpu.memory_space<vmem>>, vector<1x256xf32>
    %396 = arith.truncf %393 : vector<32x256xf32> to vector<32x256xbf16>
    %cst_167 = arith.constant dense<0.000000e+00> : vector<32x256xf32>
    %397 = tpu.matmul %396, %394, %cst_167 {dimension_numbers = #tpu.dot_dimension_numbers<[1], [0], [0], [1], [0, 0, 1, 1], [], []>} : vector<32x256xbf16>, vector<256x256xbf16>, vector<32x256xf32> -> vector<32x256xf32>
    %398 = vector.broadcast %395 : vector<1x256xf32> to vector<32x256xf32>
    %399 = arith.addf %397, %398 : vector<32x256xf32>
    %cst_168 = arith.constant 0.000000e+00 : f32
    %400 = vector.broadcast %cst_168 : f32 to vector<32x256xf32>
    %401 = arith.maximumf %399, %400 : vector<32x256xf32>
    %c0_169 = arith.constant 0 : index
    %c0_170 = arith.constant 0 : index
    %402 = vector.load %arg21[%c0_169, %c0_170] : memref<256x256xbf16, #tpu.memory_space<vmem>>, vector<256x256xbf16>
    %c0_171 = arith.constant 0 : index
    %c0_172 = arith.constant 0 : index
    %403 = vector.load %arg22[%c0_171, %c0_172] : memref<1x256xf32, #tpu.memory_space<vmem>>, vector<1x256xf32>
    %404 = arith.truncf %401 : vector<32x256xf32> to vector<32x256xbf16>
    %cst_173 = arith.constant dense<0.000000e+00> : vector<32x256xf32>
    %405 = tpu.matmul %404, %402, %cst_173 {dimension_numbers = #tpu.dot_dimension_numbers<[1], [0], [0], [1], [0, 0, 1, 1], [], []>} : vector<32x256xbf16>, vector<256x256xbf16>, vector<32x256xf32> -> vector<32x256xf32>
    %406 = vector.broadcast %403 : vector<1x256xf32> to vector<32x256xf32>
    %407 = arith.addf %405, %406 : vector<32x256xf32>
    %c0_174 = arith.constant 0 : index
    %c0_175 = arith.constant 0 : index
    %408 = vector.load %arg23[%c0_174, %c0_175] : memref<32x256xf32, #tpu.memory_space<vmem>>, vector<32x256xf32>
    tpu.vector_store %arg23[%c0_174, %c0_175], %407 {strides = array<i32>} : memref<32x256xf32, #tpu.memory_space<vmem>>, vector<32x256xf32>,
    return
  }
  func.func @transform_0(%arg0: i32) -> (i32, i32) {
    %c0_i32 = arith.constant 0 : i32
    %c0_i32_0 = arith.constant 0 : i32
    return %arg0, %c0_i32 : i32, i32
  }
  func.func @transform_1(%arg0: i32) -> (i32, i32) {
    %c0_i32 = arith.constant 0 : i32
    %c0_i32_0 = arith.constant 0 : i32
    %c0_i32_1 = arith.constant 0 : i32
    return %c0_i32, %c0_i32_0 : i32, i32
  }
  func.func @transform_2(%arg0: i32) -> (i32, i32) {
    %c0_i32 = arith.constant 0 : i32
    %c0_i32_0 = arith.constant 0 : i32
    %c0_i32_1 = arith.constant 0 : i32
    return %c0_i32, %c0_i32_0 : i32, i32
  }
  func.func @transform_3(%arg0: i32) -> (i32, i32) {
    %c0_i32 = arith.constant 0 : i32
    %c0_i32_0 = arith.constant 0 : i32
    return %arg0, %c0_i32 : i32, i32
  }
  func.func @transform_4(%arg0: i32) -> (i32, i32, i32) {
    %c0_i32 = arith.constant 0 : i32
    %c0_i32_0 = arith.constant 0 : i32
    %c0_i32_1 = arith.constant 0 : i32
    %c0_i32_2 = arith.constant 0 : i32
    return %c0_i32, %c0_i32_0, %c0_i32_1 : i32, i32, i32
  }
  func.func @transform_5(%arg0: i32) -> (i32, i32, i32) {
    %c0_i32 = arith.constant 0 : i32
    %c0_i32_0 = arith.constant 0 : i32
    %c0_i32_1 = arith.constant 0 : i32
    %c0_i32_2 = arith.constant 0 : i32
    return %c0_i32, %c0_i32_0, %c0_i32_1 : i32, i32, i32
  }
  func.func @transform_6(%arg0: i32) -> (i32, i32, i32) {
    %c0_i32 = arith.constant 0 : i32
    %c0_i32_0 = arith.constant 0 : i32
    %c0_i32_1 = arith.constant 0 : i32
    %c0_i32_2 = arith.constant 0 : i32
    return %c0_i32, %c0_i32_0, %c0_i32_1 : i32, i32, i32
  }
  func.func @transform_7(%arg0: i32) -> (i32, i32, i32) {
    %c0_i32 = arith.constant 0 : i32
    %c0_i32_0 = arith.constant 0 : i32
    %c0_i32_1 = arith.constant 0 : i32
    %c0_i32_2 = arith.constant 0 : i32
    return %c0_i32, %c0_i32_0, %c0_i32_1 : i32, i32, i32
  }
  func.func @transform_8(%arg0: i32) -> (i32, i32, i32) {
    %c0_i32 = arith.constant 0 : i32
    %c0_i32_0 = arith.constant 0 : i32
    %c0_i32_1 = arith.constant 0 : i32
    %c0_i32_2 = arith.constant 0 : i32
    return %c0_i32, %c0_i32_0, %c0_i32_1 : i32, i32, i32
  }
  func.func @transform_9(%arg0: i32) -> (i32, i32, i32) {
    %c0_i32 = arith.constant 0 : i32
    %c0_i32_0 = arith.constant 0 : i32
    %c0_i32_1 = arith.constant 0 : i32
    %c0_i32_2 = arith.constant 0 : i32
    return %c0_i32, %c0_i32_0, %c0_i32_1 : i32, i32, i32
  }
  func.func @transform_10(%arg0: i32) -> (i32, i32, i32) {
    %c0_i32 = arith.constant 0 : i32
    %c0_i32_0 = arith.constant 0 : i32
    %c0_i32_1 = arith.constant 0 : i32
    %c0_i32_2 = arith.constant 0 : i32
    return %c0_i32, %c0_i32_0, %c0_i32_1 : i32, i32, i32
  }
  func.func @transform_11(%arg0: i32) -> (i32, i32, i32) {
    %c0_i32 = arith.constant 0 : i32
    %c0_i32_0 = arith.constant 0 : i32
    %c0_i32_1 = arith.constant 0 : i32
    %c0_i32_2 = arith.constant 0 : i32
    return %c0_i32, %c0_i32_0, %c0_i32_1 : i32, i32, i32
  }
  func.func @transform_12(%arg0: i32) -> (i32, i32, i32) {
    %c0_i32 = arith.constant 0 : i32
    %c0_i32_0 = arith.constant 0 : i32
    %c0_i32_1 = arith.constant 0 : i32
    %c0_i32_2 = arith.constant 0 : i32
    return %c0_i32, %c0_i32_0, %c0_i32_1 : i32, i32, i32
  }
  func.func @transform_13(%arg0: i32) -> (i32, i32, i32) {
    %c0_i32 = arith.constant 0 : i32
    %c0_i32_0 = arith.constant 0 : i32
    %c0_i32_1 = arith.constant 0 : i32
    %c0_i32_2 = arith.constant 0 : i32
    return %c0_i32, %c0_i32_0, %c0_i32_1 : i32, i32, i32
  }
  func.func @transform_14(%arg0: i32) -> (i32, i32, i32) {
    %c0_i32 = arith.constant 0 : i32
    %c0_i32_0 = arith.constant 0 : i32
    %c0_i32_1 = arith.constant 0 : i32
    %c0_i32_2 = arith.constant 0 : i32
    return %c0_i32, %c0_i32_0, %c0_i32_1 : i32, i32, i32
  }
  func.func @transform_15(%arg0: i32) -> (i32, i32, i32) {
    %c0_i32 = arith.constant 0 : i32
    %c0_i32_0 = arith.constant 0 : i32
    %c0_i32_1 = arith.constant 0 : i32
    %c0_i32_2 = arith.constant 0 : i32
    return %c0_i32, %c0_i32_0, %c0_i32_1 : i32, i32, i32
  }
  func.func @transform_16(%arg0: i32) -> (i32, i32) {
    %c0_i32 = arith.constant 0 : i32
    %c0_i32_0 = arith.constant 0 : i32
    %c0_i32_1 = arith.constant 0 : i32
    return %c0_i32, %c0_i32_0 : i32, i32
  }
  func.func @transform_17(%arg0: i32) -> (i32, i32) {
    %c0_i32 = arith.constant 0 : i32
    %c0_i32_0 = arith.constant 0 : i32
    %c0_i32_1 = arith.constant 0 : i32
    return %c0_i32, %c0_i32_0 : i32, i32
  }
  func.func @transform_18(%arg0: i32) -> (i32, i32) {
    %c0_i32 = arith.constant 0 : i32
    %c0_i32_0 = arith.constant 0 : i32
    %c0_i32_1 = arith.constant 0 : i32
    return %c0_i32, %c0_i32_0 : i32, i32
  }
  func.func @transform_19(%arg0: i32) -> (i32, i32) {
    %c0_i32 = arith.constant 0 : i32
    %c0_i32_0 = arith.constant 0 : i32
    %c0_i32_1 = arith.constant 0 : i32
    return %c0_i32, %c0_i32_0 : i32, i32
  }
  func.func @transform_20(%arg0: i32) -> (i32, i32) {
    %c0_i32 = arith.constant 0 : i32
    %c0_i32_0 = arith.constant 0 : i32
    %c0_i32_1 = arith.constant 0 : i32
    return %c0_i32, %c0_i32_0 : i32, i32
  }
  func.func @transform_21(%arg0: i32) -> (i32, i32) {
    %c0_i32 = arith.constant 0 : i32
    %c0_i32_0 = arith.constant 0 : i32
    %c0_i32_1 = arith.constant 0 : i32
    return %c0_i32, %c0_i32_0 : i32, i32
  }
  func.func @transform_22(%arg0: i32) -> (i32, i32) {
    %c0_i32 = arith.constant 0 : i32
    %c0_i32_0 = arith.constant 0 : i32
    return %arg0, %c0_i32 : i32, i32
  }
}

</mosaic_0001>

<llo_original>
// kernel: radio_backbone_forward.1
$region0: #{radio_backbone_forward.1}
  #allocation0 [shape = 'u32[]', space=smem, size = 0x4, offset = 0x4, fixed_abs, tag = 'smem constant byte address 0x4 - core index']
  #allocation1 [shape = 'u32[144,128]{1,0:T(1,128)}', space=vmem, size = 0x12000, scoped, tag = 'internal scratch']
  %s0 = inlined_call_operand.vmem [shape: bf16[32,192], index: 0, kind: input, shape index: {}]
  %s1 = inlined_call_operand.vmem [shape: bf16[192,256], index: 1, kind: input, shape index: {}]
  %s2 = inlined_call_operand.vmem [shape: f32[1,256], index: 2, kind: input, shape index: {}, may-alias: {2,17,19,21}]
  %s3 = inlined_call_operand.vmem [shape: f32[32,256], index: 3, kind: input, shape index: {}]
  %s4 = inlined_call_operand.vmem [shape: f32[2,1,256], index: 4, kind: input, shape index: {}, may-alias: {4,10}]
  %s5 = inlined_call_operand.vmem [shape: f32[2,1,256], index: 5, kind: input, shape index: {}, may-alias: {5,9,11,15}]
  %s6 = inlined_call_operand.vmem [shape: bf16[2,256,768], index: 6, kind: input, shape index: {}]
  %s7 = inlined_call_operand.vmem [shape: f32[2,1,768], index: 7, kind: input, shape index: {}]
  %s8 = inlined_call_operand.vmem [shape: bf16[2,256,256], index: 8, kind: input, shape index: {}]
  %s9 = inlined_call_operand.vmem [shape: f32[2,1,256], index: 9, kind: input, shape index: {}, may-alias: {5,9,11,15}]
  %s10 = inlined_call_operand.vmem [shape: f32[2,1,256], index: 10, kind: input, shape index: {}, may-alias: {4,10}]
  %s11 = inlined_call_operand.vmem [shape: f32[2,1,256], index: 11, kind: input, shape index: {}, may-alias: {5,9,11,15}]
  %s12 = inlined_call_operand.vmem [shape: bf16[2,256,1024], index: 12, kind: input, shape index: {}]
  %s13 = inlined_call_operand.vmem [shape: f32[2,1,1024], index: 13, kind: input, shape index: {}]
  %s14 = inlined_call_operand.vmem [shape: bf16[2,1024,256], index: 14, kind: input, shape index: {}]
  %s15 = inlined_call_operand.vmem [shape: f32[2,1,256], index: 15, kind: input, shape index: {}, may-alias: {5,9,11,15}]
  %s16 = inlined_call_operand.vmem [shape: f32[1,256], index: 16, kind: input, shape index: {}]
  %s17 = inlined_call_operand.vmem [shape: f32[1,256], index: 17, kind: input, shape index: {}, may-alias: {2,17,19,21}]
  %s18 = inlined_call_operand.vmem [shape: bf16[256,256], index: 18, kind: input, shape index: {}]
  %s19 = inlined_call_operand.vmem [shape: f32[1,256], index: 19, kind: input, shape index: {}, may-alias: {2,17,19,21}]
  %s20 = inlined_call_operand.vmem [shape: bf16[256,256], index: 20, kind: input, shape index: {}]
  %s21 = inlined_call_operand.vmem [shape: f32[1,256], index: 21, kind: input, shape index: {}, may-alias: {2,17,19,21}]
  %s22 = inlined_call_operand.vmem [shape: f32[32,256], index: 22, kind: output, shape index: {}]
  %s23 = sld [smem:[#allocation0]]
  $region98: #{radio_backbone_forward.1} parent=0
    _
  %s25 = ssub.s32 1, %s23
  %s26 = scalar_select 0, %s25, %s23
  // Predicated region
  $region2: #{radio_backbone_forward.1} parent=0 // pred_check
    _
  $region3: #{radio_backbone_forward.1} parent=0 // pred_check_branch
    %28 = sbr.rel (0) target = $region5
  $region4: #{radio_backbone_forward.1} parent=0 // pred_region
    _
  $region5: #{radio_backbone_forward.1} parent=0 // pred_fallthru
    _
  // Predicated region
  $region6: #{radio_backbone_forward.1} parent=0 // pred_check
    _
  $region7: #{radio_backbone_forward.1} parent=0 // pred_check_branch
    %30 = sbr.rel (0) target = $region9
  $region8: #{radio_backbone_forward.1} parent=0 // pred_region
    _
  $region9: #{radio_backbone_forward.1} parent=0 // pred_fallthru
    _
  // Predicated region
  $region10: #{radio_backbone_forward.1} parent=0 // pred_check
    _
  $region11: #{radio_backbone_forward.1} parent=0 // pred_check_branch
    %32 = sbr.rel (0) target = $region13
  $region12: #{radio_backbone_forward.1} parent=0 // pred_region
    _
  $region13: #{radio_backbone_forward.1} parent=0 // pred_fallthru
    _
  // Predicated region
  $region14: #{radio_backbone_forward.1} parent=0 // pred_check
    _
  $region15: #{radio_backbone_forward.1} parent=0 // pred_check_branch
    %34 = sbr.rel (0) target = $region17
  $region16: #{radio_backbone_forward.1} parent=0 // pred_region
    _
  $region17: #{radio_backbone_forward.1} parent=0 // pred_fallthru
    _
  // Predicated region
  $region18: #{radio_backbone_forward.1} parent=0 // pred_check
    _
  $region19: #{radio_backbone_forward.1} parent=0 // pred_check_branch
    %36 = sbr.rel (0) target = $region21
  $region20: #{radio_backbone_forward.1} parent=0 // pred_region
    _
  $region21: #{radio_backbone_forward.1} parent=0 // pred_fallthru
    _
  // Predicated region
  $region22: #{radio_backbone_forward.1} parent=0 // pred_check
    _
  $region23: #{radio_backbone_forward.1} parent=0 // pred_check_branch
    %38 = sbr.rel (0) target = $region25
  $region24: #{radio_backbone_forward.1} parent=0 // pred_region
    _
  $region25: #{radio_backbone_forward.1} parent=0 // pred_fallthru
    _
  // Predicated region
  $region26: #{radio_backbone_forward.1} parent=0 // pred_check
    _
  $region27: #{radio_backbone_forward.1} parent=0 // pred_check_branch
    %40 = sbr.rel (0) target = $region29
  $region28: #{radio_backbone_forward.1} parent=0 // pred_region
    _
  $region29: #{radio_backbone_forward.1} parent=0 // pred_fallthru
    _
  // Predicated region
  $region30: #{radio_backbone_forward.1} parent=0 // pred_check
    _
  $region31: #{radio_backbone_forward.1} parent=0 // pred_check_branch
    %42 = sbr.rel (0) target = $region33
  $region32: #{radio_backbone_forward.1} parent=0 // pred_region
    _
  $region33: #{radio_backbone_forward.1} parent=0 // pred_fallthru
    _
  // Predicated region
  $region34: #{radio_backbone_forward.1} parent=0 // pred_check
    _
  $region35: #{radio_backbone_forward.1} parent=0 // pred_check_branch
    %44 = sbr.rel (0) target = $region37
  $region36: #{radio_backbone_forward.1} parent=0 // pred_region
    _
  $region37: #{radio_backbone_forward.1} parent=0 // pred_fallthru
    _
  // Predicated region
  $region38: #{radio_backbone_forward.1} parent=0 // pred_check
    _
  $region39: #{radio_backbone_forward.1} parent=0 // pred_check_branch
    %46 = sbr.rel (0) target = $region41
  $region40: #{radio_backbone_forward.1} parent=0 // pred_region
    _
  $region41: #{radio_backbone_forward.1} parent=0 // pred_fallthru
    _
  // Predicated region
  $region42: #{radio_backbone_forward.1} parent=0 // pred_check
    _
  $region43: #{radio_backbone_forward.1} parent=0 // pred_check_branch
    %48 = sbr.rel (0) target = $region45
  $region44: #{radio_backbone_forward.1} parent=0 // pred_region
    _
  $region45: #{radio_backbone_forward.1} parent=0 // pred_fallthru
    _
  // Predicated region
  $region46: #{radio_backbone_forward.1} parent=0 // pred_check
    _
  $region47: #{radio_backbone_forward.1} parent=0 // pred_check_branch
    %50 = sbr.rel (0) target = $region49
  $region48: #{radio_backbone_forward.1} parent=0 // pred_region
    _
  $region49: #{radio_backbone_forward.1} parent=0 // pred_fallthru
    _
  // Predicated region
  $region50: #{radio_backbone_forward.1} parent=0 // pred_check
    _
  $region51: #{radio_backbone_forward.1} parent=0 // pred_check_branch
    %52 = sbr.rel (0) target = $region53
  $region52: #{radio_backbone_forward.1} parent=0 // pred_region
    _
  $region53: #{radio_backbone_forward.1} parent=0 // pred_fallthru
    _
  // Predicated region
  $region54: #{radio_backbone_forward.1} parent=0 // pred_check
    _
  $region55: #{radio_backbone_forward.1} parent=0 // pred_check_branch
    %54 = sbr.rel (0) target = $region57
  $region56: #{radio_backbone_forward.1} parent=0 // pred_region
    _
  $region57: #{radio_backbone_forward.1} parent=0 // pred_fallthru
    _
  // Predicated region
  $region58: #{radio_backbone_forward.1} parent=0 // pred_check
    _
  $region59: #{radio_backbone_forward.1} parent=0 // pred_check_branch
    %56 = sbr.rel (0) target = $region61
  $region60: #{radio_backbone_forward.1} parent=0 // pred_region
    _
  $region61: #{radio_backbone_forward.1} parent=0 // pred_fallthru
    _
  // Predicated region
  $region62: #{radio_backbone_forward.1} parent=0 // pred_check
    _
  $region63: #{radio_backbone_forward.1} parent=0 // pred_check_branch
    %58 = sbr.rel (0) target = $region65
  $region64: #{radio_backbone_forward.1} parent=0 // pred_region
    _
  $region65: #{radio_backbone_forward.1} parent=0 // pred_fallthru
    _
  // Predicated region
  $region66: #{radio_backbone_forward.1} parent=0 // pred_check
    _
  $region67: #{radio_backbone_forward.1} parent=0 // pred_check_branch
    %60 = sbr.rel (0) target = $region69
  $region68: #{radio_backbone_forward.1} parent=0 // pred_region
    _
  $region69: #{radio_backbone_forward.1} parent=0 // pred_fallthru
    _
  // Predicated region
  $region70: #{radio_backbone_forward.1} parent=0 // pred_check
    _
  $region71: #{radio_backbone_forward.1} parent=0 // pred_check_branch
    %62 = sbr.rel (0) target = $region73
  $region72: #{radio_backbone_forward.1} parent=0 // pred_region
    _
  $region73: #{radio_backbone_forward.1} parent=0 // pred_fallthru
    _
  // Predicated region
  $region74: #{radio_backbone_forward.1} parent=0 // pred_check
    _
  $region75: #{radio_backbone_forward.1} parent=0 // pred_check_branch
    %64 = sbr.rel (0) target = $region77
  $region76: #{radio_backbone_forward.1} parent=0 // pred_region
    _
  $region77: #{radio_backbone_forward.1} parent=0 // pred_fallthru
    _
  // Predicated region
  $region78: #{radio_backbone_forward.1} parent=0 // pred_check
    _
  $region79: #{radio_backbone_forward.1} parent=0 // pred_check_branch
    %66 = sbr.rel (0) target = $region81
  $region80: #{radio_backbone_forward.1} parent=0 // pred_region
    _
  $region81: #{radio_backbone_forward.1} parent=0 // pred_fallthru
    _
  // Predicated region
  $region82: #{radio_backbone_forward.1} parent=0 // pred_check
    _
  $region83: #{radio_backbone_forward.1} parent=0 // pred_check_branch
    %68 = sbr.rel (0) target = $region85
  $region84: #{radio_backbone_forward.1} parent=0 // pred_region
    _
  $region85: #{radio_backbone_forward.1} parent=0 // pred_fallthru
    _
  // Predicated region
  $region86: #{radio_backbone_forward.1} parent=0 // pred_check
    _
  $region87: #{radio_backbone_forward.1} parent=0 // pred_check_branch
    %70 = sbr.rel (0) target = $region89
  $region88: #{radio_backbone_forward.1} parent=0 // pred_region
    _
  $region89: #{radio_backbone_forward.1} parent=0 // pred_fallthru
    _
  %v72 = vld [vmem:[%s0] sm:$0xff]
  %v73 = vld [vmem:[%s0 + $0x8] sm:$0xff]
  %v74 = vld [vmem:[%s0 + $0x10] sm:$0xff]
  %v75 = vld [vmem:[%s0 + $0x18] sm:$0xff]
  %v76 = vld [vmem:[%s1] sm:$0xff]
  %v77 = vld [vmem:[%s1 + $0x8] sm:$0xff]
  %v78 = vld [vmem:[%s1 + $0x10] sm:$0xff]
  %v79 = vld [vmem:[%s1 + $0x18] sm:$0xff]
  %v80 = vld [vmem:[%s1 + $0x20] sm:$0xff]
  %v81 = vld [vmem:[%s1 + $0x28] sm:$0xff]
  %v82 = vld [vmem:[%s1 + $0x30] sm:$0xff]
  %v83 = vld [vmem:[%s1 + $0x38] sm:$0xff]
  %v84 = vld [vmem:[%s1 + $0x40] sm:$0xff]
  %v85 = vld [vmem:[%s1 + $0x48] sm:$0xff]
  %v86 = vld [vmem:[%s1 + $0x50] sm:$0xff]
  %v87 = vld [vmem:[%s1 + $0x58] sm:$0xff]
  %v88 = vld [vmem:[%s1 + $0x60] sm:$0xff]
  %v89 = vld [vmem:[%s1 + $0x68] sm:$0xff]
  %v90 = vld [vmem:[%s1 + $0x70] sm:$0xff]
  %v91 = vld [vmem:[%s1 + $0x78] sm:$0xff]
  %v92 = vld [vmem:[%s1 + $0x80] sm:$0xff]
  %v93 = vld [vmem:[%s1 + $0x88] sm:$0xff]
  %v94 = vld [vmem:[%s1 + $0x90] sm:$0xff]
  %v95 = vld [vmem:[%s1 + $0x98] sm:$0xff]
  %v96 = vld [vmem:[%s1 + $0xa0] sm:$0xff]
  %v97 = vld [vmem:[%s1 + $0xa8] sm:$0xff]
  %v98 = vld [vmem:[%s1 + $0xb0] sm:$0xff]
  %v99 = vld [vmem:[%s1 + $0xb8] sm:$0xff]
  %v100 = vld [vmem:[%s2] sm:$0x3]
  %v102 = vlaneseq
  %v103 = vshrl.u32 %v102, 7
  %v104 = vsub.s32 0, %v103
  %v105 = vrot.slane %v100, %v104
  %v106 = vlaneseq
  %v107 = vshrl.u32 %v106, 7
  %v108 = vsub.s32 1, %v107
  %v109 = vrot.slane %v100, %v108
  %v116 = vunpack.c.l.b16 %v72
  %v117 = vunpack.c.h.b16 %v72
  %v118 = vunpack.c.l.b16 %v73
  %v119 = vunpack.c.h.b16 %v73
  %v120 = vunpack.c.l.b16 %v74
  %v121 = vunpack.c.h.b16 %v74
  %v122 = vunpack.c.l.b16 %v75
  %v123 = vunpack.c.h.b16 %v75
  %v124 = vpack.c.b16 %v118, %v116
  %v125 = vpack.c.b16 %v119, %v117
  %v126 = vpack.c.b16 %v122, %v120
  %v127 = vpack.c.b16 %v123, %v121
  %v154 = vunpack.c.l.b16 %v76
  %v155 = vunpack.c.h.b16 %v76
  %v156 = vunpack.c.l.b16 %v77
  %v157 = vunpack.c.h.b16 %v77
  %v158 = vunpack.c.l.b16 %v78
  %v159 = vunpack.c.h.b16 %v78
  %v160 = vunpack.c.l.b16 %v79
  %v161 = vunpack.c.h.b16 %v79
  %v162 = vunpack.c.l.b16 %v80
  %v163 = vunpack.c.h.b16 %v80
  %v164 = vunpack.c.l.b16 %v81
  %v165 = vunpack.c.h.b16 %v81
  %v166 = vunpack.c.l.b16 %v82
  %v167 = vunpack.c.h.b16 %v82
  %v168 = vunpack.c.l.b16 %v83
  %v169 = vunpack.c.h.b16 %v83
  %v170 = vunpack.c.l.b16 %v84
  %v171 = vunpack.c.h.b16 %v84
  %v172 = vunpack.c.l.b16 %v85
  %v173 = vunpack.c.h.b16 %v85
  %v174 = vunpack.c.l.b16 %v86
  %v175 = vunpack.c.h.b16 %v86
  %v176 = vunpack.c.l.b16 %v87
  %v177 = vunpack.c.h.b16 %v87
  %v178 = vunpack.c.l.b16 %v88
  %v179 = vunpack.c.h.b16 %v88
  %v180 = vunpack.c.l.b16 %v89
  %v181 = vunpack.c.h.b16 %v89
  %v182 = vunpack.c.l.b16 %v90
  %v183 = vunpack.c.h.b16 %v90
  %v184 = vunpack.c.l.b16 %v91
  %v185 = vunpack.c.h.b16 %v91
  %v186 = vunpack.c.l.b16 %v92
  %v187 = vunpack.c.h.b16 %v92
  %v188 = vunpack.c.l.b16 %v93
  %v189 = vunpack.c.h.b16 %v93
  %v190 = vunpack.c.l.b16 %v94
  %v191 = vunpack.c.h.b16 %v94
  %v192 = vunpack.c.l.b16 %v95
  %v193 = vunpack.c.h.b16 %v95
  %v194 = vunpack.c.l.b16 %v96
  %v195 = vunpack.c.h.b16 %v96
  %v196 = vunpack.c.l.b16 %v97
  %v197 = vunpack.c.h.b16 %v97
  %v198 = vunpack.c.l.b16 %v98
  %v199 = vunpack.c.h.b16 %v98
  %v200 = vunpack.c.l.b16 %v99
  %v201 = vunpack.c.h.b16 %v99
  %v202 = vpack.c.b16 %v156, %v154
  %v203 = vpack.c.b16 %v157, %v155
  %v204 = vpack.c.b16 %v160, %v158
  %v205 = vpack.c.b16 %v161, %v159
  %v206 = vpack.c.b16 %v164, %v162
  %v207 = vpack.c.b16 %v165, %v163
  %v208 = vpack.c.b16 %v168, %v166
  %v209 = vpack.c.b16 %v169, %v167
  %v210 = vpack.c.b16 %v172, %v170
  %v211 = vpack.c.b16 %v173, %v171
  %v212 = vpack.c.b16 %v176, %v174
  %v213 = vpack.c.b16 %v177, %v175
  %v214 = vpack.c.b16 %v180, %v178
  %v215 = vpack.c.b16 %v181, %v179
  %v216 = vpack.c.b16 %v184, %v182
  %v217 = vpack.c.b16 %v185, %v183
  %v218 = vpack.c.b16 %v188, %v186
  %v219 = vpack.c.b16 %v189, %v187
  %v220 = vpack.c.b16 %v192, %v190
  %v221 = vpack.c.b16 %v193, %v191
  %v222 = vpack.c.b16 %v196, %v194
  %v223 = vpack.c.b16 %v197, %v195
  %v224 = vpack.c.b16 %v200, %v198
  %v225 = vpack.c.b16 %v201, %v199
  %vm250 = vcmask 523264
  %v252 = vsel %vm250, %v125, 0
  %v255 = vsel %vm250, %v127, 0
  %257 = vmatprep.subr.bf16.mxu0 %v203
  %258 = vmatpush1.bf16.msra.mxu0 %v202
  %259 = vmatprep.subr.bf16.mxu0 %v205
  %260 = vmatpush1.bf16.msra.mxu0 %v204
  %261 = vmatprep.subr.bf16.mxu0 %v207
  %262 = vmatpush1.bf16.msra.mxu0 %v206
  %263 = vmatprep.subr.bf16.mxu0 %v209
  %264 = vmatpush1.bf16.msra.mxu0 %v208
  %265 = vmatprep.subr.bf16.mxu0 %v211
  %266 = vmatpush1.bf16.msra.mxu0 %v210
  %267 = vmatprep.subr.bf16.mxu0 %v213
  %268 = vmatpush1.bf16.msra.mxu0 %v212
  %269 = vmatprep.subr.bf16.mxu0 %v215
  %270 = vmatpush1.bf16.msra.mxu0 %v214
  %271 = vmatprep.subr.bf16.mxu0 %v217
  %272 = vmatpush1.bf16.msra.mxu0 %v216
  %273 = vmatprep.subr.bf16.mxu0 %v219
  %274 = vmatpush1.bf16.msra.mxu0 %v218
  %275 = vmatprep.subr.bf16.mxu0 %v221
  %276 = vmatpush1.bf16.msra.mxu0 %v220
  %277 = vmatprep.subr.bf16.mxu0 %v223
  %278 = vmatpush1.bf16.msra.mxu0 %v222
  %279 = vmatprep.subr.bf16.mxu0 %v225
  %280 = vmatpush1.bf16.msra.mxu0 %v224
  %281 = vmatprep.subr.bf16.mxu0 0
  %282 = vmatpush1.bf16.msra.mxu0 0
  %283 = vmatprep.subr.bf16.mxu0 0
  %284 = vmatpush1.bf16.msra.mxu0 0
  %285 = vmatprep.subr.bf16.mxu0 0
  %286 = vmatpush1.bf16.msra.mxu0 0
  %287 = vmatprep.subr.bf16.mxu0 0
  %288 = vmatpush1.bf16.msra.mxu0 0
  %289 = vmatprep.mubr.bf16.mxu0 %v252
  %290 = vmatmul.mubr.bf16.gmra.mrb[0].mxu0 %v124
  %v291 = vpop.f32.mrb[0].mxu0
  %v292 = vadd.f32 %v105, %v291
  %v293 = vpop.f32.mrb[0].mxu0
  %v294 = vadd.f32 %v109, %v293
  %v295 = vpop.f32.mrb[0].mxu0
  %v296 = vadd.f32 %v105, %v295
  %v297 = vpop.f32.mrb[0].mxu0
  %v298 = vadd.f32 %v109, %v297
  %299 = vmatprep.mubr.bf16.mxu0 %v255
  %300 = vmatmul.mubr.bf16.gmra.mrb[0].mxu0 %v126
  %v301 = vpop.f32.mrb[0].mxu0
  %v302 = vadd.f32 %v105, %v301
  %v303 = vpop.f32.mrb[0].mxu0
  %v304 = vadd.f32 %v109, %v303
  %v305 = vpop.f32.mrb[0].mxu0
  %v306 = vadd.f32 %v105, %v305
  %v307 = vpop.f32.mrb[0].mxu0
  %v308 = vadd.f32 %v109, %v307
  %309 = vdwg.mxu0
  %v310 = vld [vmem:[%s3] sm:$0xff]
  %v311 = vld [vmem:[%s3 + $0x8] sm:$0xff]
  %v312 = vld [vmem:[%s3 + $0x10] sm:$0xff]
  %v313 = vld [vmem:[%s3 + $0x18] sm:$0xff]
  %v314 = vld [vmem:[%s3 + $0x20] sm:$0xff]
  %v315 = vld [vmem:[%s3 + $0x28] sm:$0xff]
  %v316 = vld [vmem:[%s3 + $0x30] sm:$0xff]
  %v317 = vld [vmem:[%s3 + $0x38] sm:$0xff]
  %v318 = vadd.f32 %v292, %v310
  %v319 = vadd.f32 %v294, %v311
  %v320 = vadd.f32 %v296, %v312
  %v321 = vadd.f32 %v298, %v313
  %v322 = vadd.f32 %v302, %v314
  %v323 = vadd.f32 %v304, %v315
  %v324 = vadd.f32 %v306, %v316
  %v325 = vadd.f32 %v308, %v317
  %v326 = vld [vmem:[%s4] sm:$0x3]
  %v327 = vld [vmem:[%s5] sm:$0x3]
  %v328 = vadd.f32 %v318, %v319
  %329 = vadd.xlane.f32.xlu0 %v328
  %v330 = vpop.xlane.xlu0 %329
  %v331 = vadd.f32 %v320, %v321
  %332 = vadd.xlane.f32.xlu0 %v331
  %v333 = vpop.xlane.xlu0 %332
  %v334 = vadd.f32 %v322, %v323
  %335 = vadd.xlane.f32.xlu0 %v334
  %v336 = vpop.xlane.xlu0 %335
  %v337 = vadd.f32 %v324, %v325
  %338 = vadd.xlane.f32.xlu0 %v337
  %v339 = vpop.xlane.xlu0 %338
  %v340 = vrcp.pop 256.0
  %v341 = vmul.f32 %v330, %v340
  %v342 = vmul.f32 %v333, %v340
  %v343 = vmul.f32 %v336, %v340
  %v344 = vmul.f32 %v339, %v340
  %v345 = vsub.f32 %v318, %v341
  %v346 = vsub.f32 %v319, %v341
  %v347 = vsub.f32 %v320, %v342
  %v348 = vsub.f32 %v321, %v342
  %v349 = vsub.f32 %v322, %v343
  %v350 = vsub.f32 %v323, %v343
  %v351 = vsub.f32 %v324, %v344
  %v352 = vsub.f32 %v325, %v344
  %v353 = vmul.f32 %v345, %v345
  %v354 = vmul.f32 %v346, %v346
  %v355 = vmul.f32 %v347, %v347
  %v356 = vmul.f32 %v348, %v348
  %v357 = vmul.f32 %v349, %v349
  %v358 = vmul.f32 %v350, %v350
  %v359 = vmul.f32 %v351, %v351
  %v360 = vmul.f32 %v352, %v352
  %v361 = vadd.f32 %v353, %v354
  %362 = vadd.xlane.f32.xlu0 %v361
  %v363 = vpop.xlane.xlu0 %362
  %v364 = vadd.f32 %v355, %v356
  %365 = vadd.xlane.f32.xlu0 %v364
  %v366 = vpop.xlane.xlu0 %365
  %v367 = vadd.f32 %v357, %v358
  %368 = vadd.xlane.f32.xlu0 %v367
  %v369 = vpop.xlane.xlu0 %368
  %v370 = vadd.f32 %v359, %v360
  %371 = vadd.xlane.f32.xlu0 %v370
  %v372 = vpop.xlane.xlu0 %371
  %v373 = vmul.f32 %v363, %v340
  %v374 = vmul.f32 %v366, %v340
  %v375 = vmul.f32 %v369, %v340
  %v376 = vmul.f32 %v372, %v340
  %v377 = vadd.f32 %v373, 1e-06
  %v378 = vadd.f32 %v374, 1e-06
  %v379 = vadd.f32 %v375, 1e-06
  %v380 = vadd.f32 %v376, 1e-06
  %v381 = vrsqrt.pop %v377
  %v382 = vrsqrt.pop %v378
  %v383 = vrsqrt.pop %v379
  %v384 = vrsqrt.pop %v380
  %v385 = vmul.f32 %v345, %v381
  %v386 = vmul.f32 %v346, %v381
  %v387 = vmul.f32 %v347, %v382
  %v388 = vmul.f32 %v348, %v382
  %v389 = vmul.f32 %v349, %v383
  %v390 = vmul.f32 %v350, %v383
  %v391 = vmul.f32 %v351, %v384
  %v392 = vmul.f32 %v352, %v384
  %v394 = vlaneseq
  %v395 = vshrl.u32 %v394, 7
  %v396 = vsub.s32 0, %v395
  %v397 = vrot.slane %v326, %v396
  %v398 = vlaneseq
  %v399 = vshrl.u32 %v398, 7
  %v400 = vsub.s32 1, %v399
  %v401 = vrot.slane %v326, %v400
  %v404 = vmul.f32 %v385, %v397
  %v405 = vmul.f32 %v386, %v401
  %v406 = vmul.f32 %v387, %v397
  %v407 = vmul.f32 %v388, %v401
  %v408 = vmul.f32 %v389, %v397
  %v409 = vmul.f32 %v390, %v401
  %v410 = vmul.f32 %v391, %v397
  %v411 = vmul.f32 %v392, %v401
  %v413 = vlaneseq
  %v414 = vshrl.u32 %v413, 7
  %v415 = vsub.s32 0, %v414
  %v416 = vrot.slane %v327, %v415
  %v417 = vlaneseq
  %v418 = vshrl.u32 %v417, 7
  %v419 = vsub.s32 1, %v418
  %v420 = vrot.slane %v327, %v419
  %v423 = vadd.f32 %v404, %v416
  %v424 = vadd.f32 %v405, %v420
  %v425 = vadd.f32 %v406, %v416
  %v426 = vadd.f32 %v407, %v420
  %v427 = vadd.f32 %v408, %v416
  %v428 = vadd.f32 %v409, %v420
  %v429 = vadd.f32 %v410, %v416
  %v430 = vadd.f32 %v411, %v420
  %v431 = vpack.c.bf16 %v425, %v423
  %v432 = vpack.c.bf16 %v426, %v424
  %v433 = vpack.c.bf16 %v429, %v427
  %v434 = vpack.c.bf16 %v430, %v428
  %v435 = vld [vmem:[%s6] sm:$0xff]
  %v436 = vld [vmem:[%s6 + $0x8] sm:$0xff]
  %v437 = vld [vmem:[%s6 + $0x10] sm:$0xff]
  %v438 = vld [vmem:[%s6 + $0x18] sm:$0xff]
  %v439 = vld [vmem:[%s6 + $0x20] sm:$0xff]
  %v440 = vld [vmem:[%s6 + $0x28] sm:$0xff]
  %v441 = vld [vmem:[%s6 + $0x30] sm:$0xff]
  %v442 = vld [vmem:[%s6 + $0x38] sm:$0xff]
  %v443 = vld [vmem:[%s6 + $0x40] sm:$0xff]
  %v444 = vld [vmem:[%s6 + $0x48] sm:$0xff]
  %v445 = vld [vmem:[%s6 + $0x50] sm:$0xff]
  %v446 = vld [vmem:[%s6 + $0x58] sm:$0xff]
  %v447 = vld [vmem:[%s6 + $0x60] sm:$0xff]
  %v448 = vld [vmem:[%s6 + $0x68] sm:$0xff]
  %v449 = vld [vmem:[%s6 + $0x70] sm:$0xff]
  %v450 = vld [vmem:[%s6 + $0x78] sm:$0xff]
  %v451 = vld [vmem:[%s6 + $0x80] sm:$0xff]
  %v452 = vld [vmem:[%s6 + $0x88] sm:$0xff]
  %v453 = vld [vmem:[%s6 + $0x90] sm:$0xff]
  %v454 = vld [vmem:[%s6 + $0x98] sm:$0xff]
  %v455 = vld [vmem:[%s6 + $0xa0] sm:$0xff]
  %v456 = vld [vmem:[%s6 + $0xa8] sm:$0xff]
  %v457 = vld [vmem:[%s6 + $0xb0] sm:$0xff]
  %v458 = vld [vmem:[%s6 + $0xb8] sm:$0xff]
  %v459 = vld [vmem:[%s6 + $0xc0] sm:$0xff]
  %v460 = vld [vmem:[%s6 + $0xc8] sm:$0xff]
  %v461 = vld [vmem:[%s6 + $0xd0] sm:$0xff]
  %v462 = vld [vmem:[%s6 + $0xd8] sm:$0xff]
  %v463 = vld [vmem:[%s6 + $0xe0] sm:$0xff]
  %v464 = vld [vmem:[%s6 + $0xe8] sm:$0xff]
  %v465 = vld [vmem:[%s6 + $0xf0] sm:$0xff]
  %v466 = vld [vmem:[%s6 + $0xf8] sm:$0xff]
  %v467 = vld [vmem:[%s6 + $0x100] sm:$0xff]
  %v468 = vld [vmem:[%s6 + $0x108] sm:$0xff]
  %v469 = vld [vmem:[%s6 + $0x110] sm:$0xff]
  %v470 = vld [vmem:[%s6 + $0x118] sm:$0xff]
  %v471 = vld [vmem:[%s6 + $0x120] sm:$0xff]
  %v472 = vld [vmem:[%s6 + $0x128] sm:$0xff]
  %v473 = vld [vmem:[%s6 + $0x130] sm:$0xff]
  %v474 = vld [vmem:[%s6 + $0x138] sm:$0xff]
  %v475 = vld [vmem:[%s6 + $0x140] sm:$0xff]
  %v476 = vld [vmem:[%s6 + $0x148] sm:$0xff]
  %v477 = vld [vmem:[%s6 + $0x150] sm:$0xff]
  %v478 = vld [vmem:[%s6 + $0x158] sm:$0xff]
  %v479 = vld [vmem:[%s6 + $0x160] sm:$0xff]
  %v480 = vld [vmem:[%s6 + $0x168] sm:$0xff]
  %v481 = vld [vmem:[%s6 + $0x170] sm:$0xff]
  %v482 = vld [vmem:[%s6 + $0x178] sm:$0xff]
  %v483 = vld [vmem:[%s6 + $0x180] sm:$0xff]
  %v484 = vld [vmem:[%s6 + $0x188] sm:$0xff]
  %v485 = vld [vmem:[%s6 + $0x190] sm:$0xff]
  %v486 = vld [vmem:[%s6 + $0x198] sm:$0xff]
  %v487 = vld [vmem:[%s6 + $0x1a0] sm:$0xff]
  %v488 = vld [vmem:[%s6 + $0x1a8] sm:$0xff]
  %v489 = vld [vmem:[%s6 + $0x1b0] sm:$0xff]
  %v490 = vld [vmem:[%s6 + $0x1b8] sm:$0xff]
  %v491 = vld [vmem:[%s6 + $0x1c0] sm:$0xff]
  %v492 = vld [vmem:[%s6 + $0x1c8] sm:$0xff]
  %v493 = vld [vmem:[%s6 + $0x1d0] sm:$0xff]
  %v494 = vld [vmem:[%s6 + $0x1d8] sm:$0xff]
  %v495 = vld [vmem:[%s6 + $0x1e0] sm:$0xff]
  %v496 = vld [vmem:[%s6 + $0x1e8] sm:$0xff]
  %v497 = vld [vmem:[%s6 + $0x1f0] sm:$0xff]
  %v498 = vld [vmem:[%s6 + $0x1f8] sm:$0xff]
  %v499 = vld [vmem:[%s6 + $0x200] sm:$0xff]
  %v500 = vld [vmem:[%s6 + $0x208] sm:$0xff]
  %v501 = vld [vmem:[%s6 + $0x210] sm:$0xff]
  %v502 = vld [vmem:[%s6 + $0x218] sm:$0xff]
  %v503 = vld [vmem:[%s6 + $0x220] sm:$0xff]
  %v504 = vld [vmem:[%s6 + $0x228] sm:$0xff]
  %v505 = vld [vmem:[%s6 + $0x230] sm:$0xff]
  %v506 = vld [vmem:[%s6 + $0x238] sm:$0xff]
  %v507 = vld [vmem:[%s6 + $0x240] sm:$0xff]
  %v508 = vld [vmem:[%s6 + $0x248] sm:$0xff]
  %v509 = vld [vmem:[%s6 + $0x250] sm:$0xff]
  %v510 = vld [vmem:[%s6 + $0x258] sm:$0xff]
  %v511 = vld [vmem:[%s6 + $0x260] sm:$0xff]
  %v512 = vld [vmem:[%s6 + $0x268] sm:$0xff]
  %v513 = vld [vmem:[%s6 + $0x270] sm:$0xff]
  %v514 = vld [vmem:[%s6 + $0x278] sm:$0xff]
  %v515 = vld [vmem:[%s6 + $0x280] sm:$0xff]
  %v516 = vld [vmem:[%s6 + $0x288] sm:$0xff]
  %v517 = vld [vmem:[%s6 + $0x290] sm:$0xff]
  %v518 = vld [vmem:[%s6 + $0x298] sm:$0xff]
  %v519 = vld [vmem:[%s6 + $0x2a0] sm:$0xff]
  %v520 = vld [vmem:[%s6 + $0x2a8] sm:$0xff]
  %v521 = vld [vmem:[%s6 + $0x2b0] sm:$0xff]
  %v522 = vld [vmem:[%s6 + $0x2b8] sm:$0xff]
  %v523 = vld [vmem:[%s6 + $0x2c0] sm:$0xff]
  %v524 = vld [vmem:[%s6 + $0x2c8] sm:$0xff]
  %v525 = vld [vmem:[%s6 + $0x2d0] sm:$0xff]
  %v526 = vld [vmem:[%s6 + $0x2d8] sm:$0xff]
  %v527 = vld [vmem:[%s6 + $0x2e0] sm:$0xff]
  %v528 = vld [vmem:[%s6 + $0x2e8] sm:$0xff]
  %v529 = vld [vmem:[%s6 + $0x2f0] sm:$0xff]
  %v530 = vld [vmem:[%s6 + $0x2f8] sm:$0xff]
  %v531 = vld [vmem:[%s7] sm:$0x3f]
  %v533 = vlaneseq
  %v534 = vshrl.u32 %v533, 7
  %v535 = vsub.s32 0, %v534
  %v536 = vrot.slane %v531, %v535
  %v537 = vlaneseq
  %v538 = vshrl.u32 %v537, 7
  %v539 = vsub.s32 1, %v538
  %v540 = vrot.slane %v531, %v539
  %v541 = vlaneseq
  %v542 = vshrl.u32 %v541, 7
  %v543 = vsub.s32 2, %v542
  %v544 = vrot.slane %v531, %v543
  %v545 = vlaneseq
  %v546 = vshrl.u32 %v545, 7
  %v547 = vsub.s32 3, %v546
  %v548 = vrot.slane %v531, %v547
  %v549 = vlaneseq
  %v550 = vshrl.u32 %v549, 7
  %v551 = vsub.s32 4, %v550
  %v552 = vrot.slane %v531, %v551
  %v553 = vlaneseq
  %v554 = vshrl.u32 %v553, 7
  %v555 = vsub.s32 5, %v554
  %v556 = vrot.slane %v531, %v555
  %v659 = vunpack.c.l.b16 %v435
  %v660 = vunpack.c.h.b16 %v435
  %v661 = vunpack.c.l.b16 %v436
  %v662 = vunpack.c.h.b16 %v436
  %v663 = vunpack.c.l.b16 %v437
  %v664 = vunpack.c.h.b16 %v437
  %v665 = vunpack.c.l.b16 %v438
  %v666 = vunpack.c.h.b16 %v438
  %v667 = vunpack.c.l.b16 %v439
  %v668 = vunpack.c.h.b16 %v439
  %v669 = vunpack.c.l.b16 %v440
  %v670 = vunpack.c.h.b16 %v440
  %v671 = vunpack.c.l.b16 %v441
  %v672 = vunpack.c.h.b16 %v441
  %v673 = vunpack.c.l.b16 %v442
  %v674 = vunpack.c.h.b16 %v442
  %v675 = vunpack.c.l.b16 %v443
  %v676 = vunpack.c.h.b16 %v443
  %v677 = vunpack.c.l.b16 %v444
  %v678 = vunpack.c.h.b16 %v444
  %v679 = vunpack.c.l.b16 %v445
  %v680 = vunpack.c.h.b16 %v445
  %v681 = vunpack.c.l.b16 %v446
  %v682 = vunpack.c.h.b16 %v446
  %v683 = vunpack.c.l.b16 %v447
  %v684 = vunpack.c.h.b16 %v447
  %v685 = vunpack.c.l.b16 %v448
  %v686 = vunpack.c.h.b16 %v448
  %v687 = vunpack.c.l.b16 %v449
  %v688 = vunpack.c.h.b16 %v449
  %v689 = vunpack.c.l.b16 %v450
  %v690 = vunpack.c.h.b16 %v450
  %v691 = vunpack.c.l.b16 %v451
  %v692 = vunpack.c.h.b16 %v451
  %v693 = vunpack.c.l.b16 %v452
  %v694 = vunpack.c.h.b16 %v452
  %v695 = vunpack.c.l.b16 %v453
  %v696 = vunpack.c.h.b16 %v453
  %v697 = vunpack.c.l.b16 %v454
  %v698 = vunpack.c.h.b16 %v454
  %v699 = vunpack.c.l.b16 %v455
  %v700 = vunpack.c.h.b16 %v455
  %v701 = vunpack.c.l.b16 %v456
  %v702 = vunpack.c.h.b16 %v456
  %v703 = vunpack.c.l.b16 %v457
  %v704 = vunpack.c.h.b16 %v457
  %v705 = vunpack.c.l.b16 %v458
  %v706 = vunpack.c.h.b16 %v458
  %v707 = vunpack.c.l.b16 %v459
  %v708 = vunpack.c.h.b16 %v459
  %v709 = vunpack.c.l.b16 %v460
  %v710 = vunpack.c.h.b16 %v460
  %v711 = vunpack.c.l.b16 %v461
  %v712 = vunpack.c.h.b16 %v461
  %v713 = vunpack.c.l.b16 %v462
  %v714 = vunpack.c.h.b16 %v462
  %v715 = vunpack.c.l.b16 %v463
  %v716 = vunpack.c.h.b16 %v463
  %v717 = vunpack.c.l.b16 %v464
  %v718 = vunpack.c.h.b16 %v464
  %v719 = vunpack.c.l.b16 %v465
  %v720 = vunpack.c.h.b16 %v465
  %v721 = vunpack.c.l.b16 %v466
  %v722 = vunpack.c.h.b16 %v466
  %v723 = vunpack.c.l.b16 %v467
  %v724 = vunpack.c.h.b16 %v467
  %v725 = vunpack.c.l.b16 %v468
  %v726 = vunpack.c.h.b16 %v468
  %v727 = vunpack.c.l.b16 %v469
  %v728 = vunpack.c.h.b16 %v469
  %v729 = vunpack.c.l.b16 %v470
  %v730 = vunpack.c.h.b16 %v470
  %v731 = vunpack.c.l.b16 %v471
  %v732 = vunpack.c.h.b16 %v471
  %v733 = vunpack.c.l.b16 %v472
  %v734 = vunpack.c.h.b16 %v472
  %v735 = vunpack.c.l.b16 %v473
  %v736 = vunpack.c.h.b16 %v473
  %v737 = vunpack.c.l.b16 %v474
  %v738 = vunpack.c.h.b16 %v474
  %v739 = vunpack.c.l.b16 %v475
  %v740 = vunpack.c.h.b16 %v475
  %v741 = vunpack.c.l.b16 %v476
  %v742 = vunpack.c.h.b16 %v476
  %v743 = vunpack.c.l.b16 %v477
  %v744 = vunpack.c.h.b16 %v477
  %v745 = vunpack.c.l.b16 %v478
  %v746 = vunpack.c.h.b16 %v478
  %v747 = vunpack.c.l.b16 %v479
  %v748 = vunpack.c.h.b16 %v479
  %v749 = vunpack.c.l.b16 %v480
  %v750 = vunpack.c.h.b16 %v480
  %v751 = vunpack.c.l.b16 %v481
  %v752 = vunpack.c.h.b16 %v481
  %v753 = vunpack.c.l.b16 %v482
  %v754 = vunpack.c.h.b16 %v482
  %v755 = vunpack.c.l.b16 %v483
  %v756 = vunpack.c.h.b16 %v483
  %v757 = vunpack.c.l.b16 %v484
  %v758 = vunpack.c.h.b16 %v484
  %v759 = vunpack.c.l.b16 %v485
  %v760 = vunpack.c.h.b16 %v485
  %v761 = vunpack.c.l.b16 %v486
  %v762 = vunpack.c.h.b16 %v486
  %v763 = vunpack.c.l.b16 %v487
  %v764 = vunpack.c.h.b16 %v487
  %v765 = vunpack.c.l.b16 %v488
  %v766 = vunpack.c.h.b16 %v488
  %v767 = vunpack.c.l.b16 %v489
  %v768 = vunpack.c.h.b16 %v489
  %v769 = vunpack.c.l.b16 %v490
  %v770 = vunpack.c.h.b16 %v490
  %v771 = vunpack.c.l.b16 %v491
  %v772 = vunpack.c.h.b16 %v491
  %v773 = vunpack.c.l.b16 %v492
  %v774 = vunpack.c.h.b16 %v492
  %v775 = vunpack.c.l.b16 %v493
  %v776 = vunpack.c.h.b16 %v493
  %v777 = vunpack.c.l.b16 %v494
  %v778 = vunpack.c.h.b16 %v494
  %v779 = vunpack.c.l.b16 %v495
  %v780 = vunpack.c.h.b16 %v495
  %v781 = vunpack.c.l.b16 %v496
  %v782 = vunpack.c.h.b16 %v496
  %v783 = vunpack.c.l.b16 %v497
  %v784 = vunpack.c.h.b16 %v497
  %v785 = vunpack.c.l.b16 %v498
  %v786 = vunpack.c.h.b16 %v498
  %v787 = vunpack.c.l.b16 %v499
  %v788 = vunpack.c.h.b16 %v499
  %v789 = vunpack.c.l.b16 %v500
  %v790 = vunpack.c.h.b16 %v500
  %v791 = vunpack.c.l.b16 %v501
  %v792 = vunpack.c.h.b16 %v501
  %v793 = vunpack.c.l.b16 %v502
  %v794 = vunpack.c.h.b16 %v502
  %v795 = vunpack.c.l.b16 %v503
  %v796 = vunpack.c.h.b16 %v503
  %v797 = vunpack.c.l.b16 %v504
  %v798 = vunpack.c.h.b16 %v504
  %v799 = vunpack.c.l.b16 %v505
  %v800 = vunpack.c.h.b16 %v505
  %v801 = vunpack.c.l.b16 %v506
  %v802 = vunpack.c.h.b16 %v506
  %v803 = vunpack.c.l.b16 %v507
  %v804 = vunpack.c.h.b16 %v507
  %v805 = vunpack.c.l.b16 %v508
  %v806 = vunpack.c.h.b16 %v508
  %v807 = vunpack.c.l.b16 %v509
  %v808 = vunpack.c.h.b16 %v509
  %v809 = vunpack.c.l.b16 %v510
  %v810 = vunpack.c.h.b16 %v510
  %v811 = vunpack.c.l.b16 %v511
  %v812 = vunpack.c.h.b16 %v511
  %v813 = vunpack.c.l.b16 %v512
  %v814 = vunpack.c.h.b16 %v512
  %v815 = vunpack.c.l.b16 %v513
  %v816 = vunpack.c.h.b16 %v513
  %v817 = vunpack.c.l.b16 %v514
  %v818 = vunpack.c.h.b16 %v514
  %v819 = vunpack.c.l.b16 %v515
  %v820 = vunpack.c.h.b16 %v515
  %v821 = vunpack.c.l.b16 %v516
  %v822 = vunpack.c.h.b16 %v516
  %v823 = vunpack.c.l.b16 %v517
  %v824 = vunpack.c.h.b16 %v517
  %v825 = vunpack.c.l.b16 %v518
  %v826 = vunpack.c.h.b16 %v518
  %v827 = vunpack.c.l.b16 %v519
  %v828 = vunpack.c.h.b16 %v519
  %v829 = vunpack.c.l.b16 %v520
  %v830 = vunpack.c.h.b16 %v520
  %v831 = vunpack.c.l.b16 %v521
  %v832 = vunpack.c.h.b16 %v521
  %v833 = vunpack.c.l.b16 %v522
  %v834 = vunpack.c.h.b16 %v522
  %v835 = vunpack.c.l.b16 %v523
  %v836 = vunpack.c.h.b16 %v523
  %v837 = vunpack.c.l.b16 %v524
  %v838 = vunpack.c.h.b16 %v524
  %v839 = vunpack.c.l.b16 %v525
  %v840 = vunpack.c.h.b16 %v525
  %v841 = vunpack.c.l.b16 %v526
  %v842 = vunpack.c.h.b16 %v526
  %v843 = vunpack.c.l.b16 %v527
  %v844 = vunpack.c.h.b16 %v527
  %v845 = vunpack.c.l.b16 %v528
  %v846 = vunpack.c.h.b16 %v528
  %v847 = vunpack.c.l.b16 %v529
  %v848 = vunpack.c.h.b16 %v529
  %v849 = vunpack.c.l.b16 %v530
  %v850 = vunpack.c.h.b16 %v530
  %v851 = vpack.c.b16 %v665, %v659
  %v852 = vpack.c.b16 %v666, %v660
  %v853 = vpack.c.b16 %v667, %v661
  %v854 = vpack.c.b16 %v668, %v662
  %v855 = vpack.c.b16 %v669, %v663
  %v856 = vpack.c.b16 %v670, %v664
  %v857 = vpack.c.b16 %v677, %v671
  %v858 = vpack.c.b16 %v678, %v672
  %v859 = vpack.c.b16 %v679, %v673
  %v860 = vpack.c.b16 %v680, %v674
  %v861 = vpack.c.b16 %v681, %v675
  %v862 = vpack.c.b16 %v682, %v676
  %v863 = vpack.c.b16 %v689, %v683
  %v864 = vpack.c.b16 %v690, %v684
  %v865 = vpack.c.b16 %v691, %v685
  %v866 = vpack.c.b16 %v692, %v686
  %v867 = vpack.c.b16 %v693, %v687
  %v868 = vpack.c.b16 %v694, %v688
  %v869 = vpack.c.b16 %v701, %v695
  %v870 = vpack.c.b16 %v702, %v696
  %v871 = vpack.c.b16 %v703, %v697
  %v872 = vpack.c.b16 %v704, %v698
  %v873 = vpack.c.b16 %v705, %v699
  %v874 = vpack.c.b16 %v706, %v700
  %v875 = vpack.c.b16 %v713, %v707
  %v876 = vpack.c.b16 %v714, %v708
  %v877 = vpack.c.b16 %v715, %v709
  %v878 = vpack.c.b16 %v716, %v710
  %v879 = vpack.c.b16 %v717, %v711
  %v880 = vpack.c.b16 %v718, %v712
  %v881 = vpack.c.b16 %v725, %v719
  %v882 = vpack.c.b16 %v726, %v720
  %v883 = vpack.c.b16 %v727, %v721
  %v884 = vpack.c.b16 %v728, %v722
  %v885 = vpack.c.b16 %v729, %v723
  %v886 = vpack.c.b16 %v730, %v724
  %v887 = vpack.c.b16 %v737, %v731
  %v888 = vpack.c.b16 %v738, %v732
  %v889 = vpack.c.b16 %v739, %v733
  %v890 = vpack.c.b16 %v740, %v734
  %v891 = vpack.c.b16 %v741, %v735
  %v892 = vpack.c.b16 %v742, %v736
  %v893 = vpack.c.b16 %v749, %v743
  %v894 = vpack.c.b16 %v750, %v744
  %v895 = vpack.c.b16 %v751, %v745
  %v896 = vpack.c.b16 %v752, %v746
  %v897 = vpack.c.b16 %v753, %v747
  %v898 = vpack.c.b16 %v754, %v748
  %v899 = vpack.c.b16 %v761, %v755
  %v900 = vpack.c.b16 %v762, %v756
  %v901 = vpack.c.b16 %v763, %v757
  %v902 = vpack.c.b16 %v764, %v758
  %v903 = vpack.c.b16 %v765, %v759
  %v904 = vpack.c.b16 %v766, %v760
  %v905 = vpack.c.b16 %v773, %v767
  %v906 = vpack.c.b16 %v774, %v768
  %v907 = vpack.c.b16 %v775, %v769
  %v908 = vpack.c.b16 %v776, %v770
  %v909 = vpack.c.b16 %v777, %v771
  %v910 = vpack.c.b16 %v778, %v772
  %v911 = vpack.c.b16 %v785, %v779
  %v912 = vpack.c.b16 %v786, %v780
  %v913 = vpack.c.b16 %v787, %v781
  %v914 = vpack.c.b16 %v788, %v782
  %v915 = vpack.c.b16 %v789, %v783
  %v916 = vpack.c.b16 %v790, %v784
  %v917 = vpack.c.b16 %v797, %v791
  %v918 = vpack.c.b16 %v798, %v792
  %v919 = vpack.c.b16 %v799, %v793
  %v920 = vpack.c.b16 %v800, %v794
  %v921 = vpack.c.b16 %v801, %v795
  %v922 = vpack.c.b16 %v802, %v796
  %v923 = vpack.c.b16 %v809, %v803
  %v924 = vpack.c.b16 %v810, %v804
  %v925 = vpack.c.b16 %v811, %v805
  %v926 = vpack.c.b16 %v812, %v806
  %v927 = vpack.c.b16 %v813, %v807
  %v928 = vpack.c.b16 %v814, %v808
  %v929 = vpack.c.b16 %v821, %v815
  %v930 = vpack.c.b16 %v822, %v816
  %v931 = vpack.c.b16 %v823, %v817
  %v932 = vpack.c.b16 %v824, %v818
  %v933 = vpack.c.b16 %v825, %v819
  %v934 = vpack.c.b16 %v826, %v820
  %v935 = vpack.c.b16 %v833, %v827
  %v936 = vpack.c.b16 %v834, %v828
  %v937 = vpack.c.b16 %v835, %v829
  %v938 = vpack.c.b16 %v836, %v830
  %v939 = vpack.c.b16 %v837, %v831
  %v940 = vpack.c.b16 %v838, %v832
  %v941 = vpack.c.b16 %v845, %v839
  %v942 = vpack.c.b16 %v846, %v840
  %v943 = vpack.c.b16 %v847, %v841
  %v944 = vpack.c.b16 %v848, %v842
  %v945 = vpack.c.b16 %v849, %v843
  %v946 = vpack.c.b16 %v850, %v844
  %1043 = vmatprep.subr.bf16.mxu0 %v852
  %1044 = vmatpush1.bf16.msra.mxu0 %v851
  %1045 = vmatprep.subr.bf16.mxu0 %v858
  %1046 = vmatpush1.bf16.msra.mxu0 %v857
  %1047 = vmatprep.subr.bf16.mxu0 %v864
  %1048 = vmatpush1.bf16.msra.mxu0 %v863
  %1049 = vmatprep.subr.bf16.mxu0 %v870
  %1050 = vmatpush1.bf16.msra.mxu0 %v869
  %1051 = vmatprep.subr.bf16.mxu0 %v876
  %1052 = vmatpush1.bf16.msra.mxu0 %v875
  %1053 = vmatprep.subr.bf16.mxu0 %v882
  %1054 = vmatpush1.bf16.msra.mxu0 %v881
  %1055 = vmatprep.subr.bf16.mxu0 %v888
  %1056 = vmatpush1.bf16.msra.mxu0 %v887
  %1057 = vmatprep.subr.bf16.mxu0 %v894
  %1058 = vmatpush1.bf16.msra.mxu0 %v893
  %1059 = vmatprep.subr.bf16.mxu0 %v900
  %1060 = vmatpush1.bf16.msra.mxu0 %v899
  %1061 = vmatprep.subr.bf16.mxu0 %v906
  %1062 = vmatpush1.bf16.msra.mxu0 %v905
  %1063 = vmatprep.subr.bf16.mxu0 %v912
  %1064 = vmatpush1.bf16.msra.mxu0 %v911
  %1065 = vmatprep.subr.bf16.mxu0 %v918
  %1066 = vmatpush1.bf16.msra.mxu0 %v917
  %1067 = vmatprep.subr.bf16.mxu0 %v924
  %1068 = vmatpush1.bf16.msra.mxu0 %v923
  %1069 = vmatprep.subr.bf16.mxu0 %v930
  %1070 = vmatpush1.bf16.msra.mxu0 %v929
  %1071 = vmatprep.subr.bf16.mxu0 %v936
  %1072 = vmatpush1.bf16.msra.mxu0 %v935
  %1073 = vmatprep.subr.bf16.mxu0 %v942
  %1074 = vmatpush1.bf16.msra.mxu0 %v941
  %1075 = vmatprep.mubr.bf16.mxu0 %v432
  %1076 = vmatmul.mubr.bf16.gmra.mrb[0].mxu0 %v431
  %v1077 = vpop.f32.mrb[0].mxu0
  %v1078 = vadd.f32 %v536, %v1077
  %v1079 = vpop.f32.mrb[0].mxu0
  %v1080 = vadd.f32 %v540, %v1079
  %v1081 = vpop.f32.mrb[0].mxu0
  %v1082 = vadd.f32 %v536, %v1081
  %v1083 = vpop.f32.mrb[0].mxu0
  %v1084 = vadd.f32 %v540, %v1083
  %1085 = vmatprep.mubr.bf16.mxu0 %v434
  %1086 = vmatmul.mubr.bf16.gmra.mrb[0].mxu0 %v433
  %v1087 = vpop.f32.mrb[0].mxu0
  %v1088 = vadd.f32 %v536, %v1087
  %v1089 = vpop.f32.mrb[0].mxu0
  %v1090 = vadd.f32 %v540, %v1089
  %v1091 = vpop.f32.mrb[0].mxu0
  %v1092 = vadd.f32 %v536, %v1091
  %v1093 = vpop.f32.mrb[0].mxu0
  %v1094 = vadd.f32 %v540, %v1093
  %1095 = vdwg.mxu0
  %1096 = vmatprep.subr.bf16.mxu0 %v854
  %1097 = vmatpush1.bf16.msra.mxu0 %v853
  %1098 = vmatprep.subr.bf16.mxu0 %v860
  %1099 = vmatpush1.bf16.msra.mxu0 %v859
  %1100 = vmatprep.subr.bf16.mxu0 %v866
  %1101 = vmatpush1.bf16.msra.mxu0 %v865
  %1102 = vmatprep.subr.bf16.mxu0 %v872
  %1103 = vmatpush1.bf16.msra.mxu0 %v871
  %1104 = vmatprep.subr.bf16.mxu0 %v878
  %1105 = vmatpush1.bf16.msra.mxu0 %v877
  %1106 = vmatprep.subr.bf16.mxu0 %v884
  %1107 = vmatpush1.bf16.msra.mxu0 %v883
  %1108 = vmatprep.subr.bf16.mxu0 %v890
  %1109 = vmatpush1.bf16.msra.mxu0 %v889
  %1110 = vmatprep.subr.bf16.mxu0 %v896
  %1111 = vmatpush1.bf16.msra.mxu0 %v895
  %1112 = vmatprep.subr.bf16.mxu0 %v902
  %1113 = vmatpush1.bf16.msra.mxu0 %v901
  %1114 = vmatprep.subr.bf16.mxu0 %v908
  %1115 = vmatpush1.bf16.msra.mxu0 %v907
  %1116 = vmatprep.subr.bf16.mxu0 %v914
  %1117 = vmatpush1.bf16.msra.mxu0 %v913
  %1118 = vmatprep.subr.bf16.mxu0 %v920
  %1119 = vmatpush1.bf16.msra.mxu0 %v919
  %1120 = vmatprep.subr.bf16.mxu0 %v926
  %1121 = vmatpush1.bf16.msra.mxu0 %v925
  %1122 = vmatprep.subr.bf16.mxu0 %v932
  %1123 = vmatpush1.bf16.msra.mxu0 %v931
  %1124 = vmatprep.subr.bf16.mxu0 %v938
  %1125 = vmatpush1.bf16.msra.mxu0 %v937
  %1126 = vmatprep.subr.bf16.mxu0 %v944
  %1127 = vmatpush1.bf16.msra.mxu0 %v943
  %1128 = vmatprep.mubr.bf16.mxu0 %v432
  %1129 = vmatmul.mubr.bf16.gmra.mrb[0].mxu0 %v431
  %v1130 = vpop.f32.mrb[0].mxu0
  %v1131 = vadd.f32 %v544, %v1130
  %v1132 = vpop.f32.mrb[0].mxu0
  %v1133 = vadd.f32 %v548, %v1132
  %v1134 = vpop.f32.mrb[0].mxu0
  %v1135 = vadd.f32 %v544, %v1134
  %v1136 = vpop.f32.mrb[0].mxu0
  %v1137 = vadd.f32 %v548, %v1136
  %1138 = vmatprep.mubr.bf16.mxu0 %v434
  %1139 = vmatmul.mubr.bf16.gmra.mrb[0].mxu0 %v433
  %v1140 = vpop.f32.mrb[0].mxu0
  %v1141 = vadd.f32 %v544, %v1140
  %v1142 = vpop.f32.mrb[0].mxu0
  %v1143 = vadd.f32 %v548, %v1142
  %v1144 = vpop.f32.mrb[0].mxu0
  %v1145 = vadd.f32 %v544, %v1144
  %v1146 = vpop.f32.mrb[0].mxu0
  %v1147 = vadd.f32 %v548, %v1146
  %1148 = vdwg.mxu0
  %1149 = vmatprep.subr.bf16.mxu0 %v856
  %1150 = vmatpush1.bf16.msra.mxu0 %v855
  %1151 = vmatprep.subr.bf16.mxu0 %v862
  %1152 = vmatpush1.bf16.msra.mxu0 %v861
  %1153 = vmatprep.subr.bf16.mxu0 %v868
  %1154 = vmatpush1.bf16.msra.mxu0 %v867
  %1155 = vmatprep.subr.bf16.mxu0 %v874
  %1156 = vmatpush1.bf16.msra.mxu0 %v873
  %1157 = vmatprep.subr.bf16.mxu0 %v880
  %1158 = vmatpush1.bf16.msra.mxu0 %v879
  %1159 = vmatprep.subr.bf16.mxu0 %v886
  %1160 = vmatpush1.bf16.msra.mxu0 %v885
  %1161 = vmatprep.subr.bf16.mxu0 %v892
  %1162 = vmatpush1.bf16.msra.mxu0 %v891
  %1163 = vmatprep.subr.bf16.mxu0 %v898
  %1164 = vmatpush1.bf16.msra.mxu0 %v897
  %1165 = vmatprep.subr.bf16.mxu0 %v904
  %1166 = vmatpush1.bf16.msra.mxu0 %v903
  %1167 = vmatprep.subr.bf16.mxu0 %v910
  %1168 = vmatpush1.bf16.msra.mxu0 %v909
  %1169 = vmatprep.subr.bf16.mxu0 %v916
  %1170 = vmatpush1.bf16.msra.mxu0 %v915
  %1171 = vmatprep.subr.bf16.mxu0 %v922
  %1172 = vmatpush1.bf16.msra.mxu0 %v921
  %1173 = vmatprep.subr.bf16.mxu0 %v928
  %1174 = vmatpush1.bf16.msra.mxu0 %v927
  %1175 = vmatprep.subr.bf16.mxu0 %v934
  %1176 = vmatpush1.bf16.msra.mxu0 %v933
  %1177 = vmatprep.subr.bf16.mxu0 %v940
  %1178 = vmatpush1.bf16.msra.mxu0 %v939
  %1179 = vmatprep.subr.bf16.mxu0 %v946
  %1180 = vmatpush1.bf16.msra.mxu0 %v945
  %1181 = vmatprep.mubr.bf16.mxu0 %v432
  %1182 = vmatmul.mubr.bf16.gmra.mrb[0].mxu0 %v431
  %v1183 = vpop.f32.mrb[0].mxu0
  %v1184 = vadd.f32 %v552, %v1183
  %v1185 = vpop.f32.mrb[0].mxu0
  %v1186 = vadd.f32 %v556, %v1185
  %v1187 = vpop.f32.mrb[0].mxu0
  %v1188 = vadd.f32 %v552, %v1187
  %v1189 = vpop.f32.mrb[0].mxu0
  %v1190 = vadd.f32 %v556, %v1189
  %1191 = vmatprep.mubr.bf16.mxu0 %v434
  %1192 = vmatmul.mubr.bf16.gmra.mrb[0].mxu0 %v433
  %v1193 = vpop.f32.mrb[0].mxu0
  %v1194 = vadd.f32 %v552, %v1193
  %v1195 = vpop.f32.mrb[0].mxu0
  %v1196 = vadd.f32 %v556, %v1195
  %v1197 = vpop.f32.mrb[0].mxu0
  %v1198 = vadd.f32 %v552, %v1197
  %v1199 = vpop.f32.mrb[0].mxu0
  %v1200 = vadd.f32 %v556, %v1199
  %1201 = vdwg.mxu0
  %v1202 = vpack.c.bf16 %v1082, %v1078
  %v1203 = vpack.c.bf16 %v1084, %v1080
  %v1204 = vpack.c.bf16 %v1135, %v1131
  %v1205 = vpack.c.bf16 %v1137, %v1133
  %v1206 = vpack.c.bf16 %v1188, %v1184
  %v1207 = vpack.c.bf16 %v1190, %v1186
  %v1208 = vpack.c.bf16 %v1092, %v1088
  %v1209 = vpack.c.bf16 %v1094, %v1090
  %v1210 = vpack.c.bf16 %v1145, %v1141
  %v1211 = vpack.c.bf16 %v1147, %v1143
  %v1212 = vpack.c.bf16 %v1198, %v1194
  %v1213 = vpack.c.bf16 %v1200, %v1196
  %1214 = vmatprep.subr.bf16.mxu0 0
  %1215 = vmatpush1.bf16.xpose.msra.mxu0 %v1204
  %1216 = vmatprep.subr.bf16.mxu0 0
  %1217 = vmatpush1.bf16.xpose.msra.mxu0 0
  %1218 = vmatprep.subr.bf16.mxu0 0
  %1219 = vmatpush1.bf16.xpose.msra.mxu0 0
  %1220 = vmatprep.subr.bf16.mxu0 0
  %1221 = vmatpush1.bf16.xpose.msra.mxu0 0
  %1222 = vmatprep.subr.bf16.mxu0 0
  %1223 = vmatpush1.bf16.xpose.msra.mxu0 0
  %1224 = vmatprep.subr.bf16.mxu0 0
  %1225 = vmatpush1.bf16.xpose.msra.mxu0 0
  %1226 = vmatprep.subr.bf16.mxu0 0
  %1227 = vmatpush1.bf16.xpose.msra.mxu0 0
  %1228 = vmatprep.subr.bf16.mxu0 0
  %1229 = vmatpush1.bf16.xpose.msra.mxu0 0
  %1230 = vmatprep.subr.bf16.mxu0 0
  %1231 = vmatpush1.bf16.xpose.msra.mxu0 0
  %1232 = vmatprep.subr.bf16.mxu0 0
  %1233 = vmatpush1.bf16.xpose.msra.mxu0 0
  %1234 = vmatprep.subr.bf16.mxu0 0
  %1235 = vmatpush1.bf16.xpose.msra.mxu0 0
  %1236 = vmatprep.subr.bf16.mxu0 0
  %1237 = vmatpush1.bf16.xpose.msra.mxu0 0
  %1238 = vmatprep.subr.bf16.mxu0 0
  %1239 = vmatpush1.bf16.xpose.msra.mxu0 0
  %1240 = vmatprep.subr.bf16.mxu0 0
  %1241 = vmatpush1.bf16.xpose.msra.mxu0 0
  %1242 = vmatprep.subr.bf16.mxu0 0
  %1243 = vmatpush1.bf16.xpose.msra.mxu0 0
  %1244 = vmatprep.subr.bf16.mxu0 0
  %1245 = vmatpush1.bf16.xpose.msra.mxu0 0
  %1246 = vmatprep.mubr.bf16.mxu0 0
  %1247 = vmatmul.mubr.bf16.gmra.mrb[0].mxu0 %v1202
  %v1248 = vpop.f32.mrb[0].mxu0
  %v1249 = vadd.f32 0.0, %v1248
  %v1250 = vpop.f32.mrb[0].mxu0
  %v1251 = vpop.f32.mrb[0].mxu0
  %v1252 = vadd.f32 0.0, %v1251
  %v1253 = vpop.f32.mrb[0].mxu0
  %1254 = vdwg.mxu0
  %v1255 = vmul.f32 %v1249, 0.088388346
  %v1256 = vmul.f32 %v1252, 0.088388346
  %vm1257 = vcmask 130048
  %v1258 = vsel %vm1257, %v1255, -inf
  %1259 = vmax.xlane.f32.xlu0 %v1258
  %v1260 = vpop.xlane.xlu0 %1259
  %v1261 = vsel %vm1257, %v1256, -inf
  %1262 = vmax.xlane.f32.xlu0 %v1261
  %v1263 = vpop.xlane.xlu0 %1262
  %v1264 = vsub.f32 %v1255, %v1260
  %v1265 = vsub.f32 %v1256, %v1263
  %v1266 = vmul.f32 %v1264, 1.442695
  %v1267 = vpow.pop %v1266
  %v1268 = vmul.f32 %v1265, 1.442695
  %v1269 = vpow.pop %v1268
  %v1270 = vsel %vm1257, %v1267, 0.0
  %1271 = vadd.xlane.f32.xlu0 %v1270
  %v1272 = vpop.xlane.xlu0 %1271
  %v1273 = vsel %vm1257, %v1269, 0.0
  %1274 = vadd.xlane.f32.xlu0 %v1273
  %v1275 = vpop.xlane.xlu0 %1274
  %v1276 = vrcp.pop %v1272
  %v1277 = vrcp.pop %v1275
  %v1278 = vmul.f32 %v1267, %v1276
  %v1279 = vmul.f32 %v1269, %v1277
  %v1280 = vpack.c.bf16 %v1279, %v1278
  %v1282 = vsel %vm1257, %v1280, 0
  %1284 = vmatprep.subr.bf16.mxu0 0
  %1285 = vmatpush1.bf16.msra.mxu0 %v1206
  %1286 = vmatprep.subr.bf16.mxu0 0
  %1287 = vmatpush1.bf16.msra.mxu0 0
  %1288 = vmatprep.subr.bf16.mxu0 0
  %1289 = vmatpush1.bf16.msra.mxu0 0
  %1290 = vmatprep.subr.bf16.mxu0 0
  %1291 = vmatpush1.bf16.msra.mxu0 0
  %1292 = vmatprep.subr.bf16.mxu0 0
  %1293 = vmatpush1.bf16.msra.mxu0 0
  %1294 = vmatprep.subr.bf16.mxu0 0
  %1295 = vmatpush1.bf16.msra.mxu0 0
  %1296 = vmatprep.subr.bf16.mxu0 0
  %1297 = vmatpush1.bf16.msra.mxu0 0
  %1298 = vmatprep.subr.bf16.mxu0 0
  %1299 = vmatpush1.bf16.msra.mxu0 0
  %1300 = vmatprep.subr.bf16.mxu0 0
  %1301 = vmatpush1.bf16.msra.mxu0 0
  %1302 = vmatprep.subr.bf16.mxu0 0
  %1303 = vmatpush1.bf16.msra.mxu0 0
  %1304 = vmatprep.subr.bf16.mxu0 0
  %1305 = vmatpush1.bf16.msra.mxu0 0
  %1306 = vmatprep.subr.bf16.mxu0 0
  %1307 = vmatpush1.bf16.msra.mxu0 0
  %1308 = vmatprep.subr.bf16.mxu0 0
  %1309 = vmatpush1.bf16.msra.mxu0 0
  %1310 = vmatprep.subr.bf16.mxu0 0
  %1311 = vmatpush1.bf16.msra.mxu0 0
  %1312 = vmatprep.subr.bf16.mxu0 0
  %1313 = vmatpush1.bf16.msra.mxu0 0
  %1314 = vmatprep.subr.bf16.mxu0 0
  %1315 = vmatpush1.bf16.msra.mxu0 0
  %1316 = vmatprep.mubr.bf16.mxu0 0
  %1317 = vmatmul.mubr.bf16.gmra.mrb[0].mxu0 %v1282
  %v1318 = vpop.f32.mrb[0].mxu0
  %v1319 = vadd.f32 0.0, %v1318
  %v1320 = vpop.f32.mrb[0].mxu0
  %v1321 = vpop.f32.mrb[0].mxu0
  %v1322 = vadd.f32 0.0, %v1321
  %v1323 = vpop.f32.mrb[0].mxu0
  %1324 = vdwg.mxu0
  %v1325 = vpack.c.bf16 %v1322, %v1319
  %1326 = vmatprep.subr.bf16.mxu0 0
  %1327 = vmatpush1.bf16.xpose.msra.mxu0 %v1205
  %1328 = vmatprep.subr.bf16.mxu0 0
  %1329 = vmatpush1.bf16.xpose.msra.mxu0 0
  %1330 = vmatprep.subr.bf16.mxu0 0
  %1331 = vmatpush1.bf16.xpose.msra.mxu0 0
  %1332 = vmatprep.subr.bf16.mxu0 0
  %1333 = vmatpush1.bf16.xpose.msra.mxu0 0
  %1334 = vmatprep.subr.bf16.mxu0 0
  %1335 = vmatpush1.bf16.xpose.msra.mxu0 0
  %1336 = vmatprep.subr.bf16.mxu0 0
  %1337 = vmatpush1.bf16.xpose.msra.mxu0 0
  %1338 = vmatprep.subr.bf16.mxu0 0
  %1339 = vmatpush1.bf16.xpose.msra.mxu0 0
  %1340 = vmatprep.subr.bf16.mxu0 0
  %1341 = vmatpush1.bf16.xpose.msra.mxu0 0
  %1342 = vmatprep.subr.bf16.mxu0 0
  %1343 = vmatpush1.bf16.xpose.msra.mxu0 0
  %1344 = vmatprep.subr.bf16.mxu0 0
  %1345 = vmatpush1.bf16.xpose.msra.mxu0 0
  %1346 = vmatprep.subr.bf16.mxu0 0
  %1347 = vmatpush1.bf16.xpose.msra.mxu0 0
  %1348 = vmatprep.subr.bf16.mxu0 0
  %1349 = vmatpush1.bf16.xpose.msra.mxu0 0
  %1350 = vmatprep.subr.bf16.mxu0 0
  %1351 = vmatpush1.bf16.xpose.msra.mxu0 0
  %1352 = vmatprep.subr.bf16.mxu0 0
  %1353 = vmatpush1.bf16.xpose.msra.mxu0 0
  %1354 = vmatprep.subr.bf16.mxu0 0
  %1355 = vmatpush1.bf16.xpose.msra.mxu0 0
  %1356 = vmatprep.subr.bf16.mxu0 0
  %1357 = vmatpush1.bf16.xpose.msra.mxu0 0
  %1358 = vmatprep.mubr.bf16.mxu0 0
  %1359 = vmatmul.mubr.bf16.gmra.mrb[0].mxu0 %v1203
  %v1360 = vpop.f32.mrb[0].mxu0
  %v1361 = vadd.f32 0.0, %v1360
  %v1362 = vpop.f32.mrb[0].mxu0
  %v1363 = vpop.f32.mrb[0].mxu0
  %v1364 = vadd.f32 0.0, %v1363
  %v1365 = vpop.f32.mrb[0].mxu0
  %1366 = vdwg.mxu0
  %v1367 = vmul.f32 %v1361, 0.088388346
  %v1368 = vmul.f32 %v1364, 0.088388346
  %v1369 = vsel %vm1257, %v1367, -inf
  %1370 = vmax.xlane.f32.xlu0 %v1369
  %v1371 = vpop.xlane.xlu0 %1370
  %v1372 = vsel %vm1257, %v1368, -inf
  %1373 = vmax.xlane.f32.xlu0 %v1372
  %v1374 = vpop.xlane.xlu0 %1373
  %v1375 = vsub.f32 %v1367, %v1371
  %v1376 = vsub.f32 %v1368, %v1374
  %v1377 = vmul.f32 %v1375, 1.442695
  %v1378 = vpow.pop %v1377
  %v1379 = vmul.f32 %v1376, 1.442695
  %v1380 = vpow.pop %v1379
  %v1381 = vsel %vm1257, %v1378, 0.0
  %1382 = vadd.xlane.f32.xlu0 %v1381
  %v1383 = vpop.xlane.xlu0 %1382
  %v1384 = vsel %vm1257, %v1380, 0.0
  %1385 = vadd.xlane.f32.xlu0 %v1384
  %v1386 = vpop.xlane.xlu0 %1385
  %v1387 = vrcp.pop %v1383
  %v1388 = vrcp.pop %v1386
  %v1389 = vmul.f32 %v1378, %v1387
  %v1390 = vmul.f32 %v1380, %v1388
  %v1391 = vpack.c.bf16 %v1390, %v1389
  %v1393 = vsel %vm1257, %v1391, 0
  %1395 = vmatprep.subr.bf16.mxu0 0
  %1396 = vmatpush1.bf16.msra.mxu0 %v1207
  %1397 = vmatprep.subr.bf16.mxu0 0
  %1398 = vmatpush1.bf16.msra.mxu0 0
  %1399 = vmatprep.subr.bf16.mxu0 0
  %1400 = vmatpush1.bf16.msra.mxu0 0
  %1401 = vmatprep.subr.bf16.mxu0 0
  %1402 = vmatpush1.bf16.msra.mxu0 0
  %1403 = vmatprep.subr.bf16.mxu0 0
  %1404 = vmatpush1.bf16.msra.mxu0 0
  %1405 = vmatprep.subr.bf16.mxu0 0
  %1406 = vmatpush1.bf16.msra.mxu0 0
  %1407 = vmatprep.subr.bf16.mxu0 0
  %1408 = vmatpush1.bf16.msra.mxu0 0
  %1409 = vmatprep.subr.bf16.mxu0 0
  %1410 = vmatpush1.bf16.msra.mxu0 0
  %1411 = vmatprep.subr.bf16.mxu0 0
  %1412 = vmatpush1.bf16.msra.mxu0 0
  %1413 = vmatprep.subr.bf16.mxu0 0
  %1414 = vmatpush1.bf16.msra.mxu0 0
  %1415 = vmatprep.subr.bf16.mxu0 0
  %1416 = vmatpush1.bf16.msra.mxu0 0
  %1417 = vmatprep.subr.bf16.mxu0 0
  %1418 = vmatpush1.bf16.msra.mxu0 0
  %1419 = vmatprep.subr.bf16.mxu0 0
  %1420 = vmatpush1.bf16.msra.mxu0 0
  %1421 = vmatprep.subr.bf16.mxu0 0
  %1422 = vmatpush1.bf16.msra.mxu0 0
  %1423 = vmatprep.subr.bf16.mxu0 0
  %1424 = vmatpush1.bf16.msra.mxu0 0
  %1425 = vmatprep.subr.bf16.mxu0 0
  %1426 = vmatpush1.bf16.msra.mxu0 0
  %1427 = vmatprep.mubr.bf16.mxu0 0
  %1428 = vmatmul.mubr.bf16.gmra.mrb[0].mxu0 %v1393
  %v1429 = vpop.f32.mrb[0].mxu0
  %v1430 = vadd.f32 0.0, %v1429
  %v1431 = vpop.f32.mrb[0].mxu0
  %v1432 = vpop.f32.mrb[0].mxu0
  %v1433 = vadd.f32 0.0, %v1432
  %v1434 = vpop.f32.mrb[0].mxu0
  %1435 = vdwg.mxu0
  %v1436 = vpack.c.bf16 %v1433, %v1430
  %1437 = vmatprep.subr.bf16.mxu0 0
  %1438 = vmatpush1.bf16.xpose.msra.mxu0 %v1210
  %1439 = vmatprep.subr.bf16.mxu0 0
  %1440 = vmatpush1.bf16.xpose.msra.mxu0 0
  %1441 = vmatprep.subr.bf16.mxu0 0
  %1442 = vmatpush1.bf16.xpose.msra.mxu0 0
  %1443 = vmatprep.subr.bf16.mxu0 0
  %1444 = vmatpush1.bf16.xpose.msra.mxu0 0
  %1445 = vmatprep.subr.bf16.mxu0 0
  %1446 = vmatpush1.bf16.xpose.msra.mxu0 0
  %1447 = vmatprep.subr.bf16.mxu0 0
  %1448 = vmatpush1.bf16.xpose.msra.mxu0 0
  %1449 = vmatprep.subr.bf16.mxu0 0
  %1450 = vmatpush1.bf16.xpose.msra.mxu0 0
  %1451 = vmatprep.subr.bf16.mxu0 0
  %1452 = vmatpush1.bf16.xpose.msra.mxu0 0
  %1453 = vmatprep.subr.bf16.mxu0 0
  %1454 = vmatpush1.bf16.xpose.msra.mxu0 0
  %1455 = vmatprep.subr.bf16.mxu0 0
  %1456 = vmatpush1.bf16.xpose.msra.mxu0 0
  %1457 = vmatprep.subr.bf16.mxu0 0
  %1458 = vmatpush1.bf16.xpose.msra.mxu0 0
  %1459 = vmatprep.subr.bf16.mxu0 0
  %1460 = vmatpush1.bf16.xpose.msra.mxu0 0
  %1461 = vmatprep.subr.bf16.mxu0 0
  %1462 = vmatpush1.bf16.xpose.msra.mxu0 0
  %1463 = vmatprep.subr.bf16.mxu0 0
  %1464 = vmatpush1.bf16.xpose.msra.mxu0 0
  %1465 = vmatprep.subr.bf16.mxu0 0
  %1466 = vmatpush1.bf16.xpose.msra.mxu0 0
  %1467 = vmatprep.subr.bf16.mxu0 0
  %1468 = vmatpush1.bf16.xpose.msra.mxu0 0
  %1469 = vmatprep.mubr.bf16.mxu0 0
  %1470 = vmatmul.mubr.bf16.gmra.mrb[0].mxu0 %v1208
  %v1471 = vpop.f32.mrb[0].mxu0
  %v1472 = vadd.f32 0.0, %v1471
  %v1473 = vpop.f32.mrb[0].mxu0
  %v1474 = vpop.f32.mrb[0].mxu0
  %v1475 = vadd.f32 0.0, %v1474
  %v1476 = vpop.f32.mrb[0].mxu0
  %1477 = vdwg.mxu0
  %v1478 = vmul.f32 %v1472, 0.088388346
  %v1479 = vmul.f32 %v1475, 0.088388346
  %v1480 = vsel %vm1257, %v1478, -inf
  %1481 = vmax.xlane.f32.xlu0 %v1480
  %v1482 = vpop.xlane.xlu0 %1481
  %v1483 = vsel %vm1257, %v1479, -inf
  %1484 = vmax.xlane.f32.xlu0 %v1483
  %v1485 = vpop.xlane.xlu0 %1484
  %v1486 = vsub.f32 %v1478, %v1482
  %v1487 = vsub.f32 %v1479, %v1485
  %v1488 = vmul.f32 %v1486, 1.442695
  %v1489 = vpow.pop %v1488
  %v1490 = vmul.f32 %v1487, 1.442695
  %v1491 = vpow.pop %v1490
  %v1492 = vsel %vm1257, %v1489, 0.0
  %1493 = vadd.xlane.f32.xlu0 %v1492
  %v1494 = vpop.xlane.xlu0 %1493
  %v1495 = vsel %vm1257, %v1491, 0.0
  %1496 = vadd.xlane.f32.xlu0 %v1495
  %v1497 = vpop.xlane.xlu0 %1496
  %v1498 = vrcp.pop %v1494
  %v1499 = vrcp.pop %v1497
  %v1500 = vmul.f32 %v1489, %v1498
  %v1501 = vmul.f32 %v1491, %v1499
  %v1502 = vpack.c.bf16 %v1501, %v1500
  %v1504 = vsel %vm1257, %v1502, 0
  %1506 = vmatprep.subr.bf16.mxu0 0
  %1507 = vmatpush1.bf16.msra.mxu0 %v1212
  %1508 = vmatprep.subr.bf16.mxu0 0
  %1509 = vmatpush1.bf16.msra.mxu0 0
  %1510 = vmatprep.subr.bf16.mxu0 0
  %1511 = vmatpush1.bf16.msra.mxu0 0
  %1512 = vmatprep.subr.bf16.mxu0 0
  %1513 = vmatpush1.bf16.msra.mxu0 0
  %1514 = vmatprep.subr.bf16.mxu0 0
  %1515 = vmatpush1.bf16.msra.mxu0 0
  %1516 = vmatprep.subr.bf16.mxu0 0
  %1517 = vmatpush1.bf16.msra.mxu0 0
  %1518 = vmatprep.subr.bf16.mxu0 0
  %1519 = vmatpush1.bf16.msra.mxu0 0
  %1520 = vmatprep.subr.bf16.mxu0 0
  %1521 = vmatpush1.bf16.msra.mxu0 0
  %1522 = vmatprep.subr.bf16.mxu0 0
  %1523 = vmatpush1.bf16.msra.mxu0 0
  %1524 = vmatprep.subr.bf16.mxu0 0
  %1525 = vmatpush1.bf16.msra.mxu0 0
  %1526 = vmatprep.subr.bf16.mxu0 0
  %1527 = vmatpush1.bf16.msra.mxu0 0
  %1528 = vmatprep.subr.bf16.mxu0 0
  %1529 = vmatpush1.bf16.msra.mxu0 0
  %1530 = vmatprep.subr.bf16.mxu0 0
  %1531 = vmatpush1.bf16.msra.mxu0 0
  %1532 = vmatprep.subr.bf16.mxu0 0
  %1533 = vmatpush1.bf16.msra.mxu0 0
  %1534 = vmatprep.subr.bf16.mxu0 0
  %1535 = vmatpush1.bf16.msra.mxu0 0
  %1536 = vmatprep.subr.bf16.mxu0 0
  %1537 = vmatpush1.bf16.msra.mxu0 0
  %1538 = vmatprep.mubr.bf16.mxu0 0
  %1539 = vmatmul.mubr.bf16.gmra.mrb[0].mxu0 %v1504
  %v1540 = vpop.f32.mrb[0].mxu0
  %v1541 = vadd.f32 0.0, %v1540
  %v1542 = vpop.f32.mrb[0].mxu0
  %v1543 = vpop.f32.mrb[0].mxu0
  %v1544 = vadd.f32 0.0, %v1543
  %v1545 = vpop.f32.mrb[0].mxu0
  %1546 = vdwg.mxu0
  %v1547 = vpack.c.bf16 %v1544, %v1541
  %1548 = vmatprep.subr.bf16.mxu0 0
  %1549 = vmatpush1.bf16.xpose.msra.mxu0 %v1211
  %1550 = vmatprep.subr.bf16.mxu0 0
  %1551 = vmatpush1.bf16.xpose.msra.mxu0 0
  %1552 = vmatprep.subr.bf16.mxu0 0
  %1553 = vmatpush1.bf16.xpose.msra.mxu0 0
  %1554 = vmatprep.subr.bf16.mxu0 0
  %1555 = vmatpush1.bf16.xpose.msra.mxu0 0
  %1556 = vmatprep.subr.bf16.mxu0 0
  %1557 = vmatpush1.bf16.xpose.msra.mxu0 0
  %1558 = vmatprep.subr.bf16.mxu0 0
  %1559 = vmatpush1.bf16.xpose.msra.mxu0 0
  %1560 = vmatprep.subr.bf16.mxu0 0
  %1561 = vmatpush1.bf16.xpose.msra.mxu0 0
  %1562 = vmatprep.subr.bf16.mxu0 0
  %1563 = vmatpush1.bf16.xpose.msra.mxu0 0
  %1564 = vmatprep.subr.bf16.mxu0 0
  %1565 = vmatpush1.bf16.xpose.msra.mxu0 0
  %1566 = vmatprep.subr.bf16.mxu0 0
  %1567 = vmatpush1.bf16.xpose.msra.mxu0 0
  %1568 = vmatprep.subr.bf16.mxu0 0
  %1569 = vmatpush1.bf16.xpose.msra.mxu0 0
  %1570 = vmatprep.subr.bf16.mxu0 0
  %1571 = vmatpush1.bf16.xpose.msra.mxu0 0
  %1572 = vmatprep.subr.bf16.mxu0 0
  %1573 = vmatpush1.bf16.xpose.msra.mxu0 0
  %1574 = vmatprep.subr.bf16.mxu0 0
  %1575 = vmatpush1.bf16.xpose.msra.mxu0 0
  %1576 = vmatprep.subr.bf16.mxu0 0
  %1577 = vmatpush1.bf16.xpose.msra.mxu0 0
  %1578 = vmatprep.subr.bf16.mxu0 0
  %1579 = vmatpush1.bf16.xpose.msra.mxu0 0
  %1580 = vmatprep.mubr.bf16.mxu0 0
  %1581 = vmatmul.mubr.bf16.gmra.mrb[0].mxu0 %v1209
  %v1582 = vpop.f32.mrb[0].mxu0
  %v1583 = vadd.f32 0.0, %v1582
  %v1584 = vpop.f32.mrb[0].mxu0
  %v1585 = vpop.f32.mrb[0].mxu0
  %v1586 = vadd.f32 0.0, %v1585
  %v1587 = vpop.f32.mrb[0].mxu0
  %1588 = vdwg.mxu0
  %v1589 = vmul.f32 %v1583, 0.088388346
  %v1590 = vmul.f32 %v1586, 0.088388346
  %v1591 = vsel %vm1257, %v1589, -inf
  %1592 = vmax.xlane.f32.xlu0 %v1591
  %v1593 = vpop.xlane.xlu0 %1592
  %v1594 = vsel %vm1257, %v1590, -inf
  %1595 = vmax.xlane.f32.xlu0 %v1594
  %v1596 = vpop.xlane.xlu0 %1595
  %v1597 = vsub.f32 %v1589, %v1593
  %v1598 = vsub.f32 %v1590, %v1596
  %v1599 = vmul.f32 %v1597, 1.442695
  %v1600 = vpow.pop %v1599
  %v1601 = vmul.f32 %v1598, 1.442695
  %v1602 = vpow.pop %v1601
  %v1603 = vsel %vm1257, %v1600, 0.0
  %1604 = vadd.xlane.f32.xlu0 %v1603
  %v1605 = vpop.xlane.xlu0 %1604
  %v1606 = vsel %vm1257, %v1602, 0.0
  %1607 = vadd.xlane.f32.xlu0 %v1606
  %v1608 = vpop.xlane.xlu0 %1607
  %v1609 = vrcp.pop %v1605
  %v1610 = vrcp.pop %v1608
  %v1611 = vmul.f32 %v1600, %v1609
  %v1612 = vmul.f32 %v1602, %v1610
  %v1613 = vpack.c.bf16 %v1612, %v1611
  %v1615 = vsel %vm1257, %v1613, 0
  %1617 = vmatprep.subr.bf16.mxu0 0
  %1618 = vmatpush1.bf16.msra.mxu0 %v1213
  %1619 = vmatprep.subr.bf16.mxu0 0
  %1620 = vmatpush1.bf16.msra.mxu0 0
  %1621 = vmatprep.subr.bf16.mxu0 0
  %1622 = vmatpush1.bf16.msra.mxu0 0
  %1623 = vmatprep.subr.bf16.mxu0 0
  %1624 = vmatpush1.bf16.msra.mxu0 0
  %1625 = vmatprep.subr.bf16.mxu0 0
  %1626 = vmatpush1.bf16.msra.mxu0 0
  %1627 = vmatprep.subr.bf16.mxu0 0
  %1628 = vmatpush1.bf16.msra.mxu0 0
  %1629 = vmatprep.subr.bf16.mxu0 0
  %1630 = vmatpush1.bf16.msra.mxu0 0
  %1631 = vmatprep.subr.bf16.mxu0 0
  %1632 = vmatpush1.bf16.msra.mxu0 0
  %1633 = vmatprep.subr.bf16.mxu0 0
  %1634 = vmatpush1.bf16.msra.mxu0 0
  %1635 = vmatprep.subr.bf16.mxu0 0
  %1636 = vmatpush1.bf16.msra.mxu0 0
  %1637 = vmatprep.subr.bf16.mxu0 0
  %1638 = vmatpush1.bf16.msra.mxu0 0
  %1639 = vmatprep.subr.bf16.mxu0 0
  %1640 = vmatpush1.bf16.msra.mxu0 0
  %1641 = vmatprep.subr.bf16.mxu0 0
  %1642 = vmatpush1.bf16.msra.mxu0 0
  %1643 = vmatprep.subr.bf16.mxu0 0
  %1644 = vmatpush1.bf16.msra.mxu0 0
  %1645 = vmatprep.subr.bf16.mxu0 0
  %1646 = vmatpush1.bf16.msra.mxu0 0
  %1647 = vmatprep.subr.bf16.mxu0 0
  %1648 = vmatpush1.bf16.msra.mxu0 0
  %1649 = vmatprep.mubr.bf16.mxu0 0
  %1650 = vmatmul.mubr.bf16.gmra.mrb[0].mxu0 %v1615
  %v1651 = vpop.f32.mrb[0].mxu0
  %v1652 = vadd.f32 0.0, %v1651
  %v1653 = vpop.f32.mrb[0].mxu0
  %v1654 = vpop.f32.mrb[0].mxu0
  %v1655 = vadd.f32 0.0, %v1654
  %v1656 = vpop.f32.mrb[0].mxu0
  %1657 = vdwg.mxu0
  %v1658 = vpack.c.bf16 %v1655, %v1652
  %v1659 = vld [vmem:[%s8] sm:$0xff]
  %v1660 = vld [vmem:[%s8 + $0x8] sm:$0xff]
  %v1661 = vld [vmem:[%s8 + $0x10] sm:$0xff]
  %v1662 = vld [vmem:[%s8 + $0x18] sm:$0xff]
  %v1663 = vld [vmem:[%s8 + $0x20] sm:$0xff]
  %v1664 = vld [vmem:[%s8 + $0x28] sm:$0xff]
  %v1665 = vld [vmem:[%s8 + $0x30] sm:$0xff]
  %v1666 = vld [vmem:[%s8 + $0x38] sm:$0xff]
  %v1667 = vld [vmem:[%s8 + $0x40] sm:$0xff]
  %v1668 = vld [vmem:[%s8 + $0x48] sm:$0xff]
  %v1669 = vld [vmem:[%s8 + $0x50] sm:$0xff]
  %v1670 = vld [vmem:[%s8 + $0x58] sm:$0xff]
  %v1671 = vld [vmem:[%s8 + $0x60] sm:$0xff]
  %v1672 = vld [vmem:[%s8 + $0x68] sm:$0xff]
  %v1673 = vld [vmem:[%s8 + $0x70] sm:$0xff]
  %v1674 = vld [vmem:[%s8 + $0x78] sm:$0xff]
  %v1675 = vld [vmem:[%s8 + $0x80] sm:$0xff]
  %v1676 = vld [vmem:[%s8 + $0x88] sm:$0xff]
  %v1677 = vld [vmem:[%s8 + $0x90] sm:$0xff]
  %v1678 = vld [vmem:[%s8 + $0x98] sm:$0xff]
  %v1679 = vld [vmem:[%s8 + $0xa0] sm:$0xff]
  %v1680 = vld [vmem:[%s8 + $0xa8] sm:$0xff]
  %v1681 = vld [vmem:[%s8 + $0xb0] sm:$0xff]
  %v1682 = vld [vmem:[%s8 + $0xb8] sm:$0xff]
  %v1683 = vld [vmem:[%s8 + $0xc0] sm:$0xff]
  %v1684 = vld [vmem:[%s8 + $0xc8] sm:$0xff]
  %v1685 = vld [vmem:[%s8 + $0xd0] sm:$0xff]
  %v1686 = vld [vmem:[%s8 + $0xd8] sm:$0xff]
  %v1687 = vld [vmem:[%s8 + $0xe0] sm:$0xff]
  %v1688 = vld [vmem:[%s8 + $0xe8] sm:$0xff]
  %v1689 = vld [vmem:[%s8 + $0xf0] sm:$0xff]
  %v1690 = vld [vmem:[%s8 + $0xf8] sm:$0xff]
  %v1723 = vunpack.c.l.b16 %v1659
  %v1724 = vunpack.c.h.b16 %v1659
  %v1725 = vunpack.c.l.b16 %v1660
  %v1726 = vunpack.c.h.b16 %v1660
  %v1727 = vunpack.c.l.b16 %v1661
  %v1728 = vunpack.c.h.b16 %v1661
  %v1729 = vunpack.c.l.b16 %v1662
  %v1730 = vunpack.c.h.b16 %v1662
  %v1731 = vunpack.c.l.b16 %v1663
  %v1732 = vunpack.c.h.b16 %v1663
  %v1733 = vunpack.c.l.b16 %v1664
  %v1734 = vunpack.c.h.b16 %v1664
  %v1735 = vunpack.c.l.b16 %v1665
  %v1736 = vunpack.c.h.b16 %v1665
  %v1737 = vunpack.c.l.b16 %v1666
  %v1738 = vunpack.c.h.b16 %v1666
  %v1739 = vunpack.c.l.b16 %v1667
  %v1740 = vunpack.c.h.b16 %v1667
  %v1741 = vunpack.c.l.b16 %v1668
  %v1742 = vunpack.c.h.b16 %v1668
  %v1743 = vunpack.c.l.b16 %v1669
  %v1744 = vunpack.c.h.b16 %v1669
  %v1745 = vunpack.c.l.b16 %v1670
  %v1746 = vunpack.c.h.b16 %v1670
  %v1747 = vunpack.c.l.b16 %v1671
  %v1748 = vunpack.c.h.b16 %v1671
  %v1749 = vunpack.c.l.b16 %v1672
  %v1750 = vunpack.c.h.b16 %v1672
  %v1751 = vunpack.c.l.b16 %v1673
  %v1752 = vunpack.c.h.b16 %v1673
  %v1753 = vunpack.c.l.b16 %v1674
  %v1754 = vunpack.c.h.b16 %v1674
  %v1755 = vunpack.c.l.b16 %v1675
  %v1756 = vunpack.c.h.b16 %v1675
  %v1757 = vunpack.c.l.b16 %v1676
  %v1758 = vunpack.c.h.b16 %v1676
  %v1759 = vunpack.c.l.b16 %v1677
  %v1760 = vunpack.c.h.b16 %v1677
  %v1761 = vunpack.c.l.b16 %v1678
  %v1762 = vunpack.c.h.b16 %v1678
  %v1763 = vunpack.c.l.b16 %v1679
  %v1764 = vunpack.c.h.b16 %v1679
  %v1765 = vunpack.c.l.b16 %v1680
  %v1766 = vunpack.c.h.b16 %v1680
  %v1767 = vunpack.c.l.b16 %v1681
  %v1768 = vunpack.c.h.b16 %v1681
  %v1769 = vunpack.c.l.b16 %v1682
  %v1770 = vunpack.c.h.b16 %v1682
  %v1771 = vunpack.c.l.b16 %v1683
  %v1772 = vunpack.c.h.b16 %v1683
  %v1773 = vunpack.c.l.b16 %v1684
  %v1774 = vunpack.c.h.b16 %v1684
  %v1775 = vunpack.c.l.b16 %v1685
  %v1776 = vunpack.c.h.b16 %v1685
  %v1777 = vunpack.c.l.b16 %v1686
  %v1778 = vunpack.c.h.b16 %v1686
  %v1779 = vunpack.c.l.b16 %v1687
  %v1780 = vunpack.c.h.b16 %v1687
  %v1781 = vunpack.c.l.b16 %v1688
  %v1782 = vunpack.c.h.b16 %v1688
  %v1783 = vunpack.c.l.b16 %v1689
  %v1784 = vunpack.c.h.b16 %v1689
  %v1785 = vunpack.c.l.b16 %v1690
  %v1786 = vunpack.c.h.b16 %v1690
  %v1787 = vpack.c.b16 %v1725, %v1723
  %v1788 = vpack.c.b16 %v1726, %v1724
  %v1789 = vpack.c.b16 %v1729, %v1727
  %v1790 = vpack.c.b16 %v1730, %v1728
  %v1791 = vpack.c.b16 %v1733, %v1731
  %v1792 = vpack.c.b16 %v1734, %v1732
  %v1793 = vpack.c.b16 %v1737, %v1735
  %v1794 = vpack.c.b16 %v1738, %v1736
  %v1795 = vpack.c.b16 %v1741, %v1739
  %v1796 = vpack.c.b16 %v1742, %v1740
  %v1797 = vpack.c.b16 %v1745, %v1743
  %v1798 = vpack.c.b16 %v1746, %v1744
  %v1799 = vpack.c.b16 %v1749, %v1747
  %v1800 = vpack.c.b16 %v1750, %v1748
  %v1801 = vpack.c.b16 %v1753, %v1751
  %v1802 = vpack.c.b16 %v1754, %v1752
  %v1803 = vpack.c.b16 %v1757, %v1755
  %v1804 = vpack.c.b16 %v1758, %v1756
  %v1805 = vpack.c.b16 %v1761, %v1759
  %v1806 = vpack.c.b16 %v1762, %v1760
  %v1807 = vpack.c.b16 %v1765, %v1763
  %v1808 = vpack.c.b16 %v1766, %v1764
  %v1809 = vpack.c.b16 %v1769, %v1767
  %v1810 = vpack.c.b16 %v1770, %v1768
  %v1811 = vpack.c.b16 %v1773, %v1771
  %v1812 = vpack.c.b16 %v1774, %v1772
  %v1813 = vpack.c.b16 %v1777, %v1775
  %v1814 = vpack.c.b16 %v1778, %v1776
  %v1815 = vpack.c.b16 %v1781, %v1779
  %v1816 = vpack.c.b16 %v1782, %v1780
  %v1817 = vpack.c.b16 %v1785, %v1783
  %v1818 = vpack.c.b16 %v1786, %v1784
  %1851 = vmatprep.subr.bf16.mxu0 %v1788
  %1852 = vmatpush1.bf16.msra.mxu0 %v1787
  %1853 = vmatprep.subr.bf16.mxu0 %v1790
  %1854 = vmatpush1.bf16.msra.mxu0 %v1789
  %1855 = vmatprep.subr.bf16.mxu0 %v1792
  %1856 = vmatpush1.bf16.msra.mxu0 %v1791
  %1857 = vmatprep.subr.bf16.mxu0 %v1794
  %1858 = vmatpush1.bf16.msra.mxu0 %v1793
  %1859 = vmatprep.subr.bf16.mxu0 %v1796
  %1860 = vmatpush1.bf16.msra.mxu0 %v1795
  %1861 = vmatprep.subr.bf16.mxu0 %v1798
  %1862 = vmatpush1.bf16.msra.mxu0 %v1797
  %1863 = vmatprep.subr.bf16.mxu0 %v1800
  %1864 = vmatpush1.bf16.msra.mxu0 %v1799
  %1865 = vmatprep.subr.bf16.mxu0 %v1802
  %1866 = vmatpush1.bf16.msra.mxu0 %v1801
  %1867 = vmatprep.subr.bf16.mxu0 %v1804
  %1868 = vmatpush1.bf16.msra.mxu0 %v1803
  %1869 = vmatprep.subr.bf16.mxu0 %v1806
  %1870 = vmatpush1.bf16.msra.mxu0 %v1805
  %1871 = vmatprep.subr.bf16.mxu0 %v1808
  %1872 = vmatpush1.bf16.msra.mxu0 %v1807
  %1873 = vmatprep.subr.bf16.mxu0 %v1810
  %1874 = vmatpush1.bf16.msra.mxu0 %v1809
  %1875 = vmatprep.subr.bf16.mxu0 %v1812
  %1876 = vmatpush1.bf16.msra.mxu0 %v1811
  %1877 = vmatprep.subr.bf16.mxu0 %v1814
  %1878 = vmatpush1.bf16.msra.mxu0 %v1813
  %1879 = vmatprep.subr.bf16.mxu0 %v1816
  %1880 = vmatpush1.bf16.msra.mxu0 %v1815
  %1881 = vmatprep.subr.bf16.mxu0 %v1818
  %1882 = vmatpush1.bf16.msra.mxu0 %v1817
  %1883 = vmatprep.mubr.bf16.mxu0 %v1436
  %1884 = vmatmul.mubr.bf16.gmra.mrb[0].mxu0 %v1325
  %v1885 = vpop.f32.mrb[0].mxu0
  %v1886 = vadd.f32 0.0, %v1885
  %v1887 = vpop.f32.mrb[0].mxu0
  %v1888 = vadd.f32 0.0, %v1887
  %v1889 = vpop.f32.mrb[0].mxu0
  %v1890 = vadd.f32 0.0, %v1889
  %v1891 = vpop.f32.mrb[0].mxu0
  %v1892 = vadd.f32 0.0, %v1891
  %1893 = vmatprep.mubr.bf16.mxu0 %v1658
  %1894 = vmatmul.mubr.bf16.gmra.mrb[0].mxu0 %v1547
  %v1895 = vpop.f32.mrb[0].mxu0
  %v1896 = vadd.f32 0.0, %v1895
  %v1897 = vpop.f32.mrb[0].mxu0
  %v1898 = vadd.f32 0.0, %v1897
  %v1899 = vpop.f32.mrb[0].mxu0
  %v1900 = vadd.f32 0.0, %v1899
  %v1901 = vpop.f32.mrb[0].mxu0
  %v1902 = vadd.f32 0.0, %v1901
  %1903 = vdwg.mxu0
  %v1904 = vadd.f32 %v318, %v1886
  %v1905 = vadd.f32 %v319, %v1888
  %v1906 = vadd.f32 %v320, %v1890
  %v1907 = vadd.f32 %v321, %v1892
  %v1908 = vadd.f32 %v322, %v1896
  %v1909 = vadd.f32 %v323, %v1898
  %v1910 = vadd.f32 %v324, %v1900
  %v1911 = vadd.f32 %v325, %v1902
  %v1912 = vld [vmem:[%s9] sm:$0x3]
  %v1914 = vlaneseq
  %v1915 = vshrl.u32 %v1914, 7
  %v1916 = vsub.s32 0, %v1915
  %v1917 = vrot.slane %v1912, %v1916
  %v1918 = vlaneseq
  %v1919 = vshrl.u32 %v1918, 7
  %v1920 = vsub.s32 1, %v1919
  %v1921 = vrot.slane %v1912, %v1920
  %v1924 = vadd.f32 %v1904, %v1917
  %v1925 = vadd.f32 %v1905, %v1921
  %v1926 = vadd.f32 %v1906, %v1917
  %v1927 = vadd.f32 %v1907, %v1921
  %v1928 = vadd.f32 %v1908, %v1917
  %v1929 = vadd.f32 %v1909, %v1921
  %v1930 = vadd.f32 %v1910, %v1917
  %v1931 = vadd.f32 %v1911, %v1921
  %v1932 = vld [vmem:[%s10] sm:$0x3]
  %v1933 = vld [vmem:[%s11] sm:$0x3]
  %v1934 = vadd.f32 %v1924, %v1925
  %1935 = vadd.xlane.f32.xlu0 %v1934
  %v1936 = vpop.xlane.xlu0 %1935
  %v1937 = vadd.f32 %v1926, %v1927
  %1938 = vadd.xlane.f32.xlu0 %v1937
  %v1939 = vpop.xlane.xlu0 %1938
  %v1940 = vadd.f32 %v1928, %v1929
  %1941 = vadd.xlane.f32.xlu0 %v1940
  %v1942 = vpop.xlane.xlu0 %1941
  %v1943 = vadd.f32 %v1930, %v1931
  %1944 = vadd.xlane.f32.xlu0 %v1943
  %v1945 = vpop.xlane.xlu0 %1944
  %v1946 = vmul.f32 %v1936, %v340
  %v1947 = vmul.f32 %v1939, %v340
  %v1948 = vmul.f32 %v1942, %v340
  %v1949 = vmul.f32 %v1945, %v340
  %v1950 = vsub.f32 %v1924, %v1946
  %v1951 = vsub.f32 %v1925, %v1946
  %v1952 = vsub.f32 %v1926, %v1947
  %v1953 = vsub.f32 %v1927, %v1947
  %v1954 = vsub.f32 %v1928, %v1948
  %v1955 = vsub.f32 %v1929, %v1948
  %v1956 = vsub.f32 %v1930, %v1949
  %v1957 = vsub.f32 %v1931, %v1949
  %v1958 = vmul.f32 %v1950, %v1950
  %v1959 = vmul.f32 %v1951, %v1951
  %v1960 = vmul.f32 %v1952, %v1952
  %v1961 = vmul.f32 %v1953, %v1953
  %v1962 = vmul.f32 %v1954, %v1954
  %v1963 = vmul.f32 %v1955, %v1955
  %v1964 = vmul.f32 %v1956, %v1956
  %v1965 = vmul.f32 %v1957, %v1957
  %v1966 = vadd.f32 %v1958, %v1959
  %1967 = vadd.xlane.f32.xlu0 %v1966
  %v1968 = vpop.xlane.xlu0 %1967
  %v1969 = vadd.f32 %v1960, %v1961
  %1970 = vadd.xlane.f32.xlu0 %v1969
  %v1971 = vpop.xlane.xlu0 %1970
  %v1972 = vadd.f32 %v1962, %v1963
  %1973 = vadd.xlane.f32.xlu0 %v1972
  %v1974 = vpop.xlane.xlu0 %1973
  %v1975 = vadd.f32 %v1964, %v1965
  %1976 = vadd.xlane.f32.xlu0 %v1975
  %v1977 = vpop.xlane.xlu0 %1976
  %v1978 = vmul.f32 %v1968, %v340
  %v1979 = vmul.f32 %v1971, %v340
  %v1980 = vmul.f32 %v1974, %v340
  %v1981 = vmul.f32 %v1977, %v340
  %v1982 = vadd.f32 %v1978, 1e-06
  %v1983 = vadd.f32 %v1979, 1e-06
  %v1984 = vadd.f32 %v1980, 1e-06
  %v1985 = vadd.f32 %v1981, 1e-06
  %v1986 = vrsqrt.pop %v1982
  %v1987 = vrsqrt.pop %v1983
  %v1988 = vrsqrt.pop %v1984
  %v1989 = vrsqrt.pop %v1985
  %v1990 = vmul.f32 %v1950, %v1986
  %v1991 = vmul.f32 %v1951, %v1986
  %v1992 = vmul.f32 %v1952, %v1987
  %v1993 = vmul.f32 %v1953, %v1987
  %v1994 = vmul.f32 %v1954, %v1988
  %v1995 = vmul.f32 %v1955, %v1988
  %v1996 = vmul.f32 %v1956, %v1989
  %v1997 = vmul.f32 %v1957, %v1989
  %v1999 = vlaneseq
  %v2000 = vshrl.u32 %v1999, 7
  %v2001 = vsub.s32 0, %v2000
  %v2002 = vrot.slane %v1932, %v2001
  %v2003 = vlaneseq
  %v2004 = vshrl.u32 %v2003, 7
  %v2005 = vsub.s32 1, %v2004
  %v2006 = vrot.slane %v1932, %v2005
  %v2009 = vmul.f32 %v1990, %v2002
  %v2010 = vmul.f32 %v1991, %v2006
  %v2011 = vmul.f32 %v1992, %v2002
  %v2012 = vmul.f32 %v1993, %v2006
  %v2013 = vmul.f32 %v1994, %v2002
  %v2014 = vmul.f32 %v1995, %v2006
  %v2015 = vmul.f32 %v1996, %v2002
  %v2016 = vmul.f32 %v1997, %v2006
  %v2018 = vlaneseq
  %v2019 = vshrl.u32 %v2018, 7
  %v2020 = vsub.s32 0, %v2019
  %v2021 = vrot.slane %v1933, %v2020
  %v2022 = vlaneseq
  %v2023 = vshrl.u32 %v2022, 7
  %v2024 = vsub.s32 1, %v2023
  %v2025 = vrot.slane %v1933, %v2024
  %v2028 = vadd.f32 %v2009, %v2021
  %v2029 = vadd.f32 %v2010, %v2025
  %v2030 = vadd.f32 %v2011, %v2021
  %v2031 = vadd.f32 %v2012, %v2025
  %v2032 = vadd.f32 %v2013, %v2021
  %v2033 = vadd.f32 %v2014, %v2025
  %v2034 = vadd.f32 %v2015, %v2021
  %v2035 = vadd.f32 %v2016, %v2025
  %v2036 = vld [vmem:[%s12] sm:$0xff]
  %v2037 = vld [vmem:[%s12 + $0x8] sm:$0xff]
  %v2038 = vld [vmem:[%s12 + $0x10] sm:$0xff]
  %v2039 = vld [vmem:[%s12 + $0x18] sm:$0xff]
  %v2040 = vld [vmem:[%s12 + $0x20] sm:$0xff]
  %v2041 = vld [vmem:[%s12 + $0x28] sm:$0xff]
  %v2042 = vld [vmem:[%s12 + $0x30] sm:$0xff]
  %v2043 = vld [vmem:[%s12 + $0x38] sm:$0xff]
  %v2044 = vld [vmem:[%s12 + $0x40] sm:$0xff]
  %v2045 = vld [vmem:[%s12 + $0x48] sm:$0xff]
  %v2046 = vld [vmem:[%s12 + $0x50] sm:$0xff]
  %v2047 = vld [vmem:[%s12 + $0x58] sm:$0xff]
  %v2048 = vld [vmem:[%s12 + $0x60] sm:$0xff]
  %v2049 = vld [vmem:[%s12 + $0x68] sm:$0xff]
  %v2050 = vld [vmem:[%s12 + $0x70] sm:$0xff]
  %v2051 = vld [vmem:[%s12 + $0x78] sm:$0xff]
  %v2052 = vld [vmem:[%s12 + $0x80] sm:$0xff]
  %v2053 = vld [vmem:[%s12 + $0x88] sm:$0xff]
  %v2054 = vld [vmem:[%s12 + $0x90] sm:$0xff]
  %v2055 = vld [vmem:[%s12 + $0x98] sm:$0xff]
  %v2056 = vld [vmem:[%s12 + $0xa0] sm:$0xff]
  %v2057 = vld [vmem:[%s12 + $0xa8] sm:$0xff]
  %v2058 = vld [vmem:[%s12 + $0xb0] sm:$0xff]
  %v2059 = vld [vmem:[%s12 + $0xb8] sm:$0xff]
  %v2060 = vld [vmem:[%s12 + $0xc0] sm:$0xff]
  %v2061 = vld [vmem:[%s12 + $0xc8] sm:$0xff]
  %v2062 = vld [vmem:[%s12 + $0xd0] sm:$0xff]
  %v2063 = vld [vmem:[%s12 + $0xd8] sm:$0xff]
  %v2064 = vld [vmem:[%s12 + $0xe0] sm:$0xff]
  %v2065 = vld [vmem:[%s12 + $0xe8] sm:$0xff]
  %v2066 = vld [vmem:[%s12 + $0xf0] sm:$0xff]
  %v2067 = vld [vmem:[%s12 + $0xf8] sm:$0xff]
  %v2068 = vld [vmem:[%s12 + $0x100] sm:$0xff]
  %v2069 = vld [vmem:[%s12 + $0x108] sm:$0xff]
  %v2070 = vld [vmem:[%s12 + $0x110] sm:$0xff]
  %v2071 = vld [vmem:[%s12 + $0x118] sm:$0xff]
  %v2072 = vld [vmem:[%s12 + $0x120] sm:$0xff]
  %v2073 = vld [vmem:[%s12 + $0x128] sm:$0xff]
  %v2074 = vld [vmem:[%s12 + $0x130] sm:$0xff]
  %v2075 = vld [vmem:[%s12 + $0x138] sm:$0xff]
  %v2076 = vld [vmem:[%s12 + $0x140] sm:$0xff]
  %v2077 = vld [vmem:[%s12 + $0x148] sm:$0xff]
  %v2078 = vld [vmem:[%s12 + $0x150] sm:$0xff]
  %v2079 = vld [vmem:[%s12 + $0x158] sm:$0xff]
  %v2080 = vld [vmem:[%s12 + $0x160] sm:$0xff]
  %v2081 = vld [vmem:[%s12 + $0x168] sm:$0xff]
  %v2082 = vld [vmem:[%s12 + $0x170] sm:$0xff]
  %v2083 = vld [vmem:[%s12 + $0x178] sm:$0xff]
  %v2084 = vld [vmem:[%s12 + $0x180] sm:$0xff]
  %v2085 = vld [vmem:[%s12 + $0x188] sm:$0xff]
  %v2086 = vld [vmem:[%s12 + $0x190] sm:$0xff]
  %v2087 = vld [vmem:[%s12 + $0x198] sm:$0xff]
  %v2088 = vld [vmem:[%s12 + $0x1a0] sm:$0xff]
  %v2089 = vld [vmem:[%s12 + $0x1a8] sm:$0xff]
  %v2090 = vld [vmem:[%s12 + $0x1b0] sm:$0xff]
  %v2091 = vld [vmem:[%s12 + $0x1b8] sm:$0xff]
  %v2092 = vld [vmem:[%s12 + $0x1c0] sm:$0xff]
  %v2093 = vld [vmem:[%s12 + $0x1c8] sm:$0xff]
  %v2094 = vld [vmem:[%s12 + $0x1d0] sm:$0xff]
  %v2095 = vld [vmem:[%s12 + $0x1d8] sm:$0xff]
  %v2096 = vld [vmem:[%s12 + $0x1e0] sm:$0xff]
  %v2097 = vld [vmem:[%s12 + $0x1e8] sm:$0xff]
  %v2098 = vld [vmem:[%s12 + $0x1f0] sm:$0xff]
  %v2099 = vld [vmem:[%s12 + $0x1f8] sm:$0xff]
  %v2100 = vld [vmem:[%s12 + $0x200] sm:$0xff]
  %v2101 = vld [vmem:[%s12 + $0x208] sm:$0xff]
  %v2102 = vld [vmem:[%s12 + $0x210] sm:$0xff]
  %v2103 = vld [vmem:[%s12 + $0x218] sm:$0xff]
  %v2104 = vld [vmem:[%s12 + $0x220] sm:$0xff]
  %v2105 = vld [vmem:[%s12 + $0x228] sm:$0xff]
  %v2106 = vld [vmem:[%s12 + $0x230] sm:$0xff]
  %v2107 = vld [vmem:[%s12 + $0x238] sm:$0xff]
  %v2108 = vld [vmem:[%s12 + $0x240] sm:$0xff]
  %v2109 = vld [vmem:[%s12 + $0x248] sm:$0xff]
  %v2110 = vld [vmem:[%s12 + $0x250] sm:$0xff]
  %v2111 = vld [vmem:[%s12 + $0x258] sm:$0xff]
  %v2112 = vld [vmem:[%s12 + $0x260] sm:$0xff]
  %v2113 = vld [vmem:[%s12 + $0x268] sm:$0xff]
  %v2114 = vld [vmem:[%s12 + $0x270] sm:$0xff]
  %v2115 = vld [vmem:[%s12 + $0x278] sm:$0xff]
  %v2116 = vld [vmem:[%s12 + $0x280] sm:$0xff]
  %v2117 = vld [vmem:[%s12 + $0x288] sm:$0xff]
  %v2118 = vld [vmem:[%s12 + $0x290] sm:$0xff]
  %v2119 = vld [vmem:[%s12 + $0x298] sm:$0xff]
  %v2120 = vld [vmem:[%s12 + $0x2a0] sm:$0xff]
  %v2121 = vld [vmem:[%s12 + $0x2a8] sm:$0xff]
  %v2122 = vld [vmem:[%s12 + $0x2b0] sm:$0xff]
  %v2123 = vld [vmem:[%s12 + $0x2b8] sm:$0xff]
  %v2124 = vld [vmem:[%s12 + $0x2c0] sm:$0xff]
  %v2125 = vld [vmem:[%s12 + $0x2c8] sm:$0xff]
  %v2126 = vld [vmem:[%s12 + $0x2d0] sm:$0xff]
  %v2127 = vld [vmem:[%s12 + $0x2d8] sm:$0xff]
  %v2128 = vld [vmem:[%s12 + $0x2e0] sm:$0xff]
  %v2129 = vld [vmem:[%s12 + $0x2e8] sm:$0xff]
  %v2130 = vld [vmem:[%s12 + $0x2f0] sm:$0xff]
  %v2131 = vld [vmem:[%s12 + $0x2f8] sm:$0xff]
  %v2132 = vld [vmem:[%s12 + $0x300] sm:$0xff]
  %v2133 = vld [vmem:[%s12 + $0x308] sm:$0xff]
  %v2134 = vld [vmem:[%s12 + $0x310] sm:$0xff]
  %v2135 = vld [vmem:[%s12 + $0x318] sm:$0xff]
  %v2136 = vld [vmem:[%s12 + $0x320] sm:$0xff]
  %v2137 = vld [vmem:[%s12 + $0x328] sm:$0xff]
  %v2138 = vld [vmem:[%s12 + $0x330] sm:$0xff]
  %v2139 = vld [vmem:[%s12 + $0x338] sm:$0xff]
  %v2140 = vld [vmem:[%s12 + $0x340] sm:$0xff]
  %v2141 = vld [vmem:[%s12 + $0x348] sm:$0xff]
  %v2142 = vld [vmem:[%s12 + $0x350] sm:$0xff]
  %v2143 = vld [vmem:[%s12 + $0x358] sm:$0xff]
  %v2144 = vld [vmem:[%s12 + $0x360] sm:$0xff]
  %v2145 = vld [vmem:[%s12 + $0x368] sm:$0xff]
  %v2146 = vld [vmem:[%s12 + $0x370] sm:$0xff]
  %v2147 = vld [vmem:[%s12 + $0x378] sm:$0xff]
  %v2148 = vld [vmem:[%s12 + $0x380] sm:$0xff]
  %v2149 = vld [vmem:[%s12 + $0x388] sm:$0xff]
  %v2150 = vld [vmem:[%s12 + $0x390] sm:$0xff]
  %v2151 = vld [vmem:[%s12 + $0x398] sm:$0xff]
  %v2152 = vld [vmem:[%s12 + $0x3a0] sm:$0xff]
  %v2153 = vld [vmem:[%s12 + $0x3a8] sm:$0xff]
  %v2154 = vld [vmem:[%s12 + $0x3b0] sm:$0xff]
  %v2155 = vld [vmem:[%s12 + $0x3b8] sm:$0xff]
  %v2156 = vld [vmem:[%s12 + $0x3c0] sm:$0xff]
  %v2157 = vld [vmem:[%s12 + $0x3c8] sm:$0xff]
  %v2158 = vld [vmem:[%s12 + $0x3d0] sm:$0xff]
  %v2159 = vld [vmem:[%s12 + $0x3d8] sm:$0xff]
  %v2160 = vld [vmem:[%s12 + $0x3e0] sm:$0xff]
  %v2161 = vld [vmem:[%s12 + $0x3e8] sm:$0xff]
  %v2162 = vld [vmem:[%s12 + $0x3f0] sm:$0xff]
  %v2163 = vld [vmem:[%s12 + $0x3f8] sm:$0xff]
  %v2164 = vld [vmem:[%s13] sm:$0xff]
  %v2165 = vpack.c.bf16 %v2030, %v2028
  %v2166 = vpack.c.bf16 %v2031, %v2029
  %v2167 = vpack.c.bf16 %v2034, %v2032
  %v2168 = vpack.c.bf16 %v2035, %v2033
  %v2170 = vlaneseq
  %v2171 = vshrl.u32 %v2170, 7
  %v2172 = vsub.s32 0, %v2171
  %v2173 = vrot.slane %v2164, %v2172
  %v2174 = vlaneseq
  %v2175 = vshrl.u32 %v2174, 7
  %v2176 = vsub.s32 1, %v2175
  %v2177 = vrot.slane %v2164, %v2176
  %v2178 = vlaneseq
  %v2179 = vshrl.u32 %v2178, 7
  %v2180 = vsub.s32 2, %v2179
  %v2181 = vrot.slane %v2164, %v2180
  %v2182 = vlaneseq
  %v2183 = vshrl.u32 %v2182, 7
  %v2184 = vsub.s32 3, %v2183
  %v2185 = vrot.slane %v2164, %v2184
  %v2186 = vlaneseq
  %v2187 = vshrl.u32 %v2186, 7
  %v2188 = vsub.s32 4, %v2187
  %v2189 = vrot.slane %v2164, %v2188
  %v2190 = vlaneseq
  %v2191 = vshrl.u32 %v2190, 7
  %v2192 = vsub.s32 5, %v2191
  %v2193 = vrot.slane %v2164, %v2192
  %v2194 = vlaneseq
  %v2195 = vshrl.u32 %v2194, 7
  %v2196 = vsub.s32 6, %v2195
  %v2197 = vrot.slane %v2164, %v2196
  %v2198 = vlaneseq
  %v2199 = vshrl.u32 %v2198, 7
  %v2200 = vsub.s32 7, %v2199
  %v2201 = vrot.slane %v2164, %v2200
  %v2338 = vunpack.c.l.b16 %v2036
  %v2339 = vunpack.c.h.b16 %v2036
  %v2340 = vunpack.c.l.b16 %v2037
  %v2341 = vunpack.c.h.b16 %v2037
  %v2342 = vunpack.c.l.b16 %v2038
  %v2343 = vunpack.c.h.b16 %v2038
  %v2344 = vunpack.c.l.b16 %v2039
  %v2345 = vunpack.c.h.b16 %v2039
  %v2346 = vunpack.c.l.b16 %v2040
  %v2347 = vunpack.c.h.b16 %v2040
  %v2348 = vunpack.c.l.b16 %v2041
  %v2349 = vunpack.c.h.b16 %v2041
  %v2350 = vunpack.c.l.b16 %v2042
  %v2351 = vunpack.c.h.b16 %v2042
  %v2352 = vunpack.c.l.b16 %v2043
  %v2353 = vunpack.c.h.b16 %v2043
  %v2354 = vunpack.c.l.b16 %v2044
  %v2355 = vunpack.c.h.b16 %v2044
  %v2356 = vunpack.c.l.b16 %v2045
  %v2357 = vunpack.c.h.b16 %v2045
  %v2358 = vunpack.c.l.b16 %v2046
  %v2359 = vunpack.c.h.b16 %v2046
  %v2360 = vunpack.c.l.b16 %v2047
  %v2361 = vunpack.c.h.b16 %v2047
  %v2362 = vunpack.c.l.b16 %v2048
  %v2363 = vunpack.c.h.b16 %v2048
  %v2364 = vunpack.c.l.b16 %v2049
  %v2365 = vunpack.c.h.b16 %v2049
  %v2366 = vunpack.c.l.b16 %v2050
  %v2367 = vunpack.c.h.b16 %v2050
  %v2368 = vunpack.c.l.b16 %v2051
  %v2369 = vunpack.c.h.b16 %v2051
  %v2370 = vunpack.c.l.b16 %v2052
  %v2371 = vunpack.c.h.b16 %v2052
  %v2372 = vunpack.c.l.b16 %v2053
  %v2373 = vunpack.c.h.b16 %v2053
  %v2374 = vunpack.c.l.b16 %v2054
  %v2375 = vunpack.c.h.b16 %v2054
  %v2376 = vunpack.c.l.b16 %v2055
  %v2377 = vunpack.c.h.b16 %v2055
  %v2378 = vunpack.c.l.b16 %v2056
  %v2379 = vunpack.c.h.b16 %v2056
  %v2380 = vunpack.c.l.b16 %v2057
  %v2381 = vunpack.c.h.b16 %v2057
  %v2382 = vunpack.c.l.b16 %v2058
  %v2383 = vunpack.c.h.b16 %v2058
  %v2384 = vunpack.c.l.b16 %v2059
  %v2385 = vunpack.c.h.b16 %v2059
  %v2386 = vunpack.c.l.b16 %v2060
  %v2387 = vunpack.c.h.b16 %v2060
  %v2388 = vunpack.c.l.b16 %v2061
  %v2389 = vunpack.c.h.b16 %v2061
  %v2390 = vunpack.c.l.b16 %v2062
  %v2391 = vunpack.c.h.b16 %v2062
  %v2392 = vunpack.c.l.b16 %v2063
  %v2393 = vunpack.c.h.b16 %v2063
  %v2394 = vunpack.c.l.b16 %v2064
  %v2395 = vunpack.c.h.b16 %v2064
  %v2396 = vunpack.c.l.b16 %v2065
  %v2397 = vunpack.c.h.b16 %v2065
  %v2398 = vunpack.c.l.b16 %v2066
  %v2399 = vunpack.c.h.b16 %v2066
  %v2400 = vunpack.c.l.b16 %v2067
  %v2401 = vunpack.c.h.b16 %v2067
  %v2402 = vunpack.c.l.b16 %v2068
  %v2403 = vunpack.c.h.b16 %v2068
  %v2404 = vunpack.c.l.b16 %v2069
  %v2405 = vunpack.c.h.b16 %v2069
  %v2406 = vunpack.c.l.b16 %v2070
  %v2407 = vunpack.c.h.b16 %v2070
  %v2408 = vunpack.c.l.b16 %v2071
  %v2409 = vunpack.c.h.b16 %v2071
  %v2410 = vunpack.c.l.b16 %v2072
  %v2411 = vunpack.c.h.b16 %v2072
  %v2412 = vunpack.c.l.b16 %v2073
  %v2413 = vunpack.c.h.b16 %v2073
  %v2414 = vunpack.c.l.b16 %v2074
  %v2415 = vunpack.c.h.b16 %v2074
  %v2416 = vunpack.c.l.b16 %v2075
  %v2417 = vunpack.c.h.b16 %v2075
  %v2418 = vunpack.c.l.b16 %v2076
  %v2419 = vunpack.c.h.b16 %v2076
  %v2420 = vunpack.c.l.b16 %v2077
  %v2421 = vunpack.c.h.b16 %v2077
  %v2422 = vunpack.c.l.b16 %v2078
  %v2423 = vunpack.c.h.b16 %v2078
  %v2424 = vunpack.c.l.b16 %v2079
  %v2425 = vunpack.c.h.b16 %v2079
  %v2426 = vunpack.c.l.b16 %v2080
  %v2427 = vunpack.c.h.b16 %v2080
  %v2428 = vunpack.c.l.b16 %v2081
  %v2429 = vunpack.c.h.b16 %v2081
  %v2430 = vunpack.c.l.b16 %v2082
  %v2431 = vunpack.c.h.b16 %v2082
  %v2432 = vunpack.c.l.b16 %v2083
  %v2433 = vunpack.c.h.b16 %v2083
  %v2434 = vunpack.c.l.b16 %v2084
  %v2435 = vunpack.c.h.b16 %v2084
  %v2436 = vunpack.c.l.b16 %v2085
  %v2437 = vunpack.c.h.b16 %v2085
  %v2438 = vunpack.c.l.b16 %v2086
  %v2439 = vunpack.c.h.b16 %v2086
  %v2440 = vunpack.c.l.b16 %v2087
  %v2441 = vunpack.c.h.b16 %v2087
  %v2442 = vunpack.c.l.b16 %v2088
  %v2443 = vunpack.c.h.b16 %v2088
  %v2444 = vunpack.c.l.b16 %v2089
  %v2445 = vunpack.c.h.b16 %v2089
  %v2446 = vunpack.c.l.b16 %v2090
  %v2447 = vunpack.c.h.b16 %v2090
  %v2448 = vunpack.c.l.b16 %v2091
  %v2449 = vunpack.c.h.b16 %v2091
  %v2450 = vunpack.c.l.b16 %v2092
  %v2451 = vunpack.c.h.b16 %v2092
  %v2452 = vunpack.c.l.b16 %v2093
  %v2453 = vunpack.c.h.b16 %v2093
  %v2454 = vunpack.c.l.b16 %v2094
  %v2455 = vunpack.c.h.b16 %v2094
  %v2456 = vunpack.c.l.b16 %v2095
  %v2457 = vunpack.c.h.b16 %v2095
  %v2458 = vunpack.c.l.b16 %v2096
  %v2459 = vunpack.c.h.b16 %v2096
  %v2460 = vunpack.c.l.b16 %v2097
  %v2461 = vunpack.c.h.b16 %v2097
  %v2462 = vunpack.c.l.b16 %v2098
  %v2463 = vunpack.c.h.b16 %v2098
  %v2464 = vunpack.c.l.b16 %v2099
  %v2465 = vunpack.c.h.b16 %v2099
  %v2466 = vunpack.c.l.b16 %v2100
  %v2467 = vunpack.c.h.b16 %v2100
  %v2468 = vunpack.c.l.b16 %v2101
  %v2469 = vunpack.c.h.b16 %v2101
  %v2470 = vunpack.c.l.b16 %v2102
  %v2471 = vunpack.c.h.b16 %v2102
  %v2472 = vunpack.c.l.b16 %v2103
  %v2473 = vunpack.c.h.b16 %v2103
  %v2474 = vunpack.c.l.b16 %v2104
  %v2475 = vunpack.c.h.b16 %v2104
  %v2476 = vunpack.c.l.b16 %v2105
  %v2477 = vunpack.c.h.b16 %v2105
  %v2478 = vunpack.c.l.b16 %v2106
  %v2479 = vunpack.c.h.b16 %v2106
  %v2480 = vunpack.c.l.b16 %v2107
  %v2481 = vunpack.c.h.b16 %v2107
  %v2482 = vunpack.c.l.b16 %v2108
  %v2483 = vunpack.c.h.b16 %v2108
  %v2484 = vunpack.c.l.b16 %v2109
  %v2485 = vunpack.c.h.b16 %v2109
  %v2486 = vunpack.c.l.b16 %v2110
  %v2487 = vunpack.c.h.b16 %v2110
  %v2488 = vunpack.c.l.b16 %v2111
  %v2489 = vunpack.c.h.b16 %v2111
  %v2490 = vunpack.c.l.b16 %v2112
  %v2491 = vunpack.c.h.b16 %v2112
  %v2492 = vunpack.c.l.b16 %v2113
  %v2493 = vunpack.c.h.b16 %v2113
  %v2494 = vunpack.c.l.b16 %v2114
  %v2495 = vunpack.c.h.b16 %v2114
  %v2496 = vunpack.c.l.b16 %v2115
  %v2497 = vunpack.c.h.b16 %v2115
  %v2498 = vunpack.c.l.b16 %v2116
  %v2499 = vunpack.c.h.b16 %v2116
  %v2500 = vunpack.c.l.b16 %v2117
  %v2501 = vunpack.c.h.b16 %v2117
  %v2502 = vunpack.c.l.b16 %v2118
  %v2503 = vunpack.c.h.b16 %v2118
  %v2504 = vunpack.c.l.b16 %v2119
  %v2505 = vunpack.c.h.b16 %v2119
  %v2506 = vunpack.c.l.b16 %v2120
  %v2507 = vunpack.c.h.b16 %v2120
  %v2508 = vunpack.c.l.b16 %v2121
  %v2509 = vunpack.c.h.b16 %v2121
  %v2510 = vunpack.c.l.b16 %v2122
  %v2511 = vunpack.c.h.b16 %v2122
  %v2512 = vunpack.c.l.b16 %v2123
  %v2513 = vunpack.c.h.b16 %v2123
  %v2514 = vunpack.c.l.b16 %v2124
  %v2515 = vunpack.c.h.b16 %v2124
  %v2516 = vunpack.c.l.b16 %v2125
  %v2517 = vunpack.c.h.b16 %v2125
  %v2518 = vunpack.c.l.b16 %v2126
  %v2519 = vunpack.c.h.b16 %v2126
  %v2520 = vunpack.c.l.b16 %v2127
  %v2521 = vunpack.c.h.b16 %v2127
  %v2522 = vunpack.c.l.b16 %v2128
  %v2523 = vunpack.c.h.b16 %v2128
  %v2524 = vunpack.c.l.b16 %v2129
  %v2525 = vunpack.c.h.b16 %v2129
  %v2526 = vunpack.c.l.b16 %v2130
  %v2527 = vunpack.c.h.b16 %v2130
  %v2528 = vunpack.c.l.b16 %v2131
  %v2529 = vunpack.c.h.b16 %v2131
  %v2530 = vunpack.c.l.b16 %v2132
  %v2531 = vunpack.c.h.b16 %v2132
  %v2532 = vunpack.c.l.b16 %v2133
  %v2533 = vunpack.c.h.b16 %v2133
  %v2534 = vunpack.c.l.b16 %v2134
  %v2535 = vunpack.c.h.b16 %v2134
  %v2536 = vunpack.c.l.b16 %v2135
  %v2537 = vunpack.c.h.b16 %v2135
  %v2538 = vunpack.c.l.b16 %v2136
  %v2539 = vunpack.c.h.b16 %v2136
  %v2540 = vunpack.c.l.b16 %v2137
  %v2541 = vunpack.c.h.b16 %v2137
  %v2542 = vunpack.c.l.b16 %v2138
  %v2543 = vunpack.c.h.b16 %v2138
  %v2544 = vunpack.c.l.b16 %v2139
  %v2545 = vunpack.c.h.b16 %v2139
  %v2546 = vunpack.c.l.b16 %v2140
  %v2547 = vunpack.c.h.b16 %v2140
  %v2548 = vunpack.c.l.b16 %v2141
  %v2549 = vunpack.c.h.b16 %v2141
  %v2550 = vunpack.c.l.b16 %v2142
  %v2551 = vunpack.c.h.b16 %v2142
  %v2552 = vunpack.c.l.b16 %v2143
  %v2553 = vunpack.c.h.b16 %v2143
  %v2554 = vunpack.c.l.b16 %v2144
  %v2555 = vunpack.c.h.b16 %v2144
  %v2556 = vunpack.c.l.b16 %v2145
  %v2557 = vunpack.c.h.b16 %v2145
  %v2558 = vunpack.c.l.b16 %v2146
  %v2559 = vunpack.c.h.b16 %v2146
  %v2560 = vunpack.c.l.b16 %v2147
  %v2561 = vunpack.c.h.b16 %v2147
  %v2562 = vunpack.c.l.b16 %v2148
  %v2563 = vunpack.c.h.b16 %v2148
  %v2564 = vunpack.c.l.b16 %v2149
  %v2565 = vunpack.c.h.b16 %v2149
  %v2566 = vunpack.c.l.b16 %v2150
  %v2567 = vunpack.c.h.b16 %v2150
  %v2568 = vunpack.c.l.b16 %v2151
  %v2569 = vunpack.c.h.b16 %v2151
  %v2570 = vunpack.c.l.b16 %v2152
  %v2571 = vunpack.c.h.b16 %v2152
  %v2572 = vunpack.c.l.b16 %v2153
  %v2573 = vunpack.c.h.b16 %v2153
  %v2574 = vunpack.c.l.b16 %v2154
  %v2575 = vunpack.c.h.b16 %v2154
  %v2576 = vunpack.c.l.b16 %v2155
  %v2577 = vunpack.c.h.b16 %v2155
  %v2578 = vunpack.c.l.b16 %v2156
  %v2579 = vunpack.c.h.b16 %v2156
  %v2580 = vunpack.c.l.b16 %v2157
  %v2581 = vunpack.c.h.b16 %v2157
  %v2582 = vunpack.c.l.b16 %v2158
  %v2583 = vunpack.c.h.b16 %v2158
  %v2584 = vunpack.c.l.b16 %v2159
  %v2585 = vunpack.c.h.b16 %v2159
  %v2586 = vunpack.c.l.b16 %v2160
  %v2587 = vunpack.c.h.b16 %v2160
  %v2588 = vunpack.c.l.b16 %v2161
  %v2589 = vunpack.c.h.b16 %v2161
  %v2590 = vunpack.c.l.b16 %v2162
  %v2591 = vunpack.c.h.b16 %v2162
  %v2592 = vunpack.c.l.b16 %v2163
  %v2593 = vunpack.c.h.b16 %v2163
  %v2594 = vpack.c.b16 %v2346, %v2338
  %v2595 = vpack.c.b16 %v2347, %v2339
  %v2596 = vpack.c.b16 %v2348, %v2340
  %v2597 = vpack.c.b16 %v2349, %v2341
  %v2598 = vpack.c.b16 %v2350, %v2342
  %v2599 = vpack.c.b16 %v2351, %v2343
  %v2600 = vpack.c.b16 %v2352, %v2344
  %v2601 = vpack.c.b16 %v2353, %v2345
  %v2602 = vpack.c.b16 %v2362, %v2354
  %v2603 = vpack.c.b16 %v2363, %v2355
  %v2604 = vpack.c.b16 %v2364, %v2356
  %v2605 = vpack.c.b16 %v2365, %v2357
  %v2606 = vpack.c.b16 %v2366, %v2358
  %v2607 = vpack.c.b16 %v2367, %v2359
  %v2608 = vpack.c.b16 %v2368, %v2360
  %v2609 = vpack.c.b16 %v2369, %v2361
  %v2610 = vpack.c.b16 %v2378, %v2370
  %v2611 = vpack.c.b16 %v2379, %v2371
  %v2612 = vpack.c.b16 %v2380, %v2372
  %v2613 = vpack.c.b16 %v2381, %v2373
  %v2614 = vpack.c.b16 %v2382, %v2374
  %v2615 = vpack.c.b16 %v2383, %v2375
  %v2616 = vpack.c.b16 %v2384, %v2376
  %v2617 = vpack.c.b16 %v2385, %v2377
  %v2618 = vpack.c.b16 %v2394, %v2386
  %v2619 = vpack.c.b16 %v2395, %v2387
  %v2620 = vpack.c.b16 %v2396, %v2388
  %v2621 = vpack.c.b16 %v2397, %v2389
  %v2622 = vpack.c.b16 %v2398, %v2390
  %v2623 = vpack.c.b16 %v2399, %v2391
  %v2624 = vpack.c.b16 %v2400, %v2392
  %v2625 = vpack.c.b16 %v2401, %v2393
  %v2626 = vpack.c.b16 %v2410, %v2402
  %v2627 = vpack.c.b16 %v2411, %v2403
  %v2628 = vpack.c.b16 %v2412, %v2404
  %v2629 = vpack.c.b16 %v2413, %v2405
  %v2630 = vpack.c.b16 %v2414, %v2406
  %v2631 = vpack.c.b16 %v2415, %v2407
  %v2632 = vpack.c.b16 %v2416, %v2408
  %v2633 = vpack.c.b16 %v2417, %v2409
  %v2634 = vpack.c.b16 %v2426, %v2418
  %v2635 = vpack.c.b16 %v2427, %v2419
  %v2636 = vpack.c.b16 %v2428, %v2420
  %v2637 = vpack.c.b16 %v2429, %v2421
  %v2638 = vpack.c.b16 %v2430, %v2422
  %v2639 = vpack.c.b16 %v2431, %v2423
  %v2640 = vpack.c.b16 %v2432, %v2424
  %v2641 = vpack.c.b16 %v2433, %v2425
  %v2642 = vpack.c.b16 %v2442, %v2434
  %v2643 = vpack.c.b16 %v2443, %v2435
  %v2644 = vpack.c.b16 %v2444, %v2436
  %v2645 = vpack.c.b16 %v2445, %v2437
  %v2646 = vpack.c.b16 %v2446, %v2438
  %v2647 = vpack.c.b16 %v2447, %v2439
  %v2648 = vpack.c.b16 %v2448, %v2440
  %v2649 = vpack.c.b16 %v2449, %v2441
  %v2650 = vpack.c.b16 %v2458, %v2450
  %v2651 = vpack.c.b16 %v2459, %v2451
  %v2652 = vpack.c.b16 %v2460, %v2452
  %v2653 = vpack.c.b16 %v2461, %v2453
  %v2654 = vpack.c.b16 %v2462, %v2454
  %v2655 = vpack.c.b16 %v2463, %v2455
  %v2656 = vpack.c.b16 %v2464, %v2456
  %v2657 = vpack.c.b16 %v2465, %v2457
  %v2658 = vpack.c.b16 %v2474, %v2466
  %v2659 = vpack.c.b16 %v2475, %v2467
  %v2660 = vpack.c.b16 %v2476, %v2468
  %v2661 = vpack.c.b16 %v2477, %v2469
  %v2662 = vpack.c.b16 %v2478, %v2470
  %v2663 = vpack.c.b16 %v2479, %v2471
  %v2664 = vpack.c.b16 %v2480, %v2472
  %v2665 = vpack.c.b16 %v2481, %v2473
  %v2666 = vpack.c.b16 %v2490, %v2482
  %v2667 = vpack.c.b16 %v2491, %v2483
  %v2668 = vpack.c.b16 %v2492, %v2484
  %v2669 = vpack.c.b16 %v2493, %v2485
  %v2670 = vpack.c.b16 %v2494, %v2486
  %v2671 = vpack.c.b16 %v2495, %v2487
  %v2672 = vpack.c.b16 %v2496, %v2488
  %v2673 = vpack.c.b16 %v2497, %v2489
  %v2674 = vpack.c.b16 %v2506, %v2498
  %v2675 = vpack.c.b16 %v2507, %v2499
  %v2676 = vpack.c.b16 %v2508, %v2500
  %v2677 = vpack.c.b16 %v2509, %v2501
  %v2678 = vpack.c.b16 %v2510, %v2502
  %v2679 = vpack.c.b16 %v2511, %v2503
  %v2680 = vpack.c.b16 %v2512, %v2504
  %v2681 = vpack.c.b16 %v2513, %v2505
  %v2682 = vpack.c.b16 %v2522, %v2514
  %v2683 = vpack.c.b16 %v2523, %v2515
  %v2684 = vpack.c.b16 %v2524, %v2516
  %v2685 = vpack.c.b16 %v2525, %v2517
  %v2686 = vpack.c.b16 %v2526, %v2518
  %v2687 = vpack.c.b16 %v2527, %v2519
  %v2688 = vpack.c.b16 %v2528, %v2520
  %v2689 = vpack.c.b16 %v2529, %v2521
  %v2690 = vpack.c.b16 %v2538, %v2530
  %v2691 = vpack.c.b16 %v2539, %v2531
  %v2692 = vpack.c.b16 %v2540, %v2532
  %v2693 = vpack.c.b16 %v2541, %v2533
  %v2694 = vpack.c.b16 %v2542, %v2534
  %v2695 = vpack.c.b16 %v2543, %v2535
  %v2696 = vpack.c.b16 %v2544, %v2536
  %v2697 = vpack.c.b16 %v2545, %v2537
  %v2698 = vpack.c.b16 %v2554, %v2546
  %v2699 = vpack.c.b16 %v2555, %v2547
  %v2700 = vpack.c.b16 %v2556, %v2548
  %v2701 = vpack.c.b16 %v2557, %v2549
  %v2702 = vpack.c.b16 %v2558, %v2550
  %v2703 = vpack.c.b16 %v2559, %v2551
  %v2704 = vpack.c.b16 %v2560, %v2552
  %v2705 = vpack.c.b16 %v2561, %v2553
  %v2706 = vpack.c.b16 %v2570, %v2562
  %v2707 = vpack.c.b16 %v2571, %v2563
  %v2708 = vpack.c.b16 %v2572, %v2564
  %v2709 = vpack.c.b16 %v2573, %v2565
  %v2710 = vpack.c.b16 %v2574, %v2566
  %v2711 = vpack.c.b16 %v2575, %v2567
  %v2712 = vpack.c.b16 %v2576, %v2568
  %v2713 = vpack.c.b16 %v2577, %v2569
  %v2714 = vpack.c.b16 %v2586, %v2578
  %v2715 = vpack.c.b16 %v2587, %v2579
  %v2716 = vpack.c.b16 %v2588, %v2580
  %v2717 = vpack.c.b16 %v2589, %v2581
  %v2718 = vpack.c.b16 %v2590, %v2582
  %v2719 = vpack.c.b16 %v2591, %v2583
  %v2720 = vpack.c.b16 %v2592, %v2584
  %v2721 = vpack.c.b16 %v2593, %v2585
  %2850 = vmatprep.subr.bf16.mxu0 %v2595
  %2851 = vmatpush1.bf16.msra.mxu0 %v2594
  %2852 = vmatprep.subr.bf16.mxu0 %v2603
  %2853 = vmatpush1.bf16.msra.mxu0 %v2602
  %2854 = vmatprep.subr.bf16.mxu0 %v2611
  %2855 = vmatpush1.bf16.msra.mxu0 %v2610
  %2856 = vmatprep.subr.bf16.mxu0 %v2619
  %2857 = vmatpush1.bf16.msra.mxu0 %v2618
  %2858 = vmatprep.subr.bf16.mxu0 %v2627
  %2859 = vmatpush1.bf16.msra.mxu0 %v2626
  %2860 = vmatprep.subr.bf16.mxu0 %v2635
  %2861 = vmatpush1.bf16.msra.mxu0 %v2634
  %2862 = vmatprep.subr.bf16.mxu0 %v2643
  %2863 = vmatpush1.bf16.msra.mxu0 %v2642
  %2864 = vmatprep.subr.bf16.mxu0 %v2651
  %2865 = vmatpush1.bf16.msra.mxu0 %v2650
  %2866 = vmatprep.subr.bf16.mxu0 %v2659
  %2867 = vmatpush1.bf16.msra.mxu0 %v2658
  %2868 = vmatprep.subr.bf16.mxu0 %v2667
  %2869 = vmatpush1.bf16.msra.mxu0 %v2666
  %2870 = vmatprep.subr.bf16.mxu0 %v2675
  %2871 = vmatpush1.bf16.msra.mxu0 %v2674
  %2872 = vmatprep.subr.bf16.mxu0 %v2683
  %2873 = vmatpush1.bf16.msra.mxu0 %v2682
  %2874 = vmatprep.subr.bf16.mxu0 %v2691
  %2875 = vmatpush1.bf16.msra.mxu0 %v2690
  %2876 = vmatprep.subr.bf16.mxu0 %v2699
  %2877 = vmatpush1.bf16.msra.mxu0 %v2698
  %2878 = vmatprep.subr.bf16.mxu0 %v2707
  %2879 = vmatpush1.bf16.msra.mxu0 %v2706
  %2880 = vmatprep.subr.bf16.mxu0 %v2715
  %2881 = vmatpush1.bf16.msra.mxu0 %v2714
  %2882 = vmatprep.mubr.bf16.mxu0 %v2166
  %2883 = vmatmul.mubr.bf16.gmra.mrb[0].mxu0 %v2165
  %v2884 = vpop.f32.mrb[0].mxu0
  %v2885 = vadd.f32 %v2173, %v2884
  %v2886 = vpop.f32.mrb[0].mxu0
  %v2887 = vadd.f32 %v2177, %v2886
  %v2888 = vpop.f32.mrb[0].mxu0
  %v2889 = vadd.f32 %v2173, %v2888
  %v2890 = vpop.f32.mrb[0].mxu0
  %v2891 = vadd.f32 %v2177, %v2890
  %2892 = vmatprep.mubr.bf16.mxu0 %v2168
  %2893 = vmatmul.mubr.bf16.gmra.mrb[0].mxu0 %v2167
  %v2894 = vpop.f32.mrb[0].mxu0
  %v2895 = vadd.f32 %v2173, %v2894
  %v2896 = vpop.f32.mrb[0].mxu0
  %v2897 = vadd.f32 %v2177, %v2896
  %v2898 = vpop.f32.mrb[0].mxu0
  %v2899 = vadd.f32 %v2173, %v2898
  %v2900 = vpop.f32.mrb[0].mxu0
  %v2901 = vadd.f32 %v2177, %v2900
  %2902 = vdwg.mxu0
  %2903 = vmatprep.subr.bf16.mxu0 %v2597
  %2904 = vmatpush1.bf16.msra.mxu0 %v2596
  %2905 = vmatprep.subr.bf16.mxu0 %v2605
  %2906 = vmatpush1.bf16.msra.mxu0 %v2604
  %2907 = vmatprep.subr.bf16.mxu0 %v2613
  %2908 = vmatpush1.bf16.msra.mxu0 %v2612
  %2909 = vmatprep.subr.bf16.mxu0 %v2621
  %2910 = vmatpush1.bf16.msra.mxu0 %v2620
  %2911 = vmatprep.subr.bf16.mxu0 %v2629
  %2912 = vmatpush1.bf16.msra.mxu0 %v2628
  %2913 = vmatprep.subr.bf16.mxu0 %v2637
  %2914 = vmatpush1.bf16.msra.mxu0 %v2636
  %2915 = vmatprep.subr.bf16.mxu0 %v2645
  %2916 = vmatpush1.bf16.msra.mxu0 %v2644
  %2917 = vmatprep.subr.bf16.mxu0 %v2653
  %2918 = vmatpush1.bf16.msra.mxu0 %v2652
  %2919 = vmatprep.subr.bf16.mxu0 %v2661
  %2920 = vmatpush1.bf16.msra.mxu0 %v2660
  %2921 = vmatprep.subr.bf16.mxu0 %v2669
  %2922 = vmatpush1.bf16.msra.mxu0 %v2668
  %2923 = vmatprep.subr.bf16.mxu0 %v2677
  %2924 = vmatpush1.bf16.msra.mxu0 %v2676
  %2925 = vmatprep.subr.bf16.mxu0 %v2685
  %2926 = vmatpush1.bf16.msra.mxu0 %v2684
  %2927 = vmatprep.subr.bf16.mxu0 %v2693
  %2928 = vmatpush1.bf16.msra.mxu0 %v2692
  %2929 = vmatprep.subr.bf16.mxu0 %v2701
  %2930 = vmatpush1.bf16.msra.mxu0 %v2700
  %2931 = vmatprep.subr.bf16.mxu0 %v2709
  %2932 = vmatpush1.bf16.msra.mxu0 %v2708
  %2933 = vmatprep.subr.bf16.mxu0 %v2717
  %2934 = vmatpush1.bf16.msra.mxu0 %v2716
  %2935 = vmatprep.mubr.bf16.mxu0 %v2166
  %2936 = vmatmul.mubr.bf16.gmra.mrb[0].mxu0 %v2165
  %v2937 = vpop.f32.mrb[0].mxu0
  %v2938 = vadd.f32 %v2181, %v2937
  %v2939 = vpop.f32.mrb[0].mxu0
  %v2940 = vadd.f32 %v2185, %v2939
  %v2941 = vpop.f32.mrb[0].mxu0
  %v2942 = vadd.f32 %v2181, %v2941
  %v2943 = vpop.f32.mrb[0].mxu0
  %v2944 = vadd.f32 %v2185, %v2943
  %2945 = vmatprep.mubr.bf16.mxu0 %v2168
  %2946 = vmatmul.mubr.bf16.gmra.mrb[0].mxu0 %v2167
  %v2947 = vpop.f32.mrb[0].mxu0
  %v2948 = vadd.f32 %v2181, %v2947
  %v2949 = vpop.f32.mrb[0].mxu0
  %v2950 = vadd.f32 %v2185, %v2949
  %v2951 = vpop.f32.mrb[0].mxu0
  %v2952 = vadd.f32 %v2181, %v2951
  %v2953 = vpop.f32.mrb[0].mxu0
  %v2954 = vadd.f32 %v2185, %v2953
  %2955 = vdwg.mxu0
  %2956 = vmatprep.subr.bf16.mxu0 %v2599
  %2957 = vmatpush1.bf16.msra.mxu0 %v2598
  %2958 = vmatprep.subr.bf16.mxu0 %v2607
  %2959 = vmatpush1.bf16.msra.mxu0 %v2606
  %2960 = vmatprep.subr.bf16.mxu0 %v2615
  %2961 = vmatpush1.bf16.msra.mxu0 %v2614
  %2962 = vmatprep.subr.bf16.mxu0 %v2623
  %2963 = vmatpush1.bf16.msra.mxu0 %v2622
  %2964 = vmatprep.subr.bf16.mxu0 %v2631
  %2965 = vmatpush1.bf16.msra.mxu0 %v2630
  %2966 = vmatprep.subr.bf16.mxu0 %v2639
  %2967 = vmatpush1.bf16.msra.mxu0 %v2638
  %2968 = vmatprep.subr.bf16.mxu0 %v2647
  %2969 = vmatpush1.bf16.msra.mxu0 %v2646
  %2970 = vmatprep.subr.bf16.mxu0 %v2655
  %2971 = vmatpush1.bf16.msra.mxu0 %v2654
  %2972 = vmatprep.subr.bf16.mxu0 %v2663
  %2973 = vmatpush1.bf16.msra.mxu0 %v2662
  %2974 = vmatprep.subr.bf16.mxu0 %v2671
  %2975 = vmatpush1.bf16.msra.mxu0 %v2670
  %2976 = vmatprep.subr.bf16.mxu0 %v2679
  %2977 = vmatpush1.bf16.msra.mxu0 %v2678
  %2978 = vmatprep.subr.bf16.mxu0 %v2687
  %2979 = vmatpush1.bf16.msra.mxu0 %v2686
  %2980 = vmatprep.subr.bf16.mxu0 %v2695
  %2981 = vmatpush1.bf16.msra.mxu0 %v2694
  %2982 = vmatprep.subr.bf16.mxu0 %v2703
  %2983 = vmatpush1.bf16.msra.mxu0 %v2702
  %2984 = vmatprep.subr.bf16.mxu0 %v2711
  %2985 = vmatpush1.bf16.msra.mxu0 %v2710
  %2986 = vmatprep.subr.bf16.mxu0 %v2719
  %2987 = vmatpush1.bf16.msra.mxu0 %v2718
  %2988 = vmatprep.mubr.bf16.mxu0 %v2166
  %2989 = vmatmul.mubr.bf16.gmra.mrb[0].mxu0 %v2165
  %v2990 = vpop.f32.mrb[0].mxu0
  %v2991 = vadd.f32 %v2189, %v2990
  %v2992 = vpop.f32.mrb[0].mxu0
  %v2993 = vadd.f32 %v2193, %v2992
  %v2994 = vpop.f32.mrb[0].mxu0
  %v2995 = vadd.f32 %v2189, %v2994
  %v2996 = vpop.f32.mrb[0].mxu0
  %v2997 = vadd.f32 %v2193, %v2996
  %2998 = vmatprep.mubr.bf16.mxu0 %v2168
  %2999 = vmatmul.mubr.bf16.gmra.mrb[0].mxu0 %v2167
  %v3000 = vpop.f32.mrb[0].mxu0
  %v3001 = vadd.f32 %v2189, %v3000
  %v3002 = vpop.f32.mrb[0].mxu0
  %v3003 = vadd.f32 %v2193, %v3002
  %v3004 = vpop.f32.mrb[0].mxu0
  %v3005 = vadd.f32 %v2189, %v3004
  %v3006 = vpop.f32.mrb[0].mxu0
  %v3007 = vadd.f32 %v2193, %v3006
  %3008 = vdwg.mxu0
  %3009 = vmatprep.subr.bf16.mxu0 %v2601
  %3010 = vmatpush1.bf16.msra.mxu0 %v2600
  %3011 = vmatprep.subr.bf16.mxu0 %v2609
  %3012 = vmatpush1.bf16.msra.mxu0 %v2608
  %3013 = vmatprep.subr.bf16.mxu0 %v2617
  %3014 = vmatpush1.bf16.msra.mxu0 %v2616
  %3015 = vmatprep.subr.bf16.mxu0 %v2625
  %3016 = vmatpush1.bf16.msra.mxu0 %v2624
  %3017 = vmatprep.subr.bf16.mxu0 %v2633
  %3018 = vmatpush1.bf16.msra.mxu0 %v2632
  %3019 = vmatprep.subr.bf16.mxu0 %v2641
  %3020 = vmatpush1.bf16.msra.mxu0 %v2640
  %3021 = vmatprep.subr.bf16.mxu0 %v2649
  %3022 = vmatpush1.bf16.msra.mxu0 %v2648
  %3023 = vmatprep.subr.bf16.mxu0 %v2657
  %3024 = vmatpush1.bf16.msra.mxu0 %v2656
  %3025 = vmatprep.subr.bf16.mxu0 %v2665
  %3026 = vmatpush1.bf16.msra.mxu0 %v2664
  %3027 = vmatprep.subr.bf16.mxu0 %v2673
  %3028 = vmatpush1.bf16.msra.mxu0 %v2672
  %3029 = vmatprep.subr.bf16.mxu0 %v2681
  %3030 = vmatpush1.bf16.msra.mxu0 %v2680
  %3031 = vmatprep.subr.bf16.mxu0 %v2689
  %3032 = vmatpush1.bf16.msra.mxu0 %v2688
  %3033 = vmatprep.subr.bf16.mxu0 %v2697
  %3034 = vmatpush1.bf16.msra.mxu0 %v2696
  %3035 = vmatprep.subr.bf16.mxu0 %v2705
  %3036 = vmatpush1.bf16.msra.mxu0 %v2704
  %3037 = vmatprep.subr.bf16.mxu0 %v2713
  %3038 = vmatpush1.bf16.msra.mxu0 %v2712
  %3039 = vmatprep.subr.bf16.mxu0 %v2721
  %3040 = vmatpush1.bf16.msra.mxu0 %v2720
  %3041 = vmatprep.mubr.bf16.mxu0 %v2166
  %3042 = vmatmul.mubr.bf16.gmra.mrb[0].mxu0 %v2165
  %v3043 = vpop.f32.mrb[0].mxu0
  %v3044 = vadd.f32 %v2197, %v3043
  %v3045 = vpop.f32.mrb[0].mxu0
  %v3046 = vadd.f32 %v2201, %v3045
  %v3047 = vpop.f32.mrb[0].mxu0
  %v3048 = vadd.f32 %v2197, %v3047
  %v3049 = vpop.f32.mrb[0].mxu0
  %v3050 = vadd.f32 %v2201, %v3049
  %3051 = vmatprep.mubr.bf16.mxu0 %v2168
  %3052 = vmatmul.mubr.bf16.gmra.mrb[0].mxu0 %v2167
  %v3053 = vpop.f32.mrb[0].mxu0
  %v3054 = vadd.f32 %v2197, %v3053
  %v3055 = vpop.f32.mrb[0].mxu0
  %v3056 = vadd.f32 %v2201, %v3055
  %v3057 = vpop.f32.mrb[0].mxu0
  %v3058 = vadd.f32 %v2197, %v3057
  %v3059 = vpop.f32.mrb[0].mxu0
  %v3060 = vadd.f32 %v2201, %v3059
  %3061 = vdwg.mxu0
  %v3062 = vmul.f32 %v2885, %v2885
  %v3063 = vmul.f32 %v2887, %v2887
  %v3064 = vmul.f32 %v2938, %v2938
  %v3065 = vmul.f32 %v2940, %v2940
  %v3066 = vmul.f32 %v2991, %v2991
  %v3067 = vmul.f32 %v2993, %v2993
  %v3068 = vmul.f32 %v3044, %v3044
  %v3069 = vmul.f32 %v3046, %v3046
  %v3070 = vmul.f32 %v2889, %v2889
  %v3071 = vmul.f32 %v2891, %v2891
  %v3072 = vmul.f32 %v2942, %v2942
  %v3073 = vmul.f32 %v2944, %v2944
  %v3074 = vmul.f32 %v2995, %v2995
  %v3075 = vmul.f32 %v2997, %v2997
  %v3076 = vmul.f32 %v3048, %v3048
  %v3077 = vmul.f32 %v3050, %v3050
  %v3078 = vmul.f32 %v2895, %v2895
  %v3079 = vmul.f32 %v2897, %v2897
  %v3080 = vmul.f32 %v2948, %v2948
  %v3081 = vmul.f32 %v2950, %v2950
  %v3082 = vmul.f32 %v3001, %v3001
  %v3083 = vmul.f32 %v3003, %v3003
  %v3084 = vmul.f32 %v3054, %v3054
  %v3085 = vmul.f32 %v3056, %v3056
  %v3086 = vmul.f32 %v2899, %v2899
  %v3087 = vmul.f32 %v2901, %v2901
  %v3088 = vmul.f32 %v2952, %v2952
  %v3089 = vmul.f32 %v2954, %v2954
  %v3090 = vmul.f32 %v3005, %v3005
  %v3091 = vmul.f32 %v3007, %v3007
  %v3092 = vmul.f32 %v3058, %v3058
  %v3093 = vmul.f32 %v3060, %v3060
  %v3094 = vmul.f32 %v2885, %v3062
  %v3095 = vmul.f32 %v2887, %v3063
  %v3096 = vmul.f32 %v2938, %v3064
  %v3097 = vmul.f32 %v2940, %v3065
  %v3098 = vmul.f32 %v2991, %v3066
  %v3099 = vmul.f32 %v2993, %v3067
  %v3100 = vmul.f32 %v3044, %v3068
  %v3101 = vmul.f32 %v3046, %v3069
  %v3102 = vmul.f32 %v2889, %v3070
  %v3103 = vmul.f32 %v2891, %v3071
  %v3104 = vmul.f32 %v2942, %v3072
  %v3105 = vmul.f32 %v2944, %v3073
  %v3106 = vmul.f32 %v2995, %v3074
  %v3107 = vmul.f32 %v2997, %v3075
  %v3108 = vmul.f32 %v3048, %v3076
  %v3109 = vmul.f32 %v3050, %v3077
  %v3110 = vmul.f32 %v2895, %v3078
  %v3111 = vmul.f32 %v2897, %v3079
  %v3112 = vmul.f32 %v2948, %v3080
  %v3113 = vmul.f32 %v2950, %v3081
  %v3114 = vmul.f32 %v3001, %v3082
  %v3115 = vmul.f32 %v3003, %v3083
  %v3116 = vmul.f32 %v3054, %v3084
  %v3117 = vmul.f32 %v3056, %v3085
  %v3118 = vmul.f32 %v2899, %v3086
  %v3119 = vmul.f32 %v2901, %v3087
  %v3120 = vmul.f32 %v2952, %v3088
  %v3121 = vmul.f32 %v2954, %v3089
  %v3122 = vmul.f32 %v3005, %v3090
  %v3123 = vmul.f32 %v3007, %v3091
  %v3124 = vmul.f32 %v3058, %v3092
  %v3125 = vmul.f32 %v3060, %v3093
  %v3126 = vmul.f32 %v3094, 0.044715
  %v3127 = vmul.f32 %v3095, 0.044715
  %v3128 = vmul.f32 %v3096, 0.044715
  %v3129 = vmul.f32 %v3097, 0.044715
  %v3130 = vmul.f32 %v3098, 0.044715
  %v3131 = vmul.f32 %v3099, 0.044715
  %v3132 = vmul.f32 %v3100, 0.044715
  %v3133 = vmul.f32 %v3101, 0.044715
  %v3134 = vmul.f32 %v3102, 0.044715
  %v3135 = vmul.f32 %v3103, 0.044715
  %v3136 = vmul.f32 %v3104, 0.044715
  %v3137 = vmul.f32 %v3105, 0.044715
  %v3138 = vmul.f32 %v3106, 0.044715
  %v3139 = vmul.f32 %v3107, 0.044715
  %v3140 = vmul.f32 %v3108, 0.044715
  %v3141 = vmul.f32 %v3109, 0.044715
  %v3142 = vmul.f32 %v3110, 0.044715
  %v3143 = vmul.f32 %v3111, 0.044715
  %v3144 = vmul.f32 %v3112, 0.044715
  %v3145 = vmul.f32 %v3113, 0.044715
  %v3146 = vmul.f32 %v3114, 0.044715
  %v3147 = vmul.f32 %v3115, 0.044715
  %v3148 = vmul.f32 %v3116, 0.044715
  %v3149 = vmul.f32 %v3117, 0.044715
  %v3150 = vmul.f32 %v3118, 0.044715
  %v3151 = vmul.f32 %v3119, 0.044715
  %v3152 = vmul.f32 %v3120, 0.044715
  %v3153 = vmul.f32 %v3121, 0.044715
  %v3154 = vmul.f32 %v3122, 0.044715
  %v3155 = vmul.f32 %v3123, 0.044715
  %v3156 = vmul.f32 %v3124, 0.044715
  %v3157 = vmul.f32 %v3125, 0.044715
  %v3158 = vadd.f32 %v2885, %v3126
  %v3159 = vadd.f32 %v2887, %v3127
  %v3160 = vadd.f32 %v2938, %v3128
  %v3161 = vadd.f32 %v2940, %v3129
  %v3162 = vadd.f32 %v2991, %v3130
  %v3163 = vadd.f32 %v2993, %v3131
  %v3164 = vadd.f32 %v3044, %v3132
  %v3165 = vadd.f32 %v3046, %v3133
  %v3166 = vadd.f32 %v2889, %v3134
  %v3167 = vadd.f32 %v2891, %v3135
  %v3168 = vadd.f32 %v2942, %v3136
  %v3169 = vadd.f32 %v2944, %v3137
  %v3170 = vadd.f32 %v2995, %v3138
  %v3171 = vadd.f32 %v2997, %v3139
  %v3172 = vadd.f32 %v3048, %v3140
  %v3173 = vadd.f32 %v3050, %v3141
  %v3174 = vadd.f32 %v2895, %v3142
  %v3175 = vadd.f32 %v2897, %v3143
  %v3176 = vadd.f32 %v2948, %v3144
  %v3177 = vadd.f32 %v2950, %v3145
  %v3178 = vadd.f32 %v3001, %v3146
  %v3179 = vadd.f32 %v3003, %v3147
  %v3180 = vadd.f32 %v3054, %v3148
  %v3181 = vadd.f32 %v3056, %v3149
  %v3182 = vadd.f32 %v2899, %v3150
  %v3183 = vadd.f32 %v2901, %v3151
  %v3184 = vadd.f32 %v2952, %v3152
  %v3185 = vadd.f32 %v2954, %v3153
  %v3186 = vadd.f32 %v3005, %v3154
  %v3187 = vadd.f32 %v3007, %v3155
  %v3188 = vadd.f32 %v3058, %v3156
  %v3189 = vadd.f32 %v3060, %v3157
  %v3190 = vmul.f32 %v3158, 0.7978846
  %v3191 = vmul.f32 %v3159, 0.7978846
  %v3192 = vmul.f32 %v3160, 0.7978846
  %v3193 = vmul.f32 %v3161, 0.7978846
  %v3194 = vmul.f32 %v3162, 0.7978846
  %v3195 = vmul.f32 %v3163, 0.7978846
  %v3196 = vmul.f32 %v3164, 0.7978846
  %v3197 = vmul.f32 %v3165, 0.7978846
  %v3198 = vmul.f32 %v3166, 0.7978846
  %v3199 = vmul.f32 %v3167, 0.7978846
  %v3200 = vmul.f32 %v3168, 0.7978846
  %v3201 = vmul.f32 %v3169, 0.7978846
  %v3202 = vmul.f32 %v3170, 0.7978846
  %v3203 = vmul.f32 %v3171, 0.7978846
  %v3204 = vmul.f32 %v3172, 0.7978846
  %v3205 = vmul.f32 %v3173, 0.7978846
  %v3206 = vmul.f32 %v3174, 0.7978846
  %v3207 = vmul.f32 %v3175, 0.7978846
  %v3208 = vmul.f32 %v3176, 0.7978846
  %v3209 = vmul.f32 %v3177, 0.7978846
  %v3210 = vmul.f32 %v3178, 0.7978846
  %v3211 = vmul.f32 %v3179, 0.7978846
  %v3212 = vmul.f32 %v3180, 0.7978846
  %v3213 = vmul.f32 %v3181, 0.7978846
  %v3214 = vmul.f32 %v3182, 0.7978846
  %v3215 = vmul.f32 %v3183, 0.7978846
  %v3216 = vmul.f32 %v3184, 0.7978846
  %v3217 = vmul.f32 %v3185, 0.7978846
  %v3218 = vmul.f32 %v3186, 0.7978846
  %v3219 = vmul.f32 %v3187, 0.7978846
  %v3220 = vmul.f32 %v3188, 0.7978846
  %v3221 = vmul.f32 %v3189, 0.7978846
  %v3222 = vtanh.pop %v3190
  %v3223 = vtanh.pop %v3191
  %v3224 = vtanh.pop %v3192
  %v3225 = vtanh.pop %v3193
  %v3226 = vtanh.pop %v3194
  %v3227 = vtanh.pop %v3195
  %v3228 = vtanh.pop %v3196
  %v3229 = vtanh.pop %v3197
  %v3230 = vtanh.pop %v3198
  %v3231 = vtanh.pop %v3199
  %v3232 = vtanh.pop %v3200
  %v3233 = vtanh.pop %v3201
  %v3234 = vtanh.pop %v3202
  %v3235 = vtanh.pop %v3203
  %v3236 = vtanh.pop %v3204
  %v3237 = vtanh.pop %v3205
  %v3238 = vtanh.pop %v3206
  %v3239 = vtanh.pop %v3207
  %v3240 = vtanh.pop %v3208
  %v3241 = vtanh.pop %v3209
  %v3242 = vtanh.pop %v3210
  %v3243 = vtanh.pop %v3211
  %v3244 = vtanh.pop %v3212
  %v3245 = vtanh.pop %v3213
  %v3246 = vtanh.pop %v3214
  %v3247 = vtanh.pop %v3215
  %v3248 = vtanh.pop %v3216
  %v3249 = vtanh.pop %v3217
  %v3250 = vtanh.pop %v3218
  %v3251 = vtanh.pop %v3219
  %v3252 = vtanh.pop %v3220
  %v3253 = vtanh.pop %v3221
  %v3254 = vadd.f32 %v3222, 1.0
  %v3255 = vadd.f32 %v3223, 1.0
  %v3256 = vadd.f32 %v3224, 1.0
  %v3257 = vadd.f32 %v3225, 1.0
  %v3258 = vadd.f32 %v3226, 1.0
  %v3259 = vadd.f32 %v3227, 1.0
  %v3260 = vadd.f32 %v3228, 1.0
  %v3261 = vadd.f32 %v3229, 1.0
  %v3262 = vadd.f32 %v3230, 1.0
  %v3263 = vadd.f32 %v3231, 1.0
  %v3264 = vadd.f32 %v3232, 1.0
  %v3265 = vadd.f32 %v3233, 1.0
  %v3266 = vadd.f32 %v3234, 1.0
  %v3267 = vadd.f32 %v3235, 1.0
  %v3268 = vadd.f32 %v3236, 1.0
  %v3269 = vadd.f32 %v3237, 1.0
  %v3270 = vadd.f32 %v3238, 1.0
  %v3271 = vadd.f32 %v3239, 1.0
  %v3272 = vadd.f32 %v3240, 1.0
  %v3273 = vadd.f32 %v3241, 1.0
  %v3274 = vadd.f32 %v3242, 1.0
  %v3275 = vadd.f32 %v3243, 1.0
  %v3276 = vadd.f32 %v3244, 1.0
  %v3277 = vadd.f32 %v3245, 1.0
  %v3278 = vadd.f32 %v3246, 1.0
  %v3279 = vadd.f32 %v3247, 1.0
  %v3280 = vadd.f32 %v3248, 1.0
  %v3281 = vadd.f32 %v3249, 1.0
  %v3282 = vadd.f32 %v3250, 1.0
  %v3283 = vadd.f32 %v3251, 1.0
  %v3284 = vadd.f32 %v3252, 1.0
  %v3285 = vadd.f32 %v3253, 1.0
  %v3286 = vmul.f32 %v3254, 0.5
  %v3287 = vmul.f32 %v3255, 0.5
  %v3288 = vmul.f32 %v3256, 0.5
  %v3289 = vmul.f32 %v3257, 0.5
  %v3290 = vmul.f32 %v3258, 0.5
  %v3291 = vmul.f32 %v3259, 0.5
  %v3292 = vmul.f32 %v3260, 0.5
  %v3293 = vmul.f32 %v3261, 0.5
  %v3294 = vmul.f32 %v3262, 0.5
  %v3295 = vmul.f32 %v3263, 0.5
  %v3296 = vmul.f32 %v3264, 0.5
  %v3297 = vmul.f32 %v3265, 0.5
  %v3298 = vmul.f32 %v3266, 0.5
  %v3299 = vmul.f32 %v3267, 0.5
  %v3300 = vmul.f32 %v3268, 0.5
  %v3301 = vmul.f32 %v3269, 0.5
  %v3302 = vmul.f32 %v3270, 0.5
  %v3303 = vmul.f32 %v3271, 0.5
  %v3304 = vmul.f32 %v3272, 0.5
  %v3305 = vmul.f32 %v3273, 0.5
  %v3306 = vmul.f32 %v3274, 0.5
  %v3307 = vmul.f32 %v3275, 0.5
  %v3308 = vmul.f32 %v3276, 0.5
  %v3309 = vmul.f32 %v3277, 0.5
  %v3310 = vmul.f32 %v3278, 0.5
  %v3311 = vmul.f32 %v3279, 0.5
  %v3312 = vmul.f32 %v3280, 0.5
  %v3313 = vmul.f32 %v3281, 0.5
  %v3314 = vmul.f32 %v3282, 0.5
  %v3315 = vmul.f32 %v3283, 0.5
  %v3316 = vmul.f32 %v3284, 0.5
  %v3317 = vmul.f32 %v3285, 0.5
  %v3318 = vmul.f32 %v2885, %v3286
  %v3319 = vmul.f32 %v2887, %v3287
  %v3320 = vmul.f32 %v2938, %v3288
  %v3321 = vmul.f32 %v2940, %v3289
  %v3322 = vmul.f32 %v2991, %v3290
  %v3323 = vmul.f32 %v2993, %v3291
  %v3324 = vmul.f32 %v3044, %v3292
  %v3325 = vmul.f32 %v3046, %v3293
  %v3326 = vmul.f32 %v2889, %v3294
  %v3327 = vmul.f32 %v2891, %v3295
  %v3328 = vmul.f32 %v2942, %v3296
  %v3329 = vmul.f32 %v2944, %v3297
  %v3330 = vmul.f32 %v2995, %v3298
  %v3331 = vmul.f32 %v2997, %v3299
  %v3332 = vmul.f32 %v3048, %v3300
  %v3333 = vmul.f32 %v3050, %v3301
  %v3334 = vmul.f32 %v2895, %v3302
  %v3335 = vmul.f32 %v2897, %v3303
  %v3336 = vmul.f32 %v2948, %v3304
  %v3337 = vmul.f32 %v2950, %v3305
  %v3338 = vmul.f32 %v3001, %v3306
  %v3339 = vmul.f32 %v3003, %v3307
  %v3340 = vmul.f32 %v3054, %v3308
  %v3341 = vmul.f32 %v3056, %v3309
  %v3342 = vmul.f32 %v2899, %v3310
  %v3343 = vmul.f32 %v2901, %v3311
  %v3344 = vmul.f32 %v2952, %v3312
  %v3345 = vmul.f32 %v2954, %v3313
  %v3346 = vmul.f32 %v3005, %v3314
  %v3347 = vmul.f32 %v3007, %v3315
  %v3348 = vmul.f32 %v3058, %v3316
  %v3349 = vmul.f32 %v3060, %v3317
  %v3350 = vld [vmem:[%s14] sm:$0xff]
  %v3351 = vld [vmem:[%s14 + $0x8] sm:$0xff]
  %v3352 = vld [vmem:[%s14 + $0x10] sm:$0xff]
  %v3353 = vld [vmem:[%s14 + $0x18] sm:$0xff]
  %v3354 = vld [vmem:[%s14 + $0x20] sm:$0xff]
  %v3355 = vld [vmem:[%s14 + $0x28] sm:$0xff]
  %v3356 = vld [vmem:[%s14 + $0x30] sm:$0xff]
  %v3357 = vld [vmem:[%s14 + $0x38] sm:$0xff]
  %v3358 = vld [vmem:[%s14 + $0x40] sm:$0xff]
  %v3359 = vld [vmem:[%s14 + $0x48] sm:$0xff]
  %v3360 = vld [vmem:[%s14 + $0x50] sm:$0xff]
  %v3361 = vld [vmem:[%s14 + $0x58] sm:$0xff]
  %v3362 = vld [vmem:[%s14 + $0x60] sm:$0xff]
  %v3363 = vld [vmem:[%s14 + $0x68] sm:$0xff]
  %v3364 = vld [vmem:[%s14 + $0x70] sm:$0xff]
  %v3365 = vld [vmem:[%s14 + $0x78] sm:$0xff]
  %v3366 = vld [vmem:[%s14 + $0x80] sm:$0xff]
  %v3367 = vld [vmem:[%s14 + $0x88] sm:$0xff]
  %v3368 = vld [vmem:[%s14 + $0x90] sm:$0xff]
  %v3369 = vld [vmem:[%s14 + $0x98] sm:$0xff]
  %v3370 = vld [vmem:[%s14 + $0xa0] sm:$0xff]
  %v3371 = vld [vmem:[%s14 + $0xa8] sm:$0xff]
  %v3372 = vld [vmem:[%s14 + $0xb0] sm:$0xff]
  %v3373 = vld [vmem:[%s14 + $0xb8] sm:$0xff]
  %v3374 = vld [vmem:[%s14 + $0xc0] sm:$0xff]
  %v3375 = vld [vmem:[%s14 + $0xc8] sm:$0xff]
  %v3376 = vld [vmem:[%s14 + $0xd0] sm:$0xff]
  %v3377 = vld [vmem:[%s14 + $0xd8] sm:$0xff]
  %v3378 = vld [vmem:[%s14 + $0xe0] sm:$0xff]
  %v3379 = vld [vmem:[%s14 + $0xe8] sm:$0xff]
  %v3380 = vld [vmem:[%s14 + $0xf0] sm:$0xff]
  %v3381 = vld [vmem:[%s14 + $0xf8] sm:$0xff]
  %v3382 = vld [vmem:[%s14 + $0x100] sm:$0xff]
  %v3383 = vld [vmem:[%s14 + $0x108] sm:$0xff]
  %v3384 = vld [vmem:[%s14 + $0x110] sm:$0xff]
  %v3385 = vld [vmem:[%s14 + $0x118] sm:$0xff]
  %v3386 = vld [vmem:[%s14 + $0x120] sm:$0xff]
  %v3387 = vld [vmem:[%s14 + $0x128] sm:$0xff]
  %v3388 = vld [vmem:[%s14 + $0x130] sm:$0xff]
  %v3389 = vld [vmem:[%s14 + $0x138] sm:$0xff]
  %v3390 = vld [vmem:[%s14 + $0x140] sm:$0xff]
  %v3391 = vld [vmem:[%s14 + $0x148] sm:$0xff]
  %v3392 = vld [vmem:[%s14 + $0x150] sm:$0xff]
  %v3393 = vld [vmem:[%s14 + $0x158] sm:$0xff]
  %v3394 = vld [vmem:[%s14 + $0x160] sm:$0xff]
  %v3395 = vld [vmem:[%s14 + $0x168] sm:$0xff]
  %v3396 = vld [vmem:[%s14 + $0x170] sm:$0xff]
  %v3397 = vld [vmem:[%s14 + $0x178] sm:$0xff]
  %v3398 = vld [vmem:[%s14 + $0x180] sm:$0xff]
  %v3399 = vld [vmem:[%s14 + $0x188] sm:$0xff]
  %v3400 = vld [vmem:[%s14 + $0x190] sm:$0xff]
  %v3401 = vld [vmem:[%s14 + $0x198] sm:$0xff]
  %v3402 = vld [vmem:[%s14 + $0x1a0] sm:$0xff]
  %v3403 = vld [vmem:[%s14 + $0x1a8] sm:$0xff]
  %v3404 = vld [vmem:[%s14 + $0x1b0] sm:$0xff]
  %v3405 = vld [vmem:[%s14 + $0x1b8] sm:$0xff]
  %v3406 = vld [vmem:[%s14 + $0x1c0] sm:$0xff]
  %v3407 = vld [vmem:[%s14 + $0x1c8] sm:$0xff]
  %v3408 = vld [vmem:[%s14 + $0x1d0] sm:$0xff]
  %v3409 = vld [vmem:[%s14 + $0x1d8] sm:$0xff]
  %v3410 = vld [vmem:[%s14 + $0x1e0] sm:$0xff]
  %v3411 = vld [vmem:[%s14 + $0x1e8] sm:$0xff]
  %v3412 = vld [vmem:[%s14 + $0x1f0] sm:$0xff]
  %v3413 = vld [vmem:[%s14 + $0x1f8] sm:$0xff]
  %v3414 = vld [vmem:[%s14 + $0x200] sm:$0xff]
  %v3415 = vld [vmem:[%s14 + $0x208] sm:$0xff]
  %v3416 = vld [vmem:[%s14 + $0x210] sm:$0xff]
  %v3417 = vld [vmem:[%s14 + $0x218] sm:$0xff]
  %v3418 = vld [vmem:[%s14 + $0x220] sm:$0xff]
  %v3419 = vld [vmem:[%s14 + $0x228] sm:$0xff]
  %v3420 = vld [vmem:[%s14 + $0x230] sm:$0xff]
  %v3421 = vld [vmem:[%s14 + $0x238] sm:$0xff]
  %v3422 = vld [vmem:[%s14 + $0x240] sm:$0xff]
  %v3423 = vld [vmem:[%s14 + $0x248] sm:$0xff]
  %v3424 = vld [vmem:[%s14 + $0x250] sm:$0xff]
  %v3425 = vld [vmem:[%s14 + $0x258] sm:$0xff]
  %v3426 = vld [vmem:[%s14 + $0x260] sm:$0xff]
  %v3427 = vld [vmem:[%s14 + $0x268] sm:$0xff]
  %v3428 = vld [vmem:[%s14 + $0x270] sm:$0xff]
  %v3429 = vld [vmem:[%s14 + $0x278] sm:$0xff]
  %v3430 = vld [vmem:[%s14 + $0x280] sm:$0xff]
  %v3431 = vld [vmem:[%s14 + $0x288] sm:$0xff]
  %v3432 = vld [vmem:[%s14 + $0x290] sm:$0xff]
  %v3433 = vld [vmem:[%s14 + $0x298] sm:$0xff]
  %v3434 = vld [vmem:[%s14 + $0x2a0] sm:$0xff]
  %v3435 = vld [vmem:[%s14 + $0x2a8] sm:$0xff]
  %v3436 = vld [vmem:[%s14 + $0x2b0] sm:$0xff]
  %v3437 = vld [vmem:[%s14 + $0x2b8] sm:$0xff]
  %v3438 = vld [vmem:[%s14 + $0x2c0] sm:$0xff]
  %v3439 = vld [vmem:[%s14 + $0x2c8] sm:$0xff]
  %v3440 = vld [vmem:[%s14 + $0x2d0] sm:$0xff]
  %v3441 = vld [vmem:[%s14 + $0x2d8] sm:$0xff]
  %v3442 = vld [vmem:[%s14 + $0x2e0] sm:$0xff]
  %v3443 = vld [vmem:[%s14 + $0x2e8] sm:$0xff]
  %v3444 = vld [vmem:[%s14 + $0x2f0] sm:$0xff]
  %v3445 = vld [vmem:[%s14 + $0x2f8] sm:$0xff]
  %v3446 = vld [vmem:[%s14 + $0x300] sm:$0xff]
  %v3447 = vld [vmem:[%s14 + $0x308] sm:$0xff]
  %v3448 = vld [vmem:[%s14 + $0x310] sm:$0xff]
  %v3449 = vld [vmem:[%s14 + $0x318] sm:$0xff]
  %v3450 = vld [vmem:[%s14 + $0x320] sm:$0xff]
  %v3451 = vld [vmem:[%s14 + $0x328] sm:$0xff]
  %v3452 = vld [vmem:[%s14 + $0x330] sm:$0xff]
  %v3453 = vld [vmem:[%s14 + $0x338] sm:$0xff]
  %v3454 = vld [vmem:[%s14 + $0x340] sm:$0xff]
  %v3455 = vld [vmem:[%s14 + $0x348] sm:$0xff]
  %v3456 = vld [vmem:[%s14 + $0x350] sm:$0xff]
  %v3457 = vld [vmem:[%s14 + $0x358] sm:$0xff]
  %v3458 = vld [vmem:[%s14 + $0x360] sm:$0xff]
  %v3459 = vld [vmem:[%s14 + $0x368] sm:$0xff]
  %v3460 = vld [vmem:[%s14 + $0x370] sm:$0xff]
  %v3461 = vld [vmem:[%s14 + $0x378] sm:$0xff]
  %v3462 = vld [vmem:[%s14 + $0x380] sm:$0xff]
  %v3463 = vld [vmem:[%s14 + $0x388] sm:$0xff]
  %v3464 = vld [vmem:[%s14 + $0x390] sm:$0xff]
  %v3465 = vld [vmem:[%s14 + $0x398] sm:$0xff]
  %v3466 = vld [vmem:[%s14 + $0x3a0] sm:$0xff]
  %v3467 = vld [vmem:[%s14 + $0x3a8] sm:$0xff]
  %v3468 = vld [vmem:[%s14 + $0x3b0] sm:$0xff]
  %v3469 = vld [vmem:[%s14 + $0x3b8] sm:$0xff]
  %v3470 = vld [vmem:[%s14 + $0x3c0] sm:$0xff]
  %v3471 = vld [vmem:[%s14 + $0x3c8] sm:$0xff]
  %v3472 = vld [vmem:[%s14 + $0x3d0] sm:$0xff]
  %v3473 = vld [vmem:[%s14 + $0x3d8] sm:$0xff]
  %v3474 = vld [vmem:[%s14 + $0x3e0] sm:$0xff]
  %v3475 = vld [vmem:[%s14 + $0x3e8] sm:$0xff]
  %v3476 = vld [vmem:[%s14 + $0x3f0] sm:$0xff]
  %v3477 = vld [vmem:[%s14 + $0x3f8] sm:$0xff]
  %v3478 = vld [vmem:[%s15] sm:$0x3]
  %v3479 = vpack.c.bf16 %v3326, %v3318
  %v3480 = vpack.c.bf16 %v3327, %v3319
  %v3481 = vpack.c.bf16 %v3328, %v3320
  %v3482 = vpack.c.bf16 %v3329, %v3321
  %v3483 = vpack.c.bf16 %v3330, %v3322
  %v3484 = vpack.c.bf16 %v3331, %v3323
  %v3485 = vpack.c.bf16 %v3332, %v3324
  %v3486 = vpack.c.bf16 %v3333, %v3325
  %v3487 = vpack.c.bf16 %v3342, %v3334
  %v3488 = vpack.c.bf16 %v3343, %v3335
  %v3489 = vpack.c.bf16 %v3344, %v3336
  %v3490 = vpack.c.bf16 %v3345, %v3337
  %v3491 = vpack.c.bf16 %v3346, %v3338
  %v3492 = vpack.c.bf16 %v3347, %v3339
  %v3493 = vpack.c.bf16 %v3348, %v3340
  %v3494 = vpack.c.bf16 %v3349, %v3341
  %v3496 = vlaneseq
  %v3497 = vshrl.u32 %v3496, 7
  %v3498 = vsub.s32 0, %v3497
  %v3499 = vrot.slane %v3478, %v3498
  %v3500 = vlaneseq
  %v3501 = vshrl.u32 %v3500, 7
  %v3502 = vsub.s32 1, %v3501
  %v3503 = vrot.slane %v3478, %v3502
  %v3634 = vunpack.c.l.b16 %v3350
  %v3635 = vunpack.c.h.b16 %v3350
  %v3636 = vunpack.c.l.b16 %v3351
  %v3637 = vunpack.c.h.b16 %v3351
  %v3638 = vunpack.c.l.b16 %v3352
  %v3639 = vunpack.c.h.b16 %v3352
  %v3640 = vunpack.c.l.b16 %v3353
  %v3641 = vunpack.c.h.b16 %v3353
  %v3642 = vunpack.c.l.b16 %v3354
  %v3643 = vunpack.c.h.b16 %v3354
  %v3644 = vunpack.c.l.b16 %v3355
  %v3645 = vunpack.c.h.b16 %v3355
  %v3646 = vunpack.c.l.b16 %v3356
  %v3647 = vunpack.c.h.b16 %v3356
  %v3648 = vunpack.c.l.b16 %v3357
  %v3649 = vunpack.c.h.b16 %v3357
  %v3650 = vunpack.c.l.b16 %v3358
  %v3651 = vunpack.c.h.b16 %v3358
  %v3652 = vunpack.c.l.b16 %v3359
  %v3653 = vunpack.c.h.b16 %v3359
  %v3654 = vunpack.c.l.b16 %v3360
  %v3655 = vunpack.c.h.b16 %v3360
  %v3656 = vunpack.c.l.b16 %v3361
  %v3657 = vunpack.c.h.b16 %v3361
  %v3658 = vunpack.c.l.b16 %v3362
  %v3659 = vunpack.c.h.b16 %v3362
  %v3660 = vunpack.c.l.b16 %v3363
  %v3661 = vunpack.c.h.b16 %v3363
  %v3662 = vunpack.c.l.b16 %v3364
  %v3663 = vunpack.c.h.b16 %v3364
  %v3664 = vunpack.c.l.b16 %v3365
  %v3665 = vunpack.c.h.b16 %v3365
  %v3666 = vunpack.c.l.b16 %v3366
  %v3667 = vunpack.c.h.b16 %v3366
  %v3668 = vunpack.c.l.b16 %v3367
  %v3669 = vunpack.c.h.b16 %v3367
  %v3670 = vunpack.c.l.b16 %v3368
  %v3671 = vunpack.c.h.b16 %v3368
  %v3672 = vunpack.c.l.b16 %v3369
  %v3673 = vunpack.c.h.b16 %v3369
  %v3674 = vunpack.c.l.b16 %v3370
  %v3675 = vunpack.c.h.b16 %v3370
  %v3676 = vunpack.c.l.b16 %v3371
  %v3677 = vunpack.c.h.b16 %v3371
  %v3678 = vunpack.c.l.b16 %v3372
  %v3679 = vunpack.c.h.b16 %v3372
  %v3680 = vunpack.c.l.b16 %v3373
  %v3681 = vunpack.c.h.b16 %v3373
  %v3682 = vunpack.c.l.b16 %v3374
  %v3683 = vunpack.c.h.b16 %v3374
  %v3684 = vunpack.c.l.b16 %v3375
  %v3685 = vunpack.c.h.b16 %v3375
  %v3686 = vunpack.c.l.b16 %v3376
  %v3687 = vunpack.c.h.b16 %v3376
  %v3688 = vunpack.c.l.b16 %v3377
  %v3689 = vunpack.c.h.b16 %v3377
  %v3690 = vunpack.c.l.b16 %v3378
  %v3691 = vunpack.c.h.b16 %v3378
  %v3692 = vunpack.c.l.b16 %v3379
  %v3693 = vunpack.c.h.b16 %v3379
  %v3694 = vunpack.c.l.b16 %v3380
  %v3695 = vunpack.c.h.b16 %v3380
  %v3696 = vunpack.c.l.b16 %v3381
  %v3697 = vunpack.c.h.b16 %v3381
  %v3698 = vunpack.c.l.b16 %v3382
  %v3699 = vunpack.c.h.b16 %v3382
  %v3700 = vunpack.c.l.b16 %v3383
  %v3701 = vunpack.c.h.b16 %v3383
  %v3702 = vunpack.c.l.b16 %v3384
  %v3703 = vunpack.c.h.b16 %v3384
  %v3704 = vunpack.c.l.b16 %v3385
  %v3705 = vunpack.c.h.b16 %v3385
  %v3706 = vunpack.c.l.b16 %v3386
  %v3707 = vunpack.c.h.b16 %v3386
  %v3708 = vunpack.c.l.b16 %v3387
  %v3709 = vunpack.c.h.b16 %v3387
  %v3710 = vunpack.c.l.b16 %v3388
  %v3711 = vunpack.c.h.b16 %v3388
  %v3712 = vunpack.c.l.b16 %v3389
  %v3713 = vunpack.c.h.b16 %v3389
  %v3714 = vunpack.c.l.b16 %v3390
  %v3715 = vunpack.c.h.b16 %v3390
  %v3716 = vunpack.c.l.b16 %v3391
  %v3717 = vunpack.c.h.b16 %v3391
  %v3718 = vunpack.c.l.b16 %v3392
  %v3719 = vunpack.c.h.b16 %v3392
  %v3720 = vunpack.c.l.b16 %v3393
  %v3721 = vunpack.c.h.b16 %v3393
  %v3722 = vunpack.c.l.b16 %v3394
  %v3723 = vunpack.c.h.b16 %v3394
  %v3724 = vunpack.c.l.b16 %v3395
  %v3725 = vunpack.c.h.b16 %v3395
  %v3726 = vunpack.c.l.b16 %v3396
  %v3727 = vunpack.c.h.b16 %v3396
  %v3728 = vunpack.c.l.b16 %v3397
  %v3729 = vunpack.c.h.b16 %v3397
  %v3730 = vunpack.c.l.b16 %v3398
  %v3731 = vunpack.c.h.b16 %v3398
  %v3732 = vunpack.c.l.b16 %v3399
  %v3733 = vunpack.c.h.b16 %v3399
  %v3734 = vunpack.c.l.b16 %v3400
  %v3735 = vunpack.c.h.b16 %v3400
  %v3736 = vunpack.c.l.b16 %v3401
  %v3737 = vunpack.c.h.b16 %v3401
  %v3738 = vunpack.c.l.b16 %v3402
  %v3739 = vunpack.c.h.b16 %v3402
  %v3740 = vunpack.c.l.b16 %v3403
  %v3741 = vunpack.c.h.b16 %v3403
  %v3742 = vunpack.c.l.b16 %v3404
  %v3743 = vunpack.c.h.b16 %v3404
  %v3744 = vunpack.c.l.b16 %v3405
  %v3745 = vunpack.c.h.b16 %v3405
  %v3746 = vunpack.c.l.b16 %v3406
  %v3747 = vunpack.c.h.b16 %v3406
  %v3748 = vunpack.c.l.b16 %v3407
  %v3749 = vunpack.c.h.b16 %v3407
  %v3750 = vunpack.c.l.b16 %v3408
  %v3751 = vunpack.c.h.b16 %v3408
  %v3752 = vunpack.c.l.b16 %v3409
  %v3753 = vunpack.c.h.b16 %v3409
  %v3754 = vunpack.c.l.b16 %v3410
  %v3755 = vunpack.c.h.b16 %v3410
  %v3756 = vunpack.c.l.b16 %v3411
  %v3757 = vunpack.c.h.b16 %v3411
  %v3758 = vunpack.c.l.b16 %v3412
  %v3759 = vunpack.c.h.b16 %v3412
  %v3760 = vunpack.c.l.b16 %v3413
  %v3761 = vunpack.c.h.b16 %v3413
  %v3762 = vunpack.c.l.b16 %v3414
  %v3763 = vunpack.c.h.b16 %v3414
  %v3764 = vunpack.c.l.b16 %v3415
  %v3765 = vunpack.c.h.b16 %v3415
  %v3766 = vunpack.c.l.b16 %v3416
  %v3767 = vunpack.c.h.b16 %v3416
  %v3768 = vunpack.c.l.b16 %v3417
  %v3769 = vunpack.c.h.b16 %v3417
  %v3770 = vunpack.c.l.b16 %v3418
  %v3771 = vunpack.c.h.b16 %v3418
  %v3772 = vunpack.c.l.b16 %v3419
  %v3773 = vunpack.c.h.b16 %v3419
  %v3774 = vunpack.c.l.b16 %v3420
  %v3775 = vunpack.c.h.b16 %v3420
  %v3776 = vunpack.c.l.b16 %v3421
  %v3777 = vunpack.c.h.b16 %v3421
  %v3778 = vunpack.c.l.b16 %v3422
  %v3779 = vunpack.c.h.b16 %v3422
  %v3780 = vunpack.c.l.b16 %v3423
  %v3781 = vunpack.c.h.b16 %v3423
  %v3782 = vunpack.c.l.b16 %v3424
  %v3783 = vunpack.c.h.b16 %v3424
  %v3784 = vunpack.c.l.b16 %v3425
  %v3785 = vunpack.c.h.b16 %v3425
  %v3786 = vunpack.c.l.b16 %v3426
  %v3787 = vunpack.c.h.b16 %v3426
  %v3788 = vunpack.c.l.b16 %v3427
  %v3789 = vunpack.c.h.b16 %v3427
  %v3790 = vunpack.c.l.b16 %v3428
  %v3791 = vunpack.c.h.b16 %v3428
  %v3792 = vunpack.c.l.b16 %v3429
  %v3793 = vunpack.c.h.b16 %v3429
  %v3794 = vunpack.c.l.b16 %v3430
  %v3795 = vunpack.c.h.b16 %v3430
  %v3796 = vunpack.c.l.b16 %v3431
  %v3797 = vunpack.c.h.b16 %v3431
  %v3798 = vunpack.c.l.b16 %v3432
  %v3799 = vunpack.c.h.b16 %v3432
  %v3800 = vunpack.c.l.b16 %v3433
  %v3801 = vunpack.c.h.b16 %v3433
  %v3802 = vunpack.c.l.b16 %v3434
  %v3803 = vunpack.c.h.b16 %v3434
  %v3804 = vunpack.c.l.b16 %v3435
  %v3805 = vunpack.c.h.b16 %v3435
  %v3806 = vunpack.c.l.b16 %v3436
  %v3807 = vunpack.c.h.b16 %v3436
  %v3808 = vunpack.c.l.b16 %v3437
  %v3809 = vunpack.c.h.b16 %v3437
  %v3810 = vunpack.c.l.b16 %v3438
  %v3811 = vunpack.c.h.b16 %v3438
  %v3812 = vunpack.c.l.b16 %v3439
  %v3813 = vunpack.c.h.b16 %v3439
  %v3814 = vunpack.c.l.b16 %v3440
  %v3815 = vunpack.c.h.b16 %v3440
  %v3816 = vunpack.c.l.b16 %v3441
  %v3817 = vunpack.c.h.b16 %v3441
  %v3818 = vunpack.c.l.b16 %v3442
  %v3819 = vunpack.c.h.b16 %v3442
  %v3820 = vunpack.c.l.b16 %v3443
  %v3821 = vunpack.c.h.b16 %v3443
  %v3822 = vunpack.c.l.b16 %v3444
  %v3823 = vunpack.c.h.b16 %v3444
  %v3824 = vunpack.c.l.b16 %v3445
  %v3825 = vunpack.c.h.b16 %v3445
  %v3826 = vunpack.c.l.b16 %v3446
  %v3827 = vunpack.c.h.b16 %v3446
  %v3828 = vunpack.c.l.b16 %v3447
  %v3829 = vunpack.c.h.b16 %v3447
  %v3830 = vunpack.c.l.b16 %v3448
  %v3831 = vunpack.c.h.b16 %v3448
  %v3832 = vunpack.c.l.b16 %v3449
  %v3833 = vunpack.c.h.b16 %v3449
  %v3834 = vunpack.c.l.b16 %v3450
  %v3835 = vunpack.c.h.b16 %v3450
  %v3836 = vunpack.c.l.b16 %v3451
  %v3837 = vunpack.c.h.b16 %v3451
  %v3838 = vunpack.c.l.b16 %v3452
  %v3839 = vunpack.c.h.b16 %v3452
  %v3840 = vunpack.c.l.b16 %v3453
  %v3841 = vunpack.c.h.b16 %v3453
  %v3842 = vunpack.c.l.b16 %v3454
  %v3843 = vunpack.c.h.b16 %v3454
  %v3844 = vunpack.c.l.b16 %v3455
  %v3845 = vunpack.c.h.b16 %v3455
  %v3846 = vunpack.c.l.b16 %v3456
  %v3847 = vunpack.c.h.b16 %v3456
  %v3848 = vunpack.c.l.b16 %v3457
  %v3849 = vunpack.c.h.b16 %v3457
  %v3850 = vunpack.c.l.b16 %v3458
  %v3851 = vunpack.c.h.b16 %v3458
  %v3852 = vunpack.c.l.b16 %v3459
  %v3853 = vunpack.c.h.b16 %v3459
  %v3854 = vunpack.c.l.b16 %v3460
  %v3855 = vunpack.c.h.b16 %v3460
  %v3856 = vunpack.c.l.b16 %v3461
  %v3857 = vunpack.c.h.b16 %v3461
  %v3858 = vunpack.c.l.b16 %v3462
  %v3859 = vunpack.c.h.b16 %v3462
  %v3860 = vunpack.c.l.b16 %v3463
  %v3861 = vunpack.c.h.b16 %v3463
  %v3862 = vunpack.c.l.b16 %v3464
  %v3863 = vunpack.c.h.b16 %v3464
  %v3864 = vunpack.c.l.b16 %v3465
  %v3865 = vunpack.c.h.b16 %v3465
  %v3866 = vunpack.c.l.b16 %v3466
  %v3867 = vunpack.c.h.b16 %v3466
  %v3868 = vunpack.c.l.b16 %v3467
  %v3869 = vunpack.c.h.b16 %v3467
  %v3870 = vunpack.c.l.b16 %v3468
  %v3871 = vunpack.c.h.b16 %v3468
  %v3872 = vunpack.c.l.b16 %v3469
  %v3873 = vunpack.c.h.b16 %v3469
  %v3874 = vunpack.c.l.b16 %v3470
  %v3875 = vunpack.c.h.b16 %v3470
  %v3876 = vunpack.c.l.b16 %v3471
  %v3877 = vunpack.c.h.b16 %v3471
  %v3878 = vunpack.c.l.b16 %v3472
  %v3879 = vunpack.c.h.b16 %v3472
  %v3880 = vunpack.c.l.b16 %v3473
  %v3881 = vunpack.c.h.b16 %v3473
  %v3882 = vunpack.c.l.b16 %v3474
  %v3883 = vunpack.c.h.b16 %v3474
  %v3884 = vunpack.c.l.b16 %v3475
  %v3885 = vunpack.c.h.b16 %v3475
  %v3886 = vunpack.c.l.b16 %v3476
  %v3887 = vunpack.c.h.b16 %v3476
  %v3888 = vunpack.c.l.b16 %v3477
  %v3889 = vunpack.c.h.b16 %v3477
  %v3890 = vpack.c.b16 %v3636, %v3634
  %v3891 = vpack.c.b16 %v3637, %v3635
  %v3892 = vpack.c.b16 %v3640, %v3638
  %v3893 = vpack.c.b16 %v3641, %v3639
  %v3894 = vpack.c.b16 %v3644, %v3642
  %v3895 = vpack.c.b16 %v3645, %v3643
  %v3896 = vpack.c.b16 %v3648, %v3646
  %v3897 = vpack.c.b16 %v3649, %v3647
  %v3898 = vpack.c.b16 %v3652, %v3650
  %v3899 = vpack.c.b16 %v3653, %v3651
  %v3900 = vpack.c.b16 %v3656, %v3654
  %v3901 = vpack.c.b16 %v3657, %v3655
  %v3902 = vpack.c.b16 %v3660, %v3658
  %v3903 = vpack.c.b16 %v3661, %v3659
  %v3904 = vpack.c.b16 %v3664, %v3662
  %v3905 = vpack.c.b16 %v3665, %v3663
  %v3906 = vpack.c.b16 %v3668, %v3666
  %v3907 = vpack.c.b16 %v3669, %v3667
  %v3908 = vpack.c.b16 %v3672, %v3670
  %v3909 = vpack.c.b16 %v3673, %v3671
  %v3910 = vpack.c.b16 %v3676, %v3674
  %v3911 = vpack.c.b16 %v3677, %v3675
  %v3912 = vpack.c.b16 %v3680, %v3678
  %v3913 = vpack.c.b16 %v3681, %v3679
  %v3914 = vpack.c.b16 %v3684, %v3682
  %v3915 = vpack.c.b16 %v3685, %v3683
  %v3916 = vpack.c.b16 %v3688, %v3686
  %v3917 = vpack.c.b16 %v3689, %v3687
  %v3918 = vpack.c.b16 %v3692, %v3690
  %v3919 = vpack.c.b16 %v3693, %v3691
  %v3920 = vpack.c.b16 %v3696, %v3694
  %v3921 = vpack.c.b16 %v3697, %v3695
  %v3922 = vpack.c.b16 %v3700, %v3698
  %v3923 = vpack.c.b16 %v3701, %v3699
  %v3924 = vpack.c.b16 %v3704, %v3702
  %v3925 = vpack.c.b16 %v3705, %v3703
  %v3926 = vpack.c.b16 %v3708, %v3706
  %v3927 = vpack.c.b16 %v3709, %v3707
  %v3928 = vpack.c.b16 %v3712, %v3710
  %v3929 = vpack.c.b16 %v3713, %v3711
  %v3930 = vpack.c.b16 %v3716, %v3714
  %v3931 = vpack.c.b16 %v3717, %v3715
  %v3932 = vpack.c.b16 %v3720, %v3718
  %v3933 = vpack.c.b16 %v3721, %v3719
  %v3934 = vpack.c.b16 %v3724, %v3722
  %v3935 = vpack.c.b16 %v3725, %v3723
  %v3936 = vpack.c.b16 %v3728, %v3726
  %v3937 = vpack.c.b16 %v3729, %v3727
  %v3938 = vpack.c.b16 %v3732, %v3730
  %v3939 = vpack.c.b16 %v3733, %v3731
  %v3940 = vpack.c.b16 %v3736, %v3734
  %v3941 = vpack.c.b16 %v3737, %v3735
  %v3942 = vpack.c.b16 %v3740, %v3738
  %v3943 = vpack.c.b16 %v3741, %v3739
  %v3944 = vpack.c.b16 %v3744, %v3742
  %v3945 = vpack.c.b16 %v3745, %v3743
  %v3946 = vpack.c.b16 %v3748, %v3746
  %v3947 = vpack.c.b16 %v3749, %v3747
  %v3948 = vpack.c.b16 %v3752, %v3750
  %v3949 = vpack.c.b16 %v3753, %v3751
  %v3950 = vpack.c.b16 %v3756, %v3754
  %v3951 = vpack.c.b16 %v3757, %v3755
  %v3952 = vpack.c.b16 %v3760, %v3758
  %v3953 = vpack.c.b16 %v3761, %v3759
  %v3954 = vpack.c.b16 %v3764, %v3762
  %v3955 = vpack.c.b16 %v3765, %v3763
  %v3956 = vpack.c.b16 %v3768, %v3766
  %v3957 = vpack.c.b16 %v3769, %v3767
  %v3958 = vpack.c.b16 %v3772, %v3770
  %v3959 = vpack.c.b16 %v3773, %v3771
  %v3960 = vpack.c.b16 %v3776, %v3774
  %v3961 = vpack.c.b16 %v3777, %v3775
  %v3962 = vpack.c.b16 %v3780, %v3778
  %v3963 = vpack.c.b16 %v3781, %v3779
  %v3964 = vpack.c.b16 %v3784, %v3782
  %v3965 = vpack.c.b16 %v3785, %v3783
  %v3966 = vpack.c.b16 %v3788, %v3786
  %v3967 = vpack.c.b16 %v3789, %v3787
  %v3968 = vpack.c.b16 %v3792, %v3790
  %v3969 = vpack.c.b16 %v3793, %v3791
  %v3970 = vpack.c.b16 %v3796, %v3794
  %v3971 = vpack.c.b16 %v3797, %v3795
  %v3972 = vpack.c.b16 %v3800, %v3798
  %v3973 = vpack.c.b16 %v3801, %v3799
  %v3974 = vpack.c.b16 %v3804, %v3802
  %v3975 = vpack.c.b16 %v3805, %v3803
  %v3976 = vpack.c.b16 %v3808, %v3806
  %v3977 = vpack.c.b16 %v3809, %v3807
  %v3978 = vpack.c.b16 %v3812, %v3810
  %v3979 = vpack.c.b16 %v3813, %v3811
  %v3980 = vpack.c.b16 %v3816, %v3814
  %v3981 = vpack.c.b16 %v3817, %v3815
  %v3982 = vpack.c.b16 %v3820, %v3818
  %v3983 = vpack.c.b16 %v3821, %v3819
  %v3984 = vpack.c.b16 %v3824, %v3822
  %v3985 = vpack.c.b16 %v3825, %v3823
  %v3986 = vpack.c.b16 %v3828, %v3826
  %v3987 = vpack.c.b16 %v3829, %v3827
  %v3988 = vpack.c.b16 %v3832, %v3830
  %v3989 = vpack.c.b16 %v3833, %v3831
  %v3990 = vpack.c.b16 %v3836, %v3834
  %v3991 = vpack.c.b16 %v3837, %v3835
  %v3992 = vpack.c.b16 %v3840, %v3838
  %v3993 = vpack.c.b16 %v3841, %v3839
  %v3994 = vpack.c.b16 %v3844, %v3842
  %v3995 = vpack.c.b16 %v3845, %v3843
  %v3996 = vpack.c.b16 %v3848, %v3846
  %v3997 = vpack.c.b16 %v3849, %v3847
  %v3998 = vpack.c.b16 %v3852, %v3850
  %v3999 = vpack.c.b16 %v3853, %v3851
  %v4000 = vpack.c.b16 %v3856, %v3854
  %v4001 = vpack.c.b16 %v3857, %v3855
  %v4002 = vpack.c.b16 %v3860, %v3858
  %v4003 = vpack.c.b16 %v3861, %v3859
  %v4004 = vpack.c.b16 %v3864, %v3862
  %v4005 = vpack.c.b16 %v3865, %v3863
  %v4006 = vpack.c.b16 %v3868, %v3866
  %v4007 = vpack.c.b16 %v3869, %v3867
  %v4008 = vpack.c.b16 %v3872, %v3870
  %v4009 = vpack.c.b16 %v3873, %v3871
  %v4010 = vpack.c.b16 %v3876, %v3874
  %v4011 = vpack.c.b16 %v3877, %v3875
  %v4012 = vpack.c.b16 %v3880, %v3878
  %v4013 = vpack.c.b16 %v3881, %v3879
  %v4014 = vpack.c.b16 %v3884, %v3882
  %v4015 = vpack.c.b16 %v3885, %v3883
  %v4016 = vpack.c.b16 %v3888, %v3886
  %v4017 = vpack.c.b16 %v3889, %v3887
  %4146 = vmatprep.subr.bf16.mxu0 %v3891
  %4147 = vmatpush1.bf16.msra.mxu0 %v3890
  %4148 = vmatprep.subr.bf16.mxu0 %v3893
  %4149 = vmatpush1.bf16.msra.mxu0 %v3892
  %4150 = vmatprep.subr.bf16.mxu0 %v3895
  %4151 = vmatpush1.bf16.msra.mxu0 %v3894
  %4152 = vmatprep.subr.bf16.mxu0 %v3897
  %4153 = vmatpush1.bf16.msra.mxu0 %v3896
  %4154 = vmatprep.subr.bf16.mxu0 %v3899
  %4155 = vmatpush1.bf16.msra.mxu0 %v3898
  %4156 = vmatprep.subr.bf16.mxu0 %v3901
  %4157 = vmatpush1.bf16.msra.mxu0 %v3900
  %4158 = vmatprep.subr.bf16.mxu0 %v3903
  %4159 = vmatpush1.bf16.msra.mxu0 %v3902
  %4160 = vmatprep.subr.bf16.mxu0 %v3905
  %4161 = vmatpush1.bf16.msra.mxu0 %v3904
  %4162 = vmatprep.subr.bf16.mxu0 %v3907
  %4163 = vmatpush1.bf16.msra.mxu0 %v3906
  %4164 = vmatprep.subr.bf16.mxu0 %v3909
  %4165 = vmatpush1.bf16.msra.mxu0 %v3908
  %4166 = vmatprep.subr.bf16.mxu0 %v3911
  %4167 = vmatpush1.bf16.msra.mxu0 %v3910
  %4168 = vmatprep.subr.bf16.mxu0 %v3913
  %4169 = vmatpush1.bf16.msra.mxu0 %v3912
  %4170 = vmatprep.subr.bf16.mxu0 %v3915
  %4171 = vmatpush1.bf16.msra.mxu0 %v3914
  %4172 = vmatprep.subr.bf16.mxu0 %v3917
  %4173 = vmatpush1.bf16.msra.mxu0 %v3916
  %4174 = vmatprep.subr.bf16.mxu0 %v3919
  %4175 = vmatpush1.bf16.msra.mxu0 %v3918
  %4176 = vmatprep.subr.bf16.mxu0 %v3921
  %4177 = vmatpush1.bf16.msra.mxu0 %v3920
  %4178 = vmatprep.mubr.bf16.mxu0 %v3480
  %4179 = vmatmul.mubr.bf16.gmra.mrb[0].mxu0 %v3479
  %v4180 = vpop.f32.mrb[0].mxu0
  %v4181 = vadd.f32 %v3499, %v4180
  %v4182 = vpop.f32.mrb[0].mxu0
  %v4183 = vadd.f32 %v3503, %v4182
  %v4184 = vpop.f32.mrb[0].mxu0
  %v4185 = vadd.f32 %v3499, %v4184
  %v4186 = vpop.f32.mrb[0].mxu0
  %v4187 = vadd.f32 %v3503, %v4186
  %4188 = vmatprep.mubr.bf16.mxu0 %v3488
  %4189 = vmatmul.mubr.bf16.gmra.mrb[0].mxu0 %v3487
  %v4190 = vpop.f32.mrb[0].mxu0
  %v4191 = vadd.f32 %v3499, %v4190
  %v4192 = vpop.f32.mrb[0].mxu0
  %v4193 = vadd.f32 %v3503, %v4192
  %v4194 = vpop.f32.mrb[0].mxu0
  %v4195 = vadd.f32 %v3499, %v4194
  %v4196 = vpop.f32.mrb[0].mxu0
  %v4197 = vadd.f32 %v3503, %v4196
  %4198 = vdwg.mxu0
  %4199 = vmatprep.subr.bf16.mxu0 %v3923
  %4200 = vmatpush1.bf16.msra.mxu0 %v3922
  %4201 = vmatprep.subr.bf16.mxu0 %v3925
  %4202 = vmatpush1.bf16.msra.mxu0 %v3924
  %4203 = vmatprep.subr.bf16.mxu0 %v3927
  %4204 = vmatpush1.bf16.msra.mxu0 %v3926
  %4205 = vmatprep.subr.bf16.mxu0 %v3929
  %4206 = vmatpush1.bf16.msra.mxu0 %v3928
  %4207 = vmatprep.subr.bf16.mxu0 %v3931
  %4208 = vmatpush1.bf16.msra.mxu0 %v3930
  %4209 = vmatprep.subr.bf16.mxu0 %v3933
  %4210 = vmatpush1.bf16.msra.mxu0 %v3932
  %4211 = vmatprep.subr.bf16.mxu0 %v3935
  %4212 = vmatpush1.bf16.msra.mxu0 %v3934
  %4213 = vmatprep.subr.bf16.mxu0 %v3937
  %4214 = vmatpush1.bf16.msra.mxu0 %v3936
  %4215 = vmatprep.subr.bf16.mxu0 %v3939
  %4216 = vmatpush1.bf16.msra.mxu0 %v3938
  %4217 = vmatprep.subr.bf16.mxu0 %v3941
  %4218 = vmatpush1.bf16.msra.mxu0 %v3940
  %4219 = vmatprep.subr.bf16.mxu0 %v3943
  %4220 = vmatpush1.bf16.msra.mxu0 %v3942
  %4221 = vmatprep.subr.bf16.mxu0 %v3945
  %4222 = vmatpush1.bf16.msra.mxu0 %v3944
  %4223 = vmatprep.subr.bf16.mxu0 %v3947
  %4224 = vmatpush1.bf16.msra.mxu0 %v3946
  %4225 = vmatprep.subr.bf16.mxu0 %v3949
  %4226 = vmatpush1.bf16.msra.mxu0 %v3948
  %4227 = vmatprep.subr.bf16.mxu0 %v3951
  %4228 = vmatpush1.bf16.msra.mxu0 %v3950
  %4229 = vmatprep.subr.bf16.mxu0 %v3953
  %4230 = vmatpush1.bf16.msra.mxu0 %v3952
  %4231 = vmatprep.mubr.bf16.mxu0 %v3482
  %4232 = vmatmul.mubr.bf16.gmra.mrb[0].mxu0 %v3481
  %v4233 = vpop.f32.mrb[0].mxu0
  %v4234 = vadd.f32 %v4181, %v4233
  %v4235 = vpop.f32.mrb[0].mxu0
  %v4236 = vadd.f32 %v4183, %v4235
  %v4237 = vpop.f32.mrb[0].mxu0
  %v4238 = vadd.f32 %v4185, %v4237
  %v4239 = vpop.f32.mrb[0].mxu0
  %v4240 = vadd.f32 %v4187, %v4239
  %4241 = vmatprep.mubr.bf16.mxu0 %v3490
  %4242 = vmatmul.mubr.bf16.gmra.mrb[0].mxu0 %v3489
  %v4243 = vpop.f32.mrb[0].mxu0
  %v4244 = vadd.f32 %v4191, %v4243
  %v4245 = vpop.f32.mrb[0].mxu0
  %v4246 = vadd.f32 %v4193, %v4245
  %v4247 = vpop.f32.mrb[0].mxu0
  %v4248 = vadd.f32 %v4195, %v4247
  %v4249 = vpop.f32.mrb[0].mxu0
  %v4250 = vadd.f32 %v4197, %v4249
  %4251 = vdwg.mxu0
  %4252 = vmatprep.subr.bf16.mxu0 %v3955
  %4253 = vmatpush1.bf16.msra.mxu0 %v3954
  %4254 = vmatprep.subr.bf16.mxu0 %v3957
  %4255 = vmatpush1.bf16.msra.mxu0 %v3956
  %4256 = vmatprep.subr.bf16.mxu0 %v3959
  %4257 = vmatpush1.bf16.msra.mxu0 %v3958
  %4258 = vmatprep.subr.bf16.mxu0 %v3961
  %4259 = vmatpush1.bf16.msra.mxu0 %v3960
  %4260 = vmatprep.subr.bf16.mxu0 %v3963
  %4261 = vmatpush1.bf16.msra.mxu0 %v3962
  %4262 = vmatprep.subr.bf16.mxu0 %v3965
  %4263 = vmatpush1.bf16.msra.mxu0 %v3964
  %4264 = vmatprep.subr.bf16.mxu0 %v3967
  %4265 = vmatpush1.bf16.msra.mxu0 %v3966
  %4266 = vmatprep.subr.bf16.mxu0 %v3969
  %4267 = vmatpush1.bf16.msra.mxu0 %v3968
  %4268 = vmatprep.subr.bf16.mxu0 %v3971
  %4269 = vmatpush1.bf16.msra.mxu0 %v3970
  %4270 = vmatprep.subr.bf16.mxu0 %v3973
  %4271 = vmatpush1.bf16.msra.mxu0 %v3972
  %4272 = vmatprep.subr.bf16.mxu0 %v3975
  %4273 = vmatpush1.bf16.msra.mxu0 %v3974
  %4274 = vmatprep.subr.bf16.mxu0 %v3977
  %4275 = vmatpush1.bf16.msra.mxu0 %v3976
  %4276 = vmatprep.subr.bf16.mxu0 %v3979
  %4277 = vmatpush1.bf16.msra.mxu0 %v3978
  %4278 = vmatprep.subr.bf16.mxu0 %v3981
  %4279 = vmatpush1.bf16.msra.mxu0 %v3980
  %4280 = vmatprep.subr.bf16.mxu0 %v3983
  %4281 = vmatpush1.bf16.msra.mxu0 %v3982
  %4282 = vmatprep.subr.bf16.mxu0 %v3985
  %4283 = vmatpush1.bf16.msra.mxu0 %v3984
  %4284 = vmatprep.mubr.bf16.mxu0 %v3484
  %4285 = vmatmul.mubr.bf16.gmra.mrb[0].mxu0 %v3483
  %v4286 = vpop.f32.mrb[0].mxu0
  %v4287 = vadd.f32 %v4234, %v4286
  %v4288 = vpop.f32.mrb[0].mxu0
  %v4289 = vadd.f32 %v4236, %v4288
  %v4290 = vpop.f32.mrb[0].mxu0
  %v4291 = vadd.f32 %v4238, %v4290
  %v4292 = vpop.f32.mrb[0].mxu0
  %v4293 = vadd.f32 %v4240, %v4292
  %4294 = vmatprep.mubr.bf16.mxu0 %v3492
  %4295 = vmatmul.mubr.bf16.gmra.mrb[0].mxu0 %v3491
  %v4296 = vpop.f32.mrb[0].mxu0
  %v4297 = vadd.f32 %v4244, %v4296
  %v4298 = vpop.f32.mrb[0].mxu0
  %v4299 = vadd.f32 %v4246, %v4298
  %v4300 = vpop.f32.mrb[0].mxu0
  %v4301 = vadd.f32 %v4248, %v4300
  %v4302 = vpop.f32.mrb[0].mxu0
  %v4303 = vadd.f32 %v4250, %v4302
  %4304 = vdwg.mxu0
  %4305 = vmatprep.subr.bf16.mxu0 %v3987
  %4306 = vmatpush1.bf16.msra.mxu0 %v3986
  %4307 = vmatprep.subr.bf16.mxu0 %v3989
  %4308 = vmatpush1.bf16.msra.mxu0 %v3988
  %4309 = vmatprep.subr.bf16.mxu0 %v3991
  %4310 = vmatpush1.bf16.msra.mxu0 %v3990
  %4311 = vmatprep.subr.bf16.mxu0 %v3993
  %4312 = vmatpush1.bf16.msra.mxu0 %v3992
  %4313 = vmatprep.subr.bf16.mxu0 %v3995
  %4314 = vmatpush1.bf16.msra.mxu0 %v3994
  %4315 = vmatprep.subr.bf16.mxu0 %v3997
  %4316 = vmatpush1.bf16.msra.mxu0 %v3996
  %4317 = vmatprep.subr.bf16.mxu0 %v3999
  %4318 = vmatpush1.bf16.msra.mxu0 %v3998
  %4319 = vmatprep.subr.bf16.mxu0 %v4001
  %4320 = vmatpush1.bf16.msra.mxu0 %v4000
  %4321 = vmatprep.subr.bf16.mxu0 %v4003
  %4322 = vmatpush1.bf16.msra.mxu0 %v4002
  %4323 = vmatprep.subr.bf16.mxu0 %v4005
  %4324 = vmatpush1.bf16.msra.mxu0 %v4004
  %4325 = vmatprep.subr.bf16.mxu0 %v4007
  %4326 = vmatpush1.bf16.msra.mxu0 %v4006
  %4327 = vmatprep.subr.bf16.mxu0 %v4009
  %4328 = vmatpush1.bf16.msra.mxu0 %v4008
  %4329 = vmatprep.subr.bf16.mxu0 %v4011
  %4330 = vmatpush1.bf16.msra.mxu0 %v4010
  %4331 = vmatprep.subr.bf16.mxu0 %v4013
  %4332 = vmatpush1.bf16.msra.mxu0 %v4012
  %4333 = vmatprep.subr.bf16.mxu0 %v4015
  %4334 = vmatpush1.bf16.msra.mxu0 %v4014
  %4335 = vmatprep.subr.bf16.mxu0 %v4017
  %4336 = vmatpush1.bf16.msra.mxu0 %v4016
  %4337 = vmatprep.mubr.bf16.mxu0 %v3486
  %4338 = vmatmul.mubr.bf16.gmra.mrb[0].mxu0 %v3485
  %v4339 = vpop.f32.mrb[0].mxu0
  %v4340 = vadd.f32 %v4287, %v4339
  %v4341 = vpop.f32.mrb[0].mxu0
  %v4342 = vadd.f32 %v4289, %v4341
  %v4343 = vpop.f32.mrb[0].mxu0
  %v4344 = vadd.f32 %v4291, %v4343
  %v4345 = vpop.f32.mrb[0].mxu0
  %v4346 = vadd.f32 %v4293, %v4345
  %4347 = vmatprep.mubr.bf16.mxu0 %v3494
  %4348 = vmatmul.mubr.bf16.gmra.mrb[0].mxu0 %v3493
  %v4349 = vpop.f32.mrb[0].mxu0
  %v4350 = vadd.f32 %v4297, %v4349
  %v4351 = vpop.f32.mrb[0].mxu0
  %v4352 = vadd.f32 %v4299, %v4351
  %v4353 = vpop.f32.mrb[0].mxu0
  %v4354 = vadd.f32 %v4301, %v4353
  %v4355 = vpop.f32.mrb[0].mxu0
  %v4356 = vadd.f32 %v4303, %v4355
  %4357 = vdwg.mxu0
  %v4358 = vadd.f32 %v1924, %v4340
  %v4359 = vadd.f32 %v1925, %v4342
  %v4360 = vadd.f32 %v1926, %v4344
  %v4361 = vadd.f32 %v1927, %v4346
  %v4362 = vadd.f32 %v1928, %v4350
  %v4363 = vadd.f32 %v1929, %v4352
  %v4364 = vadd.f32 %v1930, %v4354
  %v4365 = vadd.f32 %v1931, %v4356
  %s4366 = scalar_lea.vmem %s4, 2
  %v4367 = vld [vmem:[%s4366] sm:$0x3]
  %s4368 = scalar_lea.vmem %s5, 2
  %v4369 = vld [vmem:[%s4368] sm:$0x3]
  %v4370 = vadd.f32 %v4358, %v4359
  %4371 = vadd.xlane.f32.xlu0 %v4370
  %v4372 = vpop.xlane.xlu0 %4371
  %v4373 = vadd.f32 %v4360, %v4361
  %4374 = vadd.xlane.f32.xlu0 %v4373
  %v4375 = vpop.xlane.xlu0 %4374
  %v4376 = vadd.f32 %v4362, %v4363
  %4377 = vadd.xlane.f32.xlu0 %v4376
  %v4378 = vpop.xlane.xlu0 %4377
  %v4379 = vadd.f32 %v4364, %v4365
  %4380 = vadd.xlane.f32.xlu0 %v4379
  %v4381 = vpop.xlane.xlu0 %4380
  %v4382 = vmul.f32 %v4372, %v340
  %v4383 = vmul.f32 %v4375, %v340
  %v4384 = vmul.f32 %v4378, %v340
  %v4385 = vmul.f32 %v4381, %v340
  %v4386 = vsub.f32 %v4358, %v4382
  %v4387 = vsub.f32 %v4359, %v4382
  %v4388 = vsub.f32 %v4360, %v4383
  %v4389 = vsub.f32 %v4361, %v4383
  %v4390 = vsub.f32 %v4362, %v4384
  %v4391 = vsub.f32 %v4363, %v4384
  %v4392 = vsub.f32 %v4364, %v4385
  %v4393 = vsub.f32 %v4365, %v4385
  %v4394 = vmul.f32 %v4386, %v4386
  %v4395 = vmul.f32 %v4387, %v4387
  %v4396 = vmul.f32 %v4388, %v4388
  %v4397 = vmul.f32 %v4389, %v4389
  %v4398 = vmul.f32 %v4390, %v4390
  %v4399 = vmul.f32 %v4391, %v4391
  %v4400 = vmul.f32 %v4392, %v4392
  %v4401 = vmul.f32 %v4393, %v4393
  %v4402 = vadd.f32 %v4394, %v4395
  %4403 = vadd.xlane.f32.xlu0 %v4402
  %v4404 = vpop.xlane.xlu0 %4403
  %v4405 = vadd.f32 %v4396, %v4397
  %4406 = vadd.xlane.f32.xlu0 %v4405
  %v4407 = vpop.xlane.xlu0 %4406
  %v4408 = vadd.f32 %v4398, %v4399
  %4409 = vadd.xlane.f32.xlu0 %v4408
  %v4410 = vpop.xlane.xlu0 %4409
  %v4411 = vadd.f32 %v4400, %v4401
  %4412 = vadd.xlane.f32.xlu0 %v4411
  %v4413 = vpop.xlane.xlu0 %4412
  %v4414 = vmul.f32 %v4404, %v340
  %v4415 = vmul.f32 %v4407, %v340
  %v4416 = vmul.f32 %v4410, %v340
  %v4417 = vmul.f32 %v4413, %v340
  %v4418 = vadd.f32 %v4414, 1e-06
  %v4419 = vadd.f32 %v4415, 1e-06
  %v4420 = vadd.f32 %v4416, 1e-06
  %v4421 = vadd.f32 %v4417, 1e-06
  %v4422 = vrsqrt.pop %v4418
  %v4423 = vrsqrt.pop %v4419
  %v4424 = vrsqrt.pop %v4420
  %v4425 = vrsqrt.pop %v4421
  %v4426 = vmul.f32 %v4386, %v4422
  %v4427 = vmul.f32 %v4387, %v4422
  %v4428 = vmul.f32 %v4388, %v4423
  %v4429 = vmul.f32 %v4389, %v4423
  %v4430 = vmul.f32 %v4390, %v4424
  %v4431 = vmul.f32 %v4391, %v4424
  %v4432 = vmul.f32 %v4392, %v4425
  %v4433 = vmul.f32 %v4393, %v4425
  %v4435 = vlaneseq
  %v4436 = vshrl.u32 %v4435, 7
  %v4437 = vsub.s32 0, %v4436
  %v4438 = vrot.slane %v4367, %v4437
  %v4439 = vlaneseq
  %v4440 = vshrl.u32 %v4439, 7
  %v4441 = vsub.s32 1, %v4440
  %v4442 = vrot.slane %v4367, %v4441
  %v4445 = vmul.f32 %v4426, %v4438
  %v4446 = vmul.f32 %v4427, %v4442
  %v4447 = vmul.f32 %v4428, %v4438
  %v4448 = vmul.f32 %v4429, %v4442
  %v4449 = vmul.f32 %v4430, %v4438
  %v4450 = vmul.f32 %v4431, %v4442
  %v4451 = vmul.f32 %v4432, %v4438
  %v4452 = vmul.f32 %v4433, %v4442
  %v4454 = vlaneseq
  %v4455 = vshrl.u32 %v4454, 7
  %v4456 = vsub.s32 0, %v4455
  %v4457 = vrot.slane %v4369, %v4456
  %v4458 = vlaneseq
  %v4459 = vshrl.u32 %v4458, 7
  %v4460 = vsub.s32 1, %v4459
  %v4461 = vrot.slane %v4369, %v4460
  %v4464 = vadd.f32 %v4445, %v4457
  %v4465 = vadd.f32 %v4446, %v4461
  %v4466 = vadd.f32 %v4447, %v4457
  %v4467 = vadd.f32 %v4448, %v4461
  %v4468 = vadd.f32 %v4449, %v4457
  %v4469 = vadd.f32 %v4450, %v4461
  %v4470 = vadd.f32 %v4451, %v4457
  %v4471 = vadd.f32 %v4452, %v4461
  %v4472 = vpack.c.bf16 %v4466, %v4464
  %v4473 = vpack.c.bf16 %v4467, %v4465
  %v4474 = vpack.c.bf16 %v4470, %v4468
  %v4475 = vpack.c.bf16 %v4471, %v4469
  %s4476 = scalar_lea.vmem %s6, 768
  %v4477 = vld [vmem:[%s4476] sm:$0xff]
  %v4478 = vld [vmem:[%s4476 + $0x8] sm:$0xff]
  %v4479 = vld [vmem:[%s4476 + $0x10] sm:$0xff]
  %v4480 = vld [vmem:[%s4476 + $0x18] sm:$0xff]
  %v4481 = vld [vmem:[%s4476 + $0x20] sm:$0xff]
  %v4482 = vld [vmem:[%s4476 + $0x28] sm:$0xff]
  %v4483 = vld [vmem:[%s4476 + $0x30] sm:$0xff]
  %v4484 = vld [vmem:[%s4476 + $0x38] sm:$0xff]
  %v4485 = vld [vmem:[%s4476 + $0x40] sm:$0xff]
  %v4486 = vld [vmem:[%s4476 + $0x48] sm:$0xff]
  %v4487 = vld [vmem:[%s4476 + $0x50] sm:$0xff]
  %v4488 = vld [vmem:[%s4476 + $0x58] sm:$0xff]
  %v4489 = vld [vmem:[%s4476 + $0x60] sm:$0xff]
  %v4490 = vld [vmem:[%s4476 + $0x68] sm:$0xff]
  %v4491 = vld [vmem:[%s4476 + $0x70] sm:$0xff]
  %v4492 = vld [vmem:[%s4476 + $0x78] sm:$0xff]
  %v4493 = vld [vmem:[%s4476 + $0x80] sm:$0xff]
  %v4494 = vld [vmem:[%s4476 + $0x88] sm:$0xff]
  %v4495 = vld [vmem:[%s4476 + $0x90] sm:$0xff]
  %v4496 = vld [vmem:[%s4476 + $0x98] sm:$0xff]
  %v4497 = vld [vmem:[%s4476 + $0xa0] sm:$0xff]
  %v4498 = vld [vmem:[%s4476 + $0xa8] sm:$0xff]
  %v4499 = vld [vmem:[%s4476 + $0xb0] sm:$0xff]
  %v4500 = vld [vmem:[%s4476 + $0xb8] sm:$0xff]
  %v4501 = vld [vmem:[%s4476 + $0xc0] sm:$0xff]
  %v4502 = vld [vmem:[%s4476 + $0xc8] sm:$0xff]
  %v4503 = vld [vmem:[%s4476 + $0xd0] sm:$0xff]
  %v4504 = vld [vmem:[%s4476 + $0xd8] sm:$0xff]
  %v4505 = vld [vmem:[%s4476 + $0xe0] sm:$0xff]
  %v4506 = vld [vmem:[%s4476 + $0xe8] sm:$0xff]
  %v4507 = vld [vmem:[%s4476 + $0xf0] sm:$0xff]
  %v4508 = vld [vmem:[%s4476 + $0xf8] sm:$0xff]
  %v4509 = vld [vmem:[%s4476 + $0x100] sm:$0xff]
  %v4510 = vld [vmem:[%s4476 + $0x108] sm:$0xff]
  %v4511 = vld [vmem:[%s4476 + $0x110] sm:$0xff]
  %v4512 = vld [vmem:[%s4476 + $0x118] sm:$0xff]
  %v4513 = vld [vmem:[%s4476 + $0x120] sm:$0xff]
  %v4514 = vld [vmem:[%s4476 + $0x128] sm:$0xff]
  %v4515 = vld [vmem:[%s4476 + $0x130] sm:$0xff]
  %v4516 = vld [vmem:[%s4476 + $0x138] sm:$0xff]
  %v4517 = vld [vmem:[%s4476 + $0x140] sm:$0xff]
  %v4518 = vld [vmem:[%s4476 + $0x148] sm:$0xff]
  %v4519 = vld [vmem:[%s4476 + $0x150] sm:$0xff]
  %v4520 = vld [vmem:[%s4476 + $0x158] sm:$0xff]
  %v4521 = vld [vmem:[%s4476 + $0x160] sm:$0xff]
  %v4522 = vld [vmem:[%s4476 + $0x168] sm:$0xff]
  %v4523 = vld [vmem:[%s4476 + $0x170] sm:$0xff]
  %v4524 = vld [vmem:[%s4476 + $0x178] sm:$0xff]
  %v4525 = vld [vmem:[%s4476 + $0x180] sm:$0xff]
  %v4526 = vld [vmem:[%s4476 + $0x188] sm:$0xff]
  %v4527 = vld [vmem:[%s4476 + $0x190] sm:$0xff]
  %v4528 = vld [vmem:[%s4476 + $0x198] sm:$0xff]
  %v4529 = vld [vmem:[%s4476 + $0x1a0] sm:$0xff]
  %v4530 = vld [vmem:[%s4476 + $0x1a8] sm:$0xff]
  %v4531 = vld [vmem:[%s4476 + $0x1b0] sm:$0xff]
  %v4532 = vld [vmem:[%s4476 + $0x1b8] sm:$0xff]
  %v4533 = vld [vmem:[%s4476 + $0x1c0] sm:$0xff]
  %v4534 = vld [vmem:[%s4476 + $0x1c8] sm:$0xff]
  %v4535 = vld [vmem:[%s4476 + $0x1d0] sm:$0xff]
  %v4536 = vld [vmem:[%s4476 + $0x1d8] sm:$0xff]
  %v4537 = vld [vmem:[%s4476 + $0x1e0] sm:$0xff]
  %v4538 = vld [vmem:[%s4476 + $0x1e8] sm:$0xff]
  %v4539 = vld [vmem:[%s4476 + $0x1f0] sm:$0xff]
  %v4540 = vld [vmem:[%s4476 + $0x1f8] sm:$0xff]
  %v4541 = vld [vmem:[%s4476 + $0x200] sm:$0xff]
  %v4542 = vld [vmem:[%s4476 + $0x208] sm:$0xff]
  %v4543 = vld [vmem:[%s4476 + $0x210] sm:$0xff]
  %v4544 = vld [vmem:[%s4476 + $0x218] sm:$0xff]
  %v4545 = vld [vmem:[%s4476 + $0x220] sm:$0xff]
  %v4546 = vld [vmem:[%s4476 + $0x228] sm:$0xff]
  %v4547 = vld [vmem:[%s4476 + $0x230] sm:$0xff]
  %v4548 = vld [vmem:[%s4476 + $0x238] sm:$0xff]
  %v4549 = vld [vmem:[%s4476 + $0x240] sm:$0xff]
  %v4550 = vld [vmem:[%s4476 + $0x248] sm:$0xff]
  %v4551 = vld [vmem:[%s4476 + $0x250] sm:$0xff]
  %v4552 = vld [vmem:[%s4476 + $0x258] sm:$0xff]
  %v4553 = vld [vmem:[%s4476 + $0x260] sm:$0xff]
  %v4554 = vld [vmem:[%s4476 + $0x268] sm:$0xff]
  %v4555 = vld [vmem:[%s4476 + $0x270] sm:$0xff]
  %v4556 = vld [vmem:[%s4476 + $0x278] sm:$0xff]
  %v4557 = vld [vmem:[%s4476 + $0x280] sm:$0xff]
  %v4558 = vld [vmem:[%s4476 + $0x288] sm:$0xff]
  %v4559 = vld [vmem:[%s4476 + $0x290] sm:$0xff]
  %v4560 = vld [vmem:[%s4476 + $0x298] sm:$0xff]
  %v4561 = vld [vmem:[%s4476 + $0x2a0] sm:$0xff]
  %v4562 = vld [vmem:[%s4476 + $0x2a8] sm:$0xff]
  %v4563 = vld [vmem:[%s4476 + $0x2b0] sm:$0xff]
  %v4564 = vld [vmem:[%s4476 + $0x2b8] sm:$0xff]
  %v4565 = vld [vmem:[%s4476 + $0x2c0] sm:$0xff]
  %v4566 = vld [vmem:[%s4476 + $0x2c8] sm:$0xff]
  %v4567 = vld [vmem:[%s4476 + $0x2d0] sm:$0xff]
  %v4568 = vld [vmem:[%s4476 + $0x2d8] sm:$0xff]
  %v4569 = vld [vmem:[%s4476 + $0x2e0] sm:$0xff]
  %v4570 = vld [vmem:[%s4476 + $0x2e8] sm:$0xff]
  %v4571 = vld [vmem:[%s4476 + $0x2f0] sm:$0xff]
  %v4572 = vld [vmem:[%s4476 + $0x2f8] sm:$0xff]
  %s4573 = scalar_lea.vmem %s7, 6
  %v4574 = vld [vmem:[%s4573] sm:$0x3f]
  %v4576 = vlaneseq
  %v4577 = vshrl.u32 %v4576, 7
  %v4578 = vsub.s32 0, %v4577
  %v4579 = vrot.slane %v4574, %v4578
  %v4580 = vlaneseq
  %v4581 = vshrl.u32 %v4580, 7
  %v4582 = vsub.s32 1, %v4581
  %v4583 = vrot.slane %v4574, %v4582
  %v4584 = vlaneseq
  %v4585 = vshrl.u32 %v4584, 7
  %v4586 = vsub.s32 2, %v4585
  %v4587 = vrot.slane %v4574, %v4586
  %v4588 = vlaneseq
  %v4589 = vshrl.u32 %v4588, 7
  %v4590 = vsub.s32 3, %v4589
  %v4591 = vrot.slane %v4574, %v4590
  %v4592 = vlaneseq
  %v4593 = vshrl.u32 %v4592, 7
  %v4594 = vsub.s32 4, %v4593
  %v4595 = vrot.slane %v4574, %v4594
  %v4596 = vlaneseq
  %v4597 = vshrl.u32 %v4596, 7
  %v4598 = vsub.s32 5, %v4597
  %v4599 = vrot.slane %v4574, %v4598
  %v4702 = vunpack.c.l.b16 %v4477
  %v4703 = vunpack.c.h.b16 %v4477
  %v4704 = vunpack.c.l.b16 %v4478
  %v4705 = vunpack.c.h.b16 %v4478
  %v4706 = vunpack.c.l.b16 %v4479
  %v4707 = vunpack.c.h.b16 %v4479
  %v4708 = vunpack.c.l.b16 %v4480
  %v4709 = vunpack.c.h.b16 %v4480
  %v4710 = vunpack.c.l.b16 %v4481
  %v4711 = vunpack.c.h.b16 %v4481
  %v4712 = vunpack.c.l.b16 %v4482
  %v4713 = vunpack.c.h.b16 %v4482
  %v4714 = vunpack.c.l.b16 %v4483
  %v4715 = vunpack.c.h.b16 %v4483
  %v4716 = vunpack.c.l.b16 %v4484
  %v4717 = vunpack.c.h.b16 %v4484
  %v4718 = vunpack.c.l.b16 %v4485
  %v4719 = vunpack.c.h.b16 %v4485
  %v4720 = vunpack.c.l.b16 %v4486
  %v4721 = vunpack.c.h.b16 %v4486
  %v4722 = vunpack.c.l.b16 %v4487
  %v4723 = vunpack.c.h.b16 %v4487
  %v4724 = vunpack.c.l.b16 %v4488
  %v4725 = vunpack.c.h.b16 %v4488
  %v4726 = vunpack.c.l.b16 %v4489
  %v4727 = vunpack.c.h.b16 %v4489
  %v4728 = vunpack.c.l.b16 %v4490
  %v4729 = vunpack.c.h.b16 %v4490
  %v4730 = vunpack.c.l.b16 %v4491
  %v4731 = vunpack.c.h.b16 %v4491
  %v4732 = vunpack.c.l.b16 %v4492
  %v4733 = vunpack.c.h.b16 %v4492
  %v4734 = vunpack.c.l.b16 %v4493
  %v4735 = vunpack.c.h.b16 %v4493
  %v4736 = vunpack.c.l.b16 %v4494
  %v4737 = vunpack.c.h.b16 %v4494
  %v4738 = vunpack.c.l.b16 %v4495
  %v4739 = vunpack.c.h.b16 %v4495
  %v4740 = vunpack.c.l.b16 %v4496
  %v4741 = vunpack.c.h.b16 %v4496
  %v4742 = vunpack.c.l.b16 %v4497
  %v4743 = vunpack.c.h.b16 %v4497
  %v4744 = vunpack.c.l.b16 %v4498
  %v4745 = vunpack.c.h.b16 %v4498
  %v4746 = vunpack.c.l.b16 %v4499
  %v4747 = vunpack.c.h.b16 %v4499
  %v4748 = vunpack.c.l.b16 %v4500
  %v4749 = vunpack.c.h.b16 %v4500
  %v4750 = vunpack.c.l.b16 %v4501
  %v4751 = vunpack.c.h.b16 %v4501
  %v4752 = vunpack.c.l.b16 %v4502
  %v4753 = vunpack.c.h.b16 %v4502
  %v4754 = vunpack.c.l.b16 %v4503
  %v4755 = vunpack.c.h.b16 %v4503
  %v4756 = vunpack.c.l.b16 %v4504
  %v4757 = vunpack.c.h.b16 %v4504
  %v4758 = vunpack.c.l.b16 %v4505
  %v4759 = vunpack.c.h.b16 %v4505
  %v4760 = vunpack.c.l.b16 %v4506
  %v4761 = vunpack.c.h.b16 %v4506
  %v4762 = vunpack.c.l.b16 %v4507
  %v4763 = vunpack.c.h.b16 %v4507
  %v4764 = vunpack.c.l.b16 %v4508
  %v4765 = vunpack.c.h.b16 %v4508
  %v4766 = vunpack.c.l.b16 %v4509
  %v4767 = vunpack.c.h.b16 %v4509
  %v4768 = vunpack.c.l.b16 %v4510
  %v4769 = vunpack.c.h.b16 %v4510
  %v4770 = vunpack.c.l.b16 %v4511
  %v4771 = vunpack.c.h.b16 %v4511
  %v4772 = vunpack.c.l.b16 %v4512
  %v4773 = vunpack.c.h.b16 %v4512
  %v4774 = vunpack.c.l.b16 %v4513
  %v4775 = vunpack.c.h.b16 %v4513
  %v4776 = vunpack.c.l.b16 %v4514
  %v4777 = vunpack.c.h.b16 %v4514
  %v4778 = vunpack.c.l.b16 %v4515
  %v4779 = vunpack.c.h.b16 %v4515
  %v4780 = vunpack.c.l.b16 %v4516
  %v4781 = vunpack.c.h.b16 %v4516
  %v4782 = vunpack.c.l.b16 %v4517
  %v4783 = vunpack.c.h.b16 %v4517
  %v4784 = vunpack.c.l.b16 %v4518
  %v4785 = vunpack.c.h.b16 %v4518
  %v4786 = vunpack.c.l.b16 %v4519
  %v4787 = vunpack.c.h.b16 %v4519
  %v4788 = vunpack.c.l.b16 %v4520
  %v4789 = vunpack.c.h.b16 %v4520
  %v4790 = vunpack.c.l.b16 %v4521
  %v4791 = vunpack.c.h.b16 %v4521
  %v4792 = vunpack.c.l.b16 %v4522
  %v4793 = vunpack.c.h.b16 %v4522
  %v4794 = vunpack.c.l.b16 %v4523
  %v4795 = vunpack.c.h.b16 %v4523
  %v4796 = vunpack.c.l.b16 %v4524
  %v4797 = vunpack.c.h.b16 %v4524
  %v4798 = vunpack.c.l.b16 %v4525
  %v4799 = vunpack.c.h.b16 %v4525
  %v4800 = vunpack.c.l.b16 %v4526
  %v4801 = vunpack.c.h.b16 %v4526
  %v4802 = vunpack.c.l.b16 %v4527
  %v4803 = vunpack.c.h.b16 %v4527
  %v4804 = vunpack.c.l.b16 %v4528
  %v4805 = vunpack.c.h.b16 %v4528
  %v4806 = vunpack.c.l.b16 %v4529
  %v4807 = vunpack.c.h.b16 %v4529
  %v4808 = vunpack.c.l.b16 %v4530
  %v4809 = vunpack.c.h.b16 %v4530
  %v4810 = vunpack.c.l.b16 %v4531
  %v4811 = vunpack.c.h.b16 %v4531
  %v4812 = vunpack.c.l.b16 %v4532
  %v4813 = vunpack.c.h.b16 %v4532
  %v4814 = vunpack.c.l.b16 %v4533
  %v4815 = vunpack.c.h.b16 %v4533
  %v4816 = vunpack.c.l.b16 %v4534
  %v4817 = vunpack.c.h.b16 %v4534
  %v4818 = vunpack.c.l.b16 %v4535
  %v4819 = vunpack.c.h.b16 %v4535
  %v4820 = vunpack.c.l.b16 %v4536
  %v4821 = vunpack.c.h.b16 %v4536
  %v4822 = vunpack.c.l.b16 %v4537
  %v4823 = vunpack.c.h.b16 %v4537
  %v4824 = vunpack.c.l.b16 %v4538
  %v4825 = vunpack.c.h.b16 %v4538
  %v4826 = vunpack.c.l.b16 %v4539
  %v4827 = vunpack.c.h.b16 %v4539
  %v4828 = vunpack.c.l.b16 %v4540
  %v4829 = vunpack.c.h.b16 %v4540
  %v4830 = vunpack.c.l.b16 %v4541
  %v4831 = vunpack.c.h.b16 %v4541
  %v4832 = vunpack.c.l.b16 %v4542
  %v4833 = vunpack.c.h.b16 %v4542
  %v4834 = vunpack.c.l.b16 %v4543
  %v4835 = vunpack.c.h.b16 %v4543
  %v4836 = vunpack.c.l.b16 %v4544
  %v4837 = vunpack.c.h.b16 %v4544
  %v4838 = vunpack.c.l.b16 %v4545
  %v4839 = vunpack.c.h.b16 %v4545
  %v4840 = vunpack.c.l.b16 %v4546
  %v4841 = vunpack.c.h.b16 %v4546
  %v4842 = vunpack.c.l.b16 %v4547
  %v4843 = vunpack.c.h.b16 %v4547
  %v4844 = vunpack.c.l.b16 %v4548
  %v4845 = vunpack.c.h.b16 %v4548
  %v4846 = vunpack.c.l.b16 %v4549
  %v4847 = vunpack.c.h.b16 %v4549
  %v4848 = vunpack.c.l.b16 %v4550
  %v4849 = vunpack.c.h.b16 %v4550
  %v4850 = vunpack.c.l.b16 %v4551
  %v4851 = vunpack.c.h.b16 %v4551
  %v4852 = vunpack.c.l.b16 %v4552
  %v4853 = vunpack.c.h.b16 %v4552
  %v4854 = vunpack.c.l.b16 %v4553
  %v4855 = vunpack.c.h.b16 %v4553
  %v4856 = vunpack.c.l.b16 %v4554
  %v4857 = vunpack.c.h.b16 %v4554
  %v4858 = vunpack.c.l.b16 %v4555
  %v4859 = vunpack.c.h.b16 %v4555
  %v4860 = vunpack.c.l.b16 %v4556
  %v4861 = vunpack.c.h.b16 %v4556
  %v4862 = vunpack.c.l.b16 %v4557
  %v4863 = vunpack.c.h.b16 %v4557
  %v4864 = vunpack.c.l.b16 %v4558
  %v4865 = vunpack.c.h.b16 %v4558
  %v4866 = vunpack.c.l.b16 %v4559
  %v4867 = vunpack.c.h.b16 %v4559
  %v4868 = vunpack.c.l.b16 %v4560
  %v4869 = vunpack.c.h.b16 %v4560
  %v4870 = vunpack.c.l.b16 %v4561
  %v4871 = vunpack.c.h.b16 %v4561
  %v4872 = vunpack.c.l.b16 %v4562
  %v4873 = vunpack.c.h.b16 %v4562
  %v4874 = vunpack.c.l.b16 %v4563
  %v4875 = vunpack.c.h.b16 %v4563
  %v4876 = vunpack.c.l.b16 %v4564
  %v4877 = vunpack.c.h.b16 %v4564
  %v4878 = vunpack.c.l.b16 %v4565
  %v4879 = vunpack.c.h.b16 %v4565
  %v4880 = vunpack.c.l.b16 %v4566
  %v4881 = vunpack.c.h.b16 %v4566
  %v4882 = vunpack.c.l.b16 %v4567
  %v4883 = vunpack.c.h.b16 %v4567
  %v4884 = vunpack.c.l.b16 %v4568
  %v4885 = vunpack.c.h.b16 %v4568
  %v4886 = vunpack.c.l.b16 %v4569
  %v4887 = vunpack.c.h.b16 %v4569
  %v4888 = vunpack.c.l.b16 %v4570
  %v4889 = vunpack.c.h.b16 %v4570
  %v4890 = vunpack.c.l.b16 %v4571
  %v4891 = vunpack.c.h.b16 %v4571
  %v4892 = vunpack.c.l.b16 %v4572
  %v4893 = vunpack.c.h.b16 %v4572
  %v4894 = vpack.c.b16 %v4708, %v4702
  %v4895 = vpack.c.b16 %v4709, %v4703
  %v4896 = vpack.c.b16 %v4710, %v4704
  %v4897 = vpack.c.b16 %v4711, %v4705
  %v4898 = vpack.c.b16 %v4712, %v4706
  %v4899 = vpack.c.b16 %v4713, %v4707
  %v4900 = vpack.c.b16 %v4720, %v4714
  %v4901 = vpack.c.b16 %v4721, %v4715
  %v4902 = vpack.c.b16 %v4722, %v4716
  %v4903 = vpack.c.b16 %v4723, %v4717
  %v4904 = vpack.c.b16 %v4724, %v4718
  %v4905 = vpack.c.b16 %v4725, %v4719
  %v4906 = vpack.c.b16 %v4732, %v4726
  %v4907 = vpack.c.b16 %v4733, %v4727
  %v4908 = vpack.c.b16 %v4734, %v4728
  %v4909 = vpack.c.b16 %v4735, %v4729
  %v4910 = vpack.c.b16 %v4736, %v4730
  %v4911 = vpack.c.b16 %v4737, %v4731
  %v4912 = vpack.c.b16 %v4744, %v4738
  %v4913 = vpack.c.b16 %v4745, %v4739
  %v4914 = vpack.c.b16 %v4746, %v4740
  %v4915 = vpack.c.b16 %v4747, %v4741
  %v4916 = vpack.c.b16 %v4748, %v4742
  %v4917 = vpack.c.b16 %v4749, %v4743
  %v4918 = vpack.c.b16 %v4756, %v4750
  %v4919 = vpack.c.b16 %v4757, %v4751
  %v4920 = vpack.c.b16 %v4758, %v4752
  %v4921 = vpack.c.b16 %v4759, %v4753
  %v4922 = vpack.c.b16 %v4760, %v4754
  %v4923 = vpack.c.b16 %v4761, %v4755
  %v4924 = vpack.c.b16 %v4768, %v4762
  %v4925 = vpack.c.b16 %v4769, %v4763
  %v4926 = vpack.c.b16 %v4770, %v4764
  %v4927 = vpack.c.b16 %v4771, %v4765
  %v4928 = vpack.c.b16 %v4772, %v4766
  %v4929 = vpack.c.b16 %v4773, %v4767
  %v4930 = vpack.c.b16 %v4780, %v4774
  %v4931 = vpack.c.b16 %v4781, %v4775
  %v4932 = vpack.c.b16 %v4782, %v4776
  %v4933 = vpack.c.b16 %v4783, %v4777
  %v4934 = vpack.c.b16 %v4784, %v4778
  %v4935 = vpack.c.b16 %v4785, %v4779
  %v4936 = vpack.c.b16 %v4792, %v4786
  %v4937 = vpack.c.b16 %v4793, %v4787
  %v4938 = vpack.c.b16 %v4794, %v4788
  %v4939 = vpack.c.b16 %v4795, %v4789
  %v4940 = vpack.c.b16 %v4796, %v4790
  %v4941 = vpack.c.b16 %v4797, %v4791
  %v4942 = vpack.c.b16 %v4804, %v4798
  %v4943 = vpack.c.b16 %v4805, %v4799
  %v4944 = vpack.c.b16 %v4806, %v4800
  %v4945 = vpack.c.b16 %v4807, %v4801
  %v4946 = vpack.c.b16 %v4808, %v4802
  %v4947 = vpack.c.b16 %v4809, %v4803
  %v4948 = vpack.c.b16 %v4816, %v4810
  %v4949 = vpack.c.b16 %v4817, %v4811
  %v4950 = vpack.c.b16 %v4818, %v4812
  %v4951 = vpack.c.b16 %v4819, %v4813
  %v4952 = vpack.c.b16 %v4820, %v4814
  %v4953 = vpack.c.b16 %v4821, %v4815
  %v4954 = vpack.c.b16 %v4828, %v4822
  %v4955 = vpack.c.b16 %v4829, %v4823
  %v4956 = vpack.c.b16 %v4830, %v4824
  %v4957 = vpack.c.b16 %v4831, %v4825
  %v4958 = vpack.c.b16 %v4832, %v4826
  %v4959 = vpack.c.b16 %v4833, %v4827
  %v4960 = vpack.c.b16 %v4840, %v4834
  %v4961 = vpack.c.b16 %v4841, %v4835
  %v4962 = vpack.c.b16 %v4842, %v4836
  %v4963 = vpack.c.b16 %v4843, %v4837
  %v4964 = vpack.c.b16 %v4844, %v4838
  %v4965 = vpack.c.b16 %v4845, %v4839
  %v4966 = vpack.c.b16 %v4852, %v4846
  %v4967 = vpack.c.b16 %v4853, %v4847
  %v4968 = vpack.c.b16 %v4854, %v4848
  %v4969 = vpack.c.b16 %v4855, %v4849
  %v4970 = vpack.c.b16 %v4856, %v4850
  %v4971 = vpack.c.b16 %v4857, %v4851
  %v4972 = vpack.c.b16 %v4864, %v4858
  %v4973 = vpack.c.b16 %v4865, %v4859
  %v4974 = vpack.c.b16 %v4866, %v4860
  %v4975 = vpack.c.b16 %v4867, %v4861
  %v4976 = vpack.c.b16 %v4868, %v4862
  %v4977 = vpack.c.b16 %v4869, %v4863
  %v4978 = vpack.c.b16 %v4876, %v4870
  %v4979 = vpack.c.b16 %v4877, %v4871
  %v4980 = vpack.c.b16 %v4878, %v4872
  %v4981 = vpack.c.b16 %v4879, %v4873
  %v4982 = vpack.c.b16 %v4880, %v4874
  %v4983 = vpack.c.b16 %v4881, %v4875
  %v4984 = vpack.c.b16 %v4888, %v4882
  %v4985 = vpack.c.b16 %v4889, %v4883
  %v4986 = vpack.c.b16 %v4890, %v4884
  %v4987 = vpack.c.b16 %v4891, %v4885
  %v4988 = vpack.c.b16 %v4892, %v4886
  %v4989 = vpack.c.b16 %v4893, %v4887
  %5086 = vmatprep.subr.bf16.mxu0 %v4895
  %5087 = vmatpush1.bf16.msra.mxu0 %v4894
  %5088 = vmatprep.subr.bf16.mxu0 %v4901
  %5089 = vmatpush1.bf16.msra.mxu0 %v4900
  %5090 = vmatprep.subr.bf16.mxu0 %v4907
  %5091 = vmatpush1.bf16.msra.mxu0 %v4906
  %5092 = vmatprep.subr.bf16.mxu0 %v4913
  %5093 = vmatpush1.bf16.msra.mxu0 %v4912
  %5094 = vmatprep.subr.bf16.mxu0 %v4919
  %5095 = vmatpush1.bf16.msra.mxu0 %v4918
  %5096 = vmatprep.subr.bf16.mxu0 %v4925
  %5097 = vmatpush1.bf16.msra.mxu0 %v4924
  %5098 = vmatprep.subr.bf16.mxu0 %v4931
  %5099 = vmatpush1.bf16.msra.mxu0 %v4930
  %5100 = vmatprep.subr.bf16.mxu0 %v4937
  %5101 = vmatpush1.bf16.msra.mxu0 %v4936
  %5102 = vmatprep.subr.bf16.mxu0 %v4943
  %5103 = vmatpush1.bf16.msra.mxu0 %v4942
  %5104 = vmatprep.subr.bf16.mxu0 %v4949
  %5105 = vmatpush1.bf16.msra.mxu0 %v4948
  %5106 = vmatprep.subr.bf16.mxu0 %v4955
  %5107 = vmatpush1.bf16.msra.mxu0 %v4954
  %5108 = vmatprep.subr.bf16.mxu0 %v4961
  %5109 = vmatpush1.bf16.msra.mxu0 %v4960
  %5110 = vmatprep.subr.bf16.mxu0 %v4967
  %5111 = vmatpush1.bf16.msra.mxu0 %v4966
  %5112 = vmatprep.subr.bf16.mxu0 %v4973
  %5113 = vmatpush1.bf16.msra.mxu0 %v4972
  %5114 = vmatprep.subr.bf16.mxu0 %v4979
  %5115 = vmatpush1.bf16.msra.mxu0 %v4978
  %5116 = vmatprep.subr.bf16.mxu0 %v4985
  %5117 = vmatpush1.bf16.msra.mxu0 %v4984
  %5118 = vmatprep.mubr.bf16.mxu0 %v4473
  %5119 = vmatmul.mubr.bf16.gmra.mrb[0].mxu0 %v4472
  %v5120 = vpop.f32.mrb[0].mxu0
  %v5121 = vadd.f32 %v4579, %v5120
  %v5122 = vpop.f32.mrb[0].mxu0
  %v5123 = vadd.f32 %v4583, %v5122
  %v5124 = vpop.f32.mrb[0].mxu0
  %v5125 = vadd.f32 %v4579, %v5124
  %v5126 = vpop.f32.mrb[0].mxu0
  %v5127 = vadd.f32 %v4583, %v5126
  %5128 = vmatprep.mubr.bf16.mxu0 %v4475
  %5129 = vmatmul.mubr.bf16.gmra.mrb[0].mxu0 %v4474
  %v5130 = vpop.f32.mrb[0].mxu0
  %v5131 = vadd.f32 %v4579, %v5130
  %v5132 = vpop.f32.mrb[0].mxu0
  %v5133 = vadd.f32 %v4583, %v5132
  %v5134 = vpop.f32.mrb[0].mxu0
  %v5135 = vadd.f32 %v4579, %v5134
  %v5136 = vpop.f32.mrb[0].mxu0
  %v5137 = vadd.f32 %v4583, %v5136
  %5138 = vdwg.mxu0
  %5139 = vmatprep.subr.bf16.mxu0 %v4897
  %5140 = vmatpush1.bf16.msra.mxu0 %v4896
  %5141 = vmatprep.subr.bf16.mxu0 %v4903
  %5142 = vmatpush1.bf16.msra.mxu0 %v4902
  %5143 = vmatprep.subr.bf16.mxu0 %v4909
  %5144 = vmatpush1.bf16.msra.mxu0 %v4908
  %5145 = vmatprep.subr.bf16.mxu0 %v4915
  %5146 = vmatpush1.bf16.msra.mxu0 %v4914
  %5147 = vmatprep.subr.bf16.mxu0 %v4921
  %5148 = vmatpush1.bf16.msra.mxu0 %v4920
  %5149 = vmatprep.subr.bf16.mxu0 %v4927
  %5150 = vmatpush1.bf16.msra.mxu0 %v4926
  %5151 = vmatprep.subr.bf16.mxu0 %v4933
  %5152 = vmatpush1.bf16.msra.mxu0 %v4932
  %5153 = vmatprep.subr.bf16.mxu0 %v4939
  %5154 = vmatpush1.bf16.msra.mxu0 %v4938
  %5155 = vmatprep.subr.bf16.mxu0 %v4945
  %5156 = vmatpush1.bf16.msra.mxu0 %v4944
  %5157 = vmatprep.subr.bf16.mxu0 %v4951
  %5158 = vmatpush1.bf16.msra.mxu0 %v4950
  %5159 = vmatprep.subr.bf16.mxu0 %v4957
  %5160 = vmatpush1.bf16.msra.mxu0 %v4956
  %5161 = vmatprep.subr.bf16.mxu0 %v4963
  %5162 = vmatpush1.bf16.msra.mxu0 %v4962
  %5163 = vmatprep.subr.bf16.mxu0 %v4969
  %5164 = vmatpush1.bf16.msra.mxu0 %v4968
  %5165 = vmatprep.subr.bf16.mxu0 %v4975
  %5166 = vmatpush1.bf16.msra.mxu0 %v4974
  %5167 = vmatprep.subr.bf16.mxu0 %v4981
  %5168 = vmatpush1.bf16.msra.mxu0 %v4980
  %5169 = vmatprep.subr.bf16.mxu0 %v4987
  %5170 = vmatpush1.bf16.msra.mxu0 %v4986
  %5171 = vmatprep.mubr.bf16.mxu0 %v4473
  %5172 = vmatmul.mubr.bf16.gmra.mrb[0].mxu0 %v4472
  %v5173 = vpop.f32.mrb[0].mxu0
  %v5174 = vadd.f32 %v4587, %v5173
  %v5175 = vpop.f32.mrb[0].mxu0
  %v5176 = vadd.f32 %v4591, %v5175
  %v5177 = vpop.f32.mrb[0].mxu0
  %v5178 = vadd.f32 %v4587, %v5177
  %v5179 = vpop.f32.mrb[0].mxu0
  %v5180 = vadd.f32 %v4591, %v5179
  %5181 = vmatprep.mubr.bf16.mxu0 %v4475
  %5182 = vmatmul.mubr.bf16.gmra.mrb[0].mxu0 %v4474
  %v5183 = vpop.f32.mrb[0].mxu0
  %v5184 = vadd.f32 %v4587, %v5183
  %v5185 = vpop.f32.mrb[0].mxu0
  %v5186 = vadd.f32 %v4591, %v5185
  %v5187 = vpop.f32.mrb[0].mxu0
  %v5188 = vadd.f32 %v4587, %v5187
  %v5189 = vpop.f32.mrb[0].mxu0
  %v5190 = vadd.f32 %v4591, %v5189
  %5191 = vdwg.mxu0
  %5192 = vmatprep.subr.bf16.mxu0 %v4899
  %5193 = vmatpush1.bf16.msra.mxu0 %v4898
  %5194 = vmatprep.subr.bf16.mxu0 %v4905
  %5195 = vmatpush1.bf16.msra.mxu0 %v4904
  %5196 = vmatprep.subr.bf16.mxu0 %v4911
  %5197 = vmatpush1.bf16.msra.mxu0 %v4910
  %5198 = vmatprep.subr.bf16.mxu0 %v4917
  %5199 = vmatpush1.bf16.msra.mxu0 %v4916
  %5200 = vmatprep.subr.bf16.mxu0 %v4923
  %5201 = vmatpush1.bf16.msra.mxu0 %v4922
  %5202 = vmatprep.subr.bf16.mxu0 %v4929
  %5203 = vmatpush1.bf16.msra.mxu0 %v4928
  %5204 = vmatprep.subr.bf16.mxu0 %v4935
  %5205 = vmatpush1.bf16.msra.mxu0 %v4934
  %5206 = vmatprep.subr.bf16.mxu0 %v4941
  %5207 = vmatpush1.bf16.msra.mxu0 %v4940
  %5208 = vmatprep.subr.bf16.mxu0 %v4947
  %5209 = vmatpush1.bf16.msra.mxu0 %v4946
  %5210 = vmatprep.subr.bf16.mxu0 %v4953
  %5211 = vmatpush1.bf16.msra.mxu0 %v4952
  %5212 = vmatprep.subr.bf16.mxu0 %v4959
  %5213 = vmatpush1.bf16.msra.mxu0 %v4958
  %5214 = vmatprep.subr.bf16.mxu0 %v4965
  %5215 = vmatpush1.bf16.msra.mxu0 %v4964
  %5216 = vmatprep.subr.bf16.mxu0 %v4971
  %5217 = vmatpush1.bf16.msra.mxu0 %v4970
  %5218 = vmatprep.subr.bf16.mxu0 %v4977
  %5219 = vmatpush1.bf16.msra.mxu0 %v4976
  %5220 = vmatprep.subr.bf16.mxu0 %v4983
  %5221 = vmatpush1.bf16.msra.mxu0 %v4982
  %5222 = vmatprep.subr.bf16.mxu0 %v4989
  %5223 = vmatpush1.bf16.msra.mxu0 %v4988
  %5224 = vmatprep.mubr.bf16.mxu0 %v4473
  %5225 = vmatmul.mubr.bf16.gmra.mrb[0].mxu0 %v4472
  %v5226 = vpop.f32.mrb[0].mxu0
  %v5227 = vadd.f32 %v4595, %v5226
  %v5228 = vpop.f32.mrb[0].mxu0
  %v5229 = vadd.f32 %v4599, %v5228
  %v5230 = vpop.f32.mrb[0].mxu0
  %v5231 = vadd.f32 %v4595, %v5230
  %v5232 = vpop.f32.mrb[0].mxu0
  %v5233 = vadd.f32 %v4599, %v5232
  %5234 = vmatprep.mubr.bf16.mxu0 %v4475
  %5235 = vmatmul.mubr.bf16.gmra.mrb[0].mxu0 %v4474
  %v5236 = vpop.f32.mrb[0].mxu0
  %v5237 = vadd.f32 %v4595, %v5236
  %v5238 = vpop.f32.mrb[0].mxu0
  %v5239 = vadd.f32 %v4599, %v5238
  %v5240 = vpop.f32.mrb[0].mxu0
  %v5241 = vadd.f32 %v4595, %v5240
  %v5242 = vpop.f32.mrb[0].mxu0
  %v5243 = vadd.f32 %v4599, %v5242
  %5244 = vdwg.mxu0
  %v5245 = vpack.c.bf16 %v5125, %v5121
  %v5246 = vpack.c.bf16 %v5127, %v5123
  %v5247 = vpack.c.bf16 %v5178, %v5174
  %v5248 = vpack.c.bf16 %v5180, %v5176
  %v5249 = vpack.c.bf16 %v5231, %v5227
  %v5250 = vpack.c.bf16 %v5233, %v5229
  %v5251 = vpack.c.bf16 %v5135, %v5131
  %v5252 = vpack.c.bf16 %v5137, %v5133
  %v5253 = vpack.c.bf16 %v5188, %v5184
  %v5254 = vpack.c.bf16 %v5190, %v5186
  %v5255 = vpack.c.bf16 %v5241, %v5237
  %v5256 = vpack.c.bf16 %v5243, %v5239
  %5257 = vmatprep.subr.bf16.mxu0 0
  %5258 = vmatpush1.bf16.xpose.msra.mxu0 %v5247
  %5259 = vmatprep.subr.bf16.mxu0 0
  %5260 = vmatpush1.bf16.xpose.msra.mxu0 0
  %5261 = vmatprep.subr.bf16.mxu0 0
  %5262 = vmatpush1.bf16.xpose.msra.mxu0 0
  %5263 = vmatprep.subr.bf16.mxu0 0
  %5264 = vmatpush1.bf16.xpose.msra.mxu0 0
  %5265 = vmatprep.subr.bf16.mxu0 0
  %5266 = vmatpush1.bf16.xpose.msra.mxu0 0
  %5267 = vmatprep.subr.bf16.mxu0 0
  %5268 = vmatpush1.bf16.xpose.msra.mxu0 0
  %5269 = vmatprep.subr.bf16.mxu0 0
  %5270 = vmatpush1.bf16.xpose.msra.mxu0 0
  %5271 = vmatprep.subr.bf16.mxu0 0
  %5272 = vmatpush1.bf16.xpose.msra.mxu0 0
  %5273 = vmatprep.subr.bf16.mxu0 0
  %5274 = vmatpush1.bf16.xpose.msra.mxu0 0
  %5275 = vmatprep.subr.bf16.mxu0 0
  %5276 = vmatpush1.bf16.xpose.msra.mxu0 0
  %5277 = vmatprep.subr.bf16.mxu0 0
  %5278 = vmatpush1.bf16.xpose.msra.mxu0 0
  %5279 = vmatprep.subr.bf16.mxu0 0
  %5280 = vmatpush1.bf16.xpose.msra.mxu0 0
  %5281 = vmatprep.subr.bf16.mxu0 0
  %5282 = vmatpush1.bf16.xpose.msra.mxu0 0
  %5283 = vmatprep.subr.bf16.mxu0 0
  %5284 = vmatpush1.bf16.xpose.msra.mxu0 0
  %5285 = vmatprep.subr.bf16.mxu0 0
  %5286 = vmatpush1.bf16.xpose.msra.mxu0 0
  %5287 = vmatprep.subr.bf16.mxu0 0
  %5288 = vmatpush1.bf16.xpose.msra.mxu0 0
  %5289 = vmatprep.mubr.bf16.mxu0 0
  %5290 = vmatmul.mubr.bf16.gmra.mrb[0].mxu0 %v5245
  %v5291 = vpop.f32.mrb[0].mxu0
  %v5292 = vadd.f32 0.0, %v5291
  %v5293 = vpop.f32.mrb[0].mxu0
  %v5294 = vpop.f32.mrb[0].mxu0
  %v5295 = vadd.f32 0.0, %v5294
  %v5296 = vpop.f32.mrb[0].mxu0
  %5297 = vdwg.mxu0
  %v5298 = vmul.f32 %v5292, 0.088388346
  %v5299 = vmul.f32 %v5295, 0.088388346
  %v5300 = vsel %vm1257, %v5298, -inf
  %5301 = vmax.xlane.f32.xlu0 %v5300
  %v5302 = vpop.xlane.xlu0 %5301
  %v5303 = vsel %vm1257, %v5299, -inf
  %5304 = vmax.xlane.f32.xlu0 %v5303
  %v5305 = vpop.xlane.xlu0 %5304
  %v5306 = vsub.f32 %v5298, %v5302
  %v5307 = vsub.f32 %v5299, %v5305
  %v5308 = vmul.f32 %v5306, 1.442695
  %v5309 = vpow.pop %v5308
  %v5310 = vmul.f32 %v5307, 1.442695
  %v5311 = vpow.pop %v5310
  %v5312 = vsel %vm1257, %v5309, 0.0
  %5313 = vadd.xlane.f32.xlu0 %v5312
  %v5314 = vpop.xlane.xlu0 %5313
  %v5315 = vsel %vm1257, %v5311, 0.0
  %5316 = vadd.xlane.f32.xlu0 %v5315
  %v5317 = vpop.xlane.xlu0 %5316
  %v5318 = vrcp.pop %v5314
  %v5319 = vrcp.pop %v5317
  %v5320 = vmul.f32 %v5309, %v5318
  %v5321 = vmul.f32 %v5311, %v5319
  %v5322 = vpack.c.bf16 %v5321, %v5320
  %v5324 = vsel %vm1257, %v5322, 0
  %5326 = vmatprep.subr.bf16.mxu0 0
  %5327 = vmatpush1.bf16.msra.mxu0 %v5249
  %5328 = vmatprep.subr.bf16.mxu0 0
  %5329 = vmatpush1.bf16.msra.mxu0 0
  %5330 = vmatprep.subr.bf16.mxu0 0
  %5331 = vmatpush1.bf16.msra.mxu0 0
  %5332 = vmatprep.subr.bf16.mxu0 0
  %5333 = vmatpush1.bf16.msra.mxu0 0
  %5334 = vmatprep.subr.bf16.mxu0 0
  %5335 = vmatpush1.bf16.msra.mxu0 0
  %5336 = vmatprep.subr.bf16.mxu0 0
  %5337 = vmatpush1.bf16.msra.mxu0 0
  %5338 = vmatprep.subr.bf16.mxu0 0
  %5339 = vmatpush1.bf16.msra.mxu0 0
  %5340 = vmatprep.subr.bf16.mxu0 0
  %5341 = vmatpush1.bf16.msra.mxu0 0
  %5342 = vmatprep.subr.bf16.mxu0 0
  %5343 = vmatpush1.bf16.msra.mxu0 0
  %5344 = vmatprep.subr.bf16.mxu0 0
  %5345 = vmatpush1.bf16.msra.mxu0 0
  %5346 = vmatprep.subr.bf16.mxu0 0
  %5347 = vmatpush1.bf16.msra.mxu0 0
  %5348 = vmatprep.subr.bf16.mxu0 0
  %5349 = vmatpush1.bf16.msra.mxu0 0
  %5350 = vmatprep.subr.bf16.mxu0 0
  %5351 = vmatpush1.bf16.msra.mxu0 0
  %5352 = vmatprep.subr.bf16.mxu0 0
  %5353 = vmatpush1.bf16.msra.mxu0 0
  %5354 = vmatprep.subr.bf16.mxu0 0
  %5355 = vmatpush1.bf16.msra.mxu0 0
  %5356 = vmatprep.subr.bf16.mxu0 0
  %5357 = vmatpush1.bf16.msra.mxu0 0
  %5358 = vmatprep.mubr.bf16.mxu0 0
  %5359 = vmatmul.mubr.bf16.gmra.mrb[0].mxu0 %v5324
  %v5360 = vpop.f32.mrb[0].mxu0
  %v5361 = vadd.f32 0.0, %v5360
  %v5362 = vpop.f32.mrb[0].mxu0
  %v5363 = vpop.f32.mrb[0].mxu0
  %v5364 = vadd.f32 0.0, %v5363
  %v5365 = vpop.f32.mrb[0].mxu0
  %5366 = vdwg.mxu0
  %v5367 = vpack.c.bf16 %v5364, %v5361
  %5368 = vmatprep.subr.bf16.mxu0 0
  %5369 = vmatpush1.bf16.xpose.msra.mxu0 %v5248
  %5370 = vmatprep.subr.bf16.mxu0 0
  %5371 = vmatpush1.bf16.xpose.msra.mxu0 0
  %5372 = vmatprep.subr.bf16.mxu0 0
  %5373 = vmatpush1.bf16.xpose.msra.mxu0 0
  %5374 = vmatprep.subr.bf16.mxu0 0
  %5375 = vmatpush1.bf16.xpose.msra.mxu0 0
  %5376 = vmatprep.subr.bf16.mxu0 0
  %5377 = vmatpush1.bf16.xpose.msra.mxu0 0
  %5378 = vmatprep.subr.bf16.mxu0 0
  %5379 = vmatpush1.bf16.xpose.msra.mxu0 0
  %5380 = vmatprep.subr.bf16.mxu0 0
  %5381 = vmatpush1.bf16.xpose.msra.mxu0 0
  %5382 = vmatprep.subr.bf16.mxu0 0
  %5383 = vmatpush1.bf16.xpose.msra.mxu0 0
  %5384 = vmatprep.subr.bf16.mxu0 0
  %5385 = vmatpush1.bf16.xpose.msra.mxu0 0
  %5386 = vmatprep.subr.bf16.mxu0 0
  %5387 = vmatpush1.bf16.xpose.msra.mxu0 0
  %5388 = vmatprep.subr.bf16.mxu0 0
  %5389 = vmatpush1.bf16.xpose.msra.mxu0 0
  %5390 = vmatprep.subr.bf16.mxu0 0
  %5391 = vmatpush1.bf16.xpose.msra.mxu0 0
  %5392 = vmatprep.subr.bf16.mxu0 0
  %5393 = vmatpush1.bf16.xpose.msra.mxu0 0
  %5394 = vmatprep.subr.bf16.mxu0 0
  %5395 = vmatpush1.bf16.xpose.msra.mxu0 0
  %5396 = vmatprep.subr.bf16.mxu0 0
  %5397 = vmatpush1.bf16.xpose.msra.mxu0 0
  %5398 = vmatprep.subr.bf16.mxu0 0
  %5399 = vmatpush1.bf16.xpose.msra.mxu0 0
  %5400 = vmatprep.mubr.bf16.mxu0 0
  %5401 = vmatmul.mubr.bf16.gmra.mrb[0].mxu0 %v5246
  %v5402 = vpop.f32.mrb[0].mxu0
  %v5403 = vadd.f32 0.0, %v5402
  %v5404 = vpop.f32.mrb[0].mxu0
  %v5405 = vpop.f32.mrb[0].mxu0
  %v5406 = vadd.f32 0.0, %v5405
  %v5407 = vpop.f32.mrb[0].mxu0
  %5408 = vdwg.mxu0
  %v5409 = vmul.f32 %v5403, 0.088388346
  %v5410 = vmul.f32 %v5406, 0.088388346
  %v5411 = vsel %vm1257, %v5409, -inf
  %5412 = vmax.xlane.f32.xlu0 %v5411
  %v5413 = vpop.xlane.xlu0 %5412
  %v5414 = vsel %vm1257, %v5410, -inf
  %5415 = vmax.xlane.f32.xlu0 %v5414
  %v5416 = vpop.xlane.xlu0 %5415
  %v5417 = vsub.f32 %v5409, %v5413
  %v5418 = vsub.f32 %v5410, %v5416
  %v5419 = vmul.f32 %v5417, 1.442695
  %v5420 = vpow.pop %v5419
  %v5421 = vmul.f32 %v5418, 1.442695
  %v5422 = vpow.pop %v5421
  %v5423 = vsel %vm1257, %v5420, 0.0
  %5424 = vadd.xlane.f32.xlu0 %v5423
  %v5425 = vpop.xlane.xlu0 %5424
  %v5426 = vsel %vm1257, %v5422, 0.0
  %5427 = vadd.xlane.f32.xlu0 %v5426
  %v5428 = vpop.xlane.xlu0 %5427
  %v5429 = vrcp.pop %v5425
  %v5430 = vrcp.pop %v5428
  %v5431 = vmul.f32 %v5420, %v5429
  %v5432 = vmul.f32 %v5422, %v5430
  %v5433 = vpack.c.bf16 %v5432, %v5431
  %v5435 = vsel %vm1257, %v5433, 0
  %5437 = vmatprep.subr.bf16.mxu0 0
  %5438 = vmatpush1.bf16.msra.mxu0 %v5250
  %5439 = vmatprep.subr.bf16.mxu0 0
  %5440 = vmatpush1.bf16.msra.mxu0 0
  %5441 = vmatprep.subr.bf16.mxu0 0
  %5442 = vmatpush1.bf16.msra.mxu0 0
  %5443 = vmatprep.subr.bf16.mxu0 0
  %5444 = vmatpush1.bf16.msra.mxu0 0
  %5445 = vmatprep.subr.bf16.mxu0 0
  %5446 = vmatpush1.bf16.msra.mxu0 0
  %5447 = vmatprep.subr.bf16.mxu0 0
  %5448 = vmatpush1.bf16.msra.mxu0 0
  %5449 = vmatprep.subr.bf16.mxu0 0
  %5450 = vmatpush1.bf16.msra.mxu0 0
  %5451 = vmatprep.subr.bf16.mxu0 0
  %5452 = vmatpush1.bf16.msra.mxu0 0
  %5453 = vmatprep.subr.bf16.mxu0 0
  %5454 = vmatpush1.bf16.msra.mxu0 0
  %5455 = vmatprep.subr.bf16.mxu0 0
  %5456 = vmatpush1.bf16.msra.mxu0 0
  %5457 = vmatprep.subr.bf16.mxu0 0
  %5458 = vmatpush1.bf16.msra.mxu0 0
  %5459 = vmatprep.subr.bf16.mxu0 0
  %5460 = vmatpush1.bf16.msra.mxu0 0
  %5461 = vmatprep.subr.bf16.mxu0 0
  %5462 = vmatpush1.bf16.msra.mxu0 0
  %5463 = vmatprep.subr.bf16.mxu0 0
  %5464 = vmatpush1.bf16.msra.mxu0 0
  %5465 = vmatprep.subr.bf16.mxu0 0
  %5466 = vmatpush1.bf16.msra.mxu0 0
  %5467 = vmatprep.subr.bf16.mxu0 0
  %5468 = vmatpush1.bf16.msra.mxu0 0
  %5469 = vmatprep.mubr.bf16.mxu0 0
  %5470 = vmatmul.mubr.bf16.gmra.mrb[0].mxu0 %v5435
  %v5471 = vpop.f32.mrb[0].mxu0
  %v5472 = vadd.f32 0.0, %v5471
  %v5473 = vpop.f32.mrb[0].mxu0
  %v5474 = vpop.f32.mrb[0].mxu0
  %v5475 = vadd.f32 0.0, %v5474
  %v5476 = vpop.f32.mrb[0].mxu0
  %5477 = vdwg.mxu0
  %v5478 = vpack.c.bf16 %v5475, %v5472
  %5479 = vmatprep.subr.bf16.mxu0 0
  %5480 = vmatpush1.bf16.xpose.msra.mxu0 %v5253
  %5481 = vmatprep.subr.bf16.mxu0 0
  %5482 = vmatpush1.bf16.xpose.msra.mxu0 0
  %5483 = vmatprep.subr.bf16.mxu0 0
  %5484 = vmatpush1.bf16.xpose.msra.mxu0 0
  %5485 = vmatprep.subr.bf16.mxu0 0
  %5486 = vmatpush1.bf16.xpose.msra.mxu0 0
  %5487 = vmatprep.subr.bf16.mxu0 0
  %5488 = vmatpush1.bf16.xpose.msra.mxu0 0
  %5489 = vmatprep.subr.bf16.mxu0 0
  %5490 = vmatpush1.bf16.xpose.msra.mxu0 0
  %5491 = vmatprep.subr.bf16.mxu0 0
  %5492 = vmatpush1.bf16.xpose.msra.mxu0 0
  %5493 = vmatprep.subr.bf16.mxu0 0
  %5494 = vmatpush1.bf16.xpose.msra.mxu0 0
  %5495 = vmatprep.subr.bf16.mxu0 0
  %5496 = vmatpush1.bf16.xpose.msra.mxu0 0
  %5497 = vmatprep.subr.bf16.mxu0 0
  %5498 = vmatpush1.bf16.xpose.msra.mxu0 0
  %5499 = vmatprep.subr.bf16.mxu0 0
  %5500 = vmatpush1.bf16.xpose.msra.mxu0 0
  %5501 = vmatprep.subr.bf16.mxu0 0
  %5502 = vmatpush1.bf16.xpose.msra.mxu0 0
  %5503 = vmatprep.subr.bf16.mxu0 0
  %5504 = vmatpush1.bf16.xpose.msra.mxu0 0
  %5505 = vmatprep.subr.bf16.mxu0 0
  %5506 = vmatpush1.bf16.xpose.msra.mxu0 0
  %5507 = vmatprep.subr.bf16.mxu0 0
  %5508 = vmatpush1.bf16.xpose.msra.mxu0 0
  %5509 = vmatprep.subr.bf16.mxu0 0
  %5510 = vmatpush1.bf16.xpose.msra.mxu0 0
  %5511 = vmatprep.mubr.bf16.mxu0 0
  %5512 = vmatmul.mubr.bf16.gmra.mrb[0].mxu0 %v5251
  %v5513 = vpop.f32.mrb[0].mxu0
  %v5514 = vadd.f32 0.0, %v5513
  %v5515 = vpop.f32.mrb[0].mxu0
  %v5516 = vpop.f32.mrb[0].mxu0
  %v5517 = vadd.f32 0.0, %v5516
  %v5518 = vpop.f32.mrb[0].mxu0
  %5519 = vdwg.mxu0
  %v5520 = vmul.f32 %v5514, 0.088388346
  %v5521 = vmul.f32 %v5517, 0.088388346
  %v5522 = vsel %vm1257, %v5520, -inf
  %5523 = vmax.xlane.f32.xlu0 %v5522
  %v5524 = vpop.xlane.xlu0 %5523
  %v5525 = vsel %vm1257, %v5521, -inf
  %5526 = vmax.xlane.f32.xlu0 %v5525
  %v5527 = vpop.xlane.xlu0 %5526
  %v5528 = vsub.f32 %v5520, %v5524
  %v5529 = vsub.f32 %v5521, %v5527
  %v5530 = vmul.f32 %v5528, 1.442695
  %v5531 = vpow.pop %v5530
  %v5532 = vmul.f32 %v5529, 1.442695
  %v5533 = vpow.pop %v5532
  %v5534 = vsel %vm1257, %v5531, 0.0
  %5535 = vadd.xlane.f32.xlu0 %v5534
  %v5536 = vpop.xlane.xlu0 %5535
  %v5537 = vsel %vm1257, %v5533, 0.0
  %5538 = vadd.xlane.f32.xlu0 %v5537
  %v5539 = vpop.xlane.xlu0 %5538
  %v5540 = vrcp.pop %v5536
  %v5541 = vrcp.pop %v5539
  %v5542 = vmul.f32 %v5531, %v5540
  %v5543 = vmul.f32 %v5533, %v5541
  %v5544 = vpack.c.bf16 %v5543, %v5542
  %v5546 = vsel %vm1257, %v5544, 0
  %5548 = vmatprep.subr.bf16.mxu0 0
  %5549 = vmatpush1.bf16.msra.mxu0 %v5255
  %5550 = vmatprep.subr.bf16.mxu0 0
  %5551 = vmatpush1.bf16.msra.mxu0 0
  %5552 = vmatprep.subr.bf16.mxu0 0
  %5553 = vmatpush1.bf16.msra.mxu0 0
  %5554 = vmatprep.subr.bf16.mxu0 0
  %5555 = vmatpush1.bf16.msra.mxu0 0
  %5556 = vmatprep.subr.bf16.mxu0 0
  %5557 = vmatpush1.bf16.msra.mxu0 0
  %5558 = vmatprep.subr.bf16.mxu0 0
  %5559 = vmatpush1.bf16.msra.mxu0 0
  %5560 = vmatprep.subr.bf16.mxu0 0
  %5561 = vmatpush1.bf16.msra.mxu0 0
  %5562 = vmatprep.subr.bf16.mxu0 0
  %5563 = vmatpush1.bf16.msra.mxu0 0
  %5564 = vmatprep.subr.bf16.mxu0 0
  %5565 = vmatpush1.bf16.msra.mxu0 0
  %5566 = vmatprep.subr.bf16.mxu0 0
  %5567 = vmatpush1.bf16.msra.mxu0 0
  %5568 = vmatprep.subr.bf16.mxu0 0
  %5569 = vmatpush1.bf16.msra.mxu0 0
  %5570 = vmatprep.subr.bf16.mxu0 0
  %5571 = vmatpush1.bf16.msra.mxu0 0
  %5572 = vmatprep.subr.bf16.mxu0 0
  %5573 = vmatpush1.bf16.msra.mxu0 0
  %5574 = vmatprep.subr.bf16.mxu0 0
  %5575 = vmatpush1.bf16.msra.mxu0 0
  %5576 = vmatprep.subr.bf16.mxu0 0
  %5577 = vmatpush1.bf16.msra.mxu0 0
  %5578 = vmatprep.subr.bf16.mxu0 0
  %5579 = vmatpush1.bf16.msra.mxu0 0
  %5580 = vmatprep.mubr.bf16.mxu0 0
  %5581 = vmatmul.mubr.bf16.gmra.mrb[0].mxu0 %v5546
  %v5582 = vpop.f32.mrb[0].mxu0
  %v5583 = vadd.f32 0.0, %v5582
  %v5584 = vpop.f32.mrb[0].mxu0
  %v5585 = vpop.f32.mrb[0].mxu0
  %v5586 = vadd.f32 0.0, %v5585
  %v5587 = vpop.f32.mrb[0].mxu0
  %5588 = vdwg.mxu0
  %v5589 = vpack.c.bf16 %v5586, %v5583
  %5590 = vmatprep.subr.bf16.mxu0 0
  %5591 = vmatpush1.bf16.xpose.msra.mxu0 %v5254
  %5592 = vmatprep.subr.bf16.mxu0 0
  %5593 = vmatpush1.bf16.xpose.msra.mxu0 0
  %5594 = vmatprep.subr.bf16.mxu0 0
  %5595 = vmatpush1.bf16.xpose.msra.mxu0 0
  %5596 = vmatprep.subr.bf16.mxu0 0
  %5597 = vmatpush1.bf16.xpose.msra.mxu0 0
  %5598 = vmatprep.subr.bf16.mxu0 0
  %5599 = vmatpush1.bf16.xpose.msra.mxu0 0
  %5600 = vmatprep.subr.bf16.mxu0 0
  %5601 = vmatpush1.bf16.xpose.msra.mxu0 0
  %5602 = vmatprep.subr.bf16.mxu0 0
  %5603 = vmatpush1.bf16.xpose.msra.mxu0 0
  %5604 = vmatprep.subr.bf16.mxu0 0
  %5605 = vmatpush1.bf16.xpose.msra.mxu0 0
  %5606 = vmatprep.subr.bf16.mxu0 0
  %5607 = vmatpush1.bf16.xpose.msra.mxu0 0
  %5608 = vmatprep.subr.bf16.mxu0 0
  %5609 = vmatpush1.bf16.xpose.msra.mxu0 0
  %5610 = vmatprep.subr.bf16.mxu0 0
  %5611 = vmatpush1.bf16.xpose.msra.mxu0 0
  %5612 = vmatprep.subr.bf16.mxu0 0
  %5613 = vmatpush1.bf16.xpose.msra.mxu0 0
  %5614 = vmatprep.subr.bf16.mxu0 0
  %5615 = vmatpush1.bf16.xpose.msra.mxu0 0
  %5616 = vmatprep.subr.bf16.mxu0 0
  %5617 = vmatpush1.bf16.xpose.msra.mxu0 0
  %5618 = vmatprep.subr.bf16.mxu0 0
  %5619 = vmatpush1.bf16.xpose.msra.mxu0 0
  %5620 = vmatprep.subr.bf16.mxu0 0
  %5621 = vmatpush1.bf16.xpose.msra.mxu0 0
  %5622 = vmatprep.mubr.bf16.mxu0 0
  %5623 = vmatmul.mubr.bf16.gmra.mrb[0].mxu0 %v5252
  %v5624 = vpop.f32.mrb[0].mxu0
  %v5625 = vadd.f32 0.0, %v5624
  %v5626 = vpop.f32.mrb[0].mxu0
  %v5627 = vpop.f32.mrb[0].mxu0
  %v5628 = vadd.f32 0.0, %v5627
  %v5629 = vpop.f32.mrb[0].mxu0
  %5630 = vdwg.mxu0
  %v5631 = vmul.f32 %v5625, 0.088388346
  %v5632 = vmul.f32 %v5628, 0.088388346
  %v5633 = vsel %vm1257, %v5631, -inf
  %5634 = vmax.xlane.f32.xlu0 %v5633
  %v5635 = vpop.xlane.xlu0 %5634
  %v5636 = vsel %vm1257, %v5632, -inf
  %5637 = vmax.xlane.f32.xlu0 %v5636
  %v5638 = vpop.xlane.xlu0 %5637
  %v5639 = vsub.f32 %v5631, %v5635
  %v5640 = vsub.f32 %v5632, %v5638
  %v5641 = vmul.f32 %v5639, 1.442695
  %v5642 = vpow.pop %v5641
  %v5643 = vmul.f32 %v5640, 1.442695
  %v5644 = vpow.pop %v5643
  %v5645 = vsel %vm1257, %v5642, 0.0
  %5646 = vadd.xlane.f32.xlu0 %v5645
  %v5647 = vpop.xlane.xlu0 %5646
  %v5648 = vsel %vm1257, %v5644, 0.0
  %5649 = vadd.xlane.f32.xlu0 %v5648
  %v5650 = vpop.xlane.xlu0 %5649
  %v5651 = vrcp.pop %v5647
  %v5652 = vrcp.pop %v5650
  %v5653 = vmul.f32 %v5642, %v5651
  %v5654 = vmul.f32 %v5644, %v5652
  %v5655 = vpack.c.bf16 %v5654, %v5653
  %v5657 = vsel %vm1257, %v5655, 0
  %5659 = vmatprep.subr.bf16.mxu0 0
  %5660 = vmatpush1.bf16.msra.mxu0 %v5256
  %5661 = vmatprep.subr.bf16.mxu0 0
  %5662 = vmatpush1.bf16.msra.mxu0 0
  %5663 = vmatprep.subr.bf16.mxu0 0
  %5664 = vmatpush1.bf16.msra.mxu0 0
  %5665 = vmatprep.subr.bf16.mxu0 0
  %5666 = vmatpush1.bf16.msra.mxu0 0
  %5667 = vmatprep.subr.bf16.mxu0 0
  %5668 = vmatpush1.bf16.msra.mxu0 0
  %5669 = vmatprep.subr.bf16.mxu0 0
  %5670 = vmatpush1.bf16.msra.mxu0 0
  %5671 = vmatprep.subr.bf16.mxu0 0
  %5672 = vmatpush1.bf16.msra.mxu0 0
  %5673 = vmatprep.subr.bf16.mxu0 0
  %5674 = vmatpush1.bf16.msra.mxu0 0
  %5675 = vmatprep.subr.bf16.mxu0 0
  %5676 = vmatpush1.bf16.msra.mxu0 0
  %5677 = vmatprep.subr.bf16.mxu0 0
  %5678 = vmatpush1.bf16.msra.mxu0 0
  %5679 = vmatprep.subr.bf16.mxu0 0
  %5680 = vmatpush1.bf16.msra.mxu0 0
  %5681 = vmatprep.subr.bf16.mxu0 0
  %5682 = vmatpush1.bf16.msra.mxu0 0
  %5683 = vmatprep.subr.bf16.mxu0 0
  %5684 = vmatpush1.bf16.msra.mxu0 0
  %5685 = vmatprep.subr.bf16.mxu0 0
  %5686 = vmatpush1.bf16.msra.mxu0 0
  %5687 = vmatprep.subr.bf16.mxu0 0
  %5688 = vmatpush1.bf16.msra.mxu0 0
  %5689 = vmatprep.subr.bf16.mxu0 0
  %5690 = vmatpush1.bf16.msra.mxu0 0
  %5691 = vmatprep.mubr.bf16.mxu0 0
  %5692 = vmatmul.mubr.bf16.gmra.mrb[0].mxu0 %v5657
  %v5693 = vpop.f32.mrb[0].mxu0
  %v5694 = vadd.f32 0.0, %v5693
  %v5695 = vpop.f32.mrb[0].mxu0
  %v5696 = vpop.f32.mrb[0].mxu0
  %v5697 = vadd.f32 0.0, %v5696
  %v5698 = vpop.f32.mrb[0].mxu0
  %5699 = vdwg.mxu0
  %v5700 = vpack.c.bf16 %v5697, %v5694
  %s5701 = scalar_lea.vmem %s8, 256
  %v5702 = vld [vmem:[%s5701] sm:$0xff]
  %v5703 = vld [vmem:[%s5701 + $0x8] sm:$0xff]
  %v5704 = vld [vmem:[%s5701 + $0x10] sm:$0xff]
  %v5705 = vld [vmem:[%s5701 + $0x18] sm:$0xff]
  %v5706 = vld [vmem:[%s5701 + $0x20] sm:$0xff]
  %v5707 = vld [vmem:[%s5701 + $0x28] sm:$0xff]
  %v5708 = vld [vmem:[%s5701 + $0x30] sm:$0xff]
  %v5709 = vld [vmem:[%s5701 + $0x38] sm:$0xff]
  %v5710 = vld [vmem:[%s5701 + $0x40] sm:$0xff]
  %v5711 = vld [vmem:[%s5701 + $0x48] sm:$0xff]
  %v5712 = vld [vmem:[%s5701 + $0x50] sm:$0xff]
  %v5713 = vld [vmem:[%s5701 + $0x58] sm:$0xff]
  %v5714 = vld [vmem:[%s5701 + $0x60] sm:$0xff]
  %v5715 = vld [vmem:[%s5701 + $0x68] sm:$0xff]
  %v5716 = vld [vmem:[%s5701 + $0x70] sm:$0xff]
  %v5717 = vld [vmem:[%s5701 + $0x78] sm:$0xff]
  %v5718 = vld [vmem:[%s5701 + $0x80] sm:$0xff]
  %v5719 = vld [vmem:[%s5701 + $0x88] sm:$0xff]
  %v5720 = vld [vmem:[%s5701 + $0x90] sm:$0xff]
  %v5721 = vld [vmem:[%s5701 + $0x98] sm:$0xff]
  %v5722 = vld [vmem:[%s5701 + $0xa0] sm:$0xff]
  %v5723 = vld [vmem:[%s5701 + $0xa8] sm:$0xff]
  %v5724 = vld [vmem:[%s5701 + $0xb0] sm:$0xff]
  %v5725 = vld [vmem:[%s5701 + $0xb8] sm:$0xff]
  %v5726 = vld [vmem:[%s5701 + $0xc0] sm:$0xff]
  %v5727 = vld [vmem:[%s5701 + $0xc8] sm:$0xff]
  %v5728 = vld [vmem:[%s5701 + $0xd0] sm:$0xff]
  %v5729 = vld [vmem:[%s5701 + $0xd8] sm:$0xff]
  %v5730 = vld [vmem:[%s5701 + $0xe0] sm:$0xff]
  %v5731 = vld [vmem:[%s5701 + $0xe8] sm:$0xff]
  %v5732 = vld [vmem:[%s5701 + $0xf0] sm:$0xff]
  %v5733 = vld [vmem:[%s5701 + $0xf8] sm:$0xff]
  %v5766 = vunpack.c.l.b16 %v5702
  %v5767 = vunpack.c.h.b16 %v5702
  %v5768 = vunpack.c.l.b16 %v5703
  %v5769 = vunpack.c.h.b16 %v5703
  %v5770 = vunpack.c.l.b16 %v5704
  %v5771 = vunpack.c.h.b16 %v5704
  %v5772 = vunpack.c.l.b16 %v5705
  %v5773 = vunpack.c.h.b16 %v5705
  %v5774 = vunpack.c.l.b16 %v5706
  %v5775 = vunpack.c.h.b16 %v5706
  %v5776 = vunpack.c.l.b16 %v5707
  %v5777 = vunpack.c.h.b16 %v5707
  %v5778 = vunpack.c.l.b16 %v5708
  %v5779 = vunpack.c.h.b16 %v5708
  %v5780 = vunpack.c.l.b16 %v5709
  %v5781 = vunpack.c.h.b16 %v5709
  %v5782 = vunpack.c.l.b16 %v5710
  %v5783 = vunpack.c.h.b16 %v5710
  %v5784 = vunpack.c.l.b16 %v5711
  %v5785 = vunpack.c.h.b16 %v5711
  %v5786 = vunpack.c.l.b16 %v5712
  %v5787 = vunpack.c.h.b16 %v5712
  %v5788 = vunpack.c.l.b16 %v5713
  %v5789 = vunpack.c.h.b16 %v5713
  %v5790 = vunpack.c.l.b16 %v5714
  %v5791 = vunpack.c.h.b16 %v5714
  %v5792 = vunpack.c.l.b16 %v5715
  %v5793 = vunpack.c.h.b16 %v5715
  %v5794 = vunpack.c.l.b16 %v5716
  %v5795 = vunpack.c.h.b16 %v5716
  %v5796 = vunpack.c.l.b16 %v5717
  %v5797 = vunpack.c.h.b16 %v5717
  %v5798 = vunpack.c.l.b16 %v5718
  %v5799 = vunpack.c.h.b16 %v5718
  %v5800 = vunpack.c.l.b16 %v5719
  %v5801 = vunpack.c.h.b16 %v5719
  %v5802 = vunpack.c.l.b16 %v5720
  %v5803 = vunpack.c.h.b16 %v5720
  %v5804 = vunpack.c.l.b16 %v5721
  %v5805 = vunpack.c.h.b16 %v5721
  %v5806 = vunpack.c.l.b16 %v5722
  %v5807 = vunpack.c.h.b16 %v5722
  %v5808 = vunpack.c.l.b16 %v5723
  %v5809 = vunpack.c.h.b16 %v5723
  %v5810 = vunpack.c.l.b16 %v5724
  %v5811 = vunpack.c.h.b16 %v5724
  %v5812 = vunpack.c.l.b16 %v5725
  %v5813 = vunpack.c.h.b16 %v5725
  %v5814 = vunpack.c.l.b16 %v5726
  %v5815 = vunpack.c.h.b16 %v5726
  %v5816 = vunpack.c.l.b16 %v5727
  %v5817 = vunpack.c.h.b16 %v5727
  %v5818 = vunpack.c.l.b16 %v5728
  %v5819 = vunpack.c.h.b16 %v5728
  %v5820 = vunpack.c.l.b16 %v5729
  %v5821 = vunpack.c.h.b16 %v5729
  %v5822 = vunpack.c.l.b16 %v5730
  %v5823 = vunpack.c.h.b16 %v5730
  %v5824 = vunpack.c.l.b16 %v5731
  %v5825 = vunpack.c.h.b16 %v5731
  %v5826 = vunpack.c.l.b16 %v5732
  %v5827 = vunpack.c.h.b16 %v5732
  %v5828 = vunpack.c.l.b16 %v5733
  %v5829 = vunpack.c.h.b16 %v5733
  %v5830 = vpack.c.b16 %v5768, %v5766
  %v5831 = vpack.c.b16 %v5769, %v5767
  %v5832 = vpack.c.b16 %v5772, %v5770
  %v5833 = vpack.c.b16 %v5773, %v5771
  %v5834 = vpack.c.b16 %v5776, %v5774
  %v5835 = vpack.c.b16 %v5777, %v5775
  %v5836 = vpack.c.b16 %v5780, %v5778
  %v5837 = vpack.c.b16 %v5781, %v5779
  %v5838 = vpack.c.b16 %v5784, %v5782
  %v5839 = vpack.c.b16 %v5785, %v5783
  %v5840 = vpack.c.b16 %v5788, %v5786
  %v5841 = vpack.c.b16 %v5789, %v5787
  %v5842 = vpack.c.b16 %v5792, %v5790
  %v5843 = vpack.c.b16 %v5793, %v5791
  %v5844 = vpack.c.b16 %v5796, %v5794
  %v5845 = vpack.c.b16 %v5797, %v5795
  %v5846 = vpack.c.b16 %v5800, %v5798
  %v5847 = vpack.c.b16 %v5801, %v5799
  %v5848 = vpack.c.b16 %v5804, %v5802
  %v5849 = vpack.c.b16 %v5805, %v5803
  %v5850 = vpack.c.b16 %v5808, %v5806
  %v5851 = vpack.c.b16 %v5809, %v5807
  %v5852 = vpack.c.b16 %v5812, %v5810
  %v5853 = vpack.c.b16 %v5813, %v5811
  %v5854 = vpack.c.b16 %v5816, %v5814
  %v5855 = vpack.c.b16 %v5817, %v5815
  %v5856 = vpack.c.b16 %v5820, %v5818
  %v5857 = vpack.c.b16 %v5821, %v5819
  %v5858 = vpack.c.b16 %v5824, %v5822
  %v5859 = vpack.c.b16 %v5825, %v5823
  %v5860 = vpack.c.b16 %v5828, %v5826
  %v5861 = vpack.c.b16 %v5829, %v5827
  %5894 = vmatprep.subr.bf16.mxu0 %v5831
  %5895 = vmatpush1.bf16.msra.mxu0 %v5830
  %5896 = vmatprep.subr.bf16.mxu0 %v5833
  %5897 = vmatpush1.bf16.msra.mxu0 %v5832
  %5898 = vmatprep.subr.bf16.mxu0 %v5835
  %5899 = vmatpush1.bf16.msra.mxu0 %v5834
  %5900 = vmatprep.subr.bf16.mxu0 %v5837
  %5901 = vmatpush1.bf16.msra.mxu0 %v5836
  %5902 = vmatprep.subr.bf16.mxu0 %v5839
  %5903 = vmatpush1.bf16.msra.mxu0 %v5838
  %5904 = vmatprep.subr.bf16.mxu0 %v5841
  %5905 = vmatpush1.bf16.msra.mxu0 %v5840
  %5906 = vmatprep.subr.bf16.mxu0 %v5843
  %5907 = vmatpush1.bf16.msra.mxu0 %v5842
  %5908 = vmatprep.subr.bf16.mxu0 %v5845
  %5909 = vmatpush1.bf16.msra.mxu0 %v5844
  %5910 = vmatprep.subr.bf16.mxu0 %v5847
  %5911 = vmatpush1.bf16.msra.mxu0 %v5846
  %5912 = vmatprep.subr.bf16.mxu0 %v5849
  %5913 = vmatpush1.bf16.msra.mxu0 %v5848
  %5914 = vmatprep.subr.bf16.mxu0 %v5851
  %5915 = vmatpush1.bf16.msra.mxu0 %v5850
  %5916 = vmatprep.subr.bf16.mxu0 %v5853
  %5917 = vmatpush1.bf16.msra.mxu0 %v5852
  %5918 = vmatprep.subr.bf16.mxu0 %v5855
  %5919 = vmatpush1.bf16.msra.mxu0 %v5854
  %5920 = vmatprep.subr.bf16.mxu0 %v5857
  %5921 = vmatpush1.bf16.msra.mxu0 %v5856
  %5922 = vmatprep.subr.bf16.mxu0 %v5859
  %5923 = vmatpush1.bf16.msra.mxu0 %v5858
  %5924 = vmatprep.subr.bf16.mxu0 %v5861
  %5925 = vmatpush1.bf16.msra.mxu0 %v5860
  %5926 = vmatprep.mubr.bf16.mxu0 %v5478
  %5927 = vmatmul.mubr.bf16.gmra.mrb[0].mxu0 %v5367
  %v5928 = vpop.f32.mrb[0].mxu0
  %v5929 = vadd.f32 0.0, %v5928
  %v5930 = vpop.f32.mrb[0].mxu0
  %v5931 = vadd.f32 0.0, %v5930
  %v5932 = vpop.f32.mrb[0].mxu0
  %v5933 = vadd.f32 0.0, %v5932
  %v5934 = vpop.f32.mrb[0].mxu0
  %v5935 = vadd.f32 0.0, %v5934
  %5936 = vmatprep.mubr.bf16.mxu0 %v5700
  %5937 = vmatmul.mubr.bf16.gmra.mrb[0].mxu0 %v5589
  %v5938 = vpop.f32.mrb[0].mxu0
  %v5939 = vadd.f32 0.0, %v5938
  %v5940 = vpop.f32.mrb[0].mxu0
  %v5941 = vadd.f32 0.0, %v5940
  %v5942 = vpop.f32.mrb[0].mxu0
  %v5943 = vadd.f32 0.0, %v5942
  %v5944 = vpop.f32.mrb[0].mxu0
  %v5945 = vadd.f32 0.0, %v5944
  %5946 = vdwg.mxu0
  %v5947 = vadd.f32 %v4358, %v5929
  %v5948 = vadd.f32 %v4359, %v5931
  %v5949 = vadd.f32 %v4360, %v5933
  %v5950 = vadd.f32 %v4361, %v5935
  %v5951 = vadd.f32 %v4362, %v5939
  %v5952 = vadd.f32 %v4363, %v5941
  %v5953 = vadd.f32 %v4364, %v5943
  %v5954 = vadd.f32 %v4365, %v5945
  %s5955 = scalar_lea.vmem %s9, 2
  %v5956 = vld [vmem:[%s5955] sm:$0x3]
  %v5958 = vlaneseq
  %v5959 = vshrl.u32 %v5958, 7
  %v5960 = vsub.s32 0, %v5959
  %v5961 = vrot.slane %v5956, %v5960
  %v5962 = vlaneseq
  %v5963 = vshrl.u32 %v5962, 7
  %v5964 = vsub.s32 1, %v5963
  %v5965 = vrot.slane %v5956, %v5964
  %v5968 = vadd.f32 %v5947, %v5961
  %v5969 = vadd.f32 %v5948, %v5965
  %v5970 = vadd.f32 %v5949, %v5961
  %v5971 = vadd.f32 %v5950, %v5965
  %v5972 = vadd.f32 %v5951, %v5961
  %v5973 = vadd.f32 %v5952, %v5965
  %v5974 = vadd.f32 %v5953, %v5961
  %v5975 = vadd.f32 %v5954, %v5965
  %s5976 = scalar_lea.vmem %s10, 2
  %v5977 = vld [vmem:[%s5976] sm:$0x3]
  %s5978 = scalar_lea.vmem %s11, 2
  %v5979 = vld [vmem:[%s5978] sm:$0x3]
  %v5980 = vadd.f32 %v5968, %v5969
  %5981 = vadd.xlane.f32.xlu0 %v5980
  %v5982 = vpop.xlane.xlu0 %5981
  %v5983 = vadd.f32 %v5970, %v5971
  %5984 = vadd.xlane.f32.xlu0 %v5983
  %v5985 = vpop.xlane.xlu0 %5984
  %v5986 = vadd.f32 %v5972, %v5973
  %5987 = vadd.xlane.f32.xlu0 %v5986
  %v5988 = vpop.xlane.xlu0 %5987
  %v5989 = vadd.f32 %v5974, %v5975
  %5990 = vadd.xlane.f32.xlu0 %v5989
  %v5991 = vpop.xlane.xlu0 %5990
  %v5992 = vmul.f32 %v5982, %v340
  %v5993 = vmul.f32 %v5985, %v340
  %v5994 = vmul.f32 %v5988, %v340
  %v5995 = vmul.f32 %v5991, %v340
  %v5996 = vsub.f32 %v5968, %v5992
  %v5997 = vsub.f32 %v5969, %v5992
  %v5998 = vsub.f32 %v5970, %v5993
  %v5999 = vsub.f32 %v5971, %v5993
  %v6000 = vsub.f32 %v5972, %v5994
  %v6001 = vsub.f32 %v5973, %v5994
  %v6002 = vsub.f32 %v5974, %v5995
  %v6003 = vsub.f32 %v5975, %v5995
  %v6004 = vmul.f32 %v5996, %v5996
  %v6005 = vmul.f32 %v5997, %v5997
  %v6006 = vmul.f32 %v5998, %v5998
  %v6007 = vmul.f32 %v5999, %v5999
  %v6008 = vmul.f32 %v6000, %v6000
  %v6009 = vmul.f32 %v6001, %v6001
  %v6010 = vmul.f32 %v6002, %v6002
  %v6011 = vmul.f32 %v6003, %v6003
  %v6012 = vadd.f32 %v6004, %v6005
  %6013 = vadd.xlane.f32.xlu0 %v6012
  %v6014 = vpop.xlane.xlu0 %6013
  %v6015 = vadd.f32 %v6006, %v6007
  %6016 = vadd.xlane.f32.xlu0 %v6015
  %v6017 = vpop.xlane.xlu0 %6016
  %v6018 = vadd.f32 %v6008, %v6009
  %6019 = vadd.xlane.f32.xlu0 %v6018
  %v6020 = vpop.xlane.xlu0 %6019
  %v6021 = vadd.f32 %v6010, %v6011
  %6022 = vadd.xlane.f32.xlu0 %v6021
  %v6023 = vpop.xlane.xlu0 %6022
  %v6024 = vmul.f32 %v6014, %v340
  %v6025 = vmul.f32 %v6017, %v340
  %v6026 = vmul.f32 %v6020, %v340
  %v6027 = vmul.f32 %v6023, %v340
  %v6028 = vadd.f32 %v6024, 1e-06
  %v6029 = vadd.f32 %v6025, 1e-06
  %v6030 = vadd.f32 %v6026, 1e-06
  %v6031 = vadd.f32 %v6027, 1e-06
  %v6032 = vrsqrt.pop %v6028
  %v6033 = vrsqrt.pop %v6029
  %v6034 = vrsqrt.pop %v6030
  %v6035 = vrsqrt.pop %v6031
  %v6036 = vmul.f32 %v5996, %v6032
  %v6037 = vmul.f32 %v5997, %v6032
  %v6038 = vmul.f32 %v5998, %v6033
  %v6039 = vmul.f32 %v5999, %v6033
  %v6040 = vmul.f32 %v6000, %v6034
  %v6041 = vmul.f32 %v6001, %v6034
  %v6042 = vmul.f32 %v6002, %v6035
  %v6043 = vmul.f32 %v6003, %v6035
  %v6045 = vlaneseq
  %v6046 = vshrl.u32 %v6045, 7
  %v6047 = vsub.s32 0, %v6046
  %v6048 = vrot.slane %v5977, %v6047
  %v6049 = vlaneseq
  %v6050 = vshrl.u32 %v6049, 7
  %v6051 = vsub.s32 1, %v6050
  %v6052 = vrot.slane %v5977, %v6051
  %v6055 = vmul.f32 %v6036, %v6048
  %v6056 = vmul.f32 %v6037, %v6052
  %v6057 = vmul.f32 %v6038, %v6048
  %v6058 = vmul.f32 %v6039, %v6052
  %v6059 = vmul.f32 %v6040, %v6048
  %v6060 = vmul.f32 %v6041, %v6052
  %v6061 = vmul.f32 %v6042, %v6048
  %v6062 = vmul.f32 %v6043, %v6052
  %v6064 = vlaneseq
  %v6065 = vshrl.u32 %v6064, 7
  %v6066 = vsub.s32 0, %v6065
  %v6067 = vrot.slane %v5979, %v6066
  %v6068 = vlaneseq
  %v6069 = vshrl.u32 %v6068, 7
  %v6070 = vsub.s32 1, %v6069
  %v6071 = vrot.slane %v5979, %v6070
  %v6074 = vadd.f32 %v6055, %v6067
  %v6075 = vadd.f32 %v6056, %v6071
  %v6076 = vadd.f32 %v6057, %v6067
  %v6077 = vadd.f32 %v6058, %v6071
  %v6078 = vadd.f32 %v6059, %v6067
  %v6079 = vadd.f32 %v6060, %v6071
  %v6080 = vadd.f32 %v6061, %v6067
  %v6081 = vadd.f32 %v6062, %v6071
  %s6082 = scalar_lea.vmem %s12, 1024
  %v6083 = vld [vmem:[%s6082] sm:$0xff]
  %v6084 = vld [vmem:[%s6082 + $0x8] sm:$0xff]
  %v6085 = vld [vmem:[%s6082 + $0x10] sm:$0xff]
  %v6086 = vld [vmem:[%s6082 + $0x18] sm:$0xff]
  %v6087 = vld [vmem:[%s6082 + $0x20] sm:$0xff]
  %v6088 = vld [vmem:[%s6082 + $0x28] sm:$0xff]
  %v6089 = vld [vmem:[%s6082 + $0x30] sm:$0xff]
  %v6090 = vld [vmem:[%s6082 + $0x38] sm:$0xff]
  %v6091 = vld [vmem:[%s6082 + $0x40] sm:$0xff]
  %v6092 = vld [vmem:[%s6082 + $0x48] sm:$0xff]
  %v6093 = vld [vmem:[%s6082 + $0x50] sm:$0xff]
  %v6094 = vld [vmem:[%s6082 + $0x58] sm:$0xff]
  %v6095 = vld [vmem:[%s6082 + $0x60] sm:$0xff]
  %v6096 = vld [vmem:[%s6082 + $0x68] sm:$0xff]
  %v6097 = vld [vmem:[%s6082 + $0x70] sm:$0xff]
  %v6098 = vld [vmem:[%s6082 + $0x78] sm:$0xff]
  %v6099 = vld [vmem:[%s6082 + $0x80] sm:$0xff]
  %v6100 = vld [vmem:[%s6082 + $0x88] sm:$0xff]
  %v6101 = vld [vmem:[%s6082 + $0x90] sm:$0xff]
  %v6102 = vld [vmem:[%s6082 + $0x98] sm:$0xff]
  %v6103 = vld [vmem:[%s6082 + $0xa0] sm:$0xff]
  %v6104 = vld [vmem:[%s6082 + $0xa8] sm:$0xff]
  %v6105 = vld [vmem:[%s6082 + $0xb0] sm:$0xff]
  %v6106 = vld [vmem:[%s6082 + $0xb8] sm:$0xff]
  %v6107 = vld [vmem:[%s6082 + $0xc0] sm:$0xff]
  %v6108 = vld [vmem:[%s6082 + $0xc8] sm:$0xff]
  %v6109 = vld [vmem:[%s6082 + $0xd0] sm:$0xff]
  %v6110 = vld [vmem:[%s6082 + $0xd8] sm:$0xff]
  %v6111 = vld [vmem:[%s6082 + $0xe0] sm:$0xff]
  %v6112 = vld [vmem:[%s6082 + $0xe8] sm:$0xff]
  %v6113 = vld [vmem:[%s6082 + $0xf0] sm:$0xff]
  %v6114 = vld [vmem:[%s6082 + $0xf8] sm:$0xff]
  %v6115 = vld [vmem:[%s6082 + $0x100] sm:$0xff]
  %v6116 = vld [vmem:[%s6082 + $0x108] sm:$0xff]
  %v6117 = vld [vmem:[%s6082 + $0x110] sm:$0xff]
  %v6118 = vld [vmem:[%s6082 + $0x118] sm:$0xff]
  %v6119 = vld [vmem:[%s6082 + $0x120] sm:$0xff]
  %v6120 = vld [vmem:[%s6082 + $0x128] sm:$0xff]
  %v6121 = vld [vmem:[%s6082 + $0x130] sm:$0xff]
  %v6122 = vld [vmem:[%s6082 + $0x138] sm:$0xff]
  %v6123 = vld [vmem:[%s6082 + $0x140] sm:$0xff]
  %v6124 = vld [vmem:[%s6082 + $0x148] sm:$0xff]
  %v6125 = vld [vmem:[%s6082 + $0x150] sm:$0xff]
  %v6126 = vld [vmem:[%s6082 + $0x158] sm:$0xff]
  %v6127 = vld [vmem:[%s6082 + $0x160] sm:$0xff]
  %v6128 = vld [vmem:[%s6082 + $0x168] sm:$0xff]
  %v6129 = vld [vmem:[%s6082 + $0x170] sm:$0xff]
  %v6130 = vld [vmem:[%s6082 + $0x178] sm:$0xff]
  %v6131 = vld [vmem:[%s6082 + $0x180] sm:$0xff]
  %v6132 = vld [vmem:[%s6082 + $0x188] sm:$0xff]
  %v6133 = vld [vmem:[%s6082 + $0x190] sm:$0xff]
  %v6134 = vld [vmem:[%s6082 + $0x198] sm:$0xff]
  %v6135 = vld [vmem:[%s6082 + $0x1a0] sm:$0xff]
  %v6136 = vld [vmem:[%s6082 + $0x1a8] sm:$0xff]
  %v6137 = vld [vmem:[%s6082 + $0x1b0] sm:$0xff]
  %v6138 = vld [vmem:[%s6082 + $0x1b8] sm:$0xff]
  %v6139 = vld [vmem:[%s6082 + $0x1c0] sm:$0xff]
  %v6140 = vld [vmem:[%s6082 + $0x1c8] sm:$0xff]
  %v6141 = vld [vmem:[%s6082 + $0x1d0] sm:$0xff]
  %v6142 = vld [vmem:[%s6082 + $0x1d8] sm:$0xff]
  %v6143 = vld [vmem:[%s6082 + $0x1e0] sm:$0xff]
  %v6144 = vld [vmem:[%s6082 + $0x1e8] sm:$0xff]
  %v6145 = vld [vmem:[%s6082 + $0x1f0] sm:$0xff]
  %v6146 = vld [vmem:[%s6082 + $0x1f8] sm:$0xff]
  %v6147 = vld [vmem:[%s6082 + $0x200] sm:$0xff]
  %v6148 = vld [vmem:[%s6082 + $0x208] sm:$0xff]
  %v6149 = vld [vmem:[%s6082 + $0x210] sm:$0xff]
  %v6150 = vld [vmem:[%s6082 + $0x218] sm:$0xff]
  %v6151 = vld [vmem:[%s6082 + $0x220] sm:$0xff]
  %v6152 = vld [vmem:[%s6082 + $0x228] sm:$0xff]
  %v6153 = vld [vmem:[%s6082 + $0x230] sm:$0xff]
  %v6154 = vld [vmem:[%s6082 + $0x238] sm:$0xff]
  %v6155 = vld [vmem:[%s6082 + $0x240] sm:$0xff]
  %v6156 = vld [vmem:[%s6082 + $0x248] sm:$0xff]
  %v6157 = vld [vmem:[%s6082 + $0x250] sm:$0xff]
  %v6158 = vld [vmem:[%s6082 + $0x258] sm:$0xff]
  %v6159 = vld [vmem:[%s6082 + $0x260] sm:$0xff]
  %v6160 = vld [vmem:[%s6082 + $0x268] sm:$0xff]
  %v6161 = vld [vmem:[%s6082 + $0x270] sm:$0xff]
  %v6162 = vld [vmem:[%s6082 + $0x278] sm:$0xff]
  %v6163 = vld [vmem:[%s6082 + $0x280] sm:$0xff]
  %v6164 = vld [vmem:[%s6082 + $0x288] sm:$0xff]
  %v6165 = vld [vmem:[%s6082 + $0x290] sm:$0xff]
  %v6166 = vld [vmem:[%s6082 + $0x298] sm:$0xff]
  %v6167 = vld [vmem:[%s6082 + $0x2a0] sm:$0xff]
  %v6168 = vld [vmem:[%s6082 + $0x2a8] sm:$0xff]
  %v6169 = vld [vmem:[%s6082 + $0x2b0] sm:$0xff]
  %v6170 = vld [vmem:[%s6082 + $0x2b8] sm:$0xff]
  %v6171 = vld [vmem:[%s6082 + $0x2c0] sm:$0xff]
  %v6172 = vld [vmem:[%s6082 + $0x2c8] sm:$0xff]
  %v6173 = vld [vmem:[%s6082 + $0x2d0] sm:$0xff]
  %v6174 = vld [vmem:[%s6082 + $0x2d8] sm:$0xff]
  %v6175 = vld [vmem:[%s6082 + $0x2e0] sm:$0xff]
  %v6176 = vld [vmem:[%s6082 + $0x2e8] sm:$0xff]
  %v6177 = vld [vmem:[%s6082 + $0x2f0] sm:$0xff]
  %v6178 = vld [vmem:[%s6082 + $0x2f8] sm:$0xff]
  %v6179 = vld [vmem:[%s6082 + $0x300] sm:$0xff]
  %v6180 = vld [vmem:[%s6082 + $0x308] sm:$0xff]
  %v6181 = vld [vmem:[%s6082 + $0x310] sm:$0xff]
  %v6182 = vld [vmem:[%s6082 + $0x318] sm:$0xff]
  %v6183 = vld [vmem:[%s6082 + $0x320] sm:$0xff]
  %v6184 = vld [vmem:[%s6082 + $0x328] sm:$0xff]
  %v6185 = vld [vmem:[%s6082 + $0x330] sm:$0xff]
  %v6186 = vld [vmem:[%s6082 + $0x338] sm:$0xff]
  %v6187 = vld [vmem:[%s6082 + $0x340] sm:$0xff]
  %v6188 = vld [vmem:[%s6082 + $0x348] sm:$0xff]
  %v6189 = vld [vmem:[%s6082 + $0x350] sm:$0xff]
  %v6190 = vld [vmem:[%s6082 + $0x358] sm:$0xff]
  %v6191 = vld [vmem:[%s6082 + $0x360] sm:$0xff]
  %v6192 = vld [vmem:[%s6082 + $0x368] sm:$0xff]
  %v6193 = vld [vmem:[%s6082 + $0x370] sm:$0xff]
  %v6194 = vld [vmem:[%s6082 + $0x378] sm:$0xff]
  %v6195 = vld [vmem:[%s6082 + $0x380] sm:$0xff]
  %v6196 = vld [vmem:[%s6082 + $0x388] sm:$0xff]
  %v6197 = vld [vmem:[%s6082 + $0x390] sm:$0xff]
  %v6198 = vld [vmem:[%s6082 + $0x398] sm:$0xff]
  %v6199 = vld [vmem:[%s6082 + $0x3a0] sm:$0xff]
  %v6200 = vld [vmem:[%s6082 + $0x3a8] sm:$0xff]
  %v6201 = vld [vmem:[%s6082 + $0x3b0] sm:$0xff]
  %v6202 = vld [vmem:[%s6082 + $0x3b8] sm:$0xff]
  %v6203 = vld [vmem:[%s6082 + $0x3c0] sm:$0xff]
  %v6204 = vld [vmem:[%s6082 + $0x3c8] sm:$0xff]
  %v6205 = vld [vmem:[%s6082 + $0x3d0] sm:$0xff]
  %v6206 = vld [vmem:[%s6082 + $0x3d8] sm:$0xff]
  %v6207 = vld [vmem:[%s6082 + $0x3e0] sm:$0xff]
  %v6208 = vld [vmem:[%s6082 + $0x3e8] sm:$0xff]
  %v6209 = vld [vmem:[%s6082 + $0x3f0] sm:$0xff]
  %v6210 = vld [vmem:[%s6082 + $0x3f8] sm:$0xff]
  %s6211 = scalar_lea.vmem %s13, 8
  %v6212 = vld [vmem:[%s6211] sm:$0xff]
  %v6213 = vpack.c.bf16 %v6076, %v6074
  %v6214 = vpack.c.bf16 %v6077, %v6075
  %v6215 = vpack.c.bf16 %v6080, %v6078
  %v6216 = vpack.c.bf16 %v6081, %v6079
  %v6218 = vlaneseq
  %v6219 = vshrl.u32 %v6218, 7
  %v6220 = vsub.s32 0, %v6219
  %v6221 = vrot.slane %v6212, %v6220
  %v6222 = vlaneseq
  %v6223 = vshrl.u32 %v6222, 7
  %v6224 = vsub.s32 1, %v6223
  %v6225 = vrot.slane %v6212, %v6224
  %v6226 = vlaneseq
  %v6227 = vshrl.u32 %v6226, 7
  %v6228 = vsub.s32 2, %v6227
  %v6229 = vrot.slane %v6212, %v6228
  %v6230 = vlaneseq
  %v6231 = vshrl.u32 %v6230, 7
  %v6232 = vsub.s32 3, %v6231
  %v6233 = vrot.slane %v6212, %v6232
  %v6234 = vlaneseq
  %v6235 = vshrl.u32 %v6234, 7
  %v6236 = vsub.s32 4, %v6235
  %v6237 = vrot.slane %v6212, %v6236
  %v6238 = vlaneseq
  %v6239 = vshrl.u32 %v6238, 7
  %v6240 = vsub.s32 5, %v6239
  %v6241 = vrot.slane %v6212, %v6240
  %v6242 = vlaneseq
  %v6243 = vshrl.u32 %v6242, 7
  %v6244 = vsub.s32 6, %v6243
  %v6245 = vrot.slane %v6212, %v6244
  %v6246 = vlaneseq
  %v6247 = vshrl.u32 %v6246, 7
  %v6248 = vsub.s32 7, %v6247
  %v6249 = vrot.slane %v6212, %v6248
  %v6386 = vunpack.c.l.b16 %v6083
  %v6387 = vunpack.c.h.b16 %v6083
  %v6388 = vunpack.c.l.b16 %v6084
  %v6389 = vunpack.c.h.b16 %v6084
  %v6390 = vunpack.c.l.b16 %v6085
  %v6391 = vunpack.c.h.b16 %v6085
  %v6392 = vunpack.c.l.b16 %v6086
  %v6393 = vunpack.c.h.b16 %v6086
  %v6394 = vunpack.c.l.b16 %v6087
  %v6395 = vunpack.c.h.b16 %v6087
  %v6396 = vunpack.c.l.b16 %v6088
  %v6397 = vunpack.c.h.b16 %v6088
  %v6398 = vunpack.c.l.b16 %v6089
  %v6399 = vunpack.c.h.b16 %v6089
  %v6400 = vunpack.c.l.b16 %v6090
  %v6401 = vunpack.c.h.b16 %v6090
  %v6402 = vunpack.c.l.b16 %v6091
  %v6403 = vunpack.c.h.b16 %v6091
  %v6404 = vunpack.c.l.b16 %v6092
  %v6405 = vunpack.c.h.b16 %v6092
  %v6406 = vunpack.c.l.b16 %v6093
  %v6407 = vunpack.c.h.b16 %v6093
  %v6408 = vunpack.c.l.b16 %v6094
  %v6409 = vunpack.c.h.b16 %v6094
  %v6410 = vunpack.c.l.b16 %v6095
  %v6411 = vunpack.c.h.b16 %v6095
  %v6412 = vunpack.c.l.b16 %v6096
  %v6413 = vunpack.c.h.b16 %v6096
  %v6414 = vunpack.c.l.b16 %v6097
  %v6415 = vunpack.c.h.b16 %v6097
  %v6416 = vunpack.c.l.b16 %v6098
  %v6417 = vunpack.c.h.b16 %v6098
  %v6418 = vunpack.c.l.b16 %v6099
  %v6419 = vunpack.c.h.b16 %v6099
  %v6420 = vunpack.c.l.b16 %v6100
  %v6421 = vunpack.c.h.b16 %v6100
  %v6422 = vunpack.c.l.b16 %v6101
  %v6423 = vunpack.c.h.b16 %v6101
  %v6424 = vunpack.c.l.b16 %v6102
  %v6425 = vunpack.c.h.b16 %v6102
  %v6426 = vunpack.c.l.b16 %v6103
  %v6427 = vunpack.c.h.b16 %v6103
  %v6428 = vunpack.c.l.b16 %v6104
  %v6429 = vunpack.c.h.b16 %v6104
  %v6430 = vunpack.c.l.b16 %v6105
  %v6431 = vunpack.c.h.b16 %v6105
  %v6432 = vunpack.c.l.b16 %v6106
  %v6433 = vunpack.c.h.b16 %v6106
  %v6434 = vunpack.c.l.b16 %v6107
  %v6435 = vunpack.c.h.b16 %v6107
  %v6436 = vunpack.c.l.b16 %v6108
  %v6437 = vunpack.c.h.b16 %v6108
  %v6438 = vunpack.c.l.b16 %v6109
  %v6439 = vunpack.c.h.b16 %v6109
  %v6440 = vunpack.c.l.b16 %v6110
  %v6441 = vunpack.c.h.b16 %v6110
  %v6442 = vunpack.c.l.b16 %v6111
  %v6443 = vunpack.c.h.b16 %v6111
  %v6444 = vunpack.c.l.b16 %v6112
  %v6445 = vunpack.c.h.b16 %v6112
  %v6446 = vunpack.c.l.b16 %v6113
  %v6447 = vunpack.c.h.b16 %v6113
  %v6448 = vunpack.c.l.b16 %v6114
  %v6449 = vunpack.c.h.b16 %v6114
  %v6450 = vunpack.c.l.b16 %v6115
  %v6451 = vunpack.c.h.b16 %v6115
  %v6452 = vunpack.c.l.b16 %v6116
  %v6453 = vunpack.c.h.b16 %v6116
  %v6454 = vunpack.c.l.b16 %v6117
  %v6455 = vunpack.c.h.b16 %v6117
  %v6456 = vunpack.c.l.b16 %v6118
  %v6457 = vunpack.c.h.b16 %v6118
  %v6458 = vunpack.c.l.b16 %v6119
  %v6459 = vunpack.c.h.b16 %v6119
  %v6460 = vunpack.c.l.b16 %v6120
  %v6461 = vunpack.c.h.b16 %v6120
  %v6462 = vunpack.c.l.b16 %v6121
  %v6463 = vunpack.c.h.b16 %v6121
  %v6464 = vunpack.c.l.b16 %v6122
  %v6465 = vunpack.c.h.b16 %v6122
  %v6466 = vunpack.c.l.b16 %v6123
  %v6467 = vunpack.c.h.b16 %v6123
  %v6468 = vunpack.c.l.b16 %v6124
  %v6469 = vunpack.c.h.b16 %v6124
  %v6470 = vunpack.c.l.b16 %v6125
  %v6471 = vunpack.c.h.b16 %v6125
  %v6472 = vunpack.c.l.b16 %v6126
  %v6473 = vunpack.c.h.b16 %v6126
  %v6474 = vunpack.c.l.b16 %v6127
  %v6475 = vunpack.c.h.b16 %v6127
  %v6476 = vunpack.c.l.b16 %v6128
  %v6477 = vunpack.c.h.b16 %v6128
  %v6478 = vunpack.c.l.b16 %v6129
  %v6479 = vunpack.c.h.b16 %v6129
  %v6480 = vunpack.c.l.b16 %v6130
  %v6481 = vunpack.c.h.b16 %v6130
  %v6482 = vunpack.c.l.b16 %v6131
  %v6483 = vunpack.c.h.b16 %v6131
  %v6484 = vunpack.c.l.b16 %v6132
  %v6485 = vunpack.c.h.b16 %v6132
  %v6486 = vunpack.c.l.b16 %v6133
  %v6487 = vunpack.c.h.b16 %v6133
  %v6488 = vunpack.c.l.b16 %v6134
  %v6489 = vunpack.c.h.b16 %v6134
  %v6490 = vunpack.c.l.b16 %v6135
  %v6491 = vunpack.c.h.b16 %v6135
  %v6492 = vunpack.c.l.b16 %v6136
  %v6493 = vunpack.c.h.b16 %v6136
  %v6494 = vunpack.c.l.b16 %v6137
  %v6495 = vunpack.c.h.b16 %v6137
  %v6496 = vunpack.c.l.b16 %v6138
  %v6497 = vunpack.c.h.b16 %v6138
  %v6498 = vunpack.c.l.b16 %v6139
  %v6499 = vunpack.c.h.b16 %v6139
  %v6500 = vunpack.c.l.b16 %v6140
  %v6501 = vunpack.c.h.b16 %v6140
  %v6502 = vunpack.c.l.b16 %v6141
  %v6503 = vunpack.c.h.b16 %v6141
  %v6504 = vunpack.c.l.b16 %v6142
  %v6505 = vunpack.c.h.b16 %v6142
  %v6506 = vunpack.c.l.b16 %v6143
  %v6507 = vunpack.c.h.b16 %v6143
  %v6508 = vunpack.c.l.b16 %v6144
  %v6509 = vunpack.c.h.b16 %v6144
  %v6510 = vunpack.c.l.b16 %v6145
  %v6511 = vunpack.c.h.b16 %v6145
  %v6512 = vunpack.c.l.b16 %v6146
  %v6513 = vunpack.c.h.b16 %v6146
  %v6514 = vunpack.c.l.b16 %v6147
  %v6515 = vunpack.c.h.b16 %v6147
  %v6516 = vunpack.c.l.b16 %v6148
  %v6517 = vunpack.c.h.b16 %v6148
  %v6518 = vunpack.c.l.b16 %v6149
  %v6519 = vunpack.c.h.b16 %v6149
  %v6520 = vunpack.c.l.b16 %v6150
  %v6521 = vunpack.c.h.b16 %v6150
  %v6522 = vunpack.c.l.b16 %v6151
  %v6523 = vunpack.c.h.b16 %v6151
  %v6524 = vunpack.c.l.b16 %v6152
  %v6525 = vunpack.c.h.b16 %v6152
  %v6526 = vunpack.c.l.b16 %v6153
  %v6527 = vunpack.c.h.b16 %v6153
  %v6528 = vunpack.c.l.b16 %v6154
  %v6529 = vunpack.c.h.b16 %v6154
  %v6530 = vunpack.c.l.b16 %v6155
  %v6531 = vunpack.c.h.b16 %v6155
  %v6532 = vunpack.c.l.b16 %v6156
  %v6533 = vunpack.c.h.b16 %v6156
  %v6534 = vunpack.c.l.b16 %v6157
  %v6535 = vunpack.c.h.b16 %v6157
  %v6536 = vunpack.c.l.b16 %v6158
  %v6537 = vunpack.c.h.b16 %v6158
  %v6538 = vunpack.c.l.b16 %v6159
  %v6539 = vunpack.c.h.b16 %v6159
  %v6540 = vunpack.c.l.b16 %v6160
  %v6541 = vunpack.c.h.b16 %v6160
  %v6542 = vunpack.c.l.b16 %v6161
  %v6543 = vunpack.c.h.b16 %v6161
  %v6544 = vunpack.c.l.b16 %v6162
  %v6545 = vunpack.c.h.b16 %v6162
  %v6546 = vunpack.c.l.b16 %v6163
  %v6547 = vunpack.c.h.b16 %v6163
  %v6548 = vunpack.c.l.b16 %v6164
  %v6549 = vunpack.c.h.b16 %v6164
  %v6550 = vunpack.c.l.b16 %v6165
  %v6551 = vunpack.c.h.b16 %v6165
  %v6552 = vunpack.c.l.b16 %v6166
  %v6553 = vunpack.c.h.b16 %v6166
  %v6554 = vunpack.c.l.b16 %v6167
  %v6555 = vunpack.c.h.b16 %v6167
  %v6556 = vunpack.c.l.b16 %v6168
  %v6557 = vunpack.c.h.b16 %v6168
  %v6558 = vunpack.c.l.b16 %v6169
  %v6559 = vunpack.c.h.b16 %v6169
  %v6560 = vunpack.c.l.b16 %v6170
  %v6561 = vunpack.c.h.b16 %v6170
  %v6562 = vunpack.c.l.b16 %v6171
  %v6563 = vunpack.c.h.b16 %v6171
  %v6564 = vunpack.c.l.b16 %v6172
  %v6565 = vunpack.c.h.b16 %v6172
  %v6566 = vunpack.c.l.b16 %v6173
  %v6567 = vunpack.c.h.b16 %v6173
  %v6568 = vunpack.c.l.b16 %v6174
  %v6569 = vunpack.c.h.b16 %v6174
  %v6570 = vunpack.c.l.b16 %v6175
  %v6571 = vunpack.c.h.b16 %v6175
  %v6572 = vunpack.c.l.b16 %v6176
  %v6573 = vunpack.c.h.b16 %v6176
  %v6574 = vunpack.c.l.b16 %v6177
  %v6575 = vunpack.c.h.b16 %v6177
  %v6576 = vunpack.c.l.b16 %v6178
  %v6577 = vunpack.c.h.b16 %v6178
  %v6578 = vunpack.c.l.b16 %v6179
  %v6579 = vunpack.c.h.b16 %v6179
  %v6580 = vunpack.c.l.b16 %v6180
  %v6581 = vunpack.c.h.b16 %v6180
  %v6582 = vunpack.c.l.b16 %v6181
  %v6583 = vunpack.c.h.b16 %v6181
  %v6584 = vunpack.c.l.b16 %v6182
  %v6585 = vunpack.c.h.b16 %v6182
  %v6586 = vunpack.c.l.b16 %v6183
  %v6587 = vunpack.c.h.b16 %v6183
  %v6588 = vunpack.c.l.b16 %v6184
  %v6589 = vunpack.c.h.b16 %v6184
  %v6590 = vunpack.c.l.b16 %v6185
  %v6591 = vunpack.c.h.b16 %v6185
  %v6592 = vunpack.c.l.b16 %v6186
  %v6593 = vunpack.c.h.b16 %v6186
  %v6594 = vunpack.c.l.b16 %v6187
  %v6595 = vunpack.c.h.b16 %v6187
  %v6596 = vunpack.c.l.b16 %v6188
  %v6597 = vunpack.c.h.b16 %v6188
  %v6598 = vunpack.c.l.b16 %v6189
  %v6599 = vunpack.c.h.b16 %v6189
  %v6600 = vunpack.c.l.b16 %v6190
  %v6601 = vunpack.c.h.b16 %v6190
  %v6602 = vunpack.c.l.b16 %v6191
  %v6603 = vunpack.c.h.b16 %v6191
  %v6604 = vunpack.c.l.b16 %v6192
  %v6605 = vunpack.c.h.b16 %v6192
  %v6606 = vunpack.c.l.b16 %v6193
  %v6607 = vunpack.c.h.b16 %v6193
  %v6608 = vunpack.c.l.b16 %v6194
  %v6609 = vunpack.c.h.b16 %v6194
  %v6610 = vunpack.c.l.b16 %v6195
  %v6611 = vunpack.c.h.b16 %v6195
  %v6612 = vunpack.c.l.b16 %v6196
  %v6613 = vunpack.c.h.b16 %v6196
  %v6614 = vunpack.c.l.b16 %v6197
  %v6615 = vunpack.c.h.b16 %v6197
  %v6616 = vunpack.c.l.b16 %v6198
  %v6617 = vunpack.c.h.b16 %v6198
  %v6618 = vunpack.c.l.b16 %v6199
  %v6619 = vunpack.c.h.b16 %v6199
  %v6620 = vunpack.c.l.b16 %v6200
  %v6621 = vunpack.c.h.b16 %v6200
  %v6622 = vunpack.c.l.b16 %v6201
  %v6623 = vunpack.c.h.b16 %v6201
  %v6624 = vunpack.c.l.b16 %v6202
  %v6625 = vunpack.c.h.b16 %v6202
  %v6626 = vunpack.c.l.b16 %v6203
  %v6627 = vunpack.c.h.b16 %v6203
  %v6628 = vunpack.c.l.b16 %v6204
  %v6629 = vunpack.c.h.b16 %v6204
  %v6630 = vunpack.c.l.b16 %v6205
  %v6631 = vunpack.c.h.b16 %v6205
  %v6632 = vunpack.c.l.b16 %v6206
  %v6633 = vunpack.c.h.b16 %v6206
  %v6634 = vunpack.c.l.b16 %v6207
  %v6635 = vunpack.c.h.b16 %v6207
  %v6636 = vunpack.c.l.b16 %v6208
  %v6637 = vunpack.c.h.b16 %v6208
  %v6638 = vunpack.c.l.b16 %v6209
  %v6639 = vunpack.c.h.b16 %v6209
  %v6640 = vunpack.c.l.b16 %v6210
  %v6641 = vunpack.c.h.b16 %v6210
  %v6642 = vpack.c.b16 %v6394, %v6386
  %v6643 = vpack.c.b16 %v6395, %v6387
  %v6644 = vpack.c.b16 %v6396, %v6388
  %v6645 = vpack.c.b16 %v6397, %v6389
  %v6646 = vpack.c.b16 %v6398, %v6390
  %v6647 = vpack.c.b16 %v6399, %v6391
  %v6648 = vpack.c.b16 %v6400, %v6392
  %v6649 = vpack.c.b16 %v6401, %v6393
  %v6650 = vpack.c.b16 %v6410, %v6402
  %v6651 = vpack.c.b16 %v6411, %v6403
  %v6652 = vpack.c.b16 %v6412, %v6404
  %v6653 = vpack.c.b16 %v6413, %v6405
  %v6654 = vpack.c.b16 %v6414, %v6406
  %v6655 = vpack.c.b16 %v6415, %v6407
  %v6656 = vpack.c.b16 %v6416, %v6408
  %v6657 = vpack.c.b16 %v6417, %v6409
  %v6658 = vpack.c.b16 %v6426, %v6418
  %v6659 = vpack.c.b16 %v6427, %v6419
  %v6660 = vpack.c.b16 %v6428, %v6420
  %v6661 = vpack.c.b16 %v6429, %v6421
  %v6662 = vpack.c.b16 %v6430, %v6422
  %v6663 = vpack.c.b16 %v6431, %v6423
  %v6664 = vpack.c.b16 %v6432, %v6424
  %v6665 = vpack.c.b16 %v6433, %v6425
  %v6666 = vpack.c.b16 %v6442, %v6434
  %v6667 = vpack.c.b16 %v6443, %v6435
  %v6668 = vpack.c.b16 %v6444, %v6436
  %v6669 = vpack.c.b16 %v6445, %v6437
  %v6670 = vpack.c.b16 %v6446, %v6438
  %v6671 = vpack.c.b16 %v6447, %v6439
  %v6672 = vpack.c.b16 %v6448, %v6440
  %v6673 = vpack.c.b16 %v6449, %v6441
  %v6674 = vpack.c.b16 %v6458, %v6450
  %v6675 = vpack.c.b16 %v6459, %v6451
  %v6676 = vpack.c.b16 %v6460, %v6452
  %v6677 = vpack.c.b16 %v6461, %v6453
  %v6678 = vpack.c.b16 %v6462, %v6454
  %v6679 = vpack.c.b16 %v6463, %v6455
  %v6680 = vpack.c.b16 %v6464, %v6456
  %v6681 = vpack.c.b16 %v6465, %v6457
  %v6682 = vpack.c.b16 %v6474, %v6466
  %v6683 = vpack.c.b16 %v6475, %v6467
  %v6684 = vpack.c.b16 %v6476, %v6468
  %v6685 = vpack.c.b16 %v6477, %v6469
  %v6686 = vpack.c.b16 %v6478, %v6470
  %v6687 = vpack.c.b16 %v6479, %v6471
  %v6688 = vpack.c.b16 %v6480, %v6472
  %v6689 = vpack.c.b16 %v6481, %v6473
  %v6690 = vpack.c.b16 %v6490, %v6482
  %v6691 = vpack.c.b16 %v6491, %v6483
  %v6692 = vpack.c.b16 %v6492, %v6484
  %v6693 = vpack.c.b16 %v6493, %v6485
  %v6694 = vpack.c.b16 %v6494, %v6486
  %v6695 = vpack.c.b16 %v6495, %v6487
  %v6696 = vpack.c.b16 %v6496, %v6488
  %v6697 = vpack.c.b16 %v6497, %v6489
  %v6698 = vpack.c.b16 %v6506, %v6498
  %v6699 = vpack.c.b16 %v6507, %v6499
  %v6700 = vpack.c.b16 %v6508, %v6500
  %v6701 = vpack.c.b16 %v6509, %v6501
  %v6702 = vpack.c.b16 %v6510, %v6502
  %v6703 = vpack.c.b16 %v6511, %v6503
  %v6704 = vpack.c.b16 %v6512, %v6504
  %v6705 = vpack.c.b16 %v6513, %v6505
  %v6706 = vpack.c.b16 %v6522, %v6514
  %v6707 = vpack.c.b16 %v6523, %v6515
  %v6708 = vpack.c.b16 %v6524, %v6516
  %v6709 = vpack.c.b16 %v6525, %v6517
  %v6710 = vpack.c.b16 %v6526, %v6518
  %v6711 = vpack.c.b16 %v6527, %v6519
  %v6712 = vpack.c.b16 %v6528, %v6520
  %v6713 = vpack.c.b16 %v6529, %v6521
  %v6714 = vpack.c.b16 %v6538, %v6530
  %v6715 = vpack.c.b16 %v6539, %v6531
  %v6716 = vpack.c.b16 %v6540, %v6532
  %v6717 = vpack.c.b16 %v6541, %v6533
  %v6718 = vpack.c.b16 %v6542, %v6534
  %v6719 = vpack.c.b16 %v6543, %v6535
  %v6720 = vpack.c.b16 %v6544, %v6536
  %v6721 = vpack.c.b16 %v6545, %v6537
  %v6722 = vpack.c.b16 %v6554, %v6546
  %v6723 = vpack.c.b16 %v6555, %v6547
  %v6724 = vpack.c.b16 %v6556, %v6548
  %v6725 = vpack.c.b16 %v6557, %v6549
  %v6726 = vpack.c.b16 %v6558, %v6550
  %v6727 = vpack.c.b16 %v6559, %v6551
  %v6728 = vpack.c.b16 %v6560, %v6552
  %v6729 = vpack.c.b16 %v6561, %v6553
  %v6730 = vpack.c.b16 %v6570, %v6562
  %v6731 = vpack.c.b16 %v6571, %v6563
  %v6732 = vpack.c.b16 %v6572, %v6564
  %v6733 = vpack.c.b16 %v6573, %v6565
  %v6734 = vpack.c.b16 %v6574, %v6566
  %v6735 = vpack.c.b16 %v6575, %v6567
  %v6736 = vpack.c.b16 %v6576, %v6568
  %v6737 = vpack.c.b16 %v6577, %v6569
  %v6738 = vpack.c.b16 %v6586, %v6578
  %v6739 = vpack.c.b16 %v6587, %v6579
  %v6740 = vpack.c.b16 %v6588, %v6580
  %v6741 = vpack.c.b16 %v6589, %v6581
  %v6742 = vpack.c.b16 %v6590, %v6582
  %v6743 = vpack.c.b16 %v6591, %v6583
  %v6744 = vpack.c.b16 %v6592, %v6584
  %v6745 = vpack.c.b16 %v6593, %v6585
  %v6746 = vpack.c.b16 %v6602, %v6594
  %v6747 = vpack.c.b16 %v6603, %v6595
  %v6748 = vpack.c.b16 %v6604, %v6596
  %v6749 = vpack.c.b16 %v6605, %v6597
  %v6750 = vpack.c.b16 %v6606, %v6598
  %v6751 = vpack.c.b16 %v6607, %v6599
  %v6752 = vpack.c.b16 %v6608, %v6600
  %v6753 = vpack.c.b16 %v6609, %v6601
  %v6754 = vpack.c.b16 %v6618, %v6610
  %v6755 = vpack.c.b16 %v6619, %v6611
  %v6756 = vpack.c.b16 %v6620, %v6612
  %v6757 = vpack.c.b16 %v6621, %v6613
  %v6758 = vpack.c.b16 %v6622, %v6614
  %v6759 = vpack.c.b16 %v6623, %v6615
  %v6760 = vpack.c.b16 %v6624, %v6616
  %v6761 = vpack.c.b16 %v6625, %v6617
  %v6762 = vpack.c.b16 %v6634, %v6626
  %v6763 = vpack.c.b16 %v6635, %v6627
  %v6764 = vpack.c.b16 %v6636, %v6628
  %v6765 = vpack.c.b16 %v6637, %v6629
  %v6766 = vpack.c.b16 %v6638, %v6630
  %v6767 = vpack.c.b16 %v6639, %v6631
  %v6768 = vpack.c.b16 %v6640, %v6632
  %v6769 = vpack.c.b16 %v6641, %v6633
  %6898 = vmatprep.subr.bf16.mxu0 %v6643
  %6899 = vmatpush1.bf16.msra.mxu0 %v6642
  %6900 = vmatprep.subr.bf16.mxu0 %v6651
  %6901 = vmatpush1.bf16.msra.mxu0 %v6650
  %6902 = vmatprep.subr.bf16.mxu0 %v6659
  %6903 = vmatpush1.bf16.msra.mxu0 %v6658
  %6904 = vmatprep.subr.bf16.mxu0 %v6667
  %6905 = vmatpush1.bf16.msra.mxu0 %v6666
  %6906 = vmatprep.subr.bf16.mxu0 %v6675
  %6907 = vmatpush1.bf16.msra.mxu0 %v6674
  %6908 = vmatprep.subr.bf16.mxu0 %v6683
  %6909 = vmatpush1.bf16.msra.mxu0 %v6682
  %6910 = vmatprep.subr.bf16.mxu0 %v6691
  %6911 = vmatpush1.bf16.msra.mxu0 %v6690
  %6912 = vmatprep.subr.bf16.mxu0 %v6699
  %6913 = vmatpush1.bf16.msra.mxu0 %v6698
  %6914 = vmatprep.subr.bf16.mxu0 %v6707
  %6915 = vmatpush1.bf16.msra.mxu0 %v6706
  %6916 = vmatprep.subr.bf16.mxu0 %v6715
  %6917 = vmatpush1.bf16.msra.mxu0 %v6714
  %6918 = vmatprep.subr.bf16.mxu0 %v6723
  %6919 = vmatpush1.bf16.msra.mxu0 %v6722
  %6920 = vmatprep.subr.bf16.mxu0 %v6731
  %6921 = vmatpush1.bf16.msra.mxu0 %v6730
  %6922 = vmatprep.subr.bf16.mxu0 %v6739
  %6923 = vmatpush1.bf16.msra.mxu0 %v6738
  %6924 = vmatprep.subr.bf16.mxu0 %v6747
  %6925 = vmatpush1.bf16.msra.mxu0 %v6746
  %6926 = vmatprep.subr.bf16.mxu0 %v6755
  %6927 = vmatpush1.bf16.msra.mxu0 %v6754
  %6928 = vmatprep.subr.bf16.mxu0 %v6763
  %6929 = vmatpush1.bf16.msra.mxu0 %v6762
  %6930 = vmatprep.mubr.bf16.mxu0 %v6214
  %6931 = vmatmul.mubr.bf16.gmra.mrb[0].mxu0 %v6213
  %v6932 = vpop.f32.mrb[0].mxu0
  %v6933 = vadd.f32 %v6221, %v6932
  %v6934 = vpop.f32.mrb[0].mxu0
  %v6935 = vadd.f32 %v6225, %v6934
  %v6936 = vpop.f32.mrb[0].mxu0
  %v6937 = vadd.f32 %v6221, %v6936
  %v6938 = vpop.f32.mrb[0].mxu0
  %v6939 = vadd.f32 %v6225, %v6938
  %6940 = vmatprep.mubr.bf16.mxu0 %v6216
  %6941 = vmatmul.mubr.bf16.gmra.mrb[0].mxu0 %v6215
  %v6942 = vpop.f32.mrb[0].mxu0
  %v6943 = vadd.f32 %v6221, %v6942
  %v6944 = vpop.f32.mrb[0].mxu0
  %v6945 = vadd.f32 %v6225, %v6944
  %v6946 = vpop.f32.mrb[0].mxu0
  %v6947 = vadd.f32 %v6221, %v6946
  %v6948 = vpop.f32.mrb[0].mxu0
  %v6949 = vadd.f32 %v6225, %v6948
  %6950 = vdwg.mxu0
  %6951 = vmatprep.subr.bf16.mxu0 %v6645
  %6952 = vmatpush1.bf16.msra.mxu0 %v6644
  %6953 = vmatprep.subr.bf16.mxu0 %v6653
  %6954 = vmatpush1.bf16.msra.mxu0 %v6652
  %6955 = vmatprep.subr.bf16.mxu0 %v6661
  %6956 = vmatpush1.bf16.msra.mxu0 %v6660
  %6957 = vmatprep.subr.bf16.mxu0 %v6669
  %6958 = vmatpush1.bf16.msra.mxu0 %v6668
  %6959 = vmatprep.subr.bf16.mxu0 %v6677
  %6960 = vmatpush1.bf16.msra.mxu0 %v6676
  %6961 = vmatprep.subr.bf16.mxu0 %v6685
  %6962 = vmatpush1.bf16.msra.mxu0 %v6684
  %6963 = vmatprep.subr.bf16.mxu0 %v6693
  %6964 = vmatpush1.bf16.msra.mxu0 %v6692
  %6965 = vmatprep.subr.bf16.mxu0 %v6701
  %6966 = vmatpush1.bf16.msra.mxu0 %v6700
  %6967 = vmatprep.subr.bf16.mxu0 %v6709
  %6968 = vmatpush1.bf16.msra.mxu0 %v6708
  %6969 = vmatprep.subr.bf16.mxu0 %v6717
  %6970 = vmatpush1.bf16.msra.mxu0 %v6716
  %6971 = vmatprep.subr.bf16.mxu0 %v6725
  %6972 = vmatpush1.bf16.msra.mxu0 %v6724
  %6973 = vmatprep.subr.bf16.mxu0 %v6733
  %6974 = vmatpush1.bf16.msra.mxu0 %v6732
  %6975 = vmatprep.subr.bf16.mxu0 %v6741
  %6976 = vmatpush1.bf16.msra.mxu0 %v6740
  %6977 = vmatprep.subr.bf16.mxu0 %v6749
  %6978 = vmatpush1.bf16.msra.mxu0 %v6748
  %6979 = vmatprep.subr.bf16.mxu0 %v6757
  %6980 = vmatpush1.bf16.msra.mxu0 %v6756
  %6981 = vmatprep.subr.bf16.mxu0 %v6765
  %6982 = vmatpush1.bf16.msra.mxu0 %v6764
  %6983 = vmatprep.mubr.bf16.mxu0 %v6214
  %6984 = vmatmul.mubr.bf16.gmra.mrb[0].mxu0 %v6213
  %v6985 = vpop.f32.mrb[0].mxu0
  %v6986 = vadd.f32 %v6229, %v6985
  %v6987 = vpop.f32.mrb[0].mxu0
  %v6988 = vadd.f32 %v6233, %v6987
  %v6989 = vpop.f32.mrb[0].mxu0
  %v6990 = vadd.f32 %v6229, %v6989
  %v6991 = vpop.f32.mrb[0].mxu0
  %v6992 = vadd.f32 %v6233, %v6991
  %6993 = vmatprep.mubr.bf16.mxu0 %v6216
  %6994 = vmatmul.mubr.bf16.gmra.mrb[0].mxu0 %v6215
  %v6995 = vpop.f32.mrb[0].mxu0
  %v6996 = vadd.f32 %v6229, %v6995
  %v6997 = vpop.f32.mrb[0].mxu0
  %v6998 = vadd.f32 %v6233, %v6997
  %v6999 = vpop.f32.mrb[0].mxu0
  %v7000 = vadd.f32 %v6229, %v6999
  %v7001 = vpop.f32.mrb[0].mxu0
  %v7002 = vadd.f32 %v6233, %v7001
  %7003 = vdwg.mxu0
  %7004 = vmatprep.subr.bf16.mxu0 %v6647
  %7005 = vmatpush1.bf16.msra.mxu0 %v6646
  %7006 = vmatprep.subr.bf16.mxu0 %v6655
  %7007 = vmatpush1.bf16.msra.mxu0 %v6654
  %7008 = vmatprep.subr.bf16.mxu0 %v6663
  %7009 = vmatpush1.bf16.msra.mxu0 %v6662
  %7010 = vmatprep.subr.bf16.mxu0 %v6671
  %7011 = vmatpush1.bf16.msra.mxu0 %v6670
  %7012 = vmatprep.subr.bf16.mxu0 %v6679
  %7013 = vmatpush1.bf16.msra.mxu0 %v6678
  %7014 = vmatprep.subr.bf16.mxu0 %v6687
  %7015 = vmatpush1.bf16.msra.mxu0 %v6686
  %7016 = vmatprep.subr.bf16.mxu0 %v6695
  %7017 = vmatpush1.bf16.msra.mxu0 %v6694
  %7018 = vmatprep.subr.bf16.mxu0 %v6703
  %7019 = vmatpush1.bf16.msra.mxu0 %v6702
  %7020 = vmatprep.subr.bf16.mxu0 %v6711
  %7021 = vmatpush1.bf16.msra.mxu0 %v6710
  %7022 = vmatprep.subr.bf16.mxu0 %v6719
  %7023 = vmatpush1.bf16.msra.mxu0 %v6718
  %7024 = vmatprep.subr.bf16.mxu0 %v6727
  %7025 = vmatpush1.bf16.msra.mxu0 %v6726
  %7026 = vmatprep.subr.bf16.mxu0 %v6735
  %7027 = vmatpush1.bf16.msra.mxu0 %v6734
  %7028 = vmatprep.subr.bf16.mxu0 %v6743
  %7029 = vmatpush1.bf16.msra.mxu0 %v6742
  %7030 = vmatprep.subr.bf16.mxu0 %v6751
  %7031 = vmatpush1.bf16.msra.mxu0 %v6750
  %7032 = vmatprep.subr.bf16.mxu0 %v6759
  %7033 = vmatpush1.bf16.msra.mxu0 %v6758
  %7034 = vmatprep.subr.bf16.mxu0 %v6767
  %7035 = vmatpush1.bf16.msra.mxu0 %v6766
  %7036 = vmatprep.mubr.bf16.mxu0 %v6214
  %7037 = vmatmul.mubr.bf16.gmra.mrb[0].mxu0 %v6213
  %v7038 = vpop.f32.mrb[0].mxu0
  %v7039 = vadd.f32 %v6237, %v7038
  %v7040 = vpop.f32.mrb[0].mxu0
  %v7041 = vadd.f32 %v6241, %v7040
  %v7042 = vpop.f32.mrb[0].mxu0
  %v7043 = vadd.f32 %v6237, %v7042
  %v7044 = vpop.f32.mrb[0].mxu0
  %v7045 = vadd.f32 %v6241, %v7044
  %7046 = vmatprep.mubr.bf16.mxu0 %v6216
  %7047 = vmatmul.mubr.bf16.gmra.mrb[0].mxu0 %v6215
  %v7048 = vpop.f32.mrb[0].mxu0
  %v7049 = vadd.f32 %v6237, %v7048
  %v7050 = vpop.f32.mrb[0].mxu0
  %v7051 = vadd.f32 %v6241, %v7050
  %v7052 = vpop.f32.mrb[0].mxu0
  %v7053 = vadd.f32 %v6237, %v7052
  %v7054 = vpop.f32.mrb[0].mxu0
  %v7055 = vadd.f32 %v6241, %v7054
  %7056 = vdwg.mxu0
  %7057 = vmatprep.subr.bf16.mxu0 %v6649
  %7058 = vmatpush1.bf16.msra.mxu0 %v6648
  %7059 = vmatprep.subr.bf16.mxu0 %v6657
  %7060 = vmatpush1.bf16.msra.mxu0 %v6656
  %7061 = vmatprep.subr.bf16.mxu0 %v6665
  %7062 = vmatpush1.bf16.msra.mxu0 %v6664
  %7063 = vmatprep.subr.bf16.mxu0 %v6673
  %7064 = vmatpush1.bf16.msra.mxu0 %v6672
  %7065 = vmatprep.subr.bf16.mxu0 %v6681
  %7066 = vmatpush1.bf16.msra.mxu0 %v6680
  %7067 = vmatprep.subr.bf16.mxu0 %v6689
  %7068 = vmatpush1.bf16.msra.mxu0 %v6688
  %7069 = vmatprep.subr.bf16.mxu0 %v6697
  %7070 = vmatpush1.bf16.msra.mxu0 %v6696
  %7071 = vmatprep.subr.bf16.mxu0 %v6705
  %7072 = vmatpush1.bf16.msra.mxu0 %v6704
  %7073 = vmatprep.subr.bf16.mxu0 %v6713
  %7074 = vmatpush1.bf16.msra.mxu0 %v6712
  %7075 = vmatprep.subr.bf16.mxu0 %v6721
  %7076 = vmatpush1.bf16.msra.mxu0 %v6720
  %7077 = vmatprep.subr.bf16.mxu0 %v6729
  %7078 = vmatpush1.bf16.msra.mxu0 %v6728
  %7079 = vmatprep.subr.bf16.mxu0 %v6737
  %7080 = vmatpush1.bf16.msra.mxu0 %v6736
  %7081 = vmatprep.subr.bf16.mxu0 %v6745
  %7082 = vmatpush1.bf16.msra.mxu0 %v6744
  %7083 = vmatprep.subr.bf16.mxu0 %v6753
  %7084 = vmatpush1.bf16.msra.mxu0 %v6752
  %7085 = vmatprep.subr.bf16.mxu0 %v6761
  %7086 = vmatpush1.bf16.msra.mxu0 %v6760
  %7087 = vmatprep.subr.bf16.mxu0 %v6769
  %7088 = vmatpush1.bf16.msra.mxu0 %v6768
  %7089 = vmatprep.mubr.bf16.mxu0 %v6214
  %7090 = vmatmul.mubr.bf16.gmra.mrb[0].mxu0 %v6213
  %v7091 = vpop.f32.mrb[0].mxu0
  %v7092 = vadd.f32 %v6245, %v7091
  %v7093 = vpop.f32.mrb[0].mxu0
  %v7094 = vadd.f32 %v6249, %v7093
  %v7095 = vpop.f32.mrb[0].mxu0
  %v7096 = vadd.f32 %v6245, %v7095
  %v7097 = vpop.f32.mrb[0].mxu0
  %v7098 = vadd.f32 %v6249, %v7097
  %7099 = vmatprep.mubr.bf16.mxu0 %v6216
  %7100 = vmatmul.mubr.bf16.gmra.mrb[0].mxu0 %v6215
  %v7101 = vpop.f32.mrb[0].mxu0
  %v7102 = vadd.f32 %v6245, %v7101
  %v7103 = vpop.f32.mrb[0].mxu0
  %v7104 = vadd.f32 %v6249, %v7103
  %v7105 = vpop.f32.mrb[0].mxu0
  %v7106 = vadd.f32 %v6245, %v7105
  %v7107 = vpop.f32.mrb[0].mxu0
  %v7108 = vadd.f32 %v6249, %v7107
  %7109 = vdwg.mxu0
  %v7110 = vmul.f32 %v6933, %v6933
  %v7111 = vmul.f32 %v6935, %v6935
  %v7112 = vmul.f32 %v6986, %v6986
  %v7113 = vmul.f32 %v6988, %v6988
  %v7114 = vmul.f32 %v7039, %v7039
  %v7115 = vmul.f32 %v7041, %v7041
  %v7116 = vmul.f32 %v7092, %v7092
  %v7117 = vmul.f32 %v7094, %v7094
  %v7118 = vmul.f32 %v6937, %v6937
  %v7119 = vmul.f32 %v6939, %v6939
  %v7120 = vmul.f32 %v6990, %v6990
  %v7121 = vmul.f32 %v6992, %v6992
  %v7122 = vmul.f32 %v7043, %v7043
  %v7123 = vmul.f32 %v7045, %v7045
  %v7124 = vmul.f32 %v7096, %v7096
  %v7125 = vmul.f32 %v7098, %v7098
  %v7126 = vmul.f32 %v6943, %v6943
  %v7127 = vmul.f32 %v6945, %v6945
  %v7128 = vmul.f32 %v6996, %v6996
  %v7129 = vmul.f32 %v6998, %v6998
  %v7130 = vmul.f32 %v7049, %v7049
  %v7131 = vmul.f32 %v7051, %v7051
  %v7132 = vmul.f32 %v7102, %v7102
  %v7133 = vmul.f32 %v7104, %v7104
  %v7134 = vmul.f32 %v6947, %v6947
  %v7135 = vmul.f32 %v6949, %v6949
  %v7136 = vmul.f32 %v7000, %v7000
  %v7137 = vmul.f32 %v7002, %v7002
  %v7138 = vmul.f32 %v7053, %v7053
  %v7139 = vmul.f32 %v7055, %v7055
  %v7140 = vmul.f32 %v7106, %v7106
  %v7141 = vmul.f32 %v7108, %v7108
  %v7142 = vmul.f32 %v6933, %v7110
  %v7143 = vmul.f32 %v6935, %v7111
  %v7144 = vmul.f32 %v6986, %v7112
  %v7145 = vmul.f32 %v6988, %v7113
  %v7146 = vmul.f32 %v7039, %v7114
  %v7147 = vmul.f32 %v7041, %v7115
  %v7148 = vmul.f32 %v7092, %v7116
  %v7149 = vmul.f32 %v7094, %v7117
  %v7150 = vmul.f32 %v6937, %v7118
  %v7151 = vmul.f32 %v6939, %v7119
  %v7152 = vmul.f32 %v6990, %v7120
  %v7153 = vmul.f32 %v6992, %v7121
  %v7154 = vmul.f32 %v7043, %v7122
  %v7155 = vmul.f32 %v7045, %v7123
  %v7156 = vmul.f32 %v7096, %v7124
  %v7157 = vmul.f32 %v7098, %v7125
  %v7158 = vmul.f32 %v6943, %v7126
  %v7159 = vmul.f32 %v6945, %v7127
  %v7160 = vmul.f32 %v6996, %v7128
  %v7161 = vmul.f32 %v6998, %v7129
  %v7162 = vmul.f32 %v7049, %v7130
  %v7163 = vmul.f32 %v7051, %v7131
  %v7164 = vmul.f32 %v7102, %v7132
  %v7165 = vmul.f32 %v7104, %v7133
  %v7166 = vmul.f32 %v6947, %v7134
  %v7167 = vmul.f32 %v6949, %v7135
  %v7168 = vmul.f32 %v7000, %v7136
  %v7169 = vmul.f32 %v7002, %v7137
  %v7170 = vmul.f32 %v7053, %v7138
  %v7171 = vmul.f32 %v7055, %v7139
  %v7172 = vmul.f32 %v7106, %v7140
  %v7173 = vmul.f32 %v7108, %v7141
  %v7174 = vmul.f32 %v7142, 0.044715
  %v7175 = vmul.f32 %v7143, 0.044715
  %v7176 = vmul.f32 %v7144, 0.044715
  %v7177 = vmul.f32 %v7145, 0.044715
  %v7178 = vmul.f32 %v7146, 0.044715
  %v7179 = vmul.f32 %v7147, 0.044715
  %v7180 = vmul.f32 %v7148, 0.044715
  %v7181 = vmul.f32 %v7149, 0.044715
  %v7182 = vmul.f32 %v7150, 0.044715
  %v7183 = vmul.f32 %v7151, 0.044715
  %v7184 = vmul.f32 %v7152, 0.044715
  %v7185 = vmul.f32 %v7153, 0.044715
  %v7186 = vmul.f32 %v7154, 0.044715
  %v7187 = vmul.f32 %v7155, 0.044715
  %v7188 = vmul.f32 %v7156, 0.044715
  %v7189 = vmul.f32 %v7157, 0.044715
  %v7190 = vmul.f32 %v7158, 0.044715
  %v7191 = vmul.f32 %v7159, 0.044715
  %v7192 = vmul.f32 %v7160, 0.044715
  %v7193 = vmul.f32 %v7161, 0.044715
  %v7194 = vmul.f32 %v7162, 0.044715
  %v7195 = vmul.f32 %v7163, 0.044715
  %v7196 = vmul.f32 %v7164, 0.044715
  %v7197 = vmul.f32 %v7165, 0.044715
  %v7198 = vmul.f32 %v7166, 0.044715
  %v7199 = vmul.f32 %v7167, 0.044715
  %v7200 = vmul.f32 %v7168, 0.044715
  %v7201 = vmul.f32 %v7169, 0.044715
  %v7202 = vmul.f32 %v7170, 0.044715
  %v7203 = vmul.f32 %v7171, 0.044715
  %v7204 = vmul.f32 %v7172, 0.044715
  %v7205 = vmul.f32 %v7173, 0.044715
  %v7206 = vadd.f32 %v6933, %v7174
  %v7207 = vadd.f32 %v6935, %v7175
  %v7208 = vadd.f32 %v6986, %v7176
  %v7209 = vadd.f32 %v6988, %v7177
  %v7210 = vadd.f32 %v7039, %v7178
  %v7211 = vadd.f32 %v7041, %v7179
  %v7212 = vadd.f32 %v7092, %v7180
  %v7213 = vadd.f32 %v7094, %v7181
  %v7214 = vadd.f32 %v6937, %v7182
  %v7215 = vadd.f32 %v6939, %v7183
  %v7216 = vadd.f32 %v6990, %v7184
  %v7217 = vadd.f32 %v6992, %v7185
  %v7218 = vadd.f32 %v7043, %v7186
  %v7219 = vadd.f32 %v7045, %v7187
  %v7220 = vadd.f32 %v7096, %v7188
  %v7221 = vadd.f32 %v7098, %v7189
  %v7222 = vadd.f32 %v6943, %v7190
  %v7223 = vadd.f32 %v6945, %v7191
  %v7224 = vadd.f32 %v6996, %v7192
  %v7225 = vadd.f32 %v6998, %v7193
  %v7226 = vadd.f32 %v7049, %v7194
  %v7227 = vadd.f32 %v7051, %v7195
  %v7228 = vadd.f32 %v7102, %v7196
  %v7229 = vadd.f32 %v7104, %v7197
  %v7230 = vadd.f32 %v6947, %v7198
  %v7231 = vadd.f32 %v6949, %v7199
  %v7232 = vadd.f32 %v7000, %v7200
  %v7233 = vadd.f32 %v7002, %v7201
  %v7234 = vadd.f32 %v7053, %v7202
  %v7235 = vadd.f32 %v7055, %v7203
  %v7236 = vadd.f32 %v7106, %v7204
  %v7237 = vadd.f32 %v7108, %v7205
  %v7238 = vmul.f32 %v7206, 0.7978846
  %v7239 = vmul.f32 %v7207, 0.7978846
  %v7240 = vmul.f32 %v7208, 0.7978846
  %v7241 = vmul.f32 %v7209, 0.7978846
  %v7242 = vmul.f32 %v7210, 0.7978846
  %v7243 = vmul.f32 %v7211, 0.7978846
  %v7244 = vmul.f32 %v7212, 0.7978846
  %v7245 = vmul.f32 %v7213, 0.7978846
  %v7246 = vmul.f32 %v7214, 0.7978846
  %v7247 = vmul.f32 %v7215, 0.7978846
  %v7248 = vmul.f32 %v7216, 0.7978846
  %v7249 = vmul.f32 %v7217, 0.7978846
  %v7250 = vmul.f32 %v7218, 0.7978846
  %v7251 = vmul.f32 %v7219, 0.7978846
  %v7252 = vmul.f32 %v7220, 0.7978846
  %v7253 = vmul.f32 %v7221, 0.7978846
  %v7254 = vmul.f32 %v7222, 0.7978846
  %v7255 = vmul.f32 %v7223, 0.7978846
  %v7256 = vmul.f32 %v7224, 0.7978846
  %v7257 = vmul.f32 %v7225, 0.7978846
  %v7258 = vmul.f32 %v7226, 0.7978846
  %v7259 = vmul.f32 %v7227, 0.7978846
  %v7260 = vmul.f32 %v7228, 0.7978846
  %v7261 = vmul.f32 %v7229, 0.7978846
  %v7262 = vmul.f32 %v7230, 0.7978846
  %v7263 = vmul.f32 %v7231, 0.7978846
  %v7264 = vmul.f32 %v7232, 0.7978846
  %v7265 = vmul.f32 %v7233, 0.7978846
  %v7266 = vmul.f32 %v7234, 0.7978846
  %v7267 = vmul.f32 %v7235, 0.7978846
  %v7268 = vmul.f32 %v7236, 0.7978846
  %v7269 = vmul.f32 %v7237, 0.7978846
  %v7270 = vtanh.pop %v7238
  %v7271 = vtanh.pop %v7239
  %v7272 = vtanh.pop %v7240
  %v7273 = vtanh.pop %v7241
  %v7274 = vtanh.pop %v7242
  %v7275 = vtanh.pop %v7243
  %v7276 = vtanh.pop %v7244
  %v7277 = vtanh.pop %v7245
  %v7278 = vtanh.pop %v7246
  %v7279 = vtanh.pop %v7247
  %v7280 = vtanh.pop %v7248
  %v7281 = vtanh.pop %v7249
  %v7282 = vtanh.pop %v7250
  %v7283 = vtanh.pop %v7251
  %v7284 = vtanh.pop %v7252
  %v7285 = vtanh.pop %v7253
  %v7286 = vtanh.pop %v7254
  %v7287 = vtanh.pop %v7255
  %v7288 = vtanh.pop %v7256
  %v7289 = vtanh.pop %v7257
  %v7290 = vtanh.pop %v7258
  %v7291 = vtanh.pop %v7259
  %v7292 = vtanh.pop %v7260
  %v7293 = vtanh.pop %v7261
  %v7294 = vtanh.pop %v7262
  %v7295 = vtanh.pop %v7263
  %v7296 = vtanh.pop %v7264
  %v7297 = vtanh.pop %v7265
  %v7298 = vtanh.pop %v7266
  %v7299 = vtanh.pop %v7267
  %v7300 = vtanh.pop %v7268
  %v7301 = vtanh.pop %v7269
  %v7302 = vadd.f32 %v7270, 1.0
  %v7303 = vadd.f32 %v7271, 1.0
  %v7304 = vadd.f32 %v7272, 1.0
  %v7305 = vadd.f32 %v7273, 1.0
  %v7306 = vadd.f32 %v7274, 1.0
  %v7307 = vadd.f32 %v7275, 1.0
  %v7308 = vadd.f32 %v7276, 1.0
  %v7309 = vadd.f32 %v7277, 1.0
  %v7310 = vadd.f32 %v7278, 1.0
  %v7311 = vadd.f32 %v7279, 1.0
  %v7312 = vadd.f32 %v7280, 1.0
  %v7313 = vadd.f32 %v7281, 1.0
  %v7314 = vadd.f32 %v7282, 1.0
  %v7315 = vadd.f32 %v7283, 1.0
  %v7316 = vadd.f32 %v7284, 1.0
  %v7317 = vadd.f32 %v7285, 1.0
  %v7318 = vadd.f32 %v7286, 1.0
  %v7319 = vadd.f32 %v7287, 1.0
  %v7320 = vadd.f32 %v7288, 1.0
  %v7321 = vadd.f32 %v7289, 1.0
  %v7322 = vadd.f32 %v7290, 1.0
  %v7323 = vadd.f32 %v7291, 1.0
  %v7324 = vadd.f32 %v7292, 1.0
  %v7325 = vadd.f32 %v7293, 1.0
  %v7326 = vadd.f32 %v7294, 1.0
  %v7327 = vadd.f32 %v7295, 1.0
  %v7328 = vadd.f32 %v7296, 1.0
  %v7329 = vadd.f32 %v7297, 1.0
  %v7330 = vadd.f32 %v7298, 1.0
  %v7331 = vadd.f32 %v7299, 1.0
  %v7332 = vadd.f32 %v7300, 1.0
  %v7333 = vadd.f32 %v7301, 1.0
  %v7334 = vmul.f32 %v7302, 0.5
  %v7335 = vmul.f32 %v7303, 0.5
  %v7336 = vmul.f32 %v7304, 0.5
  %v7337 = vmul.f32 %v7305, 0.5
  %v7338 = vmul.f32 %v7306, 0.5
  %v7339 = vmul.f32 %v7307, 0.5
  %v7340 = vmul.f32 %v7308, 0.5
  %v7341 = vmul.f32 %v7309, 0.5
  %v7342 = vmul.f32 %v7310, 0.5
  %v7343 = vmul.f32 %v7311, 0.5
  %v7344 = vmul.f32 %v7312, 0.5
  %v7345 = vmul.f32 %v7313, 0.5
  %v7346 = vmul.f32 %v7314, 0.5
  %v7347 = vmul.f32 %v7315, 0.5
  %v7348 = vmul.f32 %v7316, 0.5
  %v7349 = vmul.f32 %v7317, 0.5
  %v7350 = vmul.f32 %v7318, 0.5
  %v7351 = vmul.f32 %v7319, 0.5
  %v7352 = vmul.f32 %v7320, 0.5
  %v7353 = vmul.f32 %v7321, 0.5
  %v7354 = vmul.f32 %v7322, 0.5
  %v7355 = vmul.f32 %v7323, 0.5
  %v7356 = vmul.f32 %v7324, 0.5
  %v7357 = vmul.f32 %v7325, 0.5
  %v7358 = vmul.f32 %v7326, 0.5
  %v7359 = vmul.f32 %v7327, 0.5
  %v7360 = vmul.f32 %v7328, 0.5
  %v7361 = vmul.f32 %v7329, 0.5
  %v7362 = vmul.f32 %v7330, 0.5
  %v7363 = vmul.f32 %v7331, 0.5
  %v7364 = vmul.f32 %v7332, 0.5
  %v7365 = vmul.f32 %v7333, 0.5
  %v7366 = vmul.f32 %v6933, %v7334
  %v7367 = vmul.f32 %v6935, %v7335
  %v7368 = vmul.f32 %v6986, %v7336
  %v7369 = vmul.f32 %v6988, %v7337
  %v7370 = vmul.f32 %v7039, %v7338
  %v7371 = vmul.f32 %v7041, %v7339
  %v7372 = vmul.f32 %v7092, %v7340
  %v7373 = vmul.f32 %v7094, %v7341
  %v7374 = vmul.f32 %v6937, %v7342
  %v7375 = vmul.f32 %v6939, %v7343
  %v7376 = vmul.f32 %v6990, %v7344
  %v7377 = vmul.f32 %v6992, %v7345
  %v7378 = vmul.f32 %v7043, %v7346
  %v7379 = vmul.f32 %v7045, %v7347
  %v7380 = vmul.f32 %v7096, %v7348
  %v7381 = vmul.f32 %v7098, %v7349
  %v7382 = vmul.f32 %v6943, %v7350
  %v7383 = vmul.f32 %v6945, %v7351
  %v7384 = vmul.f32 %v6996, %v7352
  %v7385 = vmul.f32 %v6998, %v7353
  %v7386 = vmul.f32 %v7049, %v7354
  %v7387 = vmul.f32 %v7051, %v7355
  %v7388 = vmul.f32 %v7102, %v7356
  %v7389 = vmul.f32 %v7104, %v7357
  %v7390 = vmul.f32 %v6947, %v7358
  %v7391 = vmul.f32 %v6949, %v7359
  %v7392 = vmul.f32 %v7000, %v7360
  %v7393 = vmul.f32 %v7002, %v7361
  %v7394 = vmul.f32 %v7053, %v7362
  %v7395 = vmul.f32 %v7055, %v7363
  %v7396 = vmul.f32 %v7106, %v7364
  %v7397 = vmul.f32 %v7108, %v7365
  %s7398 = scalar_lea.vmem %s14, 1024
  %v7399 = vld [vmem:[%s7398] sm:$0xff]
  %v7400 = vld [vmem:[%s7398 + $0x8] sm:$0xff]
  %v7401 = vld [vmem:[%s7398 + $0x10] sm:$0xff]
  %v7402 = vld [vmem:[%s7398 + $0x18] sm:$0xff]
  %v7403 = vld [vmem:[%s7398 + $0x20] sm:$0xff]
  %v7404 = vld [vmem:[%s7398 + $0x28] sm:$0xff]
  %v7405 = vld [vmem:[%s7398 + $0x30] sm:$0xff]
  %v7406 = vld [vmem:[%s7398 + $0x38] sm:$0xff]
  %v7407 = vld [vmem:[%s7398 + $0x40] sm:$0xff]
  %v7408 = vld [vmem:[%s7398 + $0x48] sm:$0xff]
  %v7409 = vld [vmem:[%s7398 + $0x50] sm:$0xff]
  %v7410 = vld [vmem:[%s7398 + $0x58] sm:$0xff]
  %v7411 = vld [vmem:[%s7398 + $0x60] sm:$0xff]
  %v7412 = vld [vmem:[%s7398 + $0x68] sm:$0xff]
  %v7413 = vld [vmem:[%s7398 + $0x70] sm:$0xff]
  %v7414 = vld [vmem:[%s7398 + $0x78] sm:$0xff]
  %v7415 = vld [vmem:[%s7398 + $0x80] sm:$0xff]
  %v7416 = vld [vmem:[%s7398 + $0x88] sm:$0xff]
  %v7417 = vld [vmem:[%s7398 + $0x90] sm:$0xff]
  %v7418 = vld [vmem:[%s7398 + $0x98] sm:$0xff]
  %v7419 = vld [vmem:[%s7398 + $0xa0] sm:$0xff]
  %v7420 = vld [vmem:[%s7398 + $0xa8] sm:$0xff]
  %v7421 = vld [vmem:[%s7398 + $0xb0] sm:$0xff]
  %v7422 = vld [vmem:[%s7398 + $0xb8] sm:$0xff]
  %v7423 = vld [vmem:[%s7398 + $0xc0] sm:$0xff]
  %v7424 = vld [vmem:[%s7398 + $0xc8] sm:$0xff]
  %v7425 = vld [vmem:[%s7398 + $0xd0] sm:$0xff]
  %v7426 = vld [vmem:[%s7398 + $0xd8] sm:$0xff]
  %v7427 = vld [vmem:[%s7398 + $0xe0] sm:$0xff]
  %v7428 = vld [vmem:[%s7398 + $0xe8] sm:$0xff]
  %v7429 = vld [vmem:[%s7398 + $0xf0] sm:$0xff]
  %v7430 = vld [vmem:[%s7398 + $0xf8] sm:$0xff]
  %v7431 = vld [vmem:[%s7398 + $0x100] sm:$0xff]
  %v7432 = vld [vmem:[%s7398 + $0x108] sm:$0xff]
  %v7433 = vld [vmem:[%s7398 + $0x110] sm:$0xff]
  %v7434 = vld [vmem:[%s7398 + $0x118] sm:$0xff]
  %v7435 = vld [vmem:[%s7398 + $0x120] sm:$0xff]
  %v7436 = vld [vmem:[%s7398 + $0x128] sm:$0xff]
  %v7437 = vld [vmem:[%s7398 + $0x130] sm:$0xff]
  %v7438 = vld [vmem:[%s7398 + $0x138] sm:$0xff]
  %v7439 = vld [vmem:[%s7398 + $0x140] sm:$0xff]
  %v7440 = vld [vmem:[%s7398 + $0x148] sm:$0xff]
  %v7441 = vld [vmem:[%s7398 + $0x150] sm:$0xff]
  %v7442 = vld [vmem:[%s7398 + $0x158] sm:$0xff]
  %v7443 = vld [vmem:[%s7398 + $0x160] sm:$0xff]
  %v7444 = vld [vmem:[%s7398 + $0x168] sm:$0xff]
  %v7445 = vld [vmem:[%s7398 + $0x170] sm:$0xff]
  %v7446 = vld [vmem:[%s7398 + $0x178] sm:$0xff]
  %v7447 = vld [vmem:[%s7398 + $0x180] sm:$0xff]
  %v7448 = vld [vmem:[%s7398 + $0x188] sm:$0xff]
  %v7449 = vld [vmem:[%s7398 + $0x190] sm:$0xff]
  %v7450 = vld [vmem:[%s7398 + $0x198] sm:$0xff]
  %v7451 = vld [vmem:[%s7398 + $0x1a0] sm:$0xff]
  %v7452 = vld [vmem:[%s7398 + $0x1a8] sm:$0xff]
  %v7453 = vld [vmem:[%s7398 + $0x1b0] sm:$0xff]
  %v7454 = vld [vmem:[%s7398 + $0x1b8] sm:$0xff]
  %v7455 = vld [vmem:[%s7398 + $0x1c0] sm:$0xff]
  %v7456 = vld [vmem:[%s7398 + $0x1c8] sm:$0xff]
  %v7457 = vld [vmem:[%s7398 + $0x1d0] sm:$0xff]
  %v7458 = vld [vmem:[%s7398 + $0x1d8] sm:$0xff]
  %v7459 = vld [vmem:[%s7398 + $0x1e0] sm:$0xff]
  %v7460 = vld [vmem:[%s7398 + $0x1e8] sm:$0xff]
  %v7461 = vld [vmem:[%s7398 + $0x1f0] sm:$0xff]
  %v7462 = vld [vmem:[%s7398 + $0x1f8] sm:$0xff]
  %v7463 = vld [vmem:[%s7398 + $0x200] sm:$0xff]
  %v7464 = vld [vmem:[%s7398 + $0x208] sm:$0xff]
  %v7465 = vld [vmem:[%s7398 + $0x210] sm:$0xff]
  %v7466 = vld [vmem:[%s7398 + $0x218] sm:$0xff]
  %v7467 = vld [vmem:[%s7398 + $0x220] sm:$0xff]
  %v7468 = vld [vmem:[%s7398 + $0x228] sm:$0xff]
  %v7469 = vld [vmem:[%s7398 + $0x230] sm:$0xff]
  %v7470 = vld [vmem:[%s7398 + $0x238] sm:$0xff]
  %v7471 = vld [vmem:[%s7398 + $0x240] sm:$0xff]
  %v7472 = vld [vmem:[%s7398 + $0x248] sm:$0xff]
  %v7473 = vld [vmem:[%s7398 + $0x250] sm:$0xff]
  %v7474 = vld [vmem:[%s7398 + $0x258] sm:$0xff]
  %v7475 = vld [vmem:[%s7398 + $0x260] sm:$0xff]
  %v7476 = vld [vmem:[%s7398 + $0x268] sm:$0xff]
  %v7477 = vld [vmem:[%s7398 + $0x270] sm:$0xff]
  %v7478 = vld [vmem:[%s7398 + $0x278] sm:$0xff]
  %v7479 = vld [vmem:[%s7398 + $0x280] sm:$0xff]
  %v7480 = vld [vmem:[%s7398 + $0x288] sm:$0xff]
  %v7481 = vld [vmem:[%s7398 + $0x290] sm:$0xff]
  %v7482 = vld [vmem:[%s7398 + $0x298] sm:$0xff]
  %v7483 = vld [vmem:[%s7398 + $0x2a0] sm:$0xff]
  %v7484 = vld [vmem:[%s7398 + $0x2a8] sm:$0xff]
  %v7485 = vld [vmem:[%s7398 + $0x2b0] sm:$0xff]
  %v7486 = vld [vmem:[%s7398 + $0x2b8] sm:$0xff]
  %v7487 = vld [vmem:[%s7398 + $0x2c0] sm:$0xff]
  %v7488 = vld [vmem:[%s7398 + $0x2c8] sm:$0xff]
  %v7489 = vld [vmem:[%s7398 + $0x2d0] sm:$0xff]
  %v7490 = vld [vmem:[%s7398 + $0x2d8] sm:$0xff]
  %v7491 = vld [vmem:[%s7398 + $0x2e0] sm:$0xff]
  %v7492 = vld [vmem:[%s7398 + $0x2e8] sm:$0xff]
  %v7493 = vld [vmem:[%s7398 + $0x2f0] sm:$0xff]
  %v7494 = vld [vmem:[%s7398 + $0x2f8] sm:$0xff]
  %v7495 = vld [vmem:[%s7398 + $0x300] sm:$0xff]
  %v7496 = vld [vmem:[%s7398 + $0x308] sm:$0xff]
  %v7497 = vld [vmem:[%s7398 + $0x310] sm:$0xff]
  %v7498 = vld [vmem:[%s7398 + $0x318] sm:$0xff]
  %v7499 = vld [vmem:[%s7398 + $0x320] sm:$0xff]
  %v7500 = vld [vmem:[%s7398 + $0x328] sm:$0xff]
  %v7501 = vld [vmem:[%s7398 + $0x330] sm:$0xff]
  %v7502 = vld [vmem:[%s7398 + $0x338] sm:$0xff]
  %v7503 = vld [vmem:[%s7398 + $0x340] sm:$0xff]
  %v7504 = vld [vmem:[%s7398 + $0x348] sm:$0xff]
  %v7505 = vld [vmem:[%s7398 + $0x350] sm:$0xff]
  %v7506 = vld [vmem:[%s7398 + $0x358] sm:$0xff]
  %v7507 = vld [vmem:[%s7398 + $0x360] sm:$0xff]
  %v7508 = vld [vmem:[%s7398 + $0x368] sm:$0xff]
  %v7509 = vld [vmem:[%s7398 + $0x370] sm:$0xff]
  %v7510 = vld [vmem:[%s7398 + $0x378] sm:$0xff]
  %v7511 = vld [vmem:[%s7398 + $0x380] sm:$0xff]
  %v7512 = vld [vmem:[%s7398 + $0x388] sm:$0xff]
  %v7513 = vld [vmem:[%s7398 + $0x390] sm:$0xff]
  %v7514 = vld [vmem:[%s7398 + $0x398] sm:$0xff]
  %v7515 = vld [vmem:[%s7398 + $0x3a0] sm:$0xff]
  %v7516 = vld [vmem:[%s7398 + $0x3a8] sm:$0xff]
  %v7517 = vld [vmem:[%s7398 + $0x3b0] sm:$0xff]
  %v7518 = vld [vmem:[%s7398 + $0x3b8] sm:$0xff]
  %v7519 = vld [vmem:[%s7398 + $0x3c0] sm:$0xff]
  %v7520 = vld [vmem:[%s7398 + $0x3c8] sm:$0xff]
  %v7521 = vld [vmem:[%s7398 + $0x3d0] sm:$0xff]
  %v7522 = vld [vmem:[%s7398 + $0x3d8] sm:$0xff]
  %v7523 = vld [vmem:[%s7398 + $0x3e0] sm:$0xff]
  %v7524 = vld [vmem:[%s7398 + $0x3e8] sm:$0xff]
  %v7525 = vld [vmem:[%s7398 + $0x3f0] sm:$0xff]
  %v7526 = vld [vmem:[%s7398 + $0x3f8] sm:$0xff]
  %s7527 = scalar_lea.vmem %s15, 2
  %v7528 = vld [vmem:[%s7527] sm:$0x3]
  %v7529 = vpack.c.bf16 %v7374, %v7366
  %v7530 = vpack.c.bf16 %v7375, %v7367
  %v7531 = vpack.c.bf16 %v7376, %v7368
  %v7532 = vpack.c.bf16 %v7377, %v7369
  %v7533 = vpack.c.bf16 %v7378, %v7370
  %v7534 = vpack.c.bf16 %v7379, %v7371
  %v7535 = vpack.c.bf16 %v7380, %v7372
  %v7536 = vpack.c.bf16 %v7381, %v7373
  %v7537 = vpack.c.bf16 %v7390, %v7382
  %v7538 = vpack.c.bf16 %v7391, %v7383
  %v7539 = vpack.c.bf16 %v7392, %v7384
  %v7540 = vpack.c.bf16 %v7393, %v7385
  %v7541 = vpack.c.bf16 %v7394, %v7386
  %v7542 = vpack.c.bf16 %v7395, %v7387
  %v7543 = vpack.c.bf16 %v7396, %v7388
  %v7544 = vpack.c.bf16 %v7397, %v7389
  %v7546 = vlaneseq
  %v7547 = vshrl.u32 %v7546, 7
  %v7548 = vsub.s32 0, %v7547
  %v7549 = vrot.slane %v7528, %v7548
  %v7550 = vlaneseq
  %v7551 = vshrl.u32 %v7550, 7
  %v7552 = vsub.s32 1, %v7551
  %v7553 = vrot.slane %v7528, %v7552
  %v7684 = vunpack.c.l.b16 %v7399
  %v7685 = vunpack.c.h.b16 %v7399
  %v7686 = vunpack.c.l.b16 %v7400
  %v7687 = vunpack.c.h.b16 %v7400
  %v7688 = vunpack.c.l.b16 %v7401
  %v7689 = vunpack.c.h.b16 %v7401
  %v7690 = vunpack.c.l.b16 %v7402
  %v7691 = vunpack.c.h.b16 %v7402
  %v7692 = vunpack.c.l.b16 %v7403
  %v7693 = vunpack.c.h.b16 %v7403
  %v7694 = vunpack.c.l.b16 %v7404
  %v7695 = vunpack.c.h.b16 %v7404
  %v7696 = vunpack.c.l.b16 %v7405
  %v7697 = vunpack.c.h.b16 %v7405
  %v7698 = vunpack.c.l.b16 %v7406
  %v7699 = vunpack.c.h.b16 %v7406
  %v7700 = vunpack.c.l.b16 %v7407
  %v7701 = vunpack.c.h.b16 %v7407
  %v7702 = vunpack.c.l.b16 %v7408
  %v7703 = vunpack.c.h.b16 %v7408
  %v7704 = vunpack.c.l.b16 %v7409
  %v7705 = vunpack.c.h.b16 %v7409
  %v7706 = vunpack.c.l.b16 %v7410
  %v7707 = vunpack.c.h.b16 %v7410
  %v7708 = vunpack.c.l.b16 %v7411
  %v7709 = vunpack.c.h.b16 %v7411
  %v7710 = vunpack.c.l.b16 %v7412
  %v7711 = vunpack.c.h.b16 %v7412
  %v7712 = vunpack.c.l.b16 %v7413
  %v7713 = vunpack.c.h.b16 %v7413
  %v7714 = vunpack.c.l.b16 %v7414
  %v7715 = vunpack.c.h.b16 %v7414
  %v7716 = vunpack.c.l.b16 %v7415
  %v7717 = vunpack.c.h.b16 %v7415
  %v7718 = vunpack.c.l.b16 %v7416
  %v7719 = vunpack.c.h.b16 %v7416
  %v7720 = vunpack.c.l.b16 %v7417
  %v7721 = vunpack.c.h.b16 %v7417
  %v7722 = vunpack.c.l.b16 %v7418
  %v7723 = vunpack.c.h.b16 %v7418
  %v7724 = vunpack.c.l.b16 %v7419
  %v7725 = vunpack.c.h.b16 %v7419
  %v7726 = vunpack.c.l.b16 %v7420
  %v7727 = vunpack.c.h.b16 %v7420
  %v7728 = vunpack.c.l.b16 %v7421
  %v7729 = vunpack.c.h.b16 %v7421
  %v7730 = vunpack.c.l.b16 %v7422
  %v7731 = vunpack.c.h.b16 %v7422
  %v7732 = vunpack.c.l.b16 %v7423
  %v7733 = vunpack.c.h.b16 %v7423
  %v7734 = vunpack.c.l.b16 %v7424
  %v7735 = vunpack.c.h.b16 %v7424
  %v7736 = vunpack.c.l.b16 %v7425
  %v7737 = vunpack.c.h.b16 %v7425
  %v7738 = vunpack.c.l.b16 %v7426
  %v7739 = vunpack.c.h.b16 %v7426
  %v7740 = vunpack.c.l.b16 %v7427
  %v7741 = vunpack.c.h.b16 %v7427
  %v7742 = vunpack.c.l.b16 %v7428
  %v7743 = vunpack.c.h.b16 %v7428
  %v7744 = vunpack.c.l.b16 %v7429
  %v7745 = vunpack.c.h.b16 %v7429
  %v7746 = vunpack.c.l.b16 %v7430
  %v7747 = vunpack.c.h.b16 %v7430
  %v7748 = vunpack.c.l.b16 %v7431
  %v7749 = vunpack.c.h.b16 %v7431
  %v7750 = vunpack.c.l.b16 %v7432
  %v7751 = vunpack.c.h.b16 %v7432
  %v7752 = vunpack.c.l.b16 %v7433
  %v7753 = vunpack.c.h.b16 %v7433
  %v7754 = vunpack.c.l.b16 %v7434
  %v7755 = vunpack.c.h.b16 %v7434
  %v7756 = vunpack.c.l.b16 %v7435
  %v7757 = vunpack.c.h.b16 %v7435
  %v7758 = vunpack.c.l.b16 %v7436
  %v7759 = vunpack.c.h.b16 %v7436
  %v7760 = vunpack.c.l.b16 %v7437
  %v7761 = vunpack.c.h.b16 %v7437
  %v7762 = vunpack.c.l.b16 %v7438
  %v7763 = vunpack.c.h.b16 %v7438
  %v7764 = vunpack.c.l.b16 %v7439
  %v7765 = vunpack.c.h.b16 %v7439
  %v7766 = vunpack.c.l.b16 %v7440
  %v7767 = vunpack.c.h.b16 %v7440
  %v7768 = vunpack.c.l.b16 %v7441
  %v7769 = vunpack.c.h.b16 %v7441
  %v7770 = vunpack.c.l.b16 %v7442
  %v7771 = vunpack.c.h.b16 %v7442
  %v7772 = vunpack.c.l.b16 %v7443
  %v7773 = vunpack.c.h.b16 %v7443
  %v7774 = vunpack.c.l.b16 %v7444
  %v7775 = vunpack.c.h.b16 %v7444
  %v7776 = vunpack.c.l.b16 %v7445
  %v7777 = vunpack.c.h.b16 %v7445
  %v7778 = vunpack.c.l.b16 %v7446
  %v7779 = vunpack.c.h.b16 %v7446
  %v7780 = vunpack.c.l.b16 %v7447
  %v7781 = vunpack.c.h.b16 %v7447
  %v7782 = vunpack.c.l.b16 %v7448
  %v7783 = vunpack.c.h.b16 %v7448
  %v7784 = vunpack.c.l.b16 %v7449
  %v7785 = vunpack.c.h.b16 %v7449
  %v7786 = vunpack.c.l.b16 %v7450
  %v7787 = vunpack.c.h.b16 %v7450
  %v7788 = vunpack.c.l.b16 %v7451
  %v7789 = vunpack.c.h.b16 %v7451
  %v7790 = vunpack.c.l.b16 %v7452
  %v7791 = vunpack.c.h.b16 %v7452
  %v7792 = vunpack.c.l.b16 %v7453
  %v7793 = vunpack.c.h.b16 %v7453
  %v7794 = vunpack.c.l.b16 %v7454
  %v7795 = vunpack.c.h.b16 %v7454
  %v7796 = vunpack.c.l.b16 %v7455
  %v7797 = vunpack.c.h.b16 %v7455
  %v7798 = vunpack.c.l.b16 %v7456
  %v7799 = vunpack.c.h.b16 %v7456
  %v7800 = vunpack.c.l.b16 %v7457
  %v7801 = vunpack.c.h.b16 %v7457
  %v7802 = vunpack.c.l.b16 %v7458
  %v7803 = vunpack.c.h.b16 %v7458
  %v7804 = vunpack.c.l.b16 %v7459
  %v7805 = vunpack.c.h.b16 %v7459
  %v7806 = vunpack.c.l.b16 %v7460
  %v7807 = vunpack.c.h.b16 %v7460
  %v7808 = vunpack.c.l.b16 %v7461
  %v7809 = vunpack.c.h.b16 %v7461
  %v7810 = vunpack.c.l.b16 %v7462
  %v7811 = vunpack.c.h.b16 %v7462
  %v7812 = vunpack.c.l.b16 %v7463
  %v7813 = vunpack.c.h.b16 %v7463
  %v7814 = vunpack.c.l.b16 %v7464
  %v7815 = vunpack.c.h.b16 %v7464
  %v7816 = vunpack.c.l.b16 %v7465
  %v7817 = vunpack.c.h.b16 %v7465
  %v7818 = vunpack.c.l.b16 %v7466
  %v7819 = vunpack.c.h.b16 %v7466
  %v7820 = vunpack.c.l.b16 %v7467
  %v7821 = vunpack.c.h.b16 %v7467
  %v7822 = vunpack.c.l.b16 %v7468
  %v7823 = vunpack.c.h.b16 %v7468
  %v7824 = vunpack.c.l.b16 %v7469
  %v7825 = vunpack.c.h.b16 %v7469
  %v7826 = vunpack.c.l.b16 %v7470
  %v7827 = vunpack.c.h.b16 %v7470
  %v7828 = vunpack.c.l.b16 %v7471
  %v7829 = vunpack.c.h.b16 %v7471
  %v7830 = vunpack.c.l.b16 %v7472
  %v7831 = vunpack.c.h.b16 %v7472
  %v7832 = vunpack.c.l.b16 %v7473
  %v7833 = vunpack.c.h.b16 %v7473
  %v7834 = vunpack.c.l.b16 %v7474
  %v7835 = vunpack.c.h.b16 %v7474
  %v7836 = vunpack.c.l.b16 %v7475
  %v7837 = vunpack.c.h.b16 %v7475
  %v7838 = vunpack.c.l.b16 %v7476
  %v7839 = vunpack.c.h.b16 %v7476
  %v7840 = vunpack.c.l.b16 %v7477
  %v7841 = vunpack.c.h.b16 %v7477
  %v7842 = vunpack.c.l.b16 %v7478
  %v7843 = vunpack.c.h.b16 %v7478
  %v7844 = vunpack.c.l.b16 %v7479
  %v7845 = vunpack.c.h.b16 %v7479
  %v7846 = vunpack.c.l.b16 %v7480
  %v7847 = vunpack.c.h.b16 %v7480
  %v7848 = vunpack.c.l.b16 %v7481
  %v7849 = vunpack.c.h.b16 %v7481
  %v7850 = vunpack.c.l.b16 %v7482
  %v7851 = vunpack.c.h.b16 %v7482
  %v7852 = vunpack.c.l.b16 %v7483
  %v7853 = vunpack.c.h.b16 %v7483
  %v7854 = vunpack.c.l.b16 %v7484
  %v7855 = vunpack.c.h.b16 %v7484
  %v7856 = vunpack.c.l.b16 %v7485
  %v7857 = vunpack.c.h.b16 %v7485
  %v7858 = vunpack.c.l.b16 %v7486
  %v7859 = vunpack.c.h.b16 %v7486
  %v7860 = vunpack.c.l.b16 %v7487
  %v7861 = vunpack.c.h.b16 %v7487
  %v7862 = vunpack.c.l.b16 %v7488
  %v7863 = vunpack.c.h.b16 %v7488
  %v7864 = vunpack.c.l.b16 %v7489
  %v7865 = vunpack.c.h.b16 %v7489
  %v7866 = vunpack.c.l.b16 %v7490
  %v7867 = vunpack.c.h.b16 %v7490
  %v7868 = vunpack.c.l.b16 %v7491
  %v7869 = vunpack.c.h.b16 %v7491
  %v7870 = vunpack.c.l.b16 %v7492
  %v7871 = vunpack.c.h.b16 %v7492
  %v7872 = vunpack.c.l.b16 %v7493
  %v7873 = vunpack.c.h.b16 %v7493
  %v7874 = vunpack.c.l.b16 %v7494
  %v7875 = vunpack.c.h.b16 %v7494
  %v7876 = vunpack.c.l.b16 %v7495
  %v7877 = vunpack.c.h.b16 %v7495
  %v7878 = vunpack.c.l.b16 %v7496
  %v7879 = vunpack.c.h.b16 %v7496
  %v7880 = vunpack.c.l.b16 %v7497
  %v7881 = vunpack.c.h.b16 %v7497
  %v7882 = vunpack.c.l.b16 %v7498
  %v7883 = vunpack.c.h.b16 %v7498
  %v7884 = vunpack.c.l.b16 %v7499
  %v7885 = vunpack.c.h.b16 %v7499
  %v7886 = vunpack.c.l.b16 %v7500
  %v7887 = vunpack.c.h.b16 %v7500
  %v7888 = vunpack.c.l.b16 %v7501
  %v7889 = vunpack.c.h.b16 %v7501
  %v7890 = vunpack.c.l.b16 %v7502
  %v7891 = vunpack.c.h.b16 %v7502
  %v7892 = vunpack.c.l.b16 %v7503
  %v7893 = vunpack.c.h.b16 %v7503
  %v7894 = vunpack.c.l.b16 %v7504
  %v7895 = vunpack.c.h.b16 %v7504
  %v7896 = vunpack.c.l.b16 %v7505
  %v7897 = vunpack.c.h.b16 %v7505
  %v7898 = vunpack.c.l.b16 %v7506
  %v7899 = vunpack.c.h.b16 %v7506
  %v7900 = vunpack.c.l.b16 %v7507
  %v7901 = vunpack.c.h.b16 %v7507
  %v7902 = vunpack.c.l.b16 %v7508
  %v7903 = vunpack.c.h.b16 %v7508
  %v7904 = vunpack.c.l.b16 %v7509
  %v7905 = vunpack.c.h.b16 %v7509
  %v7906 = vunpack.c.l.b16 %v7510
  %v7907 = vunpack.c.h.b16 %v7510
  %v7908 = vunpack.c.l.b16 %v7511
  %v7909 = vunpack.c.h.b16 %v7511
  %v7910 = vunpack.c.l.b16 %v7512
  %v7911 = vunpack.c.h.b16 %v7512
  %v7912 = vunpack.c.l.b16 %v7513
  %v7913 = vunpack.c.h.b16 %v7513
  %v7914 = vunpack.c.l.b16 %v7514
  %v7915 = vunpack.c.h.b16 %v7514
  %v7916 = vunpack.c.l.b16 %v7515
  %v7917 = vunpack.c.h.b16 %v7515
  %v7918 = vunpack.c.l.b16 %v7516
  %v7919 = vunpack.c.h.b16 %v7516
  %v7920 = vunpack.c.l.b16 %v7517
  %v7921 = vunpack.c.h.b16 %v7517
  %v7922 = vunpack.c.l.b16 %v7518
  %v7923 = vunpack.c.h.b16 %v7518
  %v7924 = vunpack.c.l.b16 %v7519
  %v7925 = vunpack.c.h.b16 %v7519
  %v7926 = vunpack.c.l.b16 %v7520
  %v7927 = vunpack.c.h.b16 %v7520
  %v7928 = vunpack.c.l.b16 %v7521
  %v7929 = vunpack.c.h.b16 %v7521
  %v7930 = vunpack.c.l.b16 %v7522
  %v7931 = vunpack.c.h.b16 %v7522
  %v7932 = vunpack.c.l.b16 %v7523
  %v7933 = vunpack.c.h.b16 %v7523
  %v7934 = vunpack.c.l.b16 %v7524
  %v7935 = vunpack.c.h.b16 %v7524
  %v7936 = vunpack.c.l.b16 %v7525
  %v7937 = vunpack.c.h.b16 %v7525
  %v7938 = vunpack.c.l.b16 %v7526
  %v7939 = vunpack.c.h.b16 %v7526
  %v7940 = vpack.c.b16 %v7686, %v7684
  %v7941 = vpack.c.b16 %v7687, %v7685
  %v7942 = vpack.c.b16 %v7690, %v7688
  %v7943 = vpack.c.b16 %v7691, %v7689
  %v7944 = vpack.c.b16 %v7694, %v7692
  %v7945 = vpack.c.b16 %v7695, %v7693
  %v7946 = vpack.c.b16 %v7698, %v7696
  %v7947 = vpack.c.b16 %v7699, %v7697
  %v7948 = vpack.c.b16 %v7702, %v7700
  %v7949 = vpack.c.b16 %v7703, %v7701
  %v7950 = vpack.c.b16 %v7706, %v7704
  %v7951 = vpack.c.b16 %v7707, %v7705
  %v7952 = vpack.c.b16 %v7710, %v7708
  %v7953 = vpack.c.b16 %v7711, %v7709
  %v7954 = vpack.c.b16 %v7714, %v7712
  %v7955 = vpack.c.b16 %v7715, %v7713
  %v7956 = vpack.c.b16 %v7718, %v7716
  %v7957 = vpack.c.b16 %v7719, %v7717
  %v7958 = vpack.c.b16 %v7722, %v7720
  %v7959 = vpack.c.b16 %v7723, %v7721
  %v7960 = vpack.c.b16 %v7726, %v7724
  %v7961 = vpack.c.b16 %v7727, %v7725
  %v7962 = vpack.c.b16 %v7730, %v7728
  %v7963 = vpack.c.b16 %v7731, %v7729
  %v7964 = vpack.c.b16 %v7734, %v7732
  %v7965 = vpack.c.b16 %v7735, %v7733
  %v7966 = vpack.c.b16 %v7738, %v7736
  %v7967 = vpack.c.b16 %v7739, %v7737
  %v7968 = vpack.c.b16 %v7742, %v7740
  %v7969 = vpack.c.b16 %v7743, %v7741
  %v7970 = vpack.c.b16 %v7746, %v7744
  %v7971 = vpack.c.b16 %v7747, %v7745
  %v7972 = vpack.c.b16 %v7750, %v7748
  %v7973 = vpack.c.b16 %v7751, %v7749
  %v7974 = vpack.c.b16 %v7754, %v7752
  %v7975 = vpack.c.b16 %v7755, %v7753
  %v7976 = vpack.c.b16 %v7758, %v7756
  %v7977 = vpack.c.b16 %v7759, %v7757
  %v7978 = vpack.c.b16 %v7762, %v7760
  %v7979 = vpack.c.b16 %v7763, %v7761
  %v7980 = vpack.c.b16 %v7766, %v7764
  %v7981 = vpack.c.b16 %v7767, %v7765
  %v7982 = vpack.c.b16 %v7770, %v7768
  %v7983 = vpack.c.b16 %v7771, %v7769
  %v7984 = vpack.c.b16 %v7774, %v7772
  %v7985 = vpack.c.b16 %v7775, %v7773
  %v7986 = vpack.c.b16 %v7778, %v7776
  %v7987 = vpack.c.b16 %v7779, %v7777
  %v7988 = vpack.c.b16 %v7782, %v7780
  %v7989 = vpack.c.b16 %v7783, %v7781
  %v7990 = vpack.c.b16 %v7786, %v7784
  %v7991 = vpack.c.b16 %v7787, %v7785
  %v7992 = vpack.c.b16 %v7790, %v7788
  %v7993 = vpack.c.b16 %v7791, %v7789
  %v7994 = vpack.c.b16 %v7794, %v7792
  %v7995 = vpack.c.b16 %v7795, %v7793
  %v7996 = vpack.c.b16 %v7798, %v7796
  %v7997 = vpack.c.b16 %v7799, %v7797
  %v7998 = vpack.c.b16 %v7802, %v7800
  %v7999 = vpack.c.b16 %v7803, %v7801
  %v8000 = vpack.c.b16 %v7806, %v7804
  %v8001 = vpack.c.b16 %v7807, %v7805
  %v8002 = vpack.c.b16 %v7810, %v7808
  %v8003 = vpack.c.b16 %v7811, %v7809
  %v8004 = vpack.c.b16 %v7814, %v7812
  %v8005 = vpack.c.b16 %v7815, %v7813
  %v8006 = vpack.c.b16 %v7818, %v7816
  %v8007 = vpack.c.b16 %v7819, %v7817
  %v8008 = vpack.c.b16 %v7822, %v7820
  %v8009 = vpack.c.b16 %v7823, %v7821
  %v8010 = vpack.c.b16 %v7826, %v7824
  %v8011 = vpack.c.b16 %v7827, %v7825
  %v8012 = vpack.c.b16 %v7830, %v7828
  %v8013 = vpack.c.b16 %v7831, %v7829
  %v8014 = vpack.c.b16 %v7834, %v7832
  %v8015 = vpack.c.b16 %v7835, %v7833
  %v8016 = vpack.c.b16 %v7838, %v7836
  %v8017 = vpack.c.b16 %v7839, %v7837
  %v8018 = vpack.c.b16 %v7842, %v7840
  %v8019 = vpack.c.b16 %v7843, %v7841
  %v8020 = vpack.c.b16 %v7846, %v7844
  %v8021 = vpack.c.b16 %v7847, %v7845
  %v8022 = vpack.c.b16 %v7850, %v7848
  %v8023 = vpack.c.b16 %v7851, %v7849
  %v8024 = vpack.c.b16 %v7854, %v7852
  %v8025 = vpack.c.b16 %v7855, %v7853
  %v8026 = vpack.c.b16 %v7858, %v7856
  %v8027 = vpack.c.b16 %v7859, %v7857
  %v8028 = vpack.c.b16 %v7862, %v7860
  %v8029 = vpack.c.b16 %v7863, %v7861
  %v8030 = vpack.c.b16 %v7866, %v7864
  %v8031 = vpack.c.b16 %v7867, %v7865
  %v8032 = vpack.c.b16 %v7870, %v7868
  %v8033 = vpack.c.b16 %v7871, %v7869
  %v8034 = vpack.c.b16 %v7874, %v7872
  %v8035 = vpack.c.b16 %v7875, %v7873
  %v8036 = vpack.c.b16 %v7878, %v7876
  %v8037 = vpack.c.b16 %v7879, %v7877
  %v8038 = vpack.c.b16 %v7882, %v7880
  %v8039 = vpack.c.b16 %v7883, %v7881
  %v8040 = vpack.c.b16 %v7886, %v7884
  %v8041 = vpack.c.b16 %v7887, %v7885
  %v8042 = vpack.c.b16 %v7890, %v7888
  %v8043 = vpack.c.b16 %v7891, %v7889
  %v8044 = vpack.c.b16 %v7894, %v7892
  %v8045 = vpack.c.b16 %v7895, %v7893
  %v8046 = vpack.c.b16 %v7898, %v7896
  %v8047 = vpack.c.b16 %v7899, %v7897
  %v8048 = vpack.c.b16 %v7902, %v7900
  %v8049 = vpack.c.b16 %v7903, %v7901
  %v8050 = vpack.c.b16 %v7906, %v7904
  %v8051 = vpack.c.b16 %v7907, %v7905
  %v8052 = vpack.c.b16 %v7910, %v7908
  %v8053 = vpack.c.b16 %v7911, %v7909
  %v8054 = vpack.c.b16 %v7914, %v7912
  %v8055 = vpack.c.b16 %v7915, %v7913
  %v8056 = vpack.c.b16 %v7918, %v7916
  %v8057 = vpack.c.b16 %v7919, %v7917
  %v8058 = vpack.c.b16 %v7922, %v7920
  %v8059 = vpack.c.b16 %v7923, %v7921
  %v8060 = vpack.c.b16 %v7926, %v7924
  %v8061 = vpack.c.b16 %v7927, %v7925
  %v8062 = vpack.c.b16 %v7930, %v7928
  %v8063 = vpack.c.b16 %v7931, %v7929
  %v8064 = vpack.c.b16 %v7934, %v7932
  %v8065 = vpack.c.b16 %v7935, %v7933
  %v8066 = vpack.c.b16 %v7938, %v7936
  %v8067 = vpack.c.b16 %v7939, %v7937
  %8196 = vmatprep.subr.bf16.mxu0 %v7941
  %8197 = vmatpush1.bf16.msra.mxu0 %v7940
  %8198 = vmatprep.subr.bf16.mxu0 %v7943
  %8199 = vmatpush1.bf16.msra.mxu0 %v7942
  %8200 = vmatprep.subr.bf16.mxu0 %v7945
  %8201 = vmatpush1.bf16.msra.mxu0 %v7944
  %8202 = vmatprep.subr.bf16.mxu0 %v7947
  %8203 = vmatpush1.bf16.msra.mxu0 %v7946
  %8204 = vmatprep.subr.bf16.mxu0 %v7949
  %8205 = vmatpush1.bf16.msra.mxu0 %v7948
  %8206 = vmatprep.subr.bf16.mxu0 %v7951
  %8207 = vmatpush1.bf16.msra.mxu0 %v7950
  %8208 = vmatprep.subr.bf16.mxu0 %v7953
  %8209 = vmatpush1.bf16.msra.mxu0 %v7952
  %8210 = vmatprep.subr.bf16.mxu0 %v7955
  %8211 = vmatpush1.bf16.msra.mxu0 %v7954
  %8212 = vmatprep.subr.bf16.mxu0 %v7957
  %8213 = vmatpush1.bf16.msra.mxu0 %v7956
  %8214 = vmatprep.subr.bf16.mxu0 %v7959
  %8215 = vmatpush1.bf16.msra.mxu0 %v7958
  %8216 = vmatprep.subr.bf16.mxu0 %v7961
  %8217 = vmatpush1.bf16.msra.mxu0 %v7960
  %8218 = vmatprep.subr.bf16.mxu0 %v7963
  %8219 = vmatpush1.bf16.msra.mxu0 %v7962
  %8220 = vmatprep.subr.bf16.mxu0 %v7965
  %8221 = vmatpush1.bf16.msra.mxu0 %v7964
  %8222 = vmatprep.subr.bf16.mxu0 %v7967
  %8223 = vmatpush1.bf16.msra.mxu0 %v7966
  %8224 = vmatprep.subr.bf16.mxu0 %v7969
  %8225 = vmatpush1.bf16.msra.mxu0 %v7968
  %8226 = vmatprep.subr.bf16.mxu0 %v7971
  %8227 = vmatpush1.bf16.msra.mxu0 %v7970
  %8228 = vmatprep.mubr.bf16.mxu0 %v7530
  %8229 = vmatmul.mubr.bf16.gmra.mrb[0].mxu0 %v7529
  %v8230 = vpop.f32.mrb[0].mxu0
  %v8231 = vadd.f32 %v7549, %v8230
  %v8232 = vpop.f32.mrb[0].mxu0
  %v8233 = vadd.f32 %v7553, %v8232
  %v8234 = vpop.f32.mrb[0].mxu0
  %v8235 = vadd.f32 %v7549, %v8234
  %v8236 = vpop.f32.mrb[0].mxu0
  %v8237 = vadd.f32 %v7553, %v8236
  %8238 = vmatprep.mubr.bf16.mxu0 %v7538
  %8239 = vmatmul.mubr.bf16.gmra.mrb[0].mxu0 %v7537
  %v8240 = vpop.f32.mrb[0].mxu0
  %v8241 = vadd.f32 %v7549, %v8240
  %v8242 = vpop.f32.mrb[0].mxu0
  %v8243 = vadd.f32 %v7553, %v8242
  %v8244 = vpop.f32.mrb[0].mxu0
  %v8245 = vadd.f32 %v7549, %v8244
  %v8246 = vpop.f32.mrb[0].mxu0
  %v8247 = vadd.f32 %v7553, %v8246
  %8248 = vdwg.mxu0
  %8249 = vmatprep.subr.bf16.mxu0 %v7973
  %8250 = vmatpush1.bf16.msra.mxu0 %v7972
  %8251 = vmatprep.subr.bf16.mxu0 %v7975
  %8252 = vmatpush1.bf16.msra.mxu0 %v7974
  %8253 = vmatprep.subr.bf16.mxu0 %v7977
  %8254 = vmatpush1.bf16.msra.mxu0 %v7976
  %8255 = vmatprep.subr.bf16.mxu0 %v7979
  %8256 = vmatpush1.bf16.msra.mxu0 %v7978
  %8257 = vmatprep.subr.bf16.mxu0 %v7981
  %8258 = vmatpush1.bf16.msra.mxu0 %v7980
  %8259 = vmatprep.subr.bf16.mxu0 %v7983
  %8260 = vmatpush1.bf16.msra.mxu0 %v7982
  %8261 = vmatprep.subr.bf16.mxu0 %v7985
  %8262 = vmatpush1.bf16.msra.mxu0 %v7984
  %8263 = vmatprep.subr.bf16.mxu0 %v7987
  %8264 = vmatpush1.bf16.msra.mxu0 %v7986
  %8265 = vmatprep.subr.bf16.mxu0 %v7989
  %8266 = vmatpush1.bf16.msra.mxu0 %v7988
  %8267 = vmatprep.subr.bf16.mxu0 %v7991
  %8268 = vmatpush1.bf16.msra.mxu0 %v7990
  %8269 = vmatprep.subr.bf16.mxu0 %v7993
  %8270 = vmatpush1.bf16.msra.mxu0 %v7992
  %8271 = vmatprep.subr.bf16.mxu0 %v7995
  %8272 = vmatpush1.bf16.msra.mxu0 %v7994
  %8273 = vmatprep.subr.bf16.mxu0 %v7997
  %8274 = vmatpush1.bf16.msra.mxu0 %v7996
  %8275 = vmatprep.subr.bf16.mxu0 %v7999
  %8276 = vmatpush1.bf16.msra.mxu0 %v7998
  %8277 = vmatprep.subr.bf16.mxu0 %v8001
  %8278 = vmatpush1.bf16.msra.mxu0 %v8000
  %8279 = vmatprep.subr.bf16.mxu0 %v8003
  %8280 = vmatpush1.bf16.msra.mxu0 %v8002
  %8281 = vmatprep.mubr.bf16.mxu0 %v7532
  %8282 = vmatmul.mubr.bf16.gmra.mrb[0].mxu0 %v7531
  %v8283 = vpop.f32.mrb[0].mxu0
  %v8284 = vadd.f32 %v8231, %v8283
  %v8285 = vpop.f32.mrb[0].mxu0
  %v8286 = vadd.f32 %v8233, %v8285
  %v8287 = vpop.f32.mrb[0].mxu0
  %v8288 = vadd.f32 %v8235, %v8287
  %v8289 = vpop.f32.mrb[0].mxu0
  %v8290 = vadd.f32 %v8237, %v8289
  %8291 = vmatprep.mubr.bf16.mxu0 %v7540
  %8292 = vmatmul.mubr.bf16.gmra.mrb[0].mxu0 %v7539
  %v8293 = vpop.f32.mrb[0].mxu0
  %v8294 = vadd.f32 %v8241, %v8293
  %v8295 = vpop.f32.mrb[0].mxu0
  %v8296 = vadd.f32 %v8243, %v8295
  %v8297 = vpop.f32.mrb[0].mxu0
  %v8298 = vadd.f32 %v8245, %v8297
  %v8299 = vpop.f32.mrb[0].mxu0
  %v8300 = vadd.f32 %v8247, %v8299
  %8301 = vdwg.mxu0
  %8302 = vmatprep.subr.bf16.mxu0 %v8005
  %8303 = vmatpush1.bf16.msra.mxu0 %v8004
  %8304 = vmatprep.subr.bf16.mxu0 %v8007
  %8305 = vmatpush1.bf16.msra.mxu0 %v8006
  %8306 = vmatprep.subr.bf16.mxu0 %v8009
  %8307 = vmatpush1.bf16.msra.mxu0 %v8008
  %8308 = vmatprep.subr.bf16.mxu0 %v8011
  %8309 = vmatpush1.bf16.msra.mxu0 %v8010
  %8310 = vmatprep.subr.bf16.mxu0 %v8013
  %8311 = vmatpush1.bf16.msra.mxu0 %v8012
  %8312 = vmatprep.subr.bf16.mxu0 %v8015
  %8313 = vmatpush1.bf16.msra.mxu0 %v8014
  %8314 = vmatprep.subr.bf16.mxu0 %v8017
  %8315 = vmatpush1.bf16.msra.mxu0 %v8016
  %8316 = vmatprep.subr.bf16.mxu0 %v8019
  %8317 = vmatpush1.bf16.msra.mxu0 %v8018
  %8318 = vmatprep.subr.bf16.mxu0 %v8021
  %8319 = vmatpush1.bf16.msra.mxu0 %v8020
  %8320 = vmatprep.subr.bf16.mxu0 %v8023
  %8321 = vmatpush1.bf16.msra.mxu0 %v8022
  %8322 = vmatprep.subr.bf16.mxu0 %v8025
  %8323 = vmatpush1.bf16.msra.mxu0 %v8024
  %8324 = vmatprep.subr.bf16.mxu0 %v8027
  %8325 = vmatpush1.bf16.msra.mxu0 %v8026
  %8326 = vmatprep.subr.bf16.mxu0 %v8029
  %8327 = vmatpush1.bf16.msra.mxu0 %v8028
  %8328 = vmatprep.subr.bf16.mxu0 %v8031
  %8329 = vmatpush1.bf16.msra.mxu0 %v8030
  %8330 = vmatprep.subr.bf16.mxu0 %v8033
  %8331 = vmatpush1.bf16.msra.mxu0 %v8032
  %8332 = vmatprep.subr.bf16.mxu0 %v8035
  %8333 = vmatpush1.bf16.msra.mxu0 %v8034
  %8334 = vmatprep.mubr.bf16.mxu0 %v7534
  %8335 = vmatmul.mubr.bf16.gmra.mrb[0].mxu0 %v7533
  %v8336 = vpop.f32.mrb[0].mxu0
  %v8337 = vadd.f32 %v8284, %v8336
  %v8338 = vpop.f32.mrb[0].mxu0
  %v8339 = vadd.f32 %v8286, %v8338
  %v8340 = vpop.f32.mrb[0].mxu0
  %v8341 = vadd.f32 %v8288, %v8340
  %v8342 = vpop.f32.mrb[0].mxu0
  %v8343 = vadd.f32 %v8290, %v8342
  %8344 = vmatprep.mubr.bf16.mxu0 %v7542
  %8345 = vmatmul.mubr.bf16.gmra.mrb[0].mxu0 %v7541
  %v8346 = vpop.f32.mrb[0].mxu0
  %v8347 = vadd.f32 %v8294, %v8346
  %v8348 = vpop.f32.mrb[0].mxu0
  %v8349 = vadd.f32 %v8296, %v8348
  %v8350 = vpop.f32.mrb[0].mxu0
  %v8351 = vadd.f32 %v8298, %v8350
  %v8352 = vpop.f32.mrb[0].mxu0
  %v8353 = vadd.f32 %v8300, %v8352
  %8354 = vdwg.mxu0
  %8355 = vmatprep.subr.bf16.mxu0 %v8037
  %8356 = vmatpush1.bf16.msra.mxu0 %v8036
  %8357 = vmatprep.subr.bf16.mxu0 %v8039
  %8358 = vmatpush1.bf16.msra.mxu0 %v8038
  %8359 = vmatprep.subr.bf16.mxu0 %v8041
  %8360 = vmatpush1.bf16.msra.mxu0 %v8040
  %8361 = vmatprep.subr.bf16.mxu0 %v8043
  %8362 = vmatpush1.bf16.msra.mxu0 %v8042
  %8363 = vmatprep.subr.bf16.mxu0 %v8045
  %8364 = vmatpush1.bf16.msra.mxu0 %v8044
  %8365 = vmatprep.subr.bf16.mxu0 %v8047
  %8366 = vmatpush1.bf16.msra.mxu0 %v8046
  %8367 = vmatprep.subr.bf16.mxu0 %v8049
  %8368 = vmatpush1.bf16.msra.mxu0 %v8048
  %8369 = vmatprep.subr.bf16.mxu0 %v8051
  %8370 = vmatpush1.bf16.msra.mxu0 %v8050
  %8371 = vmatprep.subr.bf16.mxu0 %v8053
  %8372 = vmatpush1.bf16.msra.mxu0 %v8052
  %8373 = vmatprep.subr.bf16.mxu0 %v8055
  %8374 = vmatpush1.bf16.msra.mxu0 %v8054
  %8375 = vmatprep.subr.bf16.mxu0 %v8057
  %8376 = vmatpush1.bf16.msra.mxu0 %v8056
  %8377 = vmatprep.subr.bf16.mxu0 %v8059
  %8378 = vmatpush1.bf16.msra.mxu0 %v8058
  %8379 = vmatprep.subr.bf16.mxu0 %v8061
  %8380 = vmatpush1.bf16.msra.mxu0 %v8060
  %8381 = vmatprep.subr.bf16.mxu0 %v8063
  %8382 = vmatpush1.bf16.msra.mxu0 %v8062
  %8383 = vmatprep.subr.bf16.mxu0 %v8065
  %8384 = vmatpush1.bf16.msra.mxu0 %v8064
  %8385 = vmatprep.subr.bf16.mxu0 %v8067
  %8386 = vmatpush1.bf16.msra.mxu0 %v8066
  %8387 = vmatprep.mubr.bf16.mxu0 %v7536
  %8388 = vmatmul.mubr.bf16.gmra.mrb[0].mxu0 %v7535
  %v8389 = vpop.f32.mrb[0].mxu0
  %v8390 = vadd.f32 %v8337, %v8389
  %v8391 = vpop.f32.mrb[0].mxu0
  %v8392 = vadd.f32 %v8339, %v8391
  %v8393 = vpop.f32.mrb[0].mxu0
  %v8394 = vadd.f32 %v8341, %v8393
  %v8395 = vpop.f32.mrb[0].mxu0
  %v8396 = vadd.f32 %v8343, %v8395
  %8397 = vmatprep.mubr.bf16.mxu0 %v7544
  %8398 = vmatmul.mubr.bf16.gmra.mrb[0].mxu0 %v7543
  %v8399 = vpop.f32.mrb[0].mxu0
  %v8400 = vadd.f32 %v8347, %v8399
  %v8401 = vpop.f32.mrb[0].mxu0
  %v8402 = vadd.f32 %v8349, %v8401
  %v8403 = vpop.f32.mrb[0].mxu0
  %v8404 = vadd.f32 %v8351, %v8403
  %v8405 = vpop.f32.mrb[0].mxu0
  %v8406 = vadd.f32 %v8353, %v8405
  %8407 = vdwg.mxu0
  %v8408 = vadd.f32 %v5968, %v8390
  %v8409 = vadd.f32 %v5969, %v8392
  %v8410 = vadd.f32 %v5970, %v8394
  %v8411 = vadd.f32 %v5971, %v8396
  %v8412 = vadd.f32 %v5972, %v8400
  %v8413 = vadd.f32 %v5973, %v8402
  %v8414 = vadd.f32 %v5974, %v8404
  %v8415 = vadd.f32 %v5975, %v8406
  %v8416 = vld [vmem:[%s16] sm:$0x3]
  %v8417 = vld [vmem:[%s17] sm:$0x3]
  %v8418 = vadd.f32 %v8408, %v8409
  %8419 = vadd.xlane.f32.xlu0 %v8418
  %v8420 = vpop.xlane.xlu0 %8419
  %v8421 = vadd.f32 %v8410, %v8411
  %8422 = vadd.xlane.f32.xlu0 %v8421
  %v8423 = vpop.xlane.xlu0 %8422
  %v8424 = vadd.f32 %v8412, %v8413
  %8425 = vadd.xlane.f32.xlu0 %v8424
  %v8426 = vpop.xlane.xlu0 %8425
  %v8427 = vadd.f32 %v8414, %v8415
  %8428 = vadd.xlane.f32.xlu0 %v8427
  %v8429 = vpop.xlane.xlu0 %8428
  %v8430 = vmul.f32 %v8420, %v340
  %v8431 = vmul.f32 %v8423, %v340
  %v8432 = vmul.f32 %v8426, %v340
  %v8433 = vmul.f32 %v8429, %v340
  %v8434 = vsub.f32 %v8408, %v8430
  %v8435 = vsub.f32 %v8409, %v8430
  %v8436 = vsub.f32 %v8410, %v8431
  %v8437 = vsub.f32 %v8411, %v8431
  %v8438 = vsub.f32 %v8412, %v8432
  %v8439 = vsub.f32 %v8413, %v8432
  %v8440 = vsub.f32 %v8414, %v8433
  %v8441 = vsub.f32 %v8415, %v8433
  %v8442 = vmul.f32 %v8434, %v8434
  %v8443 = vmul.f32 %v8435, %v8435
  %v8444 = vmul.f32 %v8436, %v8436
  %v8445 = vmul.f32 %v8437, %v8437
  %v8446 = vmul.f32 %v8438, %v8438
  %v8447 = vmul.f32 %v8439, %v8439
  %v8448 = vmul.f32 %v8440, %v8440
  %v8449 = vmul.f32 %v8441, %v8441
  %v8450 = vadd.f32 %v8442, %v8443
  %8451 = vadd.xlane.f32.xlu0 %v8450
  %v8452 = vpop.xlane.xlu0 %8451
  %v8453 = vadd.f32 %v8444, %v8445
  %8454 = vadd.xlane.f32.xlu0 %v8453
  %v8455 = vpop.xlane.xlu0 %8454
  %v8456 = vadd.f32 %v8446, %v8447
  %8457 = vadd.xlane.f32.xlu0 %v8456
  %v8458 = vpop.xlane.xlu0 %8457
  %v8459 = vadd.f32 %v8448, %v8449
  %8460 = vadd.xlane.f32.xlu0 %v8459
  %v8461 = vpop.xlane.xlu0 %8460
  %v8462 = vmul.f32 %v8452, %v340
  %v8463 = vmul.f32 %v8455, %v340
  %v8464 = vmul.f32 %v8458, %v340
  %v8465 = vmul.f32 %v8461, %v340
  %v8466 = vadd.f32 %v8462, 1e-06
  %v8467 = vadd.f32 %v8463, 1e-06
  %v8468 = vadd.f32 %v8464, 1e-06
  %v8469 = vadd.f32 %v8465, 1e-06
  %v8470 = vrsqrt.pop %v8466
  %v8471 = vrsqrt.pop %v8467
  %v8472 = vrsqrt.pop %v8468
  %v8473 = vrsqrt.pop %v8469
  %v8474 = vmul.f32 %v8434, %v8470
  %v8475 = vmul.f32 %v8435, %v8470
  %v8476 = vmul.f32 %v8436, %v8471
  %v8477 = vmul.f32 %v8437, %v8471
  %v8478 = vmul.f32 %v8438, %v8472
  %v8479 = vmul.f32 %v8439, %v8472
  %v8480 = vmul.f32 %v8440, %v8473
  %v8481 = vmul.f32 %v8441, %v8473
  %v8483 = vlaneseq
  %v8484 = vshrl.u32 %v8483, 7
  %v8485 = vsub.s32 0, %v8484
  %v8486 = vrot.slane %v8416, %v8485
  %v8487 = vlaneseq
  %v8488 = vshrl.u32 %v8487, 7
  %v8489 = vsub.s32 1, %v8488
  %v8490 = vrot.slane %v8416, %v8489
  %v8493 = vmul.f32 %v8474, %v8486
  %v8494 = vmul.f32 %v8475, %v8490
  %v8495 = vmul.f32 %v8476, %v8486
  %v8496 = vmul.f32 %v8477, %v8490
  %v8497 = vmul.f32 %v8478, %v8486
  %v8498 = vmul.f32 %v8479, %v8490
  %v8499 = vmul.f32 %v8480, %v8486
  %v8500 = vmul.f32 %v8481, %v8490
  %v8502 = vlaneseq
  %v8503 = vshrl.u32 %v8502, 7
  %v8504 = vsub.s32 0, %v8503
  %v8505 = vrot.slane %v8417, %v8504
  %v8506 = vlaneseq
  %v8507 = vshrl.u32 %v8506, 7
  %v8508 = vsub.s32 1, %v8507
  %v8509 = vrot.slane %v8417, %v8508
  %v8512 = vadd.f32 %v8493, %v8505
  %v8513 = vadd.f32 %v8494, %v8509
  %v8514 = vadd.f32 %v8495, %v8505
  %v8515 = vadd.f32 %v8496, %v8509
  %v8516 = vadd.f32 %v8497, %v8505
  %v8517 = vadd.f32 %v8498, %v8509
  %v8518 = vadd.f32 %v8499, %v8505
  %v8519 = vadd.f32 %v8500, %v8509
  %v8520 = vld [vmem:[%s18] sm:$0xff]
  %v8521 = vld [vmem:[%s18 + $0x8] sm:$0xff]
  %v8522 = vld [vmem:[%s18 + $0x10] sm:$0xff]
  %v8523 = vld [vmem:[%s18 + $0x18] sm:$0xff]
  %v8524 = vld [vmem:[%s18 + $0x20] sm:$0xff]
  %v8525 = vld [vmem:[%s18 + $0x28] sm:$0xff]
  %v8526 = vld [vmem:[%s18 + $0x30] sm:$0xff]
  %v8527 = vld [vmem:[%s18 + $0x38] sm:$0xff]
  %v8528 = vld [vmem:[%s18 + $0x40] sm:$0xff]
  %v8529 = vld [vmem:[%s18 + $0x48] sm:$0xff]
  %v8530 = vld [vmem:[%s18 + $0x50] sm:$0xff]
  %v8531 = vld [vmem:[%s18 + $0x58] sm:$0xff]
  %v8532 = vld [vmem:[%s18 + $0x60] sm:$0xff]
  %v8533 = vld [vmem:[%s18 + $0x68] sm:$0xff]
  %v8534 = vld [vmem:[%s18 + $0x70] sm:$0xff]
  %v8535 = vld [vmem:[%s18 + $0x78] sm:$0xff]
  %v8536 = vld [vmem:[%s18 + $0x80] sm:$0xff]
  %v8537 = vld [vmem:[%s18 + $0x88] sm:$0xff]
  %v8538 = vld [vmem:[%s18 + $0x90] sm:$0xff]
  %v8539 = vld [vmem:[%s18 + $0x98] sm:$0xff]
  %v8540 = vld [vmem:[%s18 + $0xa0] sm:$0xff]
  %v8541 = vld [vmem:[%s18 + $0xa8] sm:$0xff]
  %v8542 = vld [vmem:[%s18 + $0xb0] sm:$0xff]
  %v8543 = vld [vmem:[%s18 + $0xb8] sm:$0xff]
  %v8544 = vld [vmem:[%s18 + $0xc0] sm:$0xff]
  %v8545 = vld [vmem:[%s18 + $0xc8] sm:$0xff]
  %v8546 = vld [vmem:[%s18 + $0xd0] sm:$0xff]
  %v8547 = vld [vmem:[%s18 + $0xd8] sm:$0xff]
  %v8548 = vld [vmem:[%s18 + $0xe0] sm:$0xff]
  %v8549 = vld [vmem:[%s18 + $0xe8] sm:$0xff]
  %v8550 = vld [vmem:[%s18 + $0xf0] sm:$0xff]
  %v8551 = vld [vmem:[%s18 + $0xf8] sm:$0xff]
  %v8552 = vld [vmem:[%s19] sm:$0x3]
  %v8553 = vpack.c.bf16 %v8514, %v8512
  %v8554 = vpack.c.bf16 %v8515, %v8513
  %v8555 = vpack.c.bf16 %v8518, %v8516
  %v8556 = vpack.c.bf16 %v8519, %v8517
  %v8558 = vlaneseq
  %v8559 = vshrl.u32 %v8558, 7
  %v8560 = vsub.s32 0, %v8559
  %v8561 = vrot.slane %v8552, %v8560
  %v8562 = vlaneseq
  %v8563 = vshrl.u32 %v8562, 7
  %v8564 = vsub.s32 1, %v8563
  %v8565 = vrot.slane %v8552, %v8564
  %v8600 = vunpack.c.l.b16 %v8520
  %v8601 = vunpack.c.h.b16 %v8520
  %v8602 = vunpack.c.l.b16 %v8521
  %v8603 = vunpack.c.h.b16 %v8521
  %v8604 = vunpack.c.l.b16 %v8522
  %v8605 = vunpack.c.h.b16 %v8522
  %v8606 = vunpack.c.l.b16 %v8523
  %v8607 = vunpack.c.h.b16 %v8523
  %v8608 = vunpack.c.l.b16 %v8524
  %v8609 = vunpack.c.h.b16 %v8524
  %v8610 = vunpack.c.l.b16 %v8525
  %v8611 = vunpack.c.h.b16 %v8525
  %v8612 = vunpack.c.l.b16 %v8526
  %v8613 = vunpack.c.h.b16 %v8526
  %v8614 = vunpack.c.l.b16 %v8527
  %v8615 = vunpack.c.h.b16 %v8527
  %v8616 = vunpack.c.l.b16 %v8528
  %v8617 = vunpack.c.h.b16 %v8528
  %v8618 = vunpack.c.l.b16 %v8529
  %v8619 = vunpack.c.h.b16 %v8529
  %v8620 = vunpack.c.l.b16 %v8530
  %v8621 = vunpack.c.h.b16 %v8530
  %v8622 = vunpack.c.l.b16 %v8531
  %v8623 = vunpack.c.h.b16 %v8531
  %v8624 = vunpack.c.l.b16 %v8532
  %v8625 = vunpack.c.h.b16 %v8532
  %v8626 = vunpack.c.l.b16 %v8533
  %v8627 = vunpack.c.h.b16 %v8533
  %v8628 = vunpack.c.l.b16 %v8534
  %v8629 = vunpack.c.h.b16 %v8534
  %v8630 = vunpack.c.l.b16 %v8535
  %v8631 = vunpack.c.h.b16 %v8535
  %v8632 = vunpack.c.l.b16 %v8536
  %v8633 = vunpack.c.h.b16 %v8536
  %v8634 = vunpack.c.l.b16 %v8537
  %v8635 = vunpack.c.h.b16 %v8537
  %v8636 = vunpack.c.l.b16 %v8538
  %v8637 = vunpack.c.h.b16 %v8538
  %v8638 = vunpack.c.l.b16 %v8539
  %v8639 = vunpack.c.h.b16 %v8539
  %v8640 = vunpack.c.l.b16 %v8540
  %v8641 = vunpack.c.h.b16 %v8540
  %v8642 = vunpack.c.l.b16 %v8541
  %v8643 = vunpack.c.h.b16 %v8541
  %v8644 = vunpack.c.l.b16 %v8542
  %v8645 = vunpack.c.h.b16 %v8542
  %v8646 = vunpack.c.l.b16 %v8543
  %v8647 = vunpack.c.h.b16 %v8543
  %v8648 = vunpack.c.l.b16 %v8544
  %v8649 = vunpack.c.h.b16 %v8544
  %v8650 = vunpack.c.l.b16 %v8545
  %v8651 = vunpack.c.h.b16 %v8545
  %v8652 = vunpack.c.l.b16 %v8546
  %v8653 = vunpack.c.h.b16 %v8546
  %v8654 = vunpack.c.l.b16 %v8547
  %v8655 = vunpack.c.h.b16 %v8547
  %v8656 = vunpack.c.l.b16 %v8548
  %v8657 = vunpack.c.h.b16 %v8548
  %v8658 = vunpack.c.l.b16 %v8549
  %v8659 = vunpack.c.h.b16 %v8549
  %v8660 = vunpack.c.l.b16 %v8550
  %v8661 = vunpack.c.h.b16 %v8550
  %v8662 = vunpack.c.l.b16 %v8551
  %v8663 = vunpack.c.h.b16 %v8551
  %v8664 = vpack.c.b16 %v8602, %v8600
  %v8665 = vpack.c.b16 %v8603, %v8601
  %v8666 = vpack.c.b16 %v8606, %v8604
  %v8667 = vpack.c.b16 %v8607, %v8605
  %v8668 = vpack.c.b16 %v8610, %v8608
  %v8669 = vpack.c.b16 %v8611, %v8609
  %v8670 = vpack.c.b16 %v8614, %v8612
  %v8671 = vpack.c.b16 %v8615, %v8613
  %v8672 = vpack.c.b16 %v8618, %v8616
  %v8673 = vpack.c.b16 %v8619, %v8617
  %v8674 = vpack.c.b16 %v8622, %v8620
  %v8675 = vpack.c.b16 %v8623, %v8621
  %v8676 = vpack.c.b16 %v8626, %v8624
  %v8677 = vpack.c.b16 %v8627, %v8625
  %v8678 = vpack.c.b16 %v8630, %v8628
  %v8679 = vpack.c.b16 %v8631, %v8629
  %v8680 = vpack.c.b16 %v8634, %v8632
  %v8681 = vpack.c.b16 %v8635, %v8633
  %v8682 = vpack.c.b16 %v8638, %v8636
  %v8683 = vpack.c.b16 %v8639, %v8637
  %v8684 = vpack.c.b16 %v8642, %v8640
  %v8685 = vpack.c.b16 %v8643, %v8641
  %v8686 = vpack.c.b16 %v8646, %v8644
  %v8687 = vpack.c.b16 %v8647, %v8645
  %v8688 = vpack.c.b16 %v8650, %v8648
  %v8689 = vpack.c.b16 %v8651, %v8649
  %v8690 = vpack.c.b16 %v8654, %v8652
  %v8691 = vpack.c.b16 %v8655, %v8653
  %v8692 = vpack.c.b16 %v8658, %v8656
  %v8693 = vpack.c.b16 %v8659, %v8657
  %v8694 = vpack.c.b16 %v8662, %v8660
  %v8695 = vpack.c.b16 %v8663, %v8661
  %8728 = vmatprep.subr.bf16.mxu0 %v8665
  %8729 = vmatpush1.bf16.msra.mxu0 %v8664
  %8730 = vmatprep.subr.bf16.mxu0 %v8667
  %8731 = vmatpush1.bf16.msra.mxu0 %v8666
  %8732 = vmatprep.subr.bf16.mxu0 %v8669
  %8733 = vmatpush1.bf16.msra.mxu0 %v8668
  %8734 = vmatprep.subr.bf16.mxu0 %v8671
  %8735 = vmatpush1.bf16.msra.mxu0 %v8670
  %8736 = vmatprep.subr.bf16.mxu0 %v8673
  %8737 = vmatpush1.bf16.msra.mxu0 %v8672
  %8738 = vmatprep.subr.bf16.mxu0 %v8675
  %8739 = vmatpush1.bf16.msra.mxu0 %v8674
  %8740 = vmatprep.subr.bf16.mxu0 %v8677
  %8741 = vmatpush1.bf16.msra.mxu0 %v8676
  %8742 = vmatprep.subr.bf16.mxu0 %v8679
  %8743 = vmatpush1.bf16.msra.mxu0 %v8678
  %8744 = vmatprep.subr.bf16.mxu0 %v8681
  %8745 = vmatpush1.bf16.msra.mxu0 %v8680
  %8746 = vmatprep.subr.bf16.mxu0 %v8683
  %8747 = vmatpush1.bf16.msra.mxu0 %v8682
  %8748 = vmatprep.subr.bf16.mxu0 %v8685
  %8749 = vmatpush1.bf16.msra.mxu0 %v8684
  %8750 = vmatprep.subr.bf16.mxu0 %v8687
  %8751 = vmatpush1.bf16.msra.mxu0 %v8686
  %8752 = vmatprep.subr.bf16.mxu0 %v8689
  %8753 = vmatpush1.bf16.msra.mxu0 %v8688
  %8754 = vmatprep.subr.bf16.mxu0 %v8691
  %8755 = vmatpush1.bf16.msra.mxu0 %v8690
  %8756 = vmatprep.subr.bf16.mxu0 %v8693
  %8757 = vmatpush1.bf16.msra.mxu0 %v8692
  %8758 = vmatprep.subr.bf16.mxu0 %v8695
  %8759 = vmatpush1.bf16.msra.mxu0 %v8694
  %8760 = vmatprep.mubr.bf16.mxu0 %v8554
  %8761 = vmatmul.mubr.bf16.gmra.mrb[0].mxu0 %v8553
  %v8762 = vpop.f32.mrb[0].mxu0
  %v8763 = vadd.f32 %v8561, %v8762
  %v8764 = vpop.f32.mrb[0].mxu0
  %v8765 = vadd.f32 %v8565, %v8764
  %v8766 = vpop.f32.mrb[0].mxu0
  %v8767 = vadd.f32 %v8561, %v8766
  %v8768 = vpop.f32.mrb[0].mxu0
  %v8769 = vadd.f32 %v8565, %v8768
  %8770 = vmatprep.mubr.bf16.mxu0 %v8556
  %8771 = vmatmul.mubr.bf16.gmra.mrb[0].mxu0 %v8555
  %v8772 = vpop.f32.mrb[0].mxu0
  %v8773 = vadd.f32 %v8561, %v8772
  %v8774 = vpop.f32.mrb[0].mxu0
  %v8775 = vadd.f32 %v8565, %v8774
  %v8776 = vpop.f32.mrb[0].mxu0
  %v8777 = vadd.f32 %v8561, %v8776
  %v8778 = vpop.f32.mrb[0].mxu0
  %v8779 = vadd.f32 %v8565, %v8778
  %8780 = vdwg.mxu0
  %v8781 = vmax.f32 %v8763, 0.0
  %v8782 = vmax.f32 %v8765, 0.0
  %v8783 = vmax.f32 %v8767, 0.0
  %v8784 = vmax.f32 %v8769, 0.0
  %v8785 = vmax.f32 %v8773, 0.0
  %v8786 = vmax.f32 %v8775, 0.0
  %v8787 = vmax.f32 %v8777, 0.0
  %v8788 = vmax.f32 %v8779, 0.0
  %v8789 = vld [vmem:[%s20] sm:$0xff]
  %v8790 = vld [vmem:[%s20 + $0x8] sm:$0xff]
  %v8791 = vld [vmem:[%s20 + $0x10] sm:$0xff]
  %v8792 = vld [vmem:[%s20 + $0x18] sm:$0xff]
  %v8793 = vld [vmem:[%s20 + $0x20] sm:$0xff]
  %v8794 = vld [vmem:[%s20 + $0x28] sm:$0xff]
  %v8795 = vld [vmem:[%s20 + $0x30] sm:$0xff]
  %v8796 = vld [vmem:[%s20 + $0x38] sm:$0xff]
  %v8797 = vld [vmem:[%s20 + $0x40] sm:$0xff]
  %v8798 = vld [vmem:[%s20 + $0x48] sm:$0xff]
  %v8799 = vld [vmem:[%s20 + $0x50] sm:$0xff]
  %v8800 = vld [vmem:[%s20 + $0x58] sm:$0xff]
  %v8801 = vld [vmem:[%s20 + $0x60] sm:$0xff]
  %v8802 = vld [vmem:[%s20 + $0x68] sm:$0xff]
  %v8803 = vld [vmem:[%s20 + $0x70] sm:$0xff]
  %v8804 = vld [vmem:[%s20 + $0x78] sm:$0xff]
  %v8805 = vld [vmem:[%s20 + $0x80] sm:$0xff]
  %v8806 = vld [vmem:[%s20 + $0x88] sm:$0xff]
  %v8807 = vld [vmem:[%s20 + $0x90] sm:$0xff]
  %v8808 = vld [vmem:[%s20 + $0x98] sm:$0xff]
  %v8809 = vld [vmem:[%s20 + $0xa0] sm:$0xff]
  %v8810 = vld [vmem:[%s20 + $0xa8] sm:$0xff]
  %v8811 = vld [vmem:[%s20 + $0xb0] sm:$0xff]
  %v8812 = vld [vmem:[%s20 + $0xb8] sm:$0xff]
  %v8813 = vld [vmem:[%s20 + $0xc0] sm:$0xff]
  %v8814 = vld [vmem:[%s20 + $0xc8] sm:$0xff]
  %v8815 = vld [vmem:[%s20 + $0xd0] sm:$0xff]
  %v8816 = vld [vmem:[%s20 + $0xd8] sm:$0xff]
  %v8817 = vld [vmem:[%s20 + $0xe0] sm:$0xff]
  %v8818 = vld [vmem:[%s20 + $0xe8] sm:$0xff]
  %v8819 = vld [vmem:[%s20 + $0xf0] sm:$0xff]
  %v8820 = vld [vmem:[%s20 + $0xf8] sm:$0xff]
  %v8821 = vld [vmem:[%s21] sm:$0x3]
  %v8822 = vpack.c.bf16 %v8783, %v8781
  %v8823 = vpack.c.bf16 %v8784, %v8782
  %v8824 = vpack.c.bf16 %v8787, %v8785
  %v8825 = vpack.c.bf16 %v8788, %v8786
  %v8827 = vlaneseq
  %v8828 = vshrl.u32 %v8827, 7
  %v8829 = vsub.s32 0, %v8828
  %v8830 = vrot.slane %v8821, %v8829
  %v8831 = vlaneseq
  %v8832 = vshrl.u32 %v8831, 7
  %v8833 = vsub.s32 1, %v8832
  %v8834 = vrot.slane %v8821, %v8833
  %v8869 = vunpack.c.l.b16 %v8789
  %v8870 = vunpack.c.h.b16 %v8789
  %v8871 = vunpack.c.l.b16 %v8790
  %v8872 = vunpack.c.h.b16 %v8790
  %v8873 = vunpack.c.l.b16 %v8791
  %v8874 = vunpack.c.h.b16 %v8791
  %v8875 = vunpack.c.l.b16 %v8792
  %v8876 = vunpack.c.h.b16 %v8792
  %v8877 = vunpack.c.l.b16 %v8793
  %v8878 = vunpack.c.h.b16 %v8793
  %v8879 = vunpack.c.l.b16 %v8794
  %v8880 = vunpack.c.h.b16 %v8794
  %v8881 = vunpack.c.l.b16 %v8795
  %v8882 = vunpack.c.h.b16 %v8795
  %v8883 = vunpack.c.l.b16 %v8796
  %v8884 = vunpack.c.h.b16 %v8796
  %v8885 = vunpack.c.l.b16 %v8797
  %v8886 = vunpack.c.h.b16 %v8797
  %v8887 = vunpack.c.l.b16 %v8798
  %v8888 = vunpack.c.h.b16 %v8798
  %v8889 = vunpack.c.l.b16 %v8799
  %v8890 = vunpack.c.h.b16 %v8799
  %v8891 = vunpack.c.l.b16 %v8800
  %v8892 = vunpack.c.h.b16 %v8800
  %v8893 = vunpack.c.l.b16 %v8801
  %v8894 = vunpack.c.h.b16 %v8801
  %v8895 = vunpack.c.l.b16 %v8802
  %v8896 = vunpack.c.h.b16 %v8802
  %v8897 = vunpack.c.l.b16 %v8803
  %v8898 = vunpack.c.h.b16 %v8803
  %v8899 = vunpack.c.l.b16 %v8804
  %v8900 = vunpack.c.h.b16 %v8804
  %v8901 = vunpack.c.l.b16 %v8805
  %v8902 = vunpack.c.h.b16 %v8805
  %v8903 = vunpack.c.l.b16 %v8806
  %v8904 = vunpack.c.h.b16 %v8806
  %v8905 = vunpack.c.l.b16 %v8807
  %v8906 = vunpack.c.h.b16 %v8807
  %v8907 = vunpack.c.l.b16 %v8808
  %v8908 = vunpack.c.h.b16 %v8808
  %v8909 = vunpack.c.l.b16 %v8809
  %v8910 = vunpack.c.h.b16 %v8809
  %v8911 = vunpack.c.l.b16 %v8810
  %v8912 = vunpack.c.h.b16 %v8810
  %v8913 = vunpack.c.l.b16 %v8811
  %v8914 = vunpack.c.h.b16 %v8811
  %v8915 = vunpack.c.l.b16 %v8812
  %v8916 = vunpack.c.h.b16 %v8812
  %v8917 = vunpack.c.l.b16 %v8813
  %v8918 = vunpack.c.h.b16 %v8813
  %v8919 = vunpack.c.l.b16 %v8814
  %v8920 = vunpack.c.h.b16 %v8814
  %v8921 = vunpack.c.l.b16 %v8815
  %v8922 = vunpack.c.h.b16 %v8815
  %v8923 = vunpack.c.l.b16 %v8816
  %v8924 = vunpack.c.h.b16 %v8816
  %v8925 = vunpack.c.l.b16 %v8817
  %v8926 = vunpack.c.h.b16 %v8817
  %v8927 = vunpack.c.l.b16 %v8818
  %v8928 = vunpack.c.h.b16 %v8818
  %v8929 = vunpack.c.l.b16 %v8819
  %v8930 = vunpack.c.h.b16 %v8819
  %v8931 = vunpack.c.l.b16 %v8820
  %v8932 = vunpack.c.h.b16 %v8820
  %v8933 = vpack.c.b16 %v8871, %v8869
  %v8934 = vpack.c.b16 %v8872, %v8870
  %v8935 = vpack.c.b16 %v8875, %v8873
  %v8936 = vpack.c.b16 %v8876, %v8874
  %v8937 = vpack.c.b16 %v8879, %v8877
  %v8938 = vpack.c.b16 %v8880, %v8878
  %v8939 = vpack.c.b16 %v8883, %v8881
  %v8940 = vpack.c.b16 %v8884, %v8882
  %v8941 = vpack.c.b16 %v8887, %v8885
  %v8942 = vpack.c.b16 %v8888, %v8886
  %v8943 = vpack.c.b16 %v8891, %v8889
  %v8944 = vpack.c.b16 %v8892, %v8890
  %v8945 = vpack.c.b16 %v8895, %v8893
  %v8946 = vpack.c.b16 %v8896, %v8894
  %v8947 = vpack.c.b16 %v8899, %v8897
  %v8948 = vpack.c.b16 %v8900, %v8898
  %v8949 = vpack.c.b16 %v8903, %v8901
  %v8950 = vpack.c.b16 %v8904, %v8902
  %v8951 = vpack.c.b16 %v8907, %v8905
  %v8952 = vpack.c.b16 %v8908, %v8906
  %v8953 = vpack.c.b16 %v8911, %v8909
  %v8954 = vpack.c.b16 %v8912, %v8910
  %v8955 = vpack.c.b16 %v8915, %v8913
  %v8956 = vpack.c.b16 %v8916, %v8914
  %v8957 = vpack.c.b16 %v8919, %v8917
  %v8958 = vpack.c.b16 %v8920, %v8918
  %v8959 = vpack.c.b16 %v8923, %v8921
  %v8960 = vpack.c.b16 %v8924, %v8922
  %v8961 = vpack.c.b16 %v8927, %v8925
  %v8962 = vpack.c.b16 %v8928, %v8926
  %v8963 = vpack.c.b16 %v8931, %v8929
  %v8964 = vpack.c.b16 %v8932, %v8930
  %8997 = vmatprep.subr.bf16.mxu0 %v8934
  %8998 = vmatpush1.bf16.msra.mxu0 %v8933
  %8999 = vmatprep.subr.bf16.mxu0 %v8936
  %9000 = vmatpush1.bf16.msra.mxu0 %v8935
  %9001 = vmatprep.subr.bf16.mxu0 %v8938
  %9002 = vmatpush1.bf16.msra.mxu0 %v8937
  %9003 = vmatprep.subr.bf16.mxu0 %v8940
  %9004 = vmatpush1.bf16.msra.mxu0 %v8939
  %9005 = vmatprep.subr.bf16.mxu0 %v8942
  %9006 = vmatpush1.bf16.msra.mxu0 %v8941
  %9007 = vmatprep.subr.bf16.mxu0 %v8944
  %9008 = vmatpush1.bf16.msra.mxu0 %v8943
  %9009 = vmatprep.subr.bf16.mxu0 %v8946
  %9010 = vmatpush1.bf16.msra.mxu0 %v8945
  %9011 = vmatprep.subr.bf16.mxu0 %v8948
  %9012 = vmatpush1.bf16.msra.mxu0 %v8947
  %9013 = vmatprep.subr.bf16.mxu0 %v8950
  %9014 = vmatpush1.bf16.msra.mxu0 %v8949
  %9015 = vmatprep.subr.bf16.mxu0 %v8952
  %9016 = vmatpush1.bf16.msra.mxu0 %v8951
  %9017 = vmatprep.subr.bf16.mxu0 %v8954
  %9018 = vmatpush1.bf16.msra.mxu0 %v8953
  %9019 = vmatprep.subr.bf16.mxu0 %v8956
  %9020 = vmatpush1.bf16.msra.mxu0 %v8955
  %9021 = vmatprep.subr.bf16.mxu0 %v8958
  %9022 = vmatpush1.bf16.msra.mxu0 %v8957
  %9023 = vmatprep.subr.bf16.mxu0 %v8960
  %9024 = vmatpush1.bf16.msra.mxu0 %v8959
  %9025 = vmatprep.subr.bf16.mxu0 %v8962
  %9026 = vmatpush1.bf16.msra.mxu0 %v8961
  %9027 = vmatprep.subr.bf16.mxu0 %v8964
  %9028 = vmatpush1.bf16.msra.mxu0 %v8963
  %9029 = vmatprep.mubr.bf16.mxu0 %v8823
  %9030 = vmatmul.mubr.bf16.gmra.mrb[0].mxu0 %v8822
  %v9031 = vpop.f32.mrb[0].mxu0
  %v9032 = vadd.f32 %v8830, %v9031
  %v9033 = vpop.f32.mrb[0].mxu0
  %v9034 = vadd.f32 %v8834, %v9033
  %v9035 = vpop.f32.mrb[0].mxu0
  %v9036 = vadd.f32 %v8830, %v9035
  %v9037 = vpop.f32.mrb[0].mxu0
  %v9038 = vadd.f32 %v8834, %v9037
  %9039 = vmatprep.mubr.bf16.mxu0 %v8825
  %9040 = vmatmul.mubr.bf16.gmra.mrb[0].mxu0 %v8824
  %v9041 = vpop.f32.mrb[0].mxu0
  %v9042 = vadd.f32 %v8830, %v9041
  %v9043 = vpop.f32.mrb[0].mxu0
  %v9044 = vadd.f32 %v8834, %v9043
  %v9045 = vpop.f32.mrb[0].mxu0
  %v9046 = vadd.f32 %v8830, %v9045
  %v9047 = vpop.f32.mrb[0].mxu0
  %v9048 = vadd.f32 %v8834, %v9047
  %9049 = vdwg.mxu0
  %9050 = vst [vmem:[%s22] sm:$0xff] %v9032
  %9051 = vst [vmem:[%s22 + $0x8] sm:$0xff] %v9034
  %9052 = vst [vmem:[%s22 + $0x10] sm:$0xff] %v9036
  %9053 = vst [vmem:[%s22 + $0x18] sm:$0xff] %v9038
  %9054 = vst [vmem:[%s22 + $0x20] sm:$0xff] %v9042
  %9055 = vst [vmem:[%s22 + $0x28] sm:$0xff] %v9044
  %9056 = vst [vmem:[%s22 + $0x30] sm:$0xff] %v9046
  %9057 = vst [vmem:[%s22 + $0x38] sm:$0xff] %v9048
  // Predicated region
  $region90: #{radio_backbone_forward.1} parent=0 // pred_check
    _
  $region91: #{radio_backbone_forward.1} parent=0 // pred_check_branch
    %9059 = sbr.rel (0) target = $region93
  $region92: #{radio_backbone_forward.1} parent=0 // pred_region
    _
  $region93: #{radio_backbone_forward.1} parent=0 // pred_fallthru
    _
  // Predicated region
  $region94: #{radio_backbone_forward.1} parent=0 // pred_check
    _
  $region95: #{radio_backbone_forward.1} parent=0 // pred_check_branch
    %9061 = sbr.rel (0) target = $region97
  $region96: #{radio_backbone_forward.1} parent=0 // pred_region
    _
  $region97: #{radio_backbone_forward.1} parent=0 // pred_fallthru
    _

</llo_original>
